<compile_context>
chip_gen: v5e
topology: v5e:2x2
jax: 0.10.0
libtpu: 0.0.40
codegen_flags: <defaults>
</compile_context>

<pallas_src>
from functools import partial

import jax
import jax.numpy as jnp
import numpy as np
from jax.experimental import pallas as pl
from jax.experimental.pallas import tpu as pltpu


def _basic_block_kernel(x_ref, w1_ref, b1_ref, w2_ref, b2_ref, out_ref, pad_ref,
                        *, H, W):
    """One batch image per grid step.  Both 3x3 convs run as 3 MXU dots (K=3*CP)."""
    CP = out_ref.shape[-1]            # lane-padded channel count (multiple of 128)
    WP = W + 2                        # padded row width
    ROWS = H * WP                     # flattened interior rows (incl. 2 pad cols/row)
    FLAT = pad_ref.shape[0]           # (H + 2) * WP
    HEAD = W + 3                      # rows [0, HEAD) of pad_ref: top halo (zero)
    TAIL = (H + 1) * WP - 1           # rows [TAIL, FLAT): bottom halo (zero)

    # Zero only the halo rows (cheap, per-step => shard-safe); interiors are
    # fully overwritten below.
    pad_ref[pl.ds(0, HEAD), :] = jnp.zeros((HEAD, 3 * CP), pad_ref.dtype)
    pad_ref[pl.ds(TAIL, FLAT - TAIL), :] = jnp.zeros((FLAT - TAIL, 3 * CP), pad_ref.dtype)

    # Mask marking the 2 pad columns inside the flattened interior layout.
    col = jax.lax.broadcasted_iota(jnp.int32, (ROWS, 1), 0) % WP
    keep = col < W

    def stage(flat_f32):
        # Write the flattened padded image at 3 lane offsets, shifted by dx,
        # so lane block dx of pad_ref holds padflat[row + dx].  Then each dy's
        # LHS slab is one contiguous (ROWS, 3*CP) slice (K = 3*CP per dot).
        v = flat_f32.astype(pad_ref.dtype)
        for dx in range(3):
            pad_ref[pl.ds(W + 3 - dx, ROWS), pl.ds(dx * CP, CP)] = v

    def conv3x3(w_ref):
        # 3x3 SAME conv as 3 accumulating MXU dots (one per dy), K = 3*CP.
        acc = jnp.dot(pad_ref[pl.ds(0, ROWS), :], w_ref[0],
                      preferred_element_type=jnp.float32)
        for dy in (1, 2):
            acc = acc + jnp.dot(pad_ref[pl.ds(dy * WP, ROWS), :], w_ref[dy],
                                preferred_element_type=jnp.float32)
        return acc

    # ---- conv1 (BN1 scale folded into w1) + bias + ReLU --------------------
    stage(x_ref[0])
    h1 = jnp.where(keep, jnp.maximum(conv3x3(w1_ref) + b1_ref[...], 0.0), 0.0)

    # ---- conv2 (BN2 scale folded into w2) + bias + residual + ReLU ---------
    # h1's pad columns were zeroed above so they act as column halos for conv2.
    stage(h1)
    h2 = conv3x3(w2_ref) + b2_ref[...] + x_ref[0]     # residual in f32
    out_ref[0] = jnp.maximum(h2, 0.0)                 # pad cols/channels stripped host-side


def basic_block_forward(x_nchw, params):
    """x_nchw: (N, C, H, W) float32 with C == planes. Returns NCHW float32."""
    w1, s1, b1, w2, s2, b2 = params
    N, Cin, H, W = x_nchw.shape
    P = w1.shape[-1]
    assert Cin == P, "stride=1 / downsample=None requires inplanes == planes"

    LANE = 128
    CP = ((P + LANE - 1) // LANE) * LANE
    WP = W + 2
    ROWS = H * WP
    FLAT = (H + 2) * WP

    # Fold BN scale into conv weights, zero-pad channels to CP, reshape each dy
    # to a (3*CP, CP) MXU RHS matching the 3-lane-block LHS layout.
    def prep_w(w_hwio, scale):
        wf = (w_hwio * scale.reshape(1, 1, 1, P)).astype(jnp.float32)
        wp = jnp.zeros((3, 3, CP, CP), jnp.float32).at[:, :, :P, :P].set(wf)
        return wp.reshape(3, 3 * CP, CP).astype(jnp.bfloat16)

    def prep_b(bias):
        return jnp.zeros((1, CP), jnp.float32).at[0, :P].set(bias.astype(jnp.float32))

    w1f, w2f = prep_w(w1, s1), prep_w(w2, s2)
    b1f, b2f = prep_b(b1), prep_b(b2)

    # NCHW -> NHWC, pad channels to CP, append the 2 zero pad columns, flatten
    # spatial to the (ROWS, CP) layout the kernel computes in.
    x_nhwc = jnp.transpose(x_nchw, (0, 2, 3, 1)).astype(jnp.float32)
    x_flat = jnp.pad(x_nhwc, ((0, 0), (0, 0), (0, 2), (0, CP - P))).reshape(N, ROWS, CP)

    # VMEM budget from the actual footprint, clamped to physical capacity.
    act = ROWS * CP * 4
    vmem_bytes = (2 * 2 * act                        # in/out activation blocks (2x buffered)
                  + 2 * 2 * 3 * (3 * CP) * CP * 2    # two bf16 weight tensors (2x buffered)
                  + 4 * 2 * CP * 4                   # biases
                  + FLAT * 3 * CP * 2                # bf16 staging scratch
                  + 8 * act                          # f32 intermediates headroom
                  + (2 << 20))
    try:
        vmem_cap = pltpu.get_tpu_info().vmem_capacity_bytes
    except Exception:
        vmem_cap = 64 << 20
    vmem_bytes = int(min(max(vmem_bytes, 8 << 20), vmem_cap - (4 << 20)))

    full = lambda shape: pl.BlockSpec(shape, lambda n: (0,) * len(shape))

    out_flat = pl.pallas_call(
        partial(_basic_block_kernel, H=H, W=W),
        out_shape=jax.ShapeDtypeStruct((N, ROWS, CP), jnp.float32),
        grid_spec=pltpu.PrefetchScalarGridSpec(
            num_scalar_prefetch=0,
            grid=(N,),
            in_specs=[
                pl.BlockSpec((1, ROWS, CP), lambda n: (n, 0, 0)),
                full((3, 3 * CP, CP)), full((1, CP)),
                full((3, 3 * CP, CP)), full((1, CP)),
            ],
            out_specs=pl.BlockSpec((1, ROWS, CP), lambda n: (n, 0, 0)),
            scratch_shapes=[pltpu.VMEM((FLAT, 3 * CP), jnp.bfloat16)],
        ),
        compiler_params=pltpu.CompilerParams(
            dimension_semantics=("parallel",),
            vmem_limit_bytes=vmem_bytes),
    )(x_flat, w1f, b1f, w2f, b2f)

    # Strip the 2 pad columns and the lane-padding channels host-side.
    out = out_flat.reshape(N, H, WP, CP)[:, :, :W, :P]
    return jnp.transpose(out, (0, 3, 1, 2))


def make_params(key, inplanes, planes, eps=1e-5):
    """Deterministic synthetic weights; BN as unfolded (scale, bias) per conv."""
    assert inplanes == planes, "BasicBlock with stride=1 / downsample=None"
    keys = jax.random.split(key, 6)

    def fold_bn(kg, kb, c):
        gamma = 1.0 + 0.1 * jax.random.normal(kg, (c,), jnp.float32)
        beta = 0.1 * jax.random.normal(kb, (c,), jnp.float32)
        running_mean = jnp.zeros((c,), jnp.float32)
        running_var = jnp.ones((c,), jnp.float32)
        scale = gamma / jnp.sqrt(running_var + eps)
        bias = beta - running_mean * scale
        return scale, bias

    # PyTorch conv weight layout (out, in, kh, kw) -> HWIO for the kernel/ref.
    w1_pt = 0.1 * jax.random.normal(keys[0], (planes, inplanes, 3, 3), jnp.float32)
    w2_pt = 0.1 * jax.random.normal(keys[1], (planes, planes, 3, 3), jnp.float32)
    w1 = jnp.transpose(w1_pt, (2, 3, 1, 0))
    w2 = jnp.transpose(w2_pt, (2, 3, 1, 0))

    s1, b1 = fold_bn(keys[2], keys[3], planes)
    s2, b2 = fold_bn(keys[4], keys[5], planes)
    return (w1, s1, b1, w2, s2, b2)


def reference_forward(x_nchw, params):
    """Plain-JAX f32 reference (NHWC convs, unfolded BN) for correctness."""
    w1, s1, b1, w2, s2, b2 = params
    x = jnp.transpose(x_nchw, (0, 2, 3, 1))

    def conv(y, w_hwio):
        return jax.lax.conv_general_dilated(
            y, w_hwio, window_strides=(1, 1), padding="SAME",
            dimension_numbers=("NHWC", "HWIO", "NHWC"))

    h = jnp.maximum(conv(x, w1) * s1 + b1, 0.0)
    h = conv(h, w2) * s2 + b2
    h = jnp.maximum(h + x, 0.0)
    return jnp.transpose(h, (0, 3, 1, 2))


if __name__ == "__main__":
    # BasicBlock with stride=1, downsample=None => inplanes == planes.
    N, planes, H, W = 2, 4, 16, 16
    inplanes = planes

    key = jax.random.PRNGKey(0)
    kx, kp = jax.random.split(key)
    x = jax.random.normal(kx, (N, inplanes, H, W), jnp.float32)
    params = make_params(kp, inplanes, planes)

    out = jax.block_until_ready(basic_block_forward(x, params))
    ref = jax.block_until_ready(reference_forward(x, params))

    # bf16 MXU operands vs. f32 reference -> loose-ish tolerance.
    np.testing.assert_allclose(np.asarray(out), np.asarray(ref),
                               rtol=2e-2, atol=2e-2)
    print("KERNEL_OK")
</pallas_src>

<mosaic_0001>
module attributes {stable_mosaic.version = 11 : i64} {
  func.func @_basic_block_kernel(%arg0: i32, %arg1: memref<1x288x128xf32, #tpu.memory_space<vmem>>, %arg2: memref<3x384x128xbf16, #tpu.memory_space<vmem>>, %arg3: memref<1x128xf32, #tpu.memory_space<vmem>>, %arg4: memref<3x384x128xbf16, #tpu.memory_space<vmem>>, %arg5: memref<1x128xf32, #tpu.memory_space<vmem>>, %arg6: memref<1x288x128xf32, #tpu.memory_space<vmem>>, %arg7: memref<324x384xbf16, #tpu.memory_space<vmem>>) attributes {dimension_semantics = [#tpu.dimension_semantics<parallel>], iteration_bounds = array<i64: 2>, scalar_prefetch = 0 : i64, scratch_operands = 1 : i64, tpu.core_type = #tpu.core_type<tc>, window_params = [{transform_indices = @transform_0, window_bounds = array<i64: 1, 288, 128>}, {pipeline_mode = #tpu.pipeline_mode<synchronous>, transform_indices = @transform_1, window_bounds = array<i64: 3, 384, 128>}, {pipeline_mode = #tpu.pipeline_mode<synchronous>, transform_indices = @transform_2, window_bounds = array<i64: 1, 128>}, {pipeline_mode = #tpu.pipeline_mode<synchronous>, transform_indices = @transform_3, window_bounds = array<i64: 3, 384, 128>}, {pipeline_mode = #tpu.pipeline_mode<synchronous>, transform_indices = @transform_4, window_bounds = array<i64: 1, 128>}, {transform_indices = @transform_5, window_bounds = array<i64: 1, 288, 128>}]} {
    %cst = arith.constant 0.000000e+00 : bf16
    %0 = vector.broadcast %cst : bf16 to vector<19x384xbf16>
    %c0 = arith.constant 0 : index
    %c0_0 = arith.constant 0 : index
    %1 = vector.load %arg7[%c0, %c0_0] : memref<324x384xbf16, #tpu.memory_space<vmem>>, vector<19x384xbf16>
    tpu.vector_store %arg7[%c0, %c0_0], %0 {strides = array<i32>} : memref<324x384xbf16, #tpu.memory_space<vmem>>, vector<19x384xbf16>,
    %cst_1 = arith.constant 0.000000e+00 : bf16
    %2 = vector.broadcast %cst_1 : bf16 to vector<19x384xbf16>
    %c305 = arith.constant 305 : index
    %c0_2 = arith.constant 0 : index
    %3 = vector.load %arg7[%c305, %c0_2] : memref<324x384xbf16, #tpu.memory_space<vmem>>, vector<19x384xbf16>
    tpu.vector_store %arg7[%c305, %c0_2], %2 {strides = array<i32>} : memref<324x384xbf16, #tpu.memory_space<vmem>>, vector<19x384xbf16>,
    %4 = tpu.iota {dimensions = array<i32: 0>} : vector<288x1xi32>
    %c18_i32 = arith.constant 18 : i32
    %c0_i32 = arith.constant 0 : i32
    %5 = arith.cmpi eq, %c18_i32, %c0_i32 : i32
    %c1_i32 = arith.constant 1 : i32
    %6 = arith.select %5, %c1_i32, %c18_i32 : i32
    %7 = vector.broadcast %6 : i32 to vector<288x1xi32>
    %8 = arith.remsi %4, %7 : vector<288x1xi32>
    %c0_i32_3 = arith.constant 0 : i32
    %9 = vector.broadcast %c0_i32_3 : i32 to vector<288x1xi32>
    %10 = arith.cmpi ne, %8, %9 : vector<288x1xi32>
    %c0_i32_4 = arith.constant 0 : i32
    %11 = vector.broadcast %c0_i32_4 : i32 to vector<288x1xi32>
    %12 = arith.cmpi slt, %8, %11 : vector<288x1xi32>
    %c0_i32_5 = arith.constant 0 : i32
    %13 = arith.cmpi slt, %6, %c0_i32_5 : i32
    %14 = vector.broadcast %13 : i1 to vector<288x1xi1>
    %15 = vector.broadcast %14 : vector<288x1xi1> to vector<288x1xi1>
    %16 = arith.xori %12, %15 : vector<288x1xi1>
    %17 = arith.andi %16, %10 : vector<288x1xi1>
    %18 = vector.broadcast %6 : i32 to vector<288x1xi32>
    %19 = arith.addi %8, %18 : vector<288x1xi32>
    %20 = arith.select %17, %19, %8 : vector<288x1xi1>, vector<288x1xi32>
    %c16_i32 = arith.constant 16 : i32
    %21 = vector.broadcast %c16_i32 : i32 to vector<288x1xi32>
    %22 = arith.cmpi slt, %20, %21 : vector<288x1xi32>
    %c0_6 = arith.constant 0 : index
    %c0_7 = arith.constant 0 : index
    %c0_8 = arith.constant 0 : index
    %23 = vector.load %arg1[%c0_6, %c0_7, %c0_8] : memref<1x288x128xf32, #tpu.memory_space<vmem>>, vector<1x288x128xf32>
    %24 = vector.shape_cast %23 : vector<1x288x128xf32> to vector<288x128xf32>
    %25 = arith.truncf %24 : vector<288x128xf32> to vector<288x128xbf16>
    %c19 = arith.constant 19 : index
    %c0_9 = arith.constant 0 : index
    %26 = vector.load %arg7[%c19, %c0_9] : memref<324x384xbf16, #tpu.memory_space<vmem>>, vector<288x128xbf16>
    tpu.vector_store %arg7[%c19, %c0_9], %25 {strides = array<i32>} : memref<324x384xbf16, #tpu.memory_space<vmem>>, vector<288x128xbf16>,
    %c18 = arith.constant 18 : index
    %c128 = arith.constant 128 : index
    %27 = vector.load %arg7[%c18, %c128] : memref<324x384xbf16, #tpu.memory_space<vmem>>, vector<288x128xbf16>
    tpu.vector_store %arg7[%c18, %c128], %25 {strides = array<i32>} : memref<324x384xbf16, #tpu.memory_space<vmem>>, vector<288x128xbf16>,
    %c17 = arith.constant 17 : index
    %c256 = arith.constant 256 : index
    %28 = vector.load %arg7[%c17, %c256] : memref<324x384xbf16, #tpu.memory_space<vmem>>, vector<288x128xbf16>
    tpu.vector_store %arg7[%c17, %c256], %25 {strides = array<i32>} : memref<324x384xbf16, #tpu.memory_space<vmem>>, vector<288x128xbf16>,
    %c0_10 = arith.constant 0 : index
    %c0_11 = arith.constant 0 : index
    %29 = vector.load %arg7[%c0_10, %c0_11] : memref<324x384xbf16, #tpu.memory_space<vmem>>, vector<288x384xbf16>
    %c0_12 = arith.constant 0 : index
    %c0_13 = arith.constant 0 : index
    %c0_14 = arith.constant 0 : index
    %30 = vector.load %arg2[%c0_12, %c0_13, %c0_14] : memref<3x384x128xbf16, #tpu.memory_space<vmem>>, vector<1x384x128xbf16>
    %31 = vector.shape_cast %30 : vector<1x384x128xbf16> to vector<384x128xbf16>
    %cst_15 = arith.constant dense<0.000000e+00> : vector<288x128xf32>
    %32 = tpu.matmul %29, %31, %cst_15 {dimension_numbers = #tpu.dot_dimension_numbers<[1], [0], [0], [1], [0, 0, 1, 1], [], []>} : vector<288x384xbf16>, vector<384x128xbf16>, vector<288x128xf32> -> vector<288x128xf32>
    %c18_16 = arith.constant 18 : index
    %c0_17 = arith.constant 0 : index
    %33 = vector.load %arg7[%c18_16, %c0_17] : memref<324x384xbf16, #tpu.memory_space<vmem>>, vector<288x384xbf16>
    %c1 = arith.constant 1 : index
    %c0_18 = arith.constant 0 : index
    %c0_19 = arith.constant 0 : index
    %34 = vector.load %arg2[%c1, %c0_18, %c0_19] : memref<3x384x128xbf16, #tpu.memory_space<vmem>>, vector<1x384x128xbf16>
    %35 = vector.shape_cast %34 : vector<1x384x128xbf16> to vector<384x128xbf16>
    %cst_20 = arith.constant dense<0.000000e+00> : vector<288x128xf32>
    %36 = tpu.matmul %33, %35, %cst_20 {dimension_numbers = #tpu.dot_dimension_numbers<[1], [0], [0], [1], [0, 0, 1, 1], [], []>} : vector<288x384xbf16>, vector<384x128xbf16>, vector<288x128xf32> -> vector<288x128xf32>
    %37 = arith.addf %32, %36 : vector<288x128xf32>
    %c36 = arith.constant 36 : index
    %c0_21 = arith.constant 0 : index
    %38 = vector.load %arg7[%c36, %c0_21] : memref<324x384xbf16, #tpu.memory_space<vmem>>, vector<288x384xbf16>
    %c2 = arith.constant 2 : index
    %c0_22 = arith.constant 0 : index
    %c0_23 = arith.constant 0 : index
    %39 = vector.load %arg2[%c2, %c0_22, %c0_23] : memref<3x384x128xbf16, #tpu.memory_space<vmem>>, vector<1x384x128xbf16>
    %40 = vector.shape_cast %39 : vector<1x384x128xbf16> to vector<384x128xbf16>
    %cst_24 = arith.constant dense<0.000000e+00> : vector<288x128xf32>
    %41 = tpu.matmul %38, %40, %cst_24 {dimension_numbers = #tpu.dot_dimension_numbers<[1], [0], [0], [1], [0, 0, 1, 1], [], []>} : vector<288x384xbf16>, vector<384x128xbf16>, vector<288x128xf32> -> vector<288x128xf32>
    %42 = arith.addf %37, %41 : vector<288x128xf32>
    %c0_25 = arith.constant 0 : index
    %c0_26 = arith.constant 0 : index
    %43 = vector.load %arg3[%c0_25, %c0_26] : memref<1x128xf32, #tpu.memory_space<vmem>>, vector<1x128xf32>
    %44 = vector.broadcast %43 : vector<1x128xf32> to vector<288x128xf32>
    %45 = arith.addf %42, %44 : vector<288x128xf32>
    %cst_27 = arith.constant 0.000000e+00 : f32
    %46 = vector.broadcast %cst_27 : f32 to vector<288x128xf32>
    %47 = arith.maximumf %45, %46 : vector<288x128xf32>
    %cst_28 = arith.constant 0.000000e+00 : f32
    %48 = vector.shape_cast %22 : vector<288x1xi1> to vector<288x1xi1>
    %49 = vector.broadcast %48 : vector<288x1xi1> to vector<288x128xi1>
    %50 = vector.broadcast %cst_28 : f32 to vector<288x128xf32>
    %51 = arith.select %49, %47, %50 : vector<288x128xi1>, vector<288x128xf32>
    %52 = arith.truncf %51 : vector<288x128xf32> to vector<288x128xbf16>
    %c19_29 = arith.constant 19 : index
    %c0_30 = arith.constant 0 : index
    %53 = vector.load %arg7[%c19_29, %c0_30] : memref<324x384xbf16, #tpu.memory_space<vmem>>, vector<288x128xbf16>
    tpu.vector_store %arg7[%c19_29, %c0_30], %52 {strides = array<i32>} : memref<324x384xbf16, #tpu.memory_space<vmem>>, vector<288x128xbf16>,
    %c18_31 = arith.constant 18 : index
    %c128_32 = arith.constant 128 : index
    %54 = vector.load %arg7[%c18_31, %c128_32] : memref<324x384xbf16, #tpu.memory_space<vmem>>, vector<288x128xbf16>
    tpu.vector_store %arg7[%c18_31, %c128_32], %52 {strides = array<i32>} : memref<324x384xbf16, #tpu.memory_space<vmem>>, vector<288x128xbf16>,
    %c17_33 = arith.constant 17 : index
    %c256_34 = arith.constant 256 : index
    %55 = vector.load %arg7[%c17_33, %c256_34] : memref<324x384xbf16, #tpu.memory_space<vmem>>, vector<288x128xbf16>
    tpu.vector_store %arg7[%c17_33, %c256_34], %52 {strides = array<i32>} : memref<324x384xbf16, #tpu.memory_space<vmem>>, vector<288x128xbf16>,
    %c0_35 = arith.constant 0 : index
    %c0_36 = arith.constant 0 : index
    %56 = vector.load %arg7[%c0_35, %c0_36] : memref<324x384xbf16, #tpu.memory_space<vmem>>, vector<288x384xbf16>
    %c0_37 = arith.constant 0 : index
    %c0_38 = arith.constant 0 : index
    %c0_39 = arith.constant 0 : index
    %57 = vector.load %arg4[%c0_37, %c0_38, %c0_39] : memref<3x384x128xbf16, #tpu.memory_space<vmem>>, vector<1x384x128xbf16>
    %58 = vector.shape_cast %57 : vector<1x384x128xbf16> to vector<384x128xbf16>
    %cst_40 = arith.constant dense<0.000000e+00> : vector<288x128xf32>
    %59 = tpu.matmul %56, %58, %cst_40 {dimension_numbers = #tpu.dot_dimension_numbers<[1], [0], [0], [1], [0, 0, 1, 1], [], []>} : vector<288x384xbf16>, vector<384x128xbf16>, vector<288x128xf32> -> vector<288x128xf32>
    %c18_41 = arith.constant 18 : index
    %c0_42 = arith.constant 0 : index
    %60 = vector.load %arg7[%c18_41, %c0_42] : memref<324x384xbf16, #tpu.memory_space<vmem>>, vector<288x384xbf16>
    %c1_43 = arith.constant 1 : index
    %c0_44 = arith.constant 0 : index
    %c0_45 = arith.constant 0 : index
    %61 = vector.load %arg4[%c1_43, %c0_44, %c0_45] : memref<3x384x128xbf16, #tpu.memory_space<vmem>>, vector<1x384x128xbf16>
    %62 = vector.shape_cast %61 : vector<1x384x128xbf16> to vector<384x128xbf16>
    %cst_46 = arith.constant dense<0.000000e+00> : vector<288x128xf32>
    %63 = tpu.matmul %60, %62, %cst_46 {dimension_numbers = #tpu.dot_dimension_numbers<[1], [0], [0], [1], [0, 0, 1, 1], [], []>} : vector<288x384xbf16>, vector<384x128xbf16>, vector<288x128xf32> -> vector<288x128xf32>
    %64 = arith.addf %59, %63 : vector<288x128xf32>
    %c36_47 = arith.constant 36 : index
    %c0_48 = arith.constant 0 : index
    %65 = vector.load %arg7[%c36_47, %c0_48] : memref<324x384xbf16, #tpu.memory_space<vmem>>, vector<288x384xbf16>
    %c2_49 = arith.constant 2 : index
    %c0_50 = arith.constant 0 : index
    %c0_51 = arith.constant 0 : index
    %66 = vector.load %arg4[%c2_49, %c0_50, %c0_51] : memref<3x384x128xbf16, #tpu.memory_space<vmem>>, vector<1x384x128xbf16>
    %67 = vector.shape_cast %66 : vector<1x384x128xbf16> to vector<384x128xbf16>
    %cst_52 = arith.constant dense<0.000000e+00> : vector<288x128xf32>
    %68 = tpu.matmul %65, %67, %cst_52 {dimension_numbers = #tpu.dot_dimension_numbers<[1], [0], [0], [1], [0, 0, 1, 1], [], []>} : vector<288x384xbf16>, vector<384x128xbf16>, vector<288x128xf32> -> vector<288x128xf32>
    %69 = arith.addf %64, %68 : vector<288x128xf32>
    %c0_53 = arith.constant 0 : index
    %c0_54 = arith.constant 0 : index
    %70 = vector.load %arg5[%c0_53, %c0_54] : memref<1x128xf32, #tpu.memory_space<vmem>>, vector<1x128xf32>
    %71 = vector.broadcast %70 : vector<1x128xf32> to vector<288x128xf32>
    %72 = arith.addf %69, %71 : vector<288x128xf32>
    %c0_55 = arith.constant 0 : index
    %c0_56 = arith.constant 0 : index
    %c0_57 = arith.constant 0 : index
    %73 = vector.load %arg1[%c0_55, %c0_56, %c0_57] : memref<1x288x128xf32, #tpu.memory_space<vmem>>, vector<1x288x128xf32>
    %74 = vector.shape_cast %73 : vector<1x288x128xf32> to vector<288x128xf32>
    %75 = arith.addf %72, %74 : vector<288x128xf32>
    %cst_58 = arith.constant 0.000000e+00 : f32
    %76 = vector.broadcast %cst_58 : f32 to vector<288x128xf32>
    %77 = arith.maximumf %75, %76 : vector<288x128xf32>
    %c0_59 = arith.constant 0 : index
    %c0_60 = arith.constant 0 : index
    %c0_61 = arith.constant 0 : index
    %78 = vector.load %arg6[%c0_59, %c0_60, %c0_61] : memref<1x288x128xf32, #tpu.memory_space<vmem>>, vector<1x288x128xf32>
    %79 = vector.shape_cast %78 : vector<1x288x128xf32> to vector<288x128xf32>
    %80 = vector.shape_cast %77 : vector<288x128xf32> to vector<1x288x128xf32>
    tpu.vector_store %arg6[%c0_59, %c0_60, %c0_61], %80 {strides = array<i32>} : memref<1x288x128xf32, #tpu.memory_space<vmem>>, vector<1x288x128xf32>,
    return
  }
  func.func @transform_0(%arg0: i32) -> (i32, i32, i32) {
    %c0_i32 = arith.constant 0 : i32
    %c0_i32_0 = arith.constant 0 : i32
    %c0_i32_1 = arith.constant 0 : i32
    return %arg0, %c0_i32, %c0_i32_0 : i32, i32, i32
  }
  func.func @transform_1(%arg0: i32) -> (i32, i32, i32) {
    %c0_i32 = arith.constant 0 : i32
    %c0_i32_0 = arith.constant 0 : i32
    %c0_i32_1 = arith.constant 0 : i32
    %c0_i32_2 = arith.constant 0 : i32
    return %c0_i32, %c0_i32_0, %c0_i32_1 : i32, i32, i32
  }
  func.func @transform_2(%arg0: i32) -> (i32, i32) {
    %c0_i32 = arith.constant 0 : i32
    %c0_i32_0 = arith.constant 0 : i32
    %c0_i32_1 = arith.constant 0 : i32
    return %c0_i32, %c0_i32_0 : i32, i32
  }
  func.func @transform_3(%arg0: i32) -> (i32, i32, i32) {
    %c0_i32 = arith.constant 0 : i32
    %c0_i32_0 = arith.constant 0 : i32
    %c0_i32_1 = arith.constant 0 : i32
    %c0_i32_2 = arith.constant 0 : i32
    return %c0_i32, %c0_i32_0, %c0_i32_1 : i32, i32, i32
  }
  func.func @transform_4(%arg0: i32) -> (i32, i32) {
    %c0_i32 = arith.constant 0 : i32
    %c0_i32_0 = arith.constant 0 : i32
    %c0_i32_1 = arith.constant 0 : i32
    return %c0_i32, %c0_i32_0 : i32, i32
  }
  func.func @transform_5(%arg0: i32) -> (i32, i32, i32) {
    %c0_i32 = arith.constant 0 : i32
    %c0_i32_0 = arith.constant 0 : i32
    %c0_i32_1 = arith.constant 0 : i32
    return %arg0, %c0_i32, %c0_i32_0 : i32, i32, i32
  }
}

</mosaic_0001>

<llo_original>
// kernel: tpu_custom_call.1
$region0: #{tpu_custom_call.1}
  #allocation0 [shape = 'u32[]', space=smem, size = 0x4, offset = 0x4, fixed_abs, tag = 'smem constant byte address 0x4 - core index']
  #allocation1 [shape = 'u32[72,128]{1,0:T(1,128)}', space=vmem, size = 0x9000, scoped, tag = 'internal scratch']
  #allocation2 [shape = 'bf16[324,384]{1,0:T(8,128)(2,1)}', space=vmem, size = 0x3d800, scoped, tag = 'scratch operand']
  %s0 = inlined_call_operand.hbm [shape: f32[2,288,128], index: 0, kind: input, shape index: {}]
  %s1 = inlined_call_operand.hbm [shape: bf16[3,384,128], index: 1, kind: input, shape index: {}]
  %s2 = inlined_call_operand.vmem [shape: f32[1,128], index: 2, kind: input, shape index: {}]
  %s3 = inlined_call_operand.hbm [shape: bf16[3,384,128], index: 3, kind: input, shape index: {}]
  %s4 = inlined_call_operand.vmem [shape: f32[1,128], index: 4, kind: input, shape index: {}]
  %s5 = inlined_call_operand.hbm [shape: f32[2,288,128], index: 5, kind: output, shape index: {}]
  %s6 = sld [smem:[#allocation0]]
  $region65: #{tpu_custom_call.1} parent=0
    _
  %s8 = ssub.s32 1, %s6
  %s9 = scalar_select 0, %s8, %s6
  $region1: #{tpu_custom_call.1} parent=0
    #allocation3 [shape = 'u8[294912]{0}', space=vmem, size = 0x48000, scoped, tag = 'input window, operand 0']
    #allocation4 [shape = 's32[2]{0}', space=sflag, size = 0x8, scoped, tag = 'scoped memory for tpu_custom_call.1']
    #allocation5 [shape = 's32[2]{0}', space=sflag, size = 0x8, scoped, tag = 'scoped memory for tpu_custom_call.1']
    #allocation6 [shape = 'u8[294912]{0}', space=vmem, size = 0x48000, scoped, tag = 'input window, operand 1, single buffered']
    #allocation7 [shape = 's32[1]{0}', space=sflag, size = 0x4, scoped, tag = 'scoped memory for tpu_custom_call.1']
    #allocation8 [shape = 'u8[294912]{0}', space=vmem, size = 0x48000, scoped, tag = 'input window, operand 3, single buffered']
    #allocation9 [shape = 'u8[294912]{0}', space=vmem, size = 0x48000, scoped, tag = 'output window, operand 0']
    %10 = vsyncpa [#allocation4], 0
    %s11 = scalar_lea.sflag [#allocation4], 1
    %12 = vsyncpa %s11, 0
    %13 = vsyncpa [#allocation7], 0
    %14 = vsyncpa [#allocation5], 0
    %s15 = scalar_lea.sflag [#allocation5], 1
    %16 = vsyncpa %s15, 0
    loop: start=0, step=1, limit=4
    $region2: #{tpu_custom_call.1} parent=1 // loop_pre_header
      _
    $region3: #{tpu_custom_call.1} parent=1 // loop_header
      %s18 = sphi 0, %s22
      %p19 = scmp.ge.s32.totalorder %s18, 4
      %s28 = sphi 0, %s30
      %s31 = sphi 0, %s28
      %s32 = sphi 0, %s31
      %s48 = sphi 0, %s32
      %s52 = sphi 0, %s52
      %s54 = sphi 0, %s52
      %s55 = sphi 0, %s54
      %s69 = sphi 0, %s55
      %s73 = sphi 0, %s73
      %s75 = sphi 0, %s73
      %s76 = sphi 0, %s75
      %s90 = sphi 0, %s76
      %s94 = sphi 0, %s94
      %s96 = sphi 0, %s94
      %s97 = sphi 0, %s96
      %s111 = sphi 0, %s97
      %s115 = sphi 0, %s115
      %s117 = sphi 0, %s115
      %s118 = sphi 0, %s117
      %s132 = sphi 0, %s118
      %s138 = sphi 0, %s140
      %s141 = sphi 0, %s138
      %s142 = sphi 0, %s141
      %s158 = sphi 0, %s142
    $region4: #{tpu_custom_call.1} parent=1 // loop_header_branch
      %21 = sbr.rel (%p19) target = $region8
    $region5: #{tpu_custom_call.1} parent=1 // loop_body
      %s23 = ssub.s32 %s18, 1
      %s24 = ssub.s32 %s18, 2
      %s25 = sadd.s32 %s18, 1
      %s26 = ssub.s32 %s18, %s25
      %p27 = scmp.eq.s32.totalorder %s26, 0
      %s29 = sadd.s32 %s28, 1
      %s30 = scalar_select %p27, %s28, %s29
      %p33 = pneg %p27
      %p34 = scmp.eq.s32.totalorder %s18, 1
      %p35 = por %p33, %p34
      %p36 = scmp.ne.s32.totalorder %s28, %s31
      %p37 = scmp.eq.s32.totalorder %s18, 0
      %p38 = por %p36, %p37
      %p39 = scmp.ne.s32.totalorder %s28, %s31
      %p40 = scmp.eq.s32.totalorder %s23, 1
      %p41 = por %p39, %p40
      %p42 = scmp.ne.s32.totalorder %s31, %s32
      %p43 = scmp.eq.s32.totalorder %s23, 0
      %p44 = por %p42, %p43
      %p45 = scmp.ne.s32.totalorder %s31, %s32
      %p46 = scmp.eq.s32.totalorder %s24, 1
      %p47 = por %p45, %p46
      %p49 = scmp.ne.s32.totalorder %s32, %s48
      %p50 = scmp.eq.s32.totalorder %s24, 0
      %p51 = por %p49, %p50
      %s53 = sadd.s32 %s52, 1
      %p56 = scmp.eq.s32.totalorder %s18, 1
      %p57 = scmp.ne.s32.totalorder %s52, %s54
      %p58 = scmp.eq.s32.totalorder %s18, 0
      %p59 = por %p57, %p58
      %p60 = scmp.ne.s32.totalorder %s52, %s54
      %p61 = scmp.eq.s32.totalorder %s23, 1
      %p62 = por %p60, %p61
      %p63 = scmp.ne.s32.totalorder %s54, %s55
      %p64 = scmp.eq.s32.totalorder %s23, 0
      %p65 = por %p63, %p64
      %p66 = scmp.ne.s32.totalorder %s54, %s55
      %p67 = scmp.eq.s32.totalorder %s24, 1
      %p68 = por %p66, %p67
      %p70 = scmp.ne.s32.totalorder %s55, %s69
      %p71 = scmp.eq.s32.totalorder %s24, 0
      %p72 = por %p70, %p71
      %s74 = sadd.s32 %s73, 1
      %p77 = scmp.eq.s32.totalorder %s18, 1
      %p78 = scmp.ne.s32.totalorder %s73, %s75
      %p79 = scmp.eq.s32.totalorder %s18, 0
      %p80 = por %p78, %p79
      %p81 = scmp.ne.s32.totalorder %s73, %s75
      %p82 = scmp.eq.s32.totalorder %s23, 1
      %p83 = por %p81, %p82
      %p84 = scmp.ne.s32.totalorder %s75, %s76
      %p85 = scmp.eq.s32.totalorder %s23, 0
      %p86 = por %p84, %p85
      %p87 = scmp.ne.s32.totalorder %s75, %s76
      %p88 = scmp.eq.s32.totalorder %s24, 1
      %p89 = por %p87, %p88
      %p91 = scmp.ne.s32.totalorder %s76, %s90
      %p92 = scmp.eq.s32.totalorder %s24, 0
      %p93 = por %p91, %p92
      %s95 = sadd.s32 %s94, 1
      %p98 = scmp.eq.s32.totalorder %s18, 1
      %p99 = scmp.ne.s32.totalorder %s94, %s96
      %p100 = scmp.eq.s32.totalorder %s18, 0
      %p101 = por %p99, %p100
      %p102 = scmp.ne.s32.totalorder %s94, %s96
      %p103 = scmp.eq.s32.totalorder %s23, 1
      %p104 = por %p102, %p103
      %p105 = scmp.ne.s32.totalorder %s96, %s97
      %p106 = scmp.eq.s32.totalorder %s23, 0
      %p107 = por %p105, %p106
      %p108 = scmp.ne.s32.totalorder %s96, %s97
      %p109 = scmp.eq.s32.totalorder %s24, 1
      %p110 = por %p108, %p109
      %p112 = scmp.ne.s32.totalorder %s97, %s111
      %p113 = scmp.eq.s32.totalorder %s24, 0
      %p114 = por %p112, %p113
      %s116 = sadd.s32 %s115, 1
      %p119 = scmp.eq.s32.totalorder %s18, 1
      %p120 = scmp.ne.s32.totalorder %s115, %s117
      %p121 = scmp.eq.s32.totalorder %s18, 0
      %p122 = por %p120, %p121
      %p123 = scmp.ne.s32.totalorder %s115, %s117
      %p124 = scmp.eq.s32.totalorder %s23, 1
      %p125 = por %p123, %p124
      %p126 = scmp.ne.s32.totalorder %s117, %s118
      %p127 = scmp.eq.s32.totalorder %s23, 0
      %p128 = por %p126, %p127
      %p129 = scmp.ne.s32.totalorder %s117, %s118
      %p130 = scmp.eq.s32.totalorder %s24, 1
      %p131 = por %p129, %p130
      %p133 = scmp.ne.s32.totalorder %s118, %s132
      %p134 = scmp.eq.s32.totalorder %s24, 0
      %p135 = por %p133, %p134
      %s136 = ssub.s32 %s18, %s25
      %p137 = scmp.eq.s32.totalorder %s136, 0
      %s139 = sadd.s32 %s138, 1
      %s140 = scalar_select %p137, %s138, %s139
      %p143 = pneg %p137
      %p144 = scmp.eq.s32.totalorder %s18, 1
      %p145 = por %p143, %p144
      %p146 = scmp.ne.s32.totalorder %s138, %s141
      %p147 = scmp.eq.s32.totalorder %s18, 0
      %p148 = por %p146, %p147
      %p149 = scmp.ne.s32.totalorder %s138, %s141
      %p150 = scmp.eq.s32.totalorder %s23, 1
      %p151 = por %p149, %p150
      %p152 = scmp.ne.s32.totalorder %s141, %s142
      %p153 = scmp.eq.s32.totalorder %s23, 0
      %p154 = por %p152, %p153
      %p155 = scmp.ne.s32.totalorder %s141, %s142
      %p156 = scmp.eq.s32.totalorder %s24, 1
      %p157 = por %p155, %p156
      %p159 = scmp.ne.s32.totalorder %s142, %s158
      %p160 = scmp.eq.s32.totalorder %s24, 0
      %p161 = por %p159, %p160
      %p162 = scmp.le.s32.totalorder 1, %s18
      %p163 = scmp.lt.s32.totalorder %s18, 3
      %p164 = pnand %p162, %p163
      %p165 = pneg %p164
      // Predicated region
      $region9: #{tpu_custom_call.1} parent=5 // pred_check
        _
      $region10: #{tpu_custom_call.1} parent=5 // pred_check_branch
        %167 = sbr.rel (%p164) target = $region12
      $region11: #{tpu_custom_call.1} parent=5 // pred_region
        %s168 = ssub.s32 %s18, 1
        // Predicated region
        $region13: #{tpu_custom_call.1} parent=11 // pred_check
          %p169 = pneg %p65
        $region14: #{tpu_custom_call.1} parent=11 // pred_check_branch
          %171 = sbr.rel (%p169) target = $region16
        $region15: #{tpu_custom_call.1} parent=11 // pred_region
          %173 = vsyncadd [#allocation7], 0
          %s174 = sshll.u32 %s1, 4
          %s175 = int_to_ptr.hbm [resolvable:$true] %s174
          %s176 = sshll.u32 [#allocation6], 4
          %s177 = int_to_ptr.vmem [resolvable:$true] %s176
          %182 = dma.hbm_to_vmem [thread:$0]  %s175, 9216, %s177, [#allocation7], 64, 64, 4
        $region16: #{tpu_custom_call.1} parent=11 // pred_fallthru
          _
        // Predicated region
        $region17: #{tpu_custom_call.1} parent=11 // pred_check
          %p183 = pneg %p86
        $region18: #{tpu_custom_call.1} parent=11 // pred_check_branch
          %185 = sbr.rel (%p183) target = $region20
        $region19: #{tpu_custom_call.1} parent=11 // pred_region
          _
        $region20: #{tpu_custom_call.1} parent=11 // pred_fallthru
          _
        // Predicated region
        $region21: #{tpu_custom_call.1} parent=11 // pred_check
          %p186 = pneg %p107
        $region22: #{tpu_custom_call.1} parent=11 // pred_check_branch
          %188 = sbr.rel (%p186) target = $region24
        $region23: #{tpu_custom_call.1} parent=11 // pred_region
          %190 = vsyncadd [#allocation7], 0
          %s191 = sshll.u32 %s3, 4
          %s192 = int_to_ptr.hbm [resolvable:$true] %s191
          %s193 = sshll.u32 [#allocation8], 4
          %s194 = int_to_ptr.vmem [resolvable:$true] %s193
          %199 = dma.hbm_to_vmem [thread:$0]  %s192, 9216, %s194, [#allocation7], 64, 64, 4
        $region24: #{tpu_custom_call.1} parent=11 // pred_fallthru
          _
        // Predicated region
        $region25: #{tpu_custom_call.1} parent=11 // pred_check
          %p200 = pneg %p128
        $region26: #{tpu_custom_call.1} parent=11 // pred_check_branch
          %202 = sbr.rel (%p200) target = $region28
        $region27: #{tpu_custom_call.1} parent=11 // pred_region
          _
        $region28: #{tpu_custom_call.1} parent=11 // pred_fallthru
          _
      $region12: #{tpu_custom_call.1} parent=5 // pred_fallthru
        _
      %p203 = scmp.lt.s32.totalorder %s18, 2
      // Predicated region
      $region29: #{tpu_custom_call.1} parent=5 // pred_check
        %p204 = pneg %p203
      $region30: #{tpu_custom_call.1} parent=5 // pred_check_branch
        %206 = sbr.rel (%p204) target = $region32
      $region31: #{tpu_custom_call.1} parent=5 // pred_region
        // Predicated region
        $region33: #{tpu_custom_call.1} parent=31 // pred_check
          %p207 = pneg %p38
        $region34: #{tpu_custom_call.1} parent=31 // pred_check_branch
          %209 = sbr.rel (%p207) target = $region36
        $region35: #{tpu_custom_call.1} parent=31 // pred_region
          %s210 = sand.u32 %s28, 1
          %s211 = scalar_lea.sflag [#allocation4], %s210
          %s212 = sand.u32 %s28, 1
          %s213 = smul.addr %s212, 288
          %s214 = scalar_lea.vmem [#allocation3], %s213
          %216 = vsyncadd %s211, 0
          %s217 = smul.addr %s18, 36
          %s218 = smul.addr %s217, 8
          %s219 = scalar_lea.hbm %s0, %s218
          %s220 = sshll.u32 %s219, 4
          %s221 = int_to_ptr.hbm [resolvable:$true] %s220
          %s222 = sshll.u32 %s214, 4
          %s223 = int_to_ptr.vmem [resolvable:$true] %s222
          %228 = dma.hbm_to_vmem [thread:$0]  %s221, 4608, %s223, %s211, 128, 128, 8
        $region36: #{tpu_custom_call.1} parent=31 // pred_fallthru
          _
      $region32: #{tpu_custom_call.1} parent=5 // pred_fallthru
        _
      %p229 = scmp.le.s32.totalorder 1, %s18
      %p230 = scmp.lt.s32.totalorder %s18, 3
      %p231 = pnand %p229, %p230
      %p232 = pneg %p231
      // Predicated region
      $region37: #{tpu_custom_call.1} parent=5 // pred_check
        _
      $region38: #{tpu_custom_call.1} parent=5 // pred_check_branch
        %234 = sbr.rel (%p231) target = $region40
      $region39: #{tpu_custom_call.1} parent=5 // pred_region
        %s235 = ssub.s32 %s18, 1
        %s236 = sand.u32 %s31, 1
        %s237 = scalar_lea.sflag [#allocation4], %s236
        %s238 = sand.u32 %s31, 1
        %s239 = smul.addr %s238, 288
        %s240 = scalar_lea.vmem [#allocation3], %s239
        // Predicated region
        $region41: #{tpu_custom_call.1} parent=39 // pred_check
          %p241 = pneg %p44
        $region42: #{tpu_custom_call.1} parent=39 // pred_check_branch
          %243 = sbr.rel (%p241) target = $region44
        $region43: #{tpu_custom_call.1} parent=39 // pred_region
          %245 = dma.done %s237, 4608
        $region44: #{tpu_custom_call.1} parent=39 // pred_fallthru
          _
        // Predicated region
        $region45: #{tpu_custom_call.1} parent=39 // pred_check
          %p246 = pneg %p65
        $region46: #{tpu_custom_call.1} parent=39 // pred_check_branch
          %248 = sbr.rel (%p246) target = $region48
        $region47: #{tpu_custom_call.1} parent=39 // pred_region
          %250 = dma.done [#allocation7], 9216
        $region48: #{tpu_custom_call.1} parent=39 // pred_fallthru
          _
        // Predicated region
        $region49: #{tpu_custom_call.1} parent=39 // pred_check
          %p251 = pneg %p107
        $region50: #{tpu_custom_call.1} parent=39 // pred_check_branch
          %253 = sbr.rel (%p251) target = $region52
        $region51: #{tpu_custom_call.1} parent=39 // pred_region
          %255 = dma.done [#allocation7], 9216
        $region52: #{tpu_custom_call.1} parent=39 // pred_fallthru
          _
        %s256 = sand.u32 %s31, 1
        %s257 = scalar_lea.sflag [#allocation4], %s256
        %s258 = sand.u32 %s31, 1
        %s259 = smul.addr %s258, 288
        %s260 = scalar_lea.vmem [#allocation3], %s259
        %p261 = pneg %p44
        %p262 = pneg %p41
        %p263 = pneg %p65
        %p264 = pneg %p62
        %p265 = pneg %p86
        %p266 = pneg %p83
        %p267 = pneg %p107
        %p268 = pneg %p104
        %p269 = pneg %p128
        %p270 = pneg %p125
        %p271 = pneg %p154
        %p272 = pneg %p151
        %s273 = sand.u32 %s141, 1
        %s274 = scalar_lea.sflag [#allocation5], %s273
        %s275 = sand.u32 %s141, 1
        %s276 = smul.addr %s275, 288
        %s277 = scalar_lea.vmem [#allocation9], %s276
        %279 = vst [vmem:[#allocation2] sm:$0xff] 0
        %280 = vst [vmem:[#allocation2 + $0x8] sm:$0xf] 0
        %281 = vst [vmem:[#allocation2 + $0xc] sm:$0xff] 0
        %282 = vst [vmem:[#allocation2 + $0x14] sm:$0xf] 0
        %vm283 = vcmask 1041408
        %vm284 = vsmask.f32 1280
        %vm285 = vmand %vm283, %vm284
        %vm286 = vcmask 1045508
        %vm287 = vsmask.f32 5376
        %vm288 = vmand %vm286, %vm287
        %vm289 = vmor %vm288, %vm285
        %v290 = vld [vmem:[#allocation2 + $0x18] sm:$0x33]
        %v291 = vsel %vm289, 0, %v290
        %292 = vst [vmem:[#allocation2 + $0x18] sm:$0x33] %v291
        %v293 = vld [vmem:[#allocation2 + $0x20] sm:$0x3]
        %v294 = vsel %vm285, 0, %v293
        %295 = vst [vmem:[#allocation2 + $0x20] sm:$0x3] %v294
        %vm296 = vcmask 1043456
        %vm297 = vsmask.f32 7938
        %vm298 = vmand %vm296, %vm297
        %vm299 = vcmask 1047556
        %vm300 = vsmask.f32 7954
        %vm301 = vmand %vm299, %vm300
        %vm302 = vmor %vm301, %vm298
        %v303 = vld [vmem:[#allocation2 + $0x1c8] sm:$0xff]
        %v304 = vsel %vm302, 0, %v303
        %305 = vst [vmem:[#allocation2 + $0x1c8] sm:$0xff] %v304
        %v306 = vld [vmem:[#allocation2 + $0x1d0] sm:$0xf]
        %v307 = vsel %vm298, 0, %v306
        %308 = vst [vmem:[#allocation2 + $0x1d0] sm:$0xf] %v307
        %309 = vst [vmem:[#allocation2 + $0x1d4] sm:$0xff] 0
        %310 = vst [vmem:[#allocation2 + $0x1dc] sm:$0xf] 0
        %311 = vst [vmem:[#allocation2 + $0x1e0] sm:$0x33] 0
        %312 = vst [vmem:[#allocation2 + $0x1e8] sm:$0x3] 0
        %v313 = vlaneseq
        %v314 = vshrl.u32 %v313, 7
        %v315 = vadd.s32 %v314, 8
        %v316 = vadd.s32 %v314, 16
        %v317 = vadd.s32 %v314, 24
        %v318 = vadd.s32 %v314, 32
        %v319 = vadd.s32 %v314, 40
        %v320 = vadd.s32 %v314, 48
        %v321 = vadd.s32 %v314, 56
        %v322 = vadd.s32 %v314, 64
        %v323 = vadd.s32 %v314, 72
        %v324 = vadd.s32 %v314, 80
        %v325 = vadd.s32 %v314, 88
        %v326 = vadd.s32 %v314, 96
        %v327 = vadd.s32 %v314, 104
        %v328 = vadd.s32 %v314, 112
        %v329 = vadd.s32 %v314, 120
        %v330 = vadd.s32 %v314, 128
        %v331 = vadd.s32 %v314, 136
        %v332 = vadd.s32 %v314, 144
        %v333 = vadd.s32 %v314, 152
        %v334 = vadd.s32 %v314, 160
        %v335 = vadd.s32 %v314, 168
        %v336 = vadd.s32 %v314, 176
        %v337 = vadd.s32 %v314, 184
        %v338 = vadd.s32 %v314, 192
        %v339 = vadd.s32 %v314, 200
        %v340 = vadd.s32 %v314, 208
        %v341 = vadd.s32 %v314, 216
        %v342 = vadd.s32 %v314, 224
        %v343 = vadd.s32 %v314, 232
        %v344 = vadd.s32 %v314, 240
        %v345 = vadd.s32 %v314, 248
        %v346 = vadd.s32 %v314, 256
        %v347 = vadd.s32 %v314, 264
        %v348 = vadd.s32 %v314, 272
        %v349 = vadd.s32 %v314, 280
        %vm350 = vcmp.lt.s32.totalorder %v314, 0
        %v351 = vsub.s32 0, %v314
        %v352 = vsel %vm350, %v351, %v314
        %v353 = vand.u32 %v352, 65535
        %v354 = vshrl.u32 %v352, 16
        %v356 = vmul.u32 %v353, 14564
        %v357 = vmul.u32 %v353, 58254
        %v358 = vmul.u32 %v354, 14564
        %v359 = vmul.u32 %v354, 58254
        %v360 = vshll.u32 %v357, 16
        %v361 = vshrl.u32 %v357, 16
        %v362 = vshll.u32 %v358, 16
        %v363 = vshrl.u32 %v358, 16
        %vm364 = vc.u32 %v356, %v360
        %v365 = vsel %vm364, 1, 0
        %v366 = vadd.s32 %v356, %v360
        %v367 = vadd.s32 %v359, %v365
        %vm368 = vc.u32 %v366, %v362
        %v369 = vsel %vm368, 1, 0
        %v370 = vadd.s32 %v366, %v362
        %v371 = vadd.s32 %v367, %v369
        %v372 = vadd.s32 %v371, %v361
        %v373 = vadd.s32 %v372, %v363
        %v374 = vshrl.u32 %v373, 4
        %v375 = vmul.u32 %v374, 18
        %v376 = vsub.s32 %v352, %v375
        %v377 = vsub.s32 0, %v376
        %v378 = vsel %vm350, %v377, %v376
        %vm379 = vcmp.lt.s32.totalorder %v315, 0
        %v380 = vsub.s32 0, %v315
        %v381 = vsel %vm379, %v380, %v315
        %v382 = vand.u32 %v381, 65535
        %v383 = vshrl.u32 %v381, 16
        %v385 = vmul.u32 %v382, 14564
        %v386 = vmul.u32 %v382, 58254
        %v387 = vmul.u32 %v383, 14564
        %v388 = vmul.u32 %v383, 58254
        %v389 = vshll.u32 %v386, 16
        %v390 = vshrl.u32 %v386, 16
        %v391 = vshll.u32 %v387, 16
        %v392 = vshrl.u32 %v387, 16
        %vm393 = vc.u32 %v385, %v389
        %v394 = vsel %vm393, 1, 0
        %v395 = vadd.s32 %v385, %v389
        %v396 = vadd.s32 %v388, %v394
        %vm397 = vc.u32 %v395, %v391
        %v398 = vsel %vm397, 1, 0
        %v399 = vadd.s32 %v395, %v391
        %v400 = vadd.s32 %v396, %v398
        %v401 = vadd.s32 %v400, %v390
        %v402 = vadd.s32 %v401, %v392
        %v403 = vshrl.u32 %v402, 4
        %v404 = vmul.u32 %v403, 18
        %v405 = vsub.s32 %v381, %v404
        %v406 = vsub.s32 0, %v405
        %v407 = vsel %vm379, %v406, %v405
        %vm408 = vcmp.lt.s32.totalorder %v316, 0
        %v409 = vsub.s32 0, %v316
        %v410 = vsel %vm408, %v409, %v316
        %v411 = vand.u32 %v410, 65535
        %v412 = vshrl.u32 %v410, 16
        %v414 = vmul.u32 %v411, 14564
        %v415 = vmul.u32 %v411, 58254
        %v416 = vmul.u32 %v412, 14564
        %v417 = vmul.u32 %v412, 58254
        %v418 = vshll.u32 %v415, 16
        %v419 = vshrl.u32 %v415, 16
        %v420 = vshll.u32 %v416, 16
        %v421 = vshrl.u32 %v416, 16
        %vm422 = vc.u32 %v414, %v418
        %v423 = vsel %vm422, 1, 0
        %v424 = vadd.s32 %v414, %v418
        %v425 = vadd.s32 %v417, %v423
        %vm426 = vc.u32 %v424, %v420
        %v427 = vsel %vm426, 1, 0
        %v428 = vadd.s32 %v424, %v420
        %v429 = vadd.s32 %v425, %v427
        %v430 = vadd.s32 %v429, %v419
        %v431 = vadd.s32 %v430, %v421
        %v432 = vshrl.u32 %v431, 4
        %v433 = vmul.u32 %v432, 18
        %v434 = vsub.s32 %v410, %v433
        %v435 = vsub.s32 0, %v434
        %v436 = vsel %vm408, %v435, %v434
        %vm437 = vcmp.lt.s32.totalorder %v317, 0
        %v438 = vsub.s32 0, %v317
        %v439 = vsel %vm437, %v438, %v317
        %v440 = vand.u32 %v439, 65535
        %v441 = vshrl.u32 %v439, 16
        %v443 = vmul.u32 %v440, 14564
        %v444 = vmul.u32 %v440, 58254
        %v445 = vmul.u32 %v441, 14564
        %v446 = vmul.u32 %v441, 58254
        %v447 = vshll.u32 %v444, 16
        %v448 = vshrl.u32 %v444, 16
        %v449 = vshll.u32 %v445, 16
        %v450 = vshrl.u32 %v445, 16
        %vm451 = vc.u32 %v443, %v447
        %v452 = vsel %vm451, 1, 0
        %v453 = vadd.s32 %v443, %v447
        %v454 = vadd.s32 %v446, %v452
        %vm455 = vc.u32 %v453, %v449
        %v456 = vsel %vm455, 1, 0
        %v457 = vadd.s32 %v453, %v449
        %v458 = vadd.s32 %v454, %v456
        %v459 = vadd.s32 %v458, %v448
        %v460 = vadd.s32 %v459, %v450
        %v461 = vshrl.u32 %v460, 4
        %v462 = vmul.u32 %v461, 18
        %v463 = vsub.s32 %v439, %v462
        %v464 = vsub.s32 0, %v463
        %v465 = vsel %vm437, %v464, %v463
        %vm466 = vcmp.lt.s32.totalorder %v318, 0
        %v467 = vsub.s32 0, %v318
        %v468 = vsel %vm466, %v467, %v318
        %v469 = vand.u32 %v468, 65535
        %v470 = vshrl.u32 %v468, 16
        %v472 = vmul.u32 %v469, 14564
        %v473 = vmul.u32 %v469, 58254
        %v474 = vmul.u32 %v470, 14564
        %v475 = vmul.u32 %v470, 58254
        %v476 = vshll.u32 %v473, 16
        %v477 = vshrl.u32 %v473, 16
        %v478 = vshll.u32 %v474, 16
        %v479 = vshrl.u32 %v474, 16
        %vm480 = vc.u32 %v472, %v476
        %v481 = vsel %vm480, 1, 0
        %v482 = vadd.s32 %v472, %v476
        %v483 = vadd.s32 %v475, %v481
        %vm484 = vc.u32 %v482, %v478
        %v485 = vsel %vm484, 1, 0
        %v486 = vadd.s32 %v482, %v478
        %v487 = vadd.s32 %v483, %v485
        %v488 = vadd.s32 %v487, %v477
        %v489 = vadd.s32 %v488, %v479
        %v490 = vshrl.u32 %v489, 4
        %v491 = vmul.u32 %v490, 18
        %v492 = vsub.s32 %v468, %v491
        %v493 = vsub.s32 0, %v492
        %v494 = vsel %vm466, %v493, %v492
        %vm495 = vcmp.lt.s32.totalorder %v319, 0
        %v496 = vsub.s32 0, %v319
        %v497 = vsel %vm495, %v496, %v319
        %v498 = vand.u32 %v497, 65535
        %v499 = vshrl.u32 %v497, 16
        %v501 = vmul.u32 %v498, 14564
        %v502 = vmul.u32 %v498, 58254
        %v503 = vmul.u32 %v499, 14564
        %v504 = vmul.u32 %v499, 58254
        %v505 = vshll.u32 %v502, 16
        %v506 = vshrl.u32 %v502, 16
        %v507 = vshll.u32 %v503, 16
        %v508 = vshrl.u32 %v503, 16
        %vm509 = vc.u32 %v501, %v505
        %v510 = vsel %vm509, 1, 0
        %v511 = vadd.s32 %v501, %v505
        %v512 = vadd.s32 %v504, %v510
        %vm513 = vc.u32 %v511, %v507
        %v514 = vsel %vm513, 1, 0
        %v515 = vadd.s32 %v511, %v507
        %v516 = vadd.s32 %v512, %v514
        %v517 = vadd.s32 %v516, %v506
        %v518 = vadd.s32 %v517, %v508
        %v519 = vshrl.u32 %v518, 4
        %v520 = vmul.u32 %v519, 18
        %v521 = vsub.s32 %v497, %v520
        %v522 = vsub.s32 0, %v521
        %v523 = vsel %vm495, %v522, %v521
        %vm524 = vcmp.lt.s32.totalorder %v320, 0
        %v525 = vsub.s32 0, %v320
        %v526 = vsel %vm524, %v525, %v320
        %v527 = vand.u32 %v526, 65535
        %v528 = vshrl.u32 %v526, 16
        %v530 = vmul.u32 %v527, 14564
        %v531 = vmul.u32 %v527, 58254
        %v532 = vmul.u32 %v528, 14564
        %v533 = vmul.u32 %v528, 58254
        %v534 = vshll.u32 %v531, 16
        %v535 = vshrl.u32 %v531, 16
        %v536 = vshll.u32 %v532, 16
        %v537 = vshrl.u32 %v532, 16
        %vm538 = vc.u32 %v530, %v534
        %v539 = vsel %vm538, 1, 0
        %v540 = vadd.s32 %v530, %v534
        %v541 = vadd.s32 %v533, %v539
        %vm542 = vc.u32 %v540, %v536
        %v543 = vsel %vm542, 1, 0
        %v544 = vadd.s32 %v540, %v536
        %v545 = vadd.s32 %v541, %v543
        %v546 = vadd.s32 %v545, %v535
        %v547 = vadd.s32 %v546, %v537
        %v548 = vshrl.u32 %v547, 4
        %v549 = vmul.u32 %v548, 18
        %v550 = vsub.s32 %v526, %v549
        %v551 = vsub.s32 0, %v550
        %v552 = vsel %vm524, %v551, %v550
        %vm553 = vcmp.lt.s32.totalorder %v321, 0
        %v554 = vsub.s32 0, %v321
        %v555 = vsel %vm553, %v554, %v321
        %v556 = vand.u32 %v555, 65535
        %v557 = vshrl.u32 %v555, 16
        %v559 = vmul.u32 %v556, 14564
        %v560 = vmul.u32 %v556, 58254
        %v561 = vmul.u32 %v557, 14564
        %v562 = vmul.u32 %v557, 58254
        %v563 = vshll.u32 %v560, 16
        %v564 = vshrl.u32 %v560, 16
        %v565 = vshll.u32 %v561, 16
        %v566 = vshrl.u32 %v561, 16
        %vm567 = vc.u32 %v559, %v563
        %v568 = vsel %vm567, 1, 0
        %v569 = vadd.s32 %v559, %v563
        %v570 = vadd.s32 %v562, %v568
        %vm571 = vc.u32 %v569, %v565
        %v572 = vsel %vm571, 1, 0
        %v573 = vadd.s32 %v569, %v565
        %v574 = vadd.s32 %v570, %v572
        %v575 = vadd.s32 %v574, %v564
        %v576 = vadd.s32 %v575, %v566
        %v577 = vshrl.u32 %v576, 4
        %v578 = vmul.u32 %v577, 18
        %v579 = vsub.s32 %v555, %v578
        %v580 = vsub.s32 0, %v579
        %v581 = vsel %vm553, %v580, %v579
        %vm582 = vcmp.lt.s32.totalorder %v322, 0
        %v583 = vsub.s32 0, %v322
        %v584 = vsel %vm582, %v583, %v322
        %v585 = vand.u32 %v584, 65535
        %v586 = vshrl.u32 %v584, 16
        %v588 = vmul.u32 %v585, 14564
        %v589 = vmul.u32 %v585, 58254
        %v590 = vmul.u32 %v586, 14564
        %v591 = vmul.u32 %v586, 58254
        %v592 = vshll.u32 %v589, 16
        %v593 = vshrl.u32 %v589, 16
        %v594 = vshll.u32 %v590, 16
        %v595 = vshrl.u32 %v590, 16
        %vm596 = vc.u32 %v588, %v592
        %v597 = vsel %vm596, 1, 0
        %v598 = vadd.s32 %v588, %v592
        %v599 = vadd.s32 %v591, %v597
        %vm600 = vc.u32 %v598, %v594
        %v601 = vsel %vm600, 1, 0
        %v602 = vadd.s32 %v598, %v594
        %v603 = vadd.s32 %v599, %v601
        %v604 = vadd.s32 %v603, %v593
        %v605 = vadd.s32 %v604, %v595
        %v606 = vshrl.u32 %v605, 4
        %v607 = vmul.u32 %v606, 18
        %v608 = vsub.s32 %v584, %v607
        %v609 = vsub.s32 0, %v608
        %v610 = vsel %vm582, %v609, %v608
        %vm611 = vcmp.lt.s32.totalorder %v323, 0
        %v612 = vsub.s32 0, %v323
        %v613 = vsel %vm611, %v612, %v323
        %v614 = vand.u32 %v613, 65535
        %v615 = vshrl.u32 %v613, 16
        %v617 = vmul.u32 %v614, 14564
        %v618 = vmul.u32 %v614, 58254
        %v619 = vmul.u32 %v615, 14564
        %v620 = vmul.u32 %v615, 58254
        %v621 = vshll.u32 %v618, 16
        %v622 = vshrl.u32 %v618, 16
        %v623 = vshll.u32 %v619, 16
        %v624 = vshrl.u32 %v619, 16
        %vm625 = vc.u32 %v617, %v621
        %v626 = vsel %vm625, 1, 0
        %v627 = vadd.s32 %v617, %v621
        %v628 = vadd.s32 %v620, %v626
        %vm629 = vc.u32 %v627, %v623
        %v630 = vsel %vm629, 1, 0
        %v631 = vadd.s32 %v627, %v623
        %v632 = vadd.s32 %v628, %v630
        %v633 = vadd.s32 %v632, %v622
        %v634 = vadd.s32 %v633, %v624
        %v635 = vshrl.u32 %v634, 4
        %v636 = vmul.u32 %v635, 18
        %v637 = vsub.s32 %v613, %v636
        %v638 = vsub.s32 0, %v637
        %v639 = vsel %vm611, %v638, %v637
        %vm640 = vcmp.lt.s32.totalorder %v324, 0
        %v641 = vsub.s32 0, %v324
        %v642 = vsel %vm640, %v641, %v324
        %v643 = vand.u32 %v642, 65535
        %v644 = vshrl.u32 %v642, 16
        %v646 = vmul.u32 %v643, 14564
        %v647 = vmul.u32 %v643, 58254
        %v648 = vmul.u32 %v644, 14564
        %v649 = vmul.u32 %v644, 58254
        %v650 = vshll.u32 %v647, 16
        %v651 = vshrl.u32 %v647, 16
        %v652 = vshll.u32 %v648, 16
        %v653 = vshrl.u32 %v648, 16
        %vm654 = vc.u32 %v646, %v650
        %v655 = vsel %vm654, 1, 0
        %v656 = vadd.s32 %v646, %v650
        %v657 = vadd.s32 %v649, %v655
        %vm658 = vc.u32 %v656, %v652
        %v659 = vsel %vm658, 1, 0
        %v660 = vadd.s32 %v656, %v652
        %v661 = vadd.s32 %v657, %v659
        %v662 = vadd.s32 %v661, %v651
        %v663 = vadd.s32 %v662, %v653
        %v664 = vshrl.u32 %v663, 4
        %v665 = vmul.u32 %v664, 18
        %v666 = vsub.s32 %v642, %v665
        %v667 = vsub.s32 0, %v666
        %v668 = vsel %vm640, %v667, %v666
        %vm669 = vcmp.lt.s32.totalorder %v325, 0
        %v670 = vsub.s32 0, %v325
        %v671 = vsel %vm669, %v670, %v325
        %v672 = vand.u32 %v671, 65535
        %v673 = vshrl.u32 %v671, 16
        %v675 = vmul.u32 %v672, 14564
        %v676 = vmul.u32 %v672, 58254
        %v677 = vmul.u32 %v673, 14564
        %v678 = vmul.u32 %v673, 58254
        %v679 = vshll.u32 %v676, 16
        %v680 = vshrl.u32 %v676, 16
        %v681 = vshll.u32 %v677, 16
        %v682 = vshrl.u32 %v677, 16
        %vm683 = vc.u32 %v675, %v679
        %v684 = vsel %vm683, 1, 0
        %v685 = vadd.s32 %v675, %v679
        %v686 = vadd.s32 %v678, %v684
        %vm687 = vc.u32 %v685, %v681
        %v688 = vsel %vm687, 1, 0
        %v689 = vadd.s32 %v685, %v681
        %v690 = vadd.s32 %v686, %v688
        %v691 = vadd.s32 %v690, %v680
        %v692 = vadd.s32 %v691, %v682
        %v693 = vshrl.u32 %v692, 4
        %v694 = vmul.u32 %v693, 18
        %v695 = vsub.s32 %v671, %v694
        %v696 = vsub.s32 0, %v695
        %v697 = vsel %vm669, %v696, %v695
        %vm698 = vcmp.lt.s32.totalorder %v326, 0
        %v699 = vsub.s32 0, %v326
        %v700 = vsel %vm698, %v699, %v326
        %v701 = vand.u32 %v700, 65535
        %v702 = vshrl.u32 %v700, 16
        %v704 = vmul.u32 %v701, 14564
        %v705 = vmul.u32 %v701, 58254
        %v706 = vmul.u32 %v702, 14564
        %v707 = vmul.u32 %v702, 58254
        %v708 = vshll.u32 %v705, 16
        %v709 = vshrl.u32 %v705, 16
        %v710 = vshll.u32 %v706, 16
        %v711 = vshrl.u32 %v706, 16
        %vm712 = vc.u32 %v704, %v708
        %v713 = vsel %vm712, 1, 0
        %v714 = vadd.s32 %v704, %v708
        %v715 = vadd.s32 %v707, %v713
        %vm716 = vc.u32 %v714, %v710
        %v717 = vsel %vm716, 1, 0
        %v718 = vadd.s32 %v714, %v710
        %v719 = vadd.s32 %v715, %v717
        %v720 = vadd.s32 %v719, %v709
        %v721 = vadd.s32 %v720, %v711
        %v722 = vshrl.u32 %v721, 4
        %v723 = vmul.u32 %v722, 18
        %v724 = vsub.s32 %v700, %v723
        %v725 = vsub.s32 0, %v724
        %v726 = vsel %vm698, %v725, %v724
        %vm727 = vcmp.lt.s32.totalorder %v327, 0
        %v728 = vsub.s32 0, %v327
        %v729 = vsel %vm727, %v728, %v327
        %v730 = vand.u32 %v729, 65535
        %v731 = vshrl.u32 %v729, 16
        %v733 = vmul.u32 %v730, 14564
        %v734 = vmul.u32 %v730, 58254
        %v735 = vmul.u32 %v731, 14564
        %v736 = vmul.u32 %v731, 58254
        %v737 = vshll.u32 %v734, 16
        %v738 = vshrl.u32 %v734, 16
        %v739 = vshll.u32 %v735, 16
        %v740 = vshrl.u32 %v735, 16
        %vm741 = vc.u32 %v733, %v737
        %v742 = vsel %vm741, 1, 0
        %v743 = vadd.s32 %v733, %v737
        %v744 = vadd.s32 %v736, %v742
        %vm745 = vc.u32 %v743, %v739
        %v746 = vsel %vm745, 1, 0
        %v747 = vadd.s32 %v743, %v739
        %v748 = vadd.s32 %v744, %v746
        %v749 = vadd.s32 %v748, %v738
        %v750 = vadd.s32 %v749, %v740
        %v751 = vshrl.u32 %v750, 4
        %v752 = vmul.u32 %v751, 18
        %v753 = vsub.s32 %v729, %v752
        %v754 = vsub.s32 0, %v753
        %v755 = vsel %vm727, %v754, %v753
        %vm756 = vcmp.lt.s32.totalorder %v328, 0
        %v757 = vsub.s32 0, %v328
        %v758 = vsel %vm756, %v757, %v328
        %v759 = vand.u32 %v758, 65535
        %v760 = vshrl.u32 %v758, 16
        %v762 = vmul.u32 %v759, 14564
        %v763 = vmul.u32 %v759, 58254
        %v764 = vmul.u32 %v760, 14564
        %v765 = vmul.u32 %v760, 58254
        %v766 = vshll.u32 %v763, 16
        %v767 = vshrl.u32 %v763, 16
        %v768 = vshll.u32 %v764, 16
        %v769 = vshrl.u32 %v764, 16
        %vm770 = vc.u32 %v762, %v766
        %v771 = vsel %vm770, 1, 0
        %v772 = vadd.s32 %v762, %v766
        %v773 = vadd.s32 %v765, %v771
        %vm774 = vc.u32 %v772, %v768
        %v775 = vsel %vm774, 1, 0
        %v776 = vadd.s32 %v772, %v768
        %v777 = vadd.s32 %v773, %v775
        %v778 = vadd.s32 %v777, %v767
        %v779 = vadd.s32 %v778, %v769
        %v780 = vshrl.u32 %v779, 4
        %v781 = vmul.u32 %v780, 18
        %v782 = vsub.s32 %v758, %v781
        %v783 = vsub.s32 0, %v782
        %v784 = vsel %vm756, %v783, %v782
        %vm785 = vcmp.lt.s32.totalorder %v329, 0
        %v786 = vsub.s32 0, %v329
        %v787 = vsel %vm785, %v786, %v329
        %v788 = vand.u32 %v787, 65535
        %v789 = vshrl.u32 %v787, 16
        %v791 = vmul.u32 %v788, 14564
        %v792 = vmul.u32 %v788, 58254
        %v793 = vmul.u32 %v789, 14564
        %v794 = vmul.u32 %v789, 58254
        %v795 = vshll.u32 %v792, 16
        %v796 = vshrl.u32 %v792, 16
        %v797 = vshll.u32 %v793, 16
        %v798 = vshrl.u32 %v793, 16
        %vm799 = vc.u32 %v791, %v795
        %v800 = vsel %vm799, 1, 0
        %v801 = vadd.s32 %v791, %v795
        %v802 = vadd.s32 %v794, %v800
        %vm803 = vc.u32 %v801, %v797
        %v804 = vsel %vm803, 1, 0
        %v805 = vadd.s32 %v801, %v797
        %v806 = vadd.s32 %v802, %v804
        %v807 = vadd.s32 %v806, %v796
        %v808 = vadd.s32 %v807, %v798
        %v809 = vshrl.u32 %v808, 4
        %v810 = vmul.u32 %v809, 18
        %v811 = vsub.s32 %v787, %v810
        %v812 = vsub.s32 0, %v811
        %v813 = vsel %vm785, %v812, %v811
        %vm814 = vcmp.lt.s32.totalorder %v330, 0
        %v815 = vsub.s32 0, %v330
        %v816 = vsel %vm814, %v815, %v330
        %v817 = vand.u32 %v816, 65535
        %v818 = vshrl.u32 %v816, 16
        %v820 = vmul.u32 %v817, 14564
        %v821 = vmul.u32 %v817, 58254
        %v822 = vmul.u32 %v818, 14564
        %v823 = vmul.u32 %v818, 58254
        %v824 = vshll.u32 %v821, 16
        %v825 = vshrl.u32 %v821, 16
        %v826 = vshll.u32 %v822, 16
        %v827 = vshrl.u32 %v822, 16
        %vm828 = vc.u32 %v820, %v824
        %v829 = vsel %vm828, 1, 0
        %v830 = vadd.s32 %v820, %v824
        %v831 = vadd.s32 %v823, %v829
        %vm832 = vc.u32 %v830, %v826
        %v833 = vsel %vm832, 1, 0
        %v834 = vadd.s32 %v830, %v826
        %v835 = vadd.s32 %v831, %v833
        %v836 = vadd.s32 %v835, %v825
        %v837 = vadd.s32 %v836, %v827
        %v838 = vshrl.u32 %v837, 4
        %v839 = vmul.u32 %v838, 18
        %v840 = vsub.s32 %v816, %v839
        %v841 = vsub.s32 0, %v840
        %v842 = vsel %vm814, %v841, %v840
        %vm843 = vcmp.lt.s32.totalorder %v331, 0
        %v844 = vsub.s32 0, %v331
        %v845 = vsel %vm843, %v844, %v331
        %v846 = vand.u32 %v845, 65535
        %v847 = vshrl.u32 %v845, 16
        %v849 = vmul.u32 %v846, 14564
        %v850 = vmul.u32 %v846, 58254
        %v851 = vmul.u32 %v847, 14564
        %v852 = vmul.u32 %v847, 58254
        %v853 = vshll.u32 %v850, 16
        %v854 = vshrl.u32 %v850, 16
        %v855 = vshll.u32 %v851, 16
        %v856 = vshrl.u32 %v851, 16
        %vm857 = vc.u32 %v849, %v853
        %v858 = vsel %vm857, 1, 0
        %v859 = vadd.s32 %v849, %v853
        %v860 = vadd.s32 %v852, %v858
        %vm861 = vc.u32 %v859, %v855
        %v862 = vsel %vm861, 1, 0
        %v863 = vadd.s32 %v859, %v855
        %v864 = vadd.s32 %v860, %v862
        %v865 = vadd.s32 %v864, %v854
        %v866 = vadd.s32 %v865, %v856
        %v867 = vshrl.u32 %v866, 4
        %v868 = vmul.u32 %v867, 18
        %v869 = vsub.s32 %v845, %v868
        %v870 = vsub.s32 0, %v869
        %v871 = vsel %vm843, %v870, %v869
        %vm872 = vcmp.lt.s32.totalorder %v332, 0
        %v873 = vsub.s32 0, %v332
        %v874 = vsel %vm872, %v873, %v332
        %v875 = vand.u32 %v874, 65535
        %v876 = vshrl.u32 %v874, 16
        %v878 = vmul.u32 %v875, 14564
        %v879 = vmul.u32 %v875, 58254
        %v880 = vmul.u32 %v876, 14564
        %v881 = vmul.u32 %v876, 58254
        %v882 = vshll.u32 %v879, 16
        %v883 = vshrl.u32 %v879, 16
        %v884 = vshll.u32 %v880, 16
        %v885 = vshrl.u32 %v880, 16
        %vm886 = vc.u32 %v878, %v882
        %v887 = vsel %vm886, 1, 0
        %v888 = vadd.s32 %v878, %v882
        %v889 = vadd.s32 %v881, %v887
        %vm890 = vc.u32 %v888, %v884
        %v891 = vsel %vm890, 1, 0
        %v892 = vadd.s32 %v888, %v884
        %v893 = vadd.s32 %v889, %v891
        %v894 = vadd.s32 %v893, %v883
        %v895 = vadd.s32 %v894, %v885
        %v896 = vshrl.u32 %v895, 4
        %v897 = vmul.u32 %v896, 18
        %v898 = vsub.s32 %v874, %v897
        %v899 = vsub.s32 0, %v898
        %v900 = vsel %vm872, %v899, %v898
        %vm901 = vcmp.lt.s32.totalorder %v333, 0
        %v902 = vsub.s32 0, %v333
        %v903 = vsel %vm901, %v902, %v333
        %v904 = vand.u32 %v903, 65535
        %v905 = vshrl.u32 %v903, 16
        %v907 = vmul.u32 %v904, 14564
        %v908 = vmul.u32 %v904, 58254
        %v909 = vmul.u32 %v905, 14564
        %v910 = vmul.u32 %v905, 58254
        %v911 = vshll.u32 %v908, 16
        %v912 = vshrl.u32 %v908, 16
        %v913 = vshll.u32 %v909, 16
        %v914 = vshrl.u32 %v909, 16
        %vm915 = vc.u32 %v907, %v911
        %v916 = vsel %vm915, 1, 0
        %v917 = vadd.s32 %v907, %v911
        %v918 = vadd.s32 %v910, %v916
        %vm919 = vc.u32 %v917, %v913
        %v920 = vsel %vm919, 1, 0
        %v921 = vadd.s32 %v917, %v913
        %v922 = vadd.s32 %v918, %v920
        %v923 = vadd.s32 %v922, %v912
        %v924 = vadd.s32 %v923, %v914
        %v925 = vshrl.u32 %v924, 4
        %v926 = vmul.u32 %v925, 18
        %v927 = vsub.s32 %v903, %v926
        %v928 = vsub.s32 0, %v927
        %v929 = vsel %vm901, %v928, %v927
        %vm930 = vcmp.lt.s32.totalorder %v334, 0
        %v931 = vsub.s32 0, %v334
        %v932 = vsel %vm930, %v931, %v334
        %v933 = vand.u32 %v932, 65535
        %v934 = vshrl.u32 %v932, 16
        %v936 = vmul.u32 %v933, 14564
        %v937 = vmul.u32 %v933, 58254
        %v938 = vmul.u32 %v934, 14564
        %v939 = vmul.u32 %v934, 58254
        %v940 = vshll.u32 %v937, 16
        %v941 = vshrl.u32 %v937, 16
        %v942 = vshll.u32 %v938, 16
        %v943 = vshrl.u32 %v938, 16
        %vm944 = vc.u32 %v936, %v940
        %v945 = vsel %vm944, 1, 0
        %v946 = vadd.s32 %v936, %v940
        %v947 = vadd.s32 %v939, %v945
        %vm948 = vc.u32 %v946, %v942
        %v949 = vsel %vm948, 1, 0
        %v950 = vadd.s32 %v946, %v942
        %v951 = vadd.s32 %v947, %v949
        %v952 = vadd.s32 %v951, %v941
        %v953 = vadd.s32 %v952, %v943
        %v954 = vshrl.u32 %v953, 4
        %v955 = vmul.u32 %v954, 18
        %v956 = vsub.s32 %v932, %v955
        %v957 = vsub.s32 0, %v956
        %v958 = vsel %vm930, %v957, %v956
        %vm959 = vcmp.lt.s32.totalorder %v335, 0
        %v960 = vsub.s32 0, %v335
        %v961 = vsel %vm959, %v960, %v335
        %v962 = vand.u32 %v961, 65535
        %v963 = vshrl.u32 %v961, 16
        %v965 = vmul.u32 %v962, 14564
        %v966 = vmul.u32 %v962, 58254
        %v967 = vmul.u32 %v963, 14564
        %v968 = vmul.u32 %v963, 58254
        %v969 = vshll.u32 %v966, 16
        %v970 = vshrl.u32 %v966, 16
        %v971 = vshll.u32 %v967, 16
        %v972 = vshrl.u32 %v967, 16
        %vm973 = vc.u32 %v965, %v969
        %v974 = vsel %vm973, 1, 0
        %v975 = vadd.s32 %v965, %v969
        %v976 = vadd.s32 %v968, %v974
        %vm977 = vc.u32 %v975, %v971
        %v978 = vsel %vm977, 1, 0
        %v979 = vadd.s32 %v975, %v971
        %v980 = vadd.s32 %v976, %v978
        %v981 = vadd.s32 %v980, %v970
        %v982 = vadd.s32 %v981, %v972
        %v983 = vshrl.u32 %v982, 4
        %v984 = vmul.u32 %v983, 18
        %v985 = vsub.s32 %v961, %v984
        %v986 = vsub.s32 0, %v985
        %v987 = vsel %vm959, %v986, %v985
        %vm988 = vcmp.lt.s32.totalorder %v336, 0
        %v989 = vsub.s32 0, %v336
        %v990 = vsel %vm988, %v989, %v336
        %v991 = vand.u32 %v990, 65535
        %v992 = vshrl.u32 %v990, 16
        %v994 = vmul.u32 %v991, 14564
        %v995 = vmul.u32 %v991, 58254
        %v996 = vmul.u32 %v992, 14564
        %v997 = vmul.u32 %v992, 58254
        %v998 = vshll.u32 %v995, 16
        %v999 = vshrl.u32 %v995, 16
        %v1000 = vshll.u32 %v996, 16
        %v1001 = vshrl.u32 %v996, 16
        %vm1002 = vc.u32 %v994, %v998
        %v1003 = vsel %vm1002, 1, 0
        %v1004 = vadd.s32 %v994, %v998
        %v1005 = vadd.s32 %v997, %v1003
        %vm1006 = vc.u32 %v1004, %v1000
        %v1007 = vsel %vm1006, 1, 0
        %v1008 = vadd.s32 %v1004, %v1000
        %v1009 = vadd.s32 %v1005, %v1007
        %v1010 = vadd.s32 %v1009, %v999
        %v1011 = vadd.s32 %v1010, %v1001
        %v1012 = vshrl.u32 %v1011, 4
        %v1013 = vmul.u32 %v1012, 18
        %v1014 = vsub.s32 %v990, %v1013
        %v1015 = vsub.s32 0, %v1014
        %v1016 = vsel %vm988, %v1015, %v1014
        %vm1017 = vcmp.lt.s32.totalorder %v337, 0
        %v1018 = vsub.s32 0, %v337
        %v1019 = vsel %vm1017, %v1018, %v337
        %v1020 = vand.u32 %v1019, 65535
        %v1021 = vshrl.u32 %v1019, 16
        %v1023 = vmul.u32 %v1020, 14564
        %v1024 = vmul.u32 %v1020, 58254
        %v1025 = vmul.u32 %v1021, 14564
        %v1026 = vmul.u32 %v1021, 58254
        %v1027 = vshll.u32 %v1024, 16
        %v1028 = vshrl.u32 %v1024, 16
        %v1029 = vshll.u32 %v1025, 16
        %v1030 = vshrl.u32 %v1025, 16
        %vm1031 = vc.u32 %v1023, %v1027
        %v1032 = vsel %vm1031, 1, 0
        %v1033 = vadd.s32 %v1023, %v1027
        %v1034 = vadd.s32 %v1026, %v1032
        %vm1035 = vc.u32 %v1033, %v1029
        %v1036 = vsel %vm1035, 1, 0
        %v1037 = vadd.s32 %v1033, %v1029
        %v1038 = vadd.s32 %v1034, %v1036
        %v1039 = vadd.s32 %v1038, %v1028
        %v1040 = vadd.s32 %v1039, %v1030
        %v1041 = vshrl.u32 %v1040, 4
        %v1042 = vmul.u32 %v1041, 18
        %v1043 = vsub.s32 %v1019, %v1042
        %v1044 = vsub.s32 0, %v1043
        %v1045 = vsel %vm1017, %v1044, %v1043
        %vm1046 = vcmp.lt.s32.totalorder %v338, 0
        %v1047 = vsub.s32 0, %v338
        %v1048 = vsel %vm1046, %v1047, %v338
        %v1049 = vand.u32 %v1048, 65535
        %v1050 = vshrl.u32 %v1048, 16
        %v1052 = vmul.u32 %v1049, 14564
        %v1053 = vmul.u32 %v1049, 58254
        %v1054 = vmul.u32 %v1050, 14564
        %v1055 = vmul.u32 %v1050, 58254
        %v1056 = vshll.u32 %v1053, 16
        %v1057 = vshrl.u32 %v1053, 16
        %v1058 = vshll.u32 %v1054, 16
        %v1059 = vshrl.u32 %v1054, 16
        %vm1060 = vc.u32 %v1052, %v1056
        %v1061 = vsel %vm1060, 1, 0
        %v1062 = vadd.s32 %v1052, %v1056
        %v1063 = vadd.s32 %v1055, %v1061
        %vm1064 = vc.u32 %v1062, %v1058
        %v1065 = vsel %vm1064, 1, 0
        %v1066 = vadd.s32 %v1062, %v1058
        %v1067 = vadd.s32 %v1063, %v1065
        %v1068 = vadd.s32 %v1067, %v1057
        %v1069 = vadd.s32 %v1068, %v1059
        %v1070 = vshrl.u32 %v1069, 4
        %v1071 = vmul.u32 %v1070, 18
        %v1072 = vsub.s32 %v1048, %v1071
        %v1073 = vsub.s32 0, %v1072
        %v1074 = vsel %vm1046, %v1073, %v1072
        %vm1075 = vcmp.lt.s32.totalorder %v339, 0
        %v1076 = vsub.s32 0, %v339
        %v1077 = vsel %vm1075, %v1076, %v339
        %v1078 = vand.u32 %v1077, 65535
        %v1079 = vshrl.u32 %v1077, 16
        %v1081 = vmul.u32 %v1078, 14564
        %v1082 = vmul.u32 %v1078, 58254
        %v1083 = vmul.u32 %v1079, 14564
        %v1084 = vmul.u32 %v1079, 58254
        %v1085 = vshll.u32 %v1082, 16
        %v1086 = vshrl.u32 %v1082, 16
        %v1087 = vshll.u32 %v1083, 16
        %v1088 = vshrl.u32 %v1083, 16
        %vm1089 = vc.u32 %v1081, %v1085
        %v1090 = vsel %vm1089, 1, 0
        %v1091 = vadd.s32 %v1081, %v1085
        %v1092 = vadd.s32 %v1084, %v1090
        %vm1093 = vc.u32 %v1091, %v1087
        %v1094 = vsel %vm1093, 1, 0
        %v1095 = vadd.s32 %v1091, %v1087
        %v1096 = vadd.s32 %v1092, %v1094
        %v1097 = vadd.s32 %v1096, %v1086
        %v1098 = vadd.s32 %v1097, %v1088
        %v1099 = vshrl.u32 %v1098, 4
        %v1100 = vmul.u32 %v1099, 18
        %v1101 = vsub.s32 %v1077, %v1100
        %v1102 = vsub.s32 0, %v1101
        %v1103 = vsel %vm1075, %v1102, %v1101
        %vm1104 = vcmp.lt.s32.totalorder %v340, 0
        %v1105 = vsub.s32 0, %v340
        %v1106 = vsel %vm1104, %v1105, %v340
        %v1107 = vand.u32 %v1106, 65535
        %v1108 = vshrl.u32 %v1106, 16
        %v1110 = vmul.u32 %v1107, 14564
        %v1111 = vmul.u32 %v1107, 58254
        %v1112 = vmul.u32 %v1108, 14564
        %v1113 = vmul.u32 %v1108, 58254
        %v1114 = vshll.u32 %v1111, 16
        %v1115 = vshrl.u32 %v1111, 16
        %v1116 = vshll.u32 %v1112, 16
        %v1117 = vshrl.u32 %v1112, 16
        %vm1118 = vc.u32 %v1110, %v1114
        %v1119 = vsel %vm1118, 1, 0
        %v1120 = vadd.s32 %v1110, %v1114
        %v1121 = vadd.s32 %v1113, %v1119
        %vm1122 = vc.u32 %v1120, %v1116
        %v1123 = vsel %vm1122, 1, 0
        %v1124 = vadd.s32 %v1120, %v1116
        %v1125 = vadd.s32 %v1121, %v1123
        %v1126 = vadd.s32 %v1125, %v1115
        %v1127 = vadd.s32 %v1126, %v1117
        %v1128 = vshrl.u32 %v1127, 4
        %v1129 = vmul.u32 %v1128, 18
        %v1130 = vsub.s32 %v1106, %v1129
        %v1131 = vsub.s32 0, %v1130
        %v1132 = vsel %vm1104, %v1131, %v1130
        %vm1133 = vcmp.lt.s32.totalorder %v341, 0
        %v1134 = vsub.s32 0, %v341
        %v1135 = vsel %vm1133, %v1134, %v341
        %v1136 = vand.u32 %v1135, 65535
        %v1137 = vshrl.u32 %v1135, 16
        %v1139 = vmul.u32 %v1136, 14564
        %v1140 = vmul.u32 %v1136, 58254
        %v1141 = vmul.u32 %v1137, 14564
        %v1142 = vmul.u32 %v1137, 58254
        %v1143 = vshll.u32 %v1140, 16
        %v1144 = vshrl.u32 %v1140, 16
        %v1145 = vshll.u32 %v1141, 16
        %v1146 = vshrl.u32 %v1141, 16
        %vm1147 = vc.u32 %v1139, %v1143
        %v1148 = vsel %vm1147, 1, 0
        %v1149 = vadd.s32 %v1139, %v1143
        %v1150 = vadd.s32 %v1142, %v1148
        %vm1151 = vc.u32 %v1149, %v1145
        %v1152 = vsel %vm1151, 1, 0
        %v1153 = vadd.s32 %v1149, %v1145
        %v1154 = vadd.s32 %v1150, %v1152
        %v1155 = vadd.s32 %v1154, %v1144
        %v1156 = vadd.s32 %v1155, %v1146
        %v1157 = vshrl.u32 %v1156, 4
        %v1158 = vmul.u32 %v1157, 18
        %v1159 = vsub.s32 %v1135, %v1158
        %v1160 = vsub.s32 0, %v1159
        %v1161 = vsel %vm1133, %v1160, %v1159
        %vm1162 = vcmp.lt.s32.totalorder %v342, 0
        %v1163 = vsub.s32 0, %v342
        %v1164 = vsel %vm1162, %v1163, %v342
        %v1165 = vand.u32 %v1164, 65535
        %v1166 = vshrl.u32 %v1164, 16
        %v1168 = vmul.u32 %v1165, 14564
        %v1169 = vmul.u32 %v1165, 58254
        %v1170 = vmul.u32 %v1166, 14564
        %v1171 = vmul.u32 %v1166, 58254
        %v1172 = vshll.u32 %v1169, 16
        %v1173 = vshrl.u32 %v1169, 16
        %v1174 = vshll.u32 %v1170, 16
        %v1175 = vshrl.u32 %v1170, 16
        %vm1176 = vc.u32 %v1168, %v1172
        %v1177 = vsel %vm1176, 1, 0
        %v1178 = vadd.s32 %v1168, %v1172
        %v1179 = vadd.s32 %v1171, %v1177
        %vm1180 = vc.u32 %v1178, %v1174
        %v1181 = vsel %vm1180, 1, 0
        %v1182 = vadd.s32 %v1178, %v1174
        %v1183 = vadd.s32 %v1179, %v1181
        %v1184 = vadd.s32 %v1183, %v1173
        %v1185 = vadd.s32 %v1184, %v1175
        %v1186 = vshrl.u32 %v1185, 4
        %v1187 = vmul.u32 %v1186, 18
        %v1188 = vsub.s32 %v1164, %v1187
        %v1189 = vsub.s32 0, %v1188
        %v1190 = vsel %vm1162, %v1189, %v1188
        %vm1191 = vcmp.lt.s32.totalorder %v343, 0
        %v1192 = vsub.s32 0, %v343
        %v1193 = vsel %vm1191, %v1192, %v343
        %v1194 = vand.u32 %v1193, 65535
        %v1195 = vshrl.u32 %v1193, 16
        %v1197 = vmul.u32 %v1194, 14564
        %v1198 = vmul.u32 %v1194, 58254
        %v1199 = vmul.u32 %v1195, 14564
        %v1200 = vmul.u32 %v1195, 58254
        %v1201 = vshll.u32 %v1198, 16
        %v1202 = vshrl.u32 %v1198, 16
        %v1203 = vshll.u32 %v1199, 16
        %v1204 = vshrl.u32 %v1199, 16
        %vm1205 = vc.u32 %v1197, %v1201
        %v1206 = vsel %vm1205, 1, 0
        %v1207 = vadd.s32 %v1197, %v1201
        %v1208 = vadd.s32 %v1200, %v1206
        %vm1209 = vc.u32 %v1207, %v1203
        %v1210 = vsel %vm1209, 1, 0
        %v1211 = vadd.s32 %v1207, %v1203
        %v1212 = vadd.s32 %v1208, %v1210
        %v1213 = vadd.s32 %v1212, %v1202
        %v1214 = vadd.s32 %v1213, %v1204
        %v1215 = vshrl.u32 %v1214, 4
        %v1216 = vmul.u32 %v1215, 18
        %v1217 = vsub.s32 %v1193, %v1216
        %v1218 = vsub.s32 0, %v1217
        %v1219 = vsel %vm1191, %v1218, %v1217
        %vm1220 = vcmp.lt.s32.totalorder %v344, 0
        %v1221 = vsub.s32 0, %v344
        %v1222 = vsel %vm1220, %v1221, %v344
        %v1223 = vand.u32 %v1222, 65535
        %v1224 = vshrl.u32 %v1222, 16
        %v1226 = vmul.u32 %v1223, 14564
        %v1227 = vmul.u32 %v1223, 58254
        %v1228 = vmul.u32 %v1224, 14564
        %v1229 = vmul.u32 %v1224, 58254
        %v1230 = vshll.u32 %v1227, 16
        %v1231 = vshrl.u32 %v1227, 16
        %v1232 = vshll.u32 %v1228, 16
        %v1233 = vshrl.u32 %v1228, 16
        %vm1234 = vc.u32 %v1226, %v1230
        %v1235 = vsel %vm1234, 1, 0
        %v1236 = vadd.s32 %v1226, %v1230
        %v1237 = vadd.s32 %v1229, %v1235
        %vm1238 = vc.u32 %v1236, %v1232
        %v1239 = vsel %vm1238, 1, 0
        %v1240 = vadd.s32 %v1236, %v1232
        %v1241 = vadd.s32 %v1237, %v1239
        %v1242 = vadd.s32 %v1241, %v1231
        %v1243 = vadd.s32 %v1242, %v1233
        %v1244 = vshrl.u32 %v1243, 4
        %v1245 = vmul.u32 %v1244, 18
        %v1246 = vsub.s32 %v1222, %v1245
        %v1247 = vsub.s32 0, %v1246
        %v1248 = vsel %vm1220, %v1247, %v1246
        %vm1249 = vcmp.lt.s32.totalorder %v345, 0
        %v1250 = vsub.s32 0, %v345
        %v1251 = vsel %vm1249, %v1250, %v345
        %v1252 = vand.u32 %v1251, 65535
        %v1253 = vshrl.u32 %v1251, 16
        %v1255 = vmul.u32 %v1252, 14564
        %v1256 = vmul.u32 %v1252, 58254
        %v1257 = vmul.u32 %v1253, 14564
        %v1258 = vmul.u32 %v1253, 58254
        %v1259 = vshll.u32 %v1256, 16
        %v1260 = vshrl.u32 %v1256, 16
        %v1261 = vshll.u32 %v1257, 16
        %v1262 = vshrl.u32 %v1257, 16
        %vm1263 = vc.u32 %v1255, %v1259
        %v1264 = vsel %vm1263, 1, 0
        %v1265 = vadd.s32 %v1255, %v1259
        %v1266 = vadd.s32 %v1258, %v1264
        %vm1267 = vc.u32 %v1265, %v1261
        %v1268 = vsel %vm1267, 1, 0
        %v1269 = vadd.s32 %v1265, %v1261
        %v1270 = vadd.s32 %v1266, %v1268
        %v1271 = vadd.s32 %v1270, %v1260
        %v1272 = vadd.s32 %v1271, %v1262
        %v1273 = vshrl.u32 %v1272, 4
        %v1274 = vmul.u32 %v1273, 18
        %v1275 = vsub.s32 %v1251, %v1274
        %v1276 = vsub.s32 0, %v1275
        %v1277 = vsel %vm1249, %v1276, %v1275
        %vm1278 = vcmp.lt.s32.totalorder %v346, 0
        %v1279 = vsub.s32 0, %v346
        %v1280 = vsel %vm1278, %v1279, %v346
        %v1281 = vand.u32 %v1280, 65535
        %v1282 = vshrl.u32 %v1280, 16
        %v1284 = vmul.u32 %v1281, 14564
        %v1285 = vmul.u32 %v1281, 58254
        %v1286 = vmul.u32 %v1282, 14564
        %v1287 = vmul.u32 %v1282, 58254
        %v1288 = vshll.u32 %v1285, 16
        %v1289 = vshrl.u32 %v1285, 16
        %v1290 = vshll.u32 %v1286, 16
        %v1291 = vshrl.u32 %v1286, 16
        %vm1292 = vc.u32 %v1284, %v1288
        %v1293 = vsel %vm1292, 1, 0
        %v1294 = vadd.s32 %v1284, %v1288
        %v1295 = vadd.s32 %v1287, %v1293
        %vm1296 = vc.u32 %v1294, %v1290
        %v1297 = vsel %vm1296, 1, 0
        %v1298 = vadd.s32 %v1294, %v1290
        %v1299 = vadd.s32 %v1295, %v1297
        %v1300 = vadd.s32 %v1299, %v1289
        %v1301 = vadd.s32 %v1300, %v1291
        %v1302 = vshrl.u32 %v1301, 4
        %v1303 = vmul.u32 %v1302, 18
        %v1304 = vsub.s32 %v1280, %v1303
        %v1305 = vsub.s32 0, %v1304
        %v1306 = vsel %vm1278, %v1305, %v1304
        %vm1307 = vcmp.lt.s32.totalorder %v347, 0
        %v1308 = vsub.s32 0, %v347
        %v1309 = vsel %vm1307, %v1308, %v347
        %v1310 = vand.u32 %v1309, 65535
        %v1311 = vshrl.u32 %v1309, 16
        %v1313 = vmul.u32 %v1310, 14564
        %v1314 = vmul.u32 %v1310, 58254
        %v1315 = vmul.u32 %v1311, 14564
        %v1316 = vmul.u32 %v1311, 58254
        %v1317 = vshll.u32 %v1314, 16
        %v1318 = vshrl.u32 %v1314, 16
        %v1319 = vshll.u32 %v1315, 16
        %v1320 = vshrl.u32 %v1315, 16
        %vm1321 = vc.u32 %v1313, %v1317
        %v1322 = vsel %vm1321, 1, 0
        %v1323 = vadd.s32 %v1313, %v1317
        %v1324 = vadd.s32 %v1316, %v1322
        %vm1325 = vc.u32 %v1323, %v1319
        %v1326 = vsel %vm1325, 1, 0
        %v1327 = vadd.s32 %v1323, %v1319
        %v1328 = vadd.s32 %v1324, %v1326
        %v1329 = vadd.s32 %v1328, %v1318
        %v1330 = vadd.s32 %v1329, %v1320
        %v1331 = vshrl.u32 %v1330, 4
        %v1332 = vmul.u32 %v1331, 18
        %v1333 = vsub.s32 %v1309, %v1332
        %v1334 = vsub.s32 0, %v1333
        %v1335 = vsel %vm1307, %v1334, %v1333
        %vm1336 = vcmp.lt.s32.totalorder %v348, 0
        %v1337 = vsub.s32 0, %v348
        %v1338 = vsel %vm1336, %v1337, %v348
        %v1339 = vand.u32 %v1338, 65535
        %v1340 = vshrl.u32 %v1338, 16
        %v1342 = vmul.u32 %v1339, 14564
        %v1343 = vmul.u32 %v1339, 58254
        %v1344 = vmul.u32 %v1340, 14564
        %v1345 = vmul.u32 %v1340, 58254
        %v1346 = vshll.u32 %v1343, 16
        %v1347 = vshrl.u32 %v1343, 16
        %v1348 = vshll.u32 %v1344, 16
        %v1349 = vshrl.u32 %v1344, 16
        %vm1350 = vc.u32 %v1342, %v1346
        %v1351 = vsel %vm1350, 1, 0
        %v1352 = vadd.s32 %v1342, %v1346
        %v1353 = vadd.s32 %v1345, %v1351
        %vm1354 = vc.u32 %v1352, %v1348
        %v1355 = vsel %vm1354, 1, 0
        %v1356 = vadd.s32 %v1352, %v1348
        %v1357 = vadd.s32 %v1353, %v1355
        %v1358 = vadd.s32 %v1357, %v1347
        %v1359 = vadd.s32 %v1358, %v1349
        %v1360 = vshrl.u32 %v1359, 4
        %v1361 = vmul.u32 %v1360, 18
        %v1362 = vsub.s32 %v1338, %v1361
        %v1363 = vsub.s32 0, %v1362
        %v1364 = vsel %vm1336, %v1363, %v1362
        %vm1365 = vcmp.lt.s32.totalorder %v349, 0
        %v1366 = vsub.s32 0, %v349
        %v1367 = vsel %vm1365, %v1366, %v349
        %v1368 = vand.u32 %v1367, 65535
        %v1369 = vshrl.u32 %v1367, 16
        %v1371 = vmul.u32 %v1368, 14564
        %v1372 = vmul.u32 %v1368, 58254
        %v1373 = vmul.u32 %v1369, 14564
        %v1374 = vmul.u32 %v1369, 58254
        %v1375 = vshll.u32 %v1372, 16
        %v1376 = vshrl.u32 %v1372, 16
        %v1377 = vshll.u32 %v1373, 16
        %v1378 = vshrl.u32 %v1373, 16
        %vm1379 = vc.u32 %v1371, %v1375
        %v1380 = vsel %vm1379, 1, 0
        %v1381 = vadd.s32 %v1371, %v1375
        %v1382 = vadd.s32 %v1374, %v1380
        %vm1383 = vc.u32 %v1381, %v1377
        %v1384 = vsel %vm1383, 1, 0
        %v1385 = vadd.s32 %v1381, %v1377
        %v1386 = vadd.s32 %v1382, %v1384
        %v1387 = vadd.s32 %v1386, %v1376
        %v1388 = vadd.s32 %v1387, %v1378
        %v1389 = vshrl.u32 %v1388, 4
        %v1390 = vmul.u32 %v1389, 18
        %v1391 = vsub.s32 %v1367, %v1390
        %v1392 = vsub.s32 0, %v1391
        %v1393 = vsel %vm1365, %v1392, %v1391
        %vm1394 = vcmp.ne.s32.totalorder %v378, 0
        %vm1395 = vcmp.ne.s32.totalorder %v407, 0
        %vm1396 = vcmp.ne.s32.totalorder %v436, 0
        %vm1397 = vcmp.ne.s32.totalorder %v465, 0
        %vm1398 = vcmp.ne.s32.totalorder %v494, 0
        %vm1399 = vcmp.ne.s32.totalorder %v523, 0
        %vm1400 = vcmp.ne.s32.totalorder %v552, 0
        %vm1401 = vcmp.ne.s32.totalorder %v581, 0
        %vm1402 = vcmp.ne.s32.totalorder %v610, 0
        %vm1403 = vcmp.ne.s32.totalorder %v639, 0
        %vm1404 = vcmp.ne.s32.totalorder %v668, 0
        %vm1405 = vcmp.ne.s32.totalorder %v697, 0
        %vm1406 = vcmp.ne.s32.totalorder %v726, 0
        %vm1407 = vcmp.ne.s32.totalorder %v755, 0
        %vm1408 = vcmp.ne.s32.totalorder %v784, 0
        %vm1409 = vcmp.ne.s32.totalorder %v813, 0
        %vm1410 = vcmp.ne.s32.totalorder %v842, 0
        %vm1411 = vcmp.ne.s32.totalorder %v871, 0
        %vm1412 = vcmp.ne.s32.totalorder %v900, 0
        %vm1413 = vcmp.ne.s32.totalorder %v929, 0
        %vm1414 = vcmp.ne.s32.totalorder %v958, 0
        %vm1415 = vcmp.ne.s32.totalorder %v987, 0
        %vm1416 = vcmp.ne.s32.totalorder %v1016, 0
        %vm1417 = vcmp.ne.s32.totalorder %v1045, 0
        %vm1418 = vcmp.ne.s32.totalorder %v1074, 0
        %vm1419 = vcmp.ne.s32.totalorder %v1103, 0
        %vm1420 = vcmp.ne.s32.totalorder %v1132, 0
        %vm1421 = vcmp.ne.s32.totalorder %v1161, 0
        %vm1422 = vcmp.ne.s32.totalorder %v1190, 0
        %vm1423 = vcmp.ne.s32.totalorder %v1219, 0
        %vm1424 = vcmp.ne.s32.totalorder %v1248, 0
        %vm1425 = vcmp.ne.s32.totalorder %v1277, 0
        %vm1426 = vcmp.ne.s32.totalorder %v1306, 0
        %vm1427 = vcmp.ne.s32.totalorder %v1335, 0
        %vm1428 = vcmp.ne.s32.totalorder %v1364, 0
        %vm1429 = vcmp.ne.s32.totalorder %v1393, 0
        %vm1430 = vcmp.lt.s32.totalorder %v378, 0
        %vm1431 = vcmp.lt.s32.totalorder %v407, 0
        %vm1432 = vcmp.lt.s32.totalorder %v436, 0
        %vm1433 = vcmp.lt.s32.totalorder %v465, 0
        %vm1434 = vcmp.lt.s32.totalorder %v494, 0
        %vm1435 = vcmp.lt.s32.totalorder %v523, 0
        %vm1436 = vcmp.lt.s32.totalorder %v552, 0
        %vm1437 = vcmp.lt.s32.totalorder %v581, 0
        %vm1438 = vcmp.lt.s32.totalorder %v610, 0
        %vm1439 = vcmp.lt.s32.totalorder %v639, 0
        %vm1440 = vcmp.lt.s32.totalorder %v668, 0
        %vm1441 = vcmp.lt.s32.totalorder %v697, 0
        %vm1442 = vcmp.lt.s32.totalorder %v726, 0
        %vm1443 = vcmp.lt.s32.totalorder %v755, 0
        %vm1444 = vcmp.lt.s32.totalorder %v784, 0
        %vm1445 = vcmp.lt.s32.totalorder %v813, 0
        %vm1446 = vcmp.lt.s32.totalorder %v842, 0
        %vm1447 = vcmp.lt.s32.totalorder %v871, 0
        %vm1448 = vcmp.lt.s32.totalorder %v900, 0
        %vm1449 = vcmp.lt.s32.totalorder %v929, 0
        %vm1450 = vcmp.lt.s32.totalorder %v958, 0
        %vm1451 = vcmp.lt.s32.totalorder %v987, 0
        %vm1452 = vcmp.lt.s32.totalorder %v1016, 0
        %vm1453 = vcmp.lt.s32.totalorder %v1045, 0
        %vm1454 = vcmp.lt.s32.totalorder %v1074, 0
        %vm1455 = vcmp.lt.s32.totalorder %v1103, 0
        %vm1456 = vcmp.lt.s32.totalorder %v1132, 0
        %vm1457 = vcmp.lt.s32.totalorder %v1161, 0
        %vm1458 = vcmp.lt.s32.totalorder %v1190, 0
        %vm1459 = vcmp.lt.s32.totalorder %v1219, 0
        %vm1460 = vcmp.lt.s32.totalorder %v1248, 0
        %vm1461 = vcmp.lt.s32.totalorder %v1277, 0
        %vm1462 = vcmp.lt.s32.totalorder %v1306, 0
        %vm1463 = vcmp.lt.s32.totalorder %v1335, 0
        %vm1464 = vcmp.lt.s32.totalorder %v1364, 0
        %vm1465 = vcmp.lt.s32.totalorder %v1393, 0
        %vm1466 = vmand %vm1430, %vm1394
        %vm1467 = vmand %vm1431, %vm1395
        %vm1468 = vmand %vm1432, %vm1396
        %vm1469 = vmand %vm1433, %vm1397
        %vm1470 = vmand %vm1434, %vm1398
        %vm1471 = vmand %vm1435, %vm1399
        %vm1472 = vmand %vm1436, %vm1400
        %vm1473 = vmand %vm1437, %vm1401
        %vm1474 = vmand %vm1438, %vm1402
        %vm1475 = vmand %vm1439, %vm1403
        %vm1476 = vmand %vm1440, %vm1404
        %vm1477 = vmand %vm1441, %vm1405
        %vm1478 = vmand %vm1442, %vm1406
        %vm1479 = vmand %vm1443, %vm1407
        %vm1480 = vmand %vm1444, %vm1408
        %vm1481 = vmand %vm1445, %vm1409
        %vm1482 = vmand %vm1446, %vm1410
        %vm1483 = vmand %vm1447, %vm1411
        %vm1484 = vmand %vm1448, %vm1412
        %vm1485 = vmand %vm1449, %vm1413
        %vm1486 = vmand %vm1450, %vm1414
        %vm1487 = vmand %vm1451, %vm1415
        %vm1488 = vmand %vm1452, %vm1416
        %vm1489 = vmand %vm1453, %vm1417
        %vm1490 = vmand %vm1454, %vm1418
        %vm1491 = vmand %vm1455, %vm1419
        %vm1492 = vmand %vm1456, %vm1420
        %vm1493 = vmand %vm1457, %vm1421
        %vm1494 = vmand %vm1458, %vm1422
        %vm1495 = vmand %vm1459, %vm1423
        %vm1496 = vmand %vm1460, %vm1424
        %vm1497 = vmand %vm1461, %vm1425
        %vm1498 = vmand %vm1462, %vm1426
        %vm1499 = vmand %vm1463, %vm1427
        %vm1500 = vmand %vm1464, %vm1428
        %vm1501 = vmand %vm1465, %vm1429
        %v1502 = vadd.s32 %v378, 18
        %v1503 = vadd.s32 %v407, 18
        %v1504 = vadd.s32 %v436, 18
        %v1505 = vadd.s32 %v465, 18
        %v1506 = vadd.s32 %v494, 18
        %v1507 = vadd.s32 %v523, 18
        %v1508 = vadd.s32 %v552, 18
        %v1509 = vadd.s32 %v581, 18
        %v1510 = vadd.s32 %v610, 18
        %v1511 = vadd.s32 %v639, 18
        %v1512 = vadd.s32 %v668, 18
        %v1513 = vadd.s32 %v697, 18
        %v1514 = vadd.s32 %v726, 18
        %v1515 = vadd.s32 %v755, 18
        %v1516 = vadd.s32 %v784, 18
        %v1517 = vadd.s32 %v813, 18
        %v1518 = vadd.s32 %v842, 18
        %v1519 = vadd.s32 %v871, 18
        %v1520 = vadd.s32 %v900, 18
        %v1521 = vadd.s32 %v929, 18
        %v1522 = vadd.s32 %v958, 18
        %v1523 = vadd.s32 %v987, 18
        %v1524 = vadd.s32 %v1016, 18
        %v1525 = vadd.s32 %v1045, 18
        %v1526 = vadd.s32 %v1074, 18
        %v1527 = vadd.s32 %v1103, 18
        %v1528 = vadd.s32 %v1132, 18
        %v1529 = vadd.s32 %v1161, 18
        %v1530 = vadd.s32 %v1190, 18
        %v1531 = vadd.s32 %v1219, 18
        %v1532 = vadd.s32 %v1248, 18
        %v1533 = vadd.s32 %v1277, 18
        %v1534 = vadd.s32 %v1306, 18
        %v1535 = vadd.s32 %v1335, 18
        %v1536 = vadd.s32 %v1364, 18
        %v1537 = vadd.s32 %v1393, 18
        %v1538 = vsel %vm1466, %v1502, %v378
        %v1539 = vsel %vm1467, %v1503, %v407
        %v1540 = vsel %vm1468, %v1504, %v436
        %v1541 = vsel %vm1469, %v1505, %v465
        %v1542 = vsel %vm1470, %v1506, %v494
        %v1543 = vsel %vm1471, %v1507, %v523
        %v1544 = vsel %vm1472, %v1508, %v552
        %v1545 = vsel %vm1473, %v1509, %v581
        %v1546 = vsel %vm1474, %v1510, %v610
        %v1547 = vsel %vm1475, %v1511, %v639
        %v1548 = vsel %vm1476, %v1512, %v668
        %v1549 = vsel %vm1477, %v1513, %v697
        %v1550 = vsel %vm1478, %v1514, %v726
        %v1551 = vsel %vm1479, %v1515, %v755
        %v1552 = vsel %vm1480, %v1516, %v784
        %v1553 = vsel %vm1481, %v1517, %v813
        %v1554 = vsel %vm1482, %v1518, %v842
        %v1555 = vsel %vm1483, %v1519, %v871
        %v1556 = vsel %vm1484, %v1520, %v900
        %v1557 = vsel %vm1485, %v1521, %v929
        %v1558 = vsel %vm1486, %v1522, %v958
        %v1559 = vsel %vm1487, %v1523, %v987
        %v1560 = vsel %vm1488, %v1524, %v1016
        %v1561 = vsel %vm1489, %v1525, %v1045
        %v1562 = vsel %vm1490, %v1526, %v1074
        %v1563 = vsel %vm1491, %v1527, %v1103
        %v1564 = vsel %vm1492, %v1528, %v1132
        %v1565 = vsel %vm1493, %v1529, %v1161
        %v1566 = vsel %vm1494, %v1530, %v1190
        %v1567 = vsel %vm1495, %v1531, %v1219
        %v1568 = vsel %vm1496, %v1532, %v1248
        %v1569 = vsel %vm1497, %v1533, %v1277
        %v1570 = vsel %vm1498, %v1534, %v1306
        %v1571 = vsel %vm1499, %v1535, %v1335
        %v1572 = vsel %vm1500, %v1536, %v1364
        %v1573 = vsel %vm1501, %v1537, %v1393
        %vm1574 = vcmp.lt.s32.totalorder %v1538, 16
        %vm1575 = vcmp.lt.s32.totalorder %v1539, 16
        %vm1576 = vcmp.lt.s32.totalorder %v1540, 16
        %vm1577 = vcmp.lt.s32.totalorder %v1541, 16
        %vm1578 = vcmp.lt.s32.totalorder %v1542, 16
        %vm1579 = vcmp.lt.s32.totalorder %v1543, 16
        %vm1580 = vcmp.lt.s32.totalorder %v1544, 16
        %vm1581 = vcmp.lt.s32.totalorder %v1545, 16
        %vm1582 = vcmp.lt.s32.totalorder %v1546, 16
        %vm1583 = vcmp.lt.s32.totalorder %v1547, 16
        %vm1584 = vcmp.lt.s32.totalorder %v1548, 16
        %vm1585 = vcmp.lt.s32.totalorder %v1549, 16
        %vm1586 = vcmp.lt.s32.totalorder %v1550, 16
        %vm1587 = vcmp.lt.s32.totalorder %v1551, 16
        %vm1588 = vcmp.lt.s32.totalorder %v1552, 16
        %vm1589 = vcmp.lt.s32.totalorder %v1553, 16
        %vm1590 = vcmp.lt.s32.totalorder %v1554, 16
        %vm1591 = vcmp.lt.s32.totalorder %v1555, 16
        %vm1592 = vcmp.lt.s32.totalorder %v1556, 16
        %vm1593 = vcmp.lt.s32.totalorder %v1557, 16
        %vm1594 = vcmp.lt.s32.totalorder %v1558, 16
        %vm1595 = vcmp.lt.s32.totalorder %v1559, 16
        %vm1596 = vcmp.lt.s32.totalorder %v1560, 16
        %vm1597 = vcmp.lt.s32.totalorder %v1561, 16
        %vm1598 = vcmp.lt.s32.totalorder %v1562, 16
        %vm1599 = vcmp.lt.s32.totalorder %v1563, 16
        %vm1600 = vcmp.lt.s32.totalorder %v1564, 16
        %vm1601 = vcmp.lt.s32.totalorder %v1565, 16
        %vm1602 = vcmp.lt.s32.totalorder %v1566, 16
        %vm1603 = vcmp.lt.s32.totalorder %v1567, 16
        %vm1604 = vcmp.lt.s32.totalorder %v1568, 16
        %vm1605 = vcmp.lt.s32.totalorder %v1569, 16
        %vm1606 = vcmp.lt.s32.totalorder %v1570, 16
        %vm1607 = vcmp.lt.s32.totalorder %v1571, 16
        %vm1608 = vcmp.lt.s32.totalorder %v1572, 16
        %vm1609 = vcmp.lt.s32.totalorder %v1573, 16
        %v1610 = vld [vmem:[%s240] sm:$0xff]
        %v1611 = vld [vmem:[%s240 + $0x8] sm:$0xff]
        %v1612 = vld [vmem:[%s240 + $0x10] sm:$0xff]
        %v1613 = vld [vmem:[%s240 + $0x18] sm:$0xff]
        %v1614 = vld [vmem:[%s240 + $0x20] sm:$0xff]
        %v1615 = vld [vmem:[%s240 + $0x28] sm:$0xff]
        %v1616 = vld [vmem:[%s240 + $0x30] sm:$0xff]
        %v1617 = vld [vmem:[%s240 + $0x38] sm:$0xff]
        %v1618 = vld [vmem:[%s240 + $0x40] sm:$0xff]
        %v1619 = vld [vmem:[%s240 + $0x48] sm:$0xff]
        %v1620 = vld [vmem:[%s240 + $0x50] sm:$0xff]
        %v1621 = vld [vmem:[%s240 + $0x58] sm:$0xff]
        %v1622 = vld [vmem:[%s240 + $0x60] sm:$0xff]
        %v1623 = vld [vmem:[%s240 + $0x68] sm:$0xff]
        %v1624 = vld [vmem:[%s240 + $0x70] sm:$0xff]
        %v1625 = vld [vmem:[%s240 + $0x78] sm:$0xff]
        %v1626 = vld [vmem:[%s240 + $0x80] sm:$0xff]
        %v1627 = vld [vmem:[%s240 + $0x88] sm:$0xff]
        %v1628 = vld [vmem:[%s240 + $0x90] sm:$0xff]
        %v1629 = vld [vmem:[%s240 + $0x98] sm:$0xff]
        %v1630 = vld [vmem:[%s240 + $0xa0] sm:$0xff]
        %v1631 = vld [vmem:[%s240 + $0xa8] sm:$0xff]
        %v1632 = vld [vmem:[%s240 + $0xb0] sm:$0xff]
        %v1633 = vld [vmem:[%s240 + $0xb8] sm:$0xff]
        %v1634 = vld [vmem:[%s240 + $0xc0] sm:$0xff]
        %v1635 = vld [vmem:[%s240 + $0xc8] sm:$0xff]
        %v1636 = vld [vmem:[%s240 + $0xd0] sm:$0xff]
        %v1637 = vld [vmem:[%s240 + $0xd8] sm:$0xff]
        %v1638 = vld [vmem:[%s240 + $0xe0] sm:$0xff]
        %v1639 = vld [vmem:[%s240 + $0xe8] sm:$0xff]
        %v1640 = vld [vmem:[%s240 + $0xf0] sm:$0xff]
        %v1641 = vld [vmem:[%s240 + $0xf8] sm:$0xff]
        %v1642 = vld [vmem:[%s240 + $0x100] sm:$0xff]
        %v1643 = vld [vmem:[%s240 + $0x108] sm:$0xff]
        %v1644 = vld [vmem:[%s240 + $0x110] sm:$0xff]
        %v1645 = vld [vmem:[%s240 + $0x118] sm:$0xff]
        %v1646 = vpack.c.bf16 %v1610, %v1610
        %v1647 = vpack.c.bf16 %v1611, %v1611
        %v1648 = vpack.c.bf16 %v1612, %v1612
        %v1649 = vpack.c.bf16 %v1613, %v1613
        %v1650 = vpack.c.bf16 %v1614, %v1614
        %v1651 = vpack.c.bf16 %v1615, %v1615
        %v1652 = vpack.c.bf16 %v1616, %v1616
        %v1653 = vpack.c.bf16 %v1617, %v1617
        %v1654 = vpack.c.bf16 %v1618, %v1618
        %v1655 = vpack.c.bf16 %v1619, %v1619
        %v1656 = vpack.c.bf16 %v1620, %v1620
        %v1657 = vpack.c.bf16 %v1621, %v1621
        %v1658 = vpack.c.bf16 %v1622, %v1622
        %v1659 = vpack.c.bf16 %v1623, %v1623
        %v1660 = vpack.c.bf16 %v1624, %v1624
        %v1661 = vpack.c.bf16 %v1625, %v1625
        %v1662 = vpack.c.bf16 %v1626, %v1626
        %v1663 = vpack.c.bf16 %v1627, %v1627
        %v1664 = vpack.c.bf16 %v1628, %v1628
        %v1665 = vpack.c.bf16 %v1629, %v1629
        %v1666 = vpack.c.bf16 %v1630, %v1630
        %v1667 = vpack.c.bf16 %v1631, %v1631
        %v1668 = vpack.c.bf16 %v1632, %v1632
        %v1669 = vpack.c.bf16 %v1633, %v1633
        %v1670 = vpack.c.bf16 %v1634, %v1634
        %v1671 = vpack.c.bf16 %v1635, %v1635
        %v1672 = vpack.c.bf16 %v1636, %v1636
        %v1673 = vpack.c.bf16 %v1637, %v1637
        %v1674 = vpack.c.bf16 %v1638, %v1638
        %v1675 = vpack.c.bf16 %v1639, %v1639
        %v1676 = vpack.c.bf16 %v1640, %v1640
        %v1677 = vpack.c.bf16 %v1641, %v1641
        %v1678 = vpack.c.bf16 %v1642, %v1642
        %v1679 = vpack.c.bf16 %v1643, %v1643
        %v1680 = vpack.c.bf16 %v1644, %v1644
        %v1681 = vpack.c.bf16 %v1645, %v1645
        %vm1682 = vsmask.f32 5392
        %vm1683 = vmor %vm284, %vm1682
        %v1685 = vshrl.u32 %v1646, 16
        %v1687 = vrot.slane %v1685, 6
        %v1688 = vshll.u32 %v1646, 16
        %v1690 = vrot.slane %v1688, 7
        %v1691 = vor.u32 %v1687, %v1690
        %v1692 = vrot.slane %v1691, 4
        %v1694 = vshrl.u32 %v1647, 16
        %v1696 = vrot.slane %v1694, 6
        %v1697 = vshll.u32 %v1647, 16
        %v1699 = vrot.slane %v1697, 7
        %v1700 = vor.u32 %v1696, %v1699
        %v1701 = vsel %vm1683, %v1692, %v1700
        %v1702 = vrot.slane %v1700, 4
        %v1704 = vshrl.u32 %v1648, 16
        %v1706 = vrot.slane %v1704, 6
        %v1707 = vshll.u32 %v1648, 16
        %v1709 = vrot.slane %v1707, 7
        %v1710 = vor.u32 %v1706, %v1709
        %v1711 = vsel %vm1683, %v1702, %v1710
        %v1712 = vrot.slane %v1710, 4
        %v1714 = vshrl.u32 %v1649, 16
        %v1716 = vrot.slane %v1714, 6
        %v1717 = vshll.u32 %v1649, 16
        %v1719 = vrot.slane %v1717, 7
        %v1720 = vor.u32 %v1716, %v1719
        %v1721 = vsel %vm1683, %v1712, %v1720
        %v1722 = vrot.slane %v1720, 4
        %v1724 = vshrl.u32 %v1650, 16
        %v1726 = vrot.slane %v1724, 6
        %v1727 = vshll.u32 %v1650, 16
        %v1729 = vrot.slane %v1727, 7
        %v1730 = vor.u32 %v1726, %v1729
        %v1731 = vsel %vm1683, %v1722, %v1730
        %v1732 = vrot.slane %v1730, 4
        %v1734 = vshrl.u32 %v1651, 16
        %v1736 = vrot.slane %v1734, 6
        %v1737 = vshll.u32 %v1651, 16
        %v1739 = vrot.slane %v1737, 7
        %v1740 = vor.u32 %v1736, %v1739
        %v1741 = vsel %vm1683, %v1732, %v1740
        %v1742 = vrot.slane %v1740, 4
        %v1744 = vshrl.u32 %v1652, 16
        %v1746 = vrot.slane %v1744, 6
        %v1747 = vshll.u32 %v1652, 16
        %v1749 = vrot.slane %v1747, 7
        %v1750 = vor.u32 %v1746, %v1749
        %v1751 = vsel %vm1683, %v1742, %v1750
        %v1752 = vrot.slane %v1750, 4
        %v1754 = vshrl.u32 %v1653, 16
        %v1756 = vrot.slane %v1754, 6
        %v1757 = vshll.u32 %v1653, 16
        %v1759 = vrot.slane %v1757, 7
        %v1760 = vor.u32 %v1756, %v1759
        %v1761 = vsel %vm1683, %v1752, %v1760
        %v1762 = vrot.slane %v1760, 4
        %v1764 = vshrl.u32 %v1654, 16
        %v1766 = vrot.slane %v1764, 6
        %v1767 = vshll.u32 %v1654, 16
        %v1769 = vrot.slane %v1767, 7
        %v1770 = vor.u32 %v1766, %v1769
        %v1771 = vsel %vm1683, %v1762, %v1770
        %v1772 = vrot.slane %v1770, 4
        %v1774 = vshrl.u32 %v1655, 16
        %v1776 = vrot.slane %v1774, 6
        %v1777 = vshll.u32 %v1655, 16
        %v1779 = vrot.slane %v1777, 7
        %v1780 = vor.u32 %v1776, %v1779
        %v1781 = vsel %vm1683, %v1772, %v1780
        %v1782 = vrot.slane %v1780, 4
        %v1784 = vshrl.u32 %v1656, 16
        %v1786 = vrot.slane %v1784, 6
        %v1787 = vshll.u32 %v1656, 16
        %v1789 = vrot.slane %v1787, 7
        %v1790 = vor.u32 %v1786, %v1789
        %v1791 = vsel %vm1683, %v1782, %v1790
        %v1792 = vrot.slane %v1790, 4
        %v1794 = vshrl.u32 %v1657, 16
        %v1796 = vrot.slane %v1794, 6
        %v1797 = vshll.u32 %v1657, 16
        %v1799 = vrot.slane %v1797, 7
        %v1800 = vor.u32 %v1796, %v1799
        %v1801 = vsel %vm1683, %v1792, %v1800
        %v1802 = vrot.slane %v1800, 4
        %v1804 = vshrl.u32 %v1658, 16
        %v1806 = vrot.slane %v1804, 6
        %v1807 = vshll.u32 %v1658, 16
        %v1809 = vrot.slane %v1807, 7
        %v1810 = vor.u32 %v1806, %v1809
        %v1811 = vsel %vm1683, %v1802, %v1810
        %v1812 = vrot.slane %v1810, 4
        %v1814 = vshrl.u32 %v1659, 16
        %v1816 = vrot.slane %v1814, 6
        %v1817 = vshll.u32 %v1659, 16
        %v1819 = vrot.slane %v1817, 7
        %v1820 = vor.u32 %v1816, %v1819
        %v1821 = vsel %vm1683, %v1812, %v1820
        %v1822 = vrot.slane %v1820, 4
        %v1824 = vshrl.u32 %v1660, 16
        %v1826 = vrot.slane %v1824, 6
        %v1827 = vshll.u32 %v1660, 16
        %v1829 = vrot.slane %v1827, 7
        %v1830 = vor.u32 %v1826, %v1829
        %v1831 = vsel %vm1683, %v1822, %v1830
        %v1832 = vrot.slane %v1830, 4
        %v1834 = vshrl.u32 %v1661, 16
        %v1836 = vrot.slane %v1834, 6
        %v1837 = vshll.u32 %v1661, 16
        %v1839 = vrot.slane %v1837, 7
        %v1840 = vor.u32 %v1836, %v1839
        %v1841 = vsel %vm1683, %v1832, %v1840
        %v1842 = vrot.slane %v1840, 4
        %v1844 = vshrl.u32 %v1662, 16
        %v1846 = vrot.slane %v1844, 6
        %v1847 = vshll.u32 %v1662, 16
        %v1849 = vrot.slane %v1847, 7
        %v1850 = vor.u32 %v1846, %v1849
        %v1851 = vsel %vm1683, %v1842, %v1850
        %v1852 = vrot.slane %v1850, 4
        %v1854 = vshrl.u32 %v1663, 16
        %v1856 = vrot.slane %v1854, 6
        %v1857 = vshll.u32 %v1663, 16
        %v1859 = vrot.slane %v1857, 7
        %v1860 = vor.u32 %v1856, %v1859
        %v1861 = vsel %vm1683, %v1852, %v1860
        %v1862 = vrot.slane %v1860, 4
        %v1864 = vshrl.u32 %v1664, 16
        %v1866 = vrot.slane %v1864, 6
        %v1867 = vshll.u32 %v1664, 16
        %v1869 = vrot.slane %v1867, 7
        %v1870 = vor.u32 %v1866, %v1869
        %v1871 = vsel %vm1683, %v1862, %v1870
        %v1872 = vrot.slane %v1870, 4
        %v1874 = vshrl.u32 %v1665, 16
        %v1876 = vrot.slane %v1874, 6
        %v1877 = vshll.u32 %v1665, 16
        %v1879 = vrot.slane %v1877, 7
        %v1880 = vor.u32 %v1876, %v1879
        %v1881 = vsel %vm1683, %v1872, %v1880
        %v1882 = vrot.slane %v1880, 4
        %v1884 = vshrl.u32 %v1666, 16
        %v1886 = vrot.slane %v1884, 6
        %v1887 = vshll.u32 %v1666, 16
        %v1889 = vrot.slane %v1887, 7
        %v1890 = vor.u32 %v1886, %v1889
        %v1891 = vsel %vm1683, %v1882, %v1890
        %v1892 = vrot.slane %v1890, 4
        %v1894 = vshrl.u32 %v1667, 16
        %v1896 = vrot.slane %v1894, 6
        %v1897 = vshll.u32 %v1667, 16
        %v1899 = vrot.slane %v1897, 7
        %v1900 = vor.u32 %v1896, %v1899
        %v1901 = vsel %vm1683, %v1892, %v1900
        %v1902 = vrot.slane %v1900, 4
        %v1904 = vshrl.u32 %v1668, 16
        %v1906 = vrot.slane %v1904, 6
        %v1907 = vshll.u32 %v1668, 16
        %v1909 = vrot.slane %v1907, 7
        %v1910 = vor.u32 %v1906, %v1909
        %v1911 = vsel %vm1683, %v1902, %v1910
        %v1912 = vrot.slane %v1910, 4
        %v1914 = vshrl.u32 %v1669, 16
        %v1916 = vrot.slane %v1914, 6
        %v1917 = vshll.u32 %v1669, 16
        %v1919 = vrot.slane %v1917, 7
        %v1920 = vor.u32 %v1916, %v1919
        %v1921 = vsel %vm1683, %v1912, %v1920
        %v1922 = vrot.slane %v1920, 4
        %v1924 = vshrl.u32 %v1670, 16
        %v1926 = vrot.slane %v1924, 6
        %v1927 = vshll.u32 %v1670, 16
        %v1929 = vrot.slane %v1927, 7
        %v1930 = vor.u32 %v1926, %v1929
        %v1931 = vsel %vm1683, %v1922, %v1930
        %v1932 = vrot.slane %v1930, 4
        %v1934 = vshrl.u32 %v1671, 16
        %v1936 = vrot.slane %v1934, 6
        %v1937 = vshll.u32 %v1671, 16
        %v1939 = vrot.slane %v1937, 7
        %v1940 = vor.u32 %v1936, %v1939
        %v1941 = vsel %vm1683, %v1932, %v1940
        %v1942 = vrot.slane %v1940, 4
        %v1944 = vshrl.u32 %v1672, 16
        %v1946 = vrot.slane %v1944, 6
        %v1947 = vshll.u32 %v1672, 16
        %v1949 = vrot.slane %v1947, 7
        %v1950 = vor.u32 %v1946, %v1949
        %v1951 = vsel %vm1683, %v1942, %v1950
        %v1952 = vrot.slane %v1950, 4
        %v1954 = vshrl.u32 %v1673, 16
        %v1956 = vrot.slane %v1954, 6
        %v1957 = vshll.u32 %v1673, 16
        %v1959 = vrot.slane %v1957, 7
        %v1960 = vor.u32 %v1956, %v1959
        %v1961 = vsel %vm1683, %v1952, %v1960
        %v1962 = vrot.slane %v1960, 4
        %v1964 = vshrl.u32 %v1674, 16
        %v1966 = vrot.slane %v1964, 6
        %v1967 = vshll.u32 %v1674, 16
        %v1969 = vrot.slane %v1967, 7
        %v1970 = vor.u32 %v1966, %v1969
        %v1971 = vsel %vm1683, %v1962, %v1970
        %v1972 = vrot.slane %v1970, 4
        %v1974 = vshrl.u32 %v1675, 16
        %v1976 = vrot.slane %v1974, 6
        %v1977 = vshll.u32 %v1675, 16
        %v1979 = vrot.slane %v1977, 7
        %v1980 = vor.u32 %v1976, %v1979
        %v1981 = vsel %vm1683, %v1972, %v1980
        %v1982 = vrot.slane %v1980, 4
        %v1984 = vshrl.u32 %v1676, 16
        %v1986 = vrot.slane %v1984, 6
        %v1987 = vshll.u32 %v1676, 16
        %v1989 = vrot.slane %v1987, 7
        %v1990 = vor.u32 %v1986, %v1989
        %v1991 = vsel %vm1683, %v1982, %v1990
        %v1992 = vrot.slane %v1990, 4
        %v1994 = vshrl.u32 %v1677, 16
        %v1996 = vrot.slane %v1994, 6
        %v1997 = vshll.u32 %v1677, 16
        %v1999 = vrot.slane %v1997, 7
        %v2000 = vor.u32 %v1996, %v1999
        %v2001 = vsel %vm1683, %v1992, %v2000
        %v2002 = vrot.slane %v2000, 4
        %v2004 = vshrl.u32 %v1678, 16
        %v2006 = vrot.slane %v2004, 6
        %v2007 = vshll.u32 %v1678, 16
        %v2009 = vrot.slane %v2007, 7
        %v2010 = vor.u32 %v2006, %v2009
        %v2011 = vsel %vm1683, %v2002, %v2010
        %v2012 = vrot.slane %v2010, 4
        %v2014 = vshrl.u32 %v1679, 16
        %v2016 = vrot.slane %v2014, 6
        %v2017 = vshll.u32 %v1679, 16
        %v2019 = vrot.slane %v2017, 7
        %v2020 = vor.u32 %v2016, %v2019
        %v2021 = vsel %vm1683, %v2012, %v2020
        %v2022 = vrot.slane %v2020, 4
        %v2024 = vshrl.u32 %v1680, 16
        %v2026 = vrot.slane %v2024, 6
        %v2027 = vshll.u32 %v1680, 16
        %v2029 = vrot.slane %v2027, 7
        %v2030 = vor.u32 %v2026, %v2029
        %v2031 = vsel %vm1683, %v2022, %v2030
        %v2032 = vrot.slane %v2030, 4
        %v2034 = vshrl.u32 %v1681, 16
        %v2036 = vrot.slane %v2034, 6
        %v2037 = vshll.u32 %v1681, 16
        %v2039 = vrot.slane %v2037, 7
        %v2040 = vor.u32 %v2036, %v2039
        %v2041 = vsel %vm1683, %v2032, %v2040
        %v2042 = vrot.slane %v2040, 4
        %vm2080 = vcmask 1043457
        %vm2081 = vsmask.f32 7942
        %vm2082 = vmand %vm2080, %vm2081
        %v2083 = vld [vmem:[#allocation2 + $0x18] sm:$0xe]
        %v2084 = vsel %vm2082, %v1691, %v2083
        %2085 = vst [vmem:[#allocation2 + $0x18] sm:$0xe] %v2084
        %2086 = vst [vmem:[#allocation2 + $0x24] sm:$0xf] %v1701
        %2087 = vst [vmem:[#allocation2 + $0x30] sm:$0xf] %v1711
        %2088 = vst [vmem:[#allocation2 + $0x3c] sm:$0xf] %v1721
        %2089 = vst [vmem:[#allocation2 + $0x48] sm:$0xf] %v1731
        %2090 = vst [vmem:[#allocation2 + $0x54] sm:$0xf] %v1741
        %2091 = vst [vmem:[#allocation2 + $0x60] sm:$0xf] %v1751
        %2092 = vst [vmem:[#allocation2 + $0x6c] sm:$0xf] %v1761
        %2093 = vst [vmem:[#allocation2 + $0x78] sm:$0xf] %v1771
        %2094 = vst [vmem:[#allocation2 + $0x84] sm:$0xf] %v1781
        %2095 = vst [vmem:[#allocation2 + $0x90] sm:$0xf] %v1791
        %2096 = vst [vmem:[#allocation2 + $0x9c] sm:$0xf] %v1801
        %2097 = vst [vmem:[#allocation2 + $0xa8] sm:$0xf] %v1811
        %2098 = vst [vmem:[#allocation2 + $0xb4] sm:$0xf] %v1821
        %2099 = vst [vmem:[#allocation2 + $0xc0] sm:$0xf] %v1831
        %2100 = vst [vmem:[#allocation2 + $0xcc] sm:$0xf] %v1841
        %2101 = vst [vmem:[#allocation2 + $0xd8] sm:$0xf] %v1851
        %2102 = vst [vmem:[#allocation2 + $0xe4] sm:$0xf] %v1861
        %2103 = vst [vmem:[#allocation2 + $0xf0] sm:$0xf] %v1871
        %2104 = vst [vmem:[#allocation2 + $0xfc] sm:$0xf] %v1881
        %2105 = vst [vmem:[#allocation2 + $0x108] sm:$0xf] %v1891
        %2106 = vst [vmem:[#allocation2 + $0x114] sm:$0xf] %v1901
        %2107 = vst [vmem:[#allocation2 + $0x120] sm:$0xf] %v1911
        %2108 = vst [vmem:[#allocation2 + $0x12c] sm:$0xf] %v1921
        %2109 = vst [vmem:[#allocation2 + $0x138] sm:$0xf] %v1931
        %2110 = vst [vmem:[#allocation2 + $0x144] sm:$0xf] %v1941
        %2111 = vst [vmem:[#allocation2 + $0x150] sm:$0xf] %v1951
        %2112 = vst [vmem:[#allocation2 + $0x15c] sm:$0xf] %v1961
        %2113 = vst [vmem:[#allocation2 + $0x168] sm:$0xf] %v1971
        %2114 = vst [vmem:[#allocation2 + $0x174] sm:$0xf] %v1981
        %2115 = vst [vmem:[#allocation2 + $0x180] sm:$0xf] %v1991
        %2116 = vst [vmem:[#allocation2 + $0x18c] sm:$0xf] %v2001
        %2117 = vst [vmem:[#allocation2 + $0x198] sm:$0xf] %v2011
        %2118 = vst [vmem:[#allocation2 + $0x1a4] sm:$0xf] %v2021
        %2119 = vst [vmem:[#allocation2 + $0x1b0] sm:$0xf] %v2031
        %2120 = vst [vmem:[#allocation2 + $0x1bc] sm:$0xf] %v2041
        %v2121 = vld [vmem:[#allocation2 + $0x1c8] sm:$0x3]
        %v2122 = vsel %vm285, %v2042, %v2121
        %2123 = vst [vmem:[#allocation2 + $0x1c8] sm:$0x3] %v2122
        %vm2160 = vcmask 1040384
        %vm2161 = vcmask 1044484
        %vm2162 = vmor %vm2160, %vm2161
        %v2163 = vrot.slane %v1646, 7
        %v2164 = vrot.slane %v2163, 4
        %v2165 = vrot.slane %v1647, 7
        %v2166 = vsel %vm2162, %v2164, %v2165
        %v2167 = vrot.slane %v2165, 4
        %v2168 = vrot.slane %v1648, 7
        %v2169 = vsel %vm2162, %v2167, %v2168
        %v2170 = vrot.slane %v2168, 4
        %v2171 = vrot.slane %v1649, 7
        %v2172 = vsel %vm2162, %v2170, %v2171
        %v2173 = vrot.slane %v2171, 4
        %v2174 = vrot.slane %v1650, 7
        %v2175 = vsel %vm2162, %v2173, %v2174
        %v2176 = vrot.slane %v2174, 4
        %v2177 = vrot.slane %v1651, 7
        %v2178 = vsel %vm2162, %v2176, %v2177
        %v2179 = vrot.slane %v2177, 4
        %v2180 = vrot.slane %v1652, 7
        %v2181 = vsel %vm2162, %v2179, %v2180
        %v2182 = vrot.slane %v2180, 4
        %v2183 = vrot.slane %v1653, 7
        %v2184 = vsel %vm2162, %v2182, %v2183
        %v2185 = vrot.slane %v2183, 4
        %v2186 = vrot.slane %v1654, 7
        %v2187 = vsel %vm2162, %v2185, %v2186
        %v2188 = vrot.slane %v2186, 4
        %v2189 = vrot.slane %v1655, 7
        %v2190 = vsel %vm2162, %v2188, %v2189
        %v2191 = vrot.slane %v2189, 4
        %v2192 = vrot.slane %v1656, 7
        %v2193 = vsel %vm2162, %v2191, %v2192
        %v2194 = vrot.slane %v2192, 4
        %v2195 = vrot.slane %v1657, 7
        %v2196 = vsel %vm2162, %v2194, %v2195
        %v2197 = vrot.slane %v2195, 4
        %v2198 = vrot.slane %v1658, 7
        %v2199 = vsel %vm2162, %v2197, %v2198
        %v2200 = vrot.slane %v2198, 4
        %v2201 = vrot.slane %v1659, 7
        %v2202 = vsel %vm2162, %v2200, %v2201
        %v2203 = vrot.slane %v2201, 4
        %v2204 = vrot.slane %v1660, 7
        %v2205 = vsel %vm2162, %v2203, %v2204
        %v2206 = vrot.slane %v2204, 4
        %v2207 = vrot.slane %v1661, 7
        %v2208 = vsel %vm2162, %v2206, %v2207
        %v2209 = vrot.slane %v2207, 4
        %v2210 = vrot.slane %v1662, 7
        %v2211 = vsel %vm2162, %v2209, %v2210
        %v2212 = vrot.slane %v2210, 4
        %v2213 = vrot.slane %v1663, 7
        %v2214 = vsel %vm2162, %v2212, %v2213
        %v2215 = vrot.slane %v2213, 4
        %v2216 = vrot.slane %v1664, 7
        %v2217 = vsel %vm2162, %v2215, %v2216
        %v2218 = vrot.slane %v2216, 4
        %v2219 = vrot.slane %v1665, 7
        %v2220 = vsel %vm2162, %v2218, %v2219
        %v2221 = vrot.slane %v2219, 4
        %v2222 = vrot.slane %v1666, 7
        %v2223 = vsel %vm2162, %v2221, %v2222
        %v2224 = vrot.slane %v2222, 4
        %v2225 = vrot.slane %v1667, 7
        %v2226 = vsel %vm2162, %v2224, %v2225
        %v2227 = vrot.slane %v2225, 4
        %v2228 = vrot.slane %v1668, 7
        %v2229 = vsel %vm2162, %v2227, %v2228
        %v2230 = vrot.slane %v2228, 4
        %v2231 = vrot.slane %v1669, 7
        %v2232 = vsel %vm2162, %v2230, %v2231
        %v2233 = vrot.slane %v2231, 4
        %v2234 = vrot.slane %v1670, 7
        %v2235 = vsel %vm2162, %v2233, %v2234
        %v2236 = vrot.slane %v2234, 4
        %v2237 = vrot.slane %v1671, 7
        %v2238 = vsel %vm2162, %v2236, %v2237
        %v2239 = vrot.slane %v2237, 4
        %v2240 = vrot.slane %v1672, 7
        %v2241 = vsel %vm2162, %v2239, %v2240
        %v2242 = vrot.slane %v2240, 4
        %v2243 = vrot.slane %v1673, 7
        %v2244 = vsel %vm2162, %v2242, %v2243
        %v2245 = vrot.slane %v2243, 4
        %v2246 = vrot.slane %v1674, 7
        %v2247 = vsel %vm2162, %v2245, %v2246
        %v2248 = vrot.slane %v2246, 4
        %v2249 = vrot.slane %v1675, 7
        %v2250 = vsel %vm2162, %v2248, %v2249
        %v2251 = vrot.slane %v2249, 4
        %v2252 = vrot.slane %v1676, 7
        %v2253 = vsel %vm2162, %v2251, %v2252
        %v2254 = vrot.slane %v2252, 4
        %v2255 = vrot.slane %v1677, 7
        %v2256 = vsel %vm2162, %v2254, %v2255
        %v2257 = vrot.slane %v2255, 4
        %v2258 = vrot.slane %v1678, 7
        %v2259 = vsel %vm2162, %v2257, %v2258
        %v2260 = vrot.slane %v2258, 4
        %v2261 = vrot.slane %v1679, 7
        %v2262 = vsel %vm2162, %v2260, %v2261
        %v2263 = vrot.slane %v2261, 4
        %v2264 = vrot.slane %v1680, 7
        %v2265 = vsel %vm2162, %v2263, %v2264
        %v2266 = vrot.slane %v2264, 4
        %v2267 = vrot.slane %v1681, 7
        %v2268 = vsel %vm2162, %v2266, %v2267
        %v2269 = vrot.slane %v2267, 4
        %2307 = vst [vmem:[#allocation2 + $0x1c] sm:$0xe] %v2163
        %2308 = vst [vmem:[#allocation2 + $0x28] sm:$0xf] %v2166
        %2309 = vst [vmem:[#allocation2 + $0x34] sm:$0xf] %v2169
        %2310 = vst [vmem:[#allocation2 + $0x40] sm:$0xf] %v2172
        %2311 = vst [vmem:[#allocation2 + $0x4c] sm:$0xf] %v2175
        %2312 = vst [vmem:[#allocation2 + $0x58] sm:$0xf] %v2178
        %2313 = vst [vmem:[#allocation2 + $0x64] sm:$0xf] %v2181
        %2314 = vst [vmem:[#allocation2 + $0x70] sm:$0xf] %v2184
        %2315 = vst [vmem:[#allocation2 + $0x7c] sm:$0xf] %v2187
        %2316 = vst [vmem:[#allocation2 + $0x88] sm:$0xf] %v2190
        %2317 = vst [vmem:[#allocation2 + $0x94] sm:$0xf] %v2193
        %2318 = vst [vmem:[#allocation2 + $0xa0] sm:$0xf] %v2196
        %2319 = vst [vmem:[#allocation2 + $0xac] sm:$0xf] %v2199
        %2320 = vst [vmem:[#allocation2 + $0xb8] sm:$0xf] %v2202
        %2321 = vst [vmem:[#allocation2 + $0xc4] sm:$0xf] %v2205
        %2322 = vst [vmem:[#allocation2 + $0xd0] sm:$0xf] %v2208
        %2323 = vst [vmem:[#allocation2 + $0xdc] sm:$0xf] %v2211
        %2324 = vst [vmem:[#allocation2 + $0xe8] sm:$0xf] %v2214
        %2325 = vst [vmem:[#allocation2 + $0xf4] sm:$0xf] %v2217
        %2326 = vst [vmem:[#allocation2 + $0x100] sm:$0xf] %v2220
        %2327 = vst [vmem:[#allocation2 + $0x10c] sm:$0xf] %v2223
        %2328 = vst [vmem:[#allocation2 + $0x118] sm:$0xf] %v2226
        %2329 = vst [vmem:[#allocation2 + $0x124] sm:$0xf] %v2229
        %2330 = vst [vmem:[#allocation2 + $0x130] sm:$0xf] %v2232
        %2331 = vst [vmem:[#allocation2 + $0x13c] sm:$0xf] %v2235
        %2332 = vst [vmem:[#allocation2 + $0x148] sm:$0xf] %v2238
        %2333 = vst [vmem:[#allocation2 + $0x154] sm:$0xf] %v2241
        %2334 = vst [vmem:[#allocation2 + $0x160] sm:$0xf] %v2244
        %2335 = vst [vmem:[#allocation2 + $0x16c] sm:$0xf] %v2247
        %2336 = vst [vmem:[#allocation2 + $0x178] sm:$0xf] %v2250
        %2337 = vst [vmem:[#allocation2 + $0x184] sm:$0xf] %v2253
        %2338 = vst [vmem:[#allocation2 + $0x190] sm:$0xf] %v2256
        %2339 = vst [vmem:[#allocation2 + $0x19c] sm:$0xf] %v2259
        %2340 = vst [vmem:[#allocation2 + $0x1a8] sm:$0xf] %v2262
        %2341 = vst [vmem:[#allocation2 + $0x1b4] sm:$0xf] %v2265
        %2342 = vst [vmem:[#allocation2 + $0x1c0] sm:$0xf] %v2268
        %2343 = vst [vmem:[#allocation2 + $0x1cc] sm:$0x1] %v2269
        %vm2344 = vsmask.f32 256
        %vm2345 = vsmask.f32 4368
        %vm2346 = vmor %vm2344, %vm2345
        %v2347 = vrot.slane %v1685, 7
        %v2348 = vor.u32 %v2347, %v1688
        %v2349 = vrot.slane %v2347, 4
        %v2350 = vrot.slane %v1694, 7
        %v2351 = vor.u32 %v2350, %v1697
        %v2352 = vsel %vm2346, %v2349, %v2351
        %v2353 = vrot.slane %v2350, 4
        %v2354 = vrot.slane %v1704, 7
        %v2355 = vor.u32 %v2354, %v1707
        %v2356 = vsel %vm2346, %v2353, %v2355
        %v2357 = vrot.slane %v2354, 4
        %v2358 = vrot.slane %v1714, 7
        %v2359 = vor.u32 %v2358, %v1717
        %v2360 = vsel %vm2346, %v2357, %v2359
        %v2361 = vrot.slane %v2358, 4
        %v2362 = vrot.slane %v1724, 7
        %v2363 = vor.u32 %v2362, %v1727
        %v2364 = vsel %vm2346, %v2361, %v2363
        %v2365 = vrot.slane %v2362, 4
        %v2366 = vrot.slane %v1734, 7
        %v2367 = vor.u32 %v2366, %v1737
        %v2368 = vsel %vm2346, %v2365, %v2367
        %v2369 = vrot.slane %v2366, 4
        %v2370 = vrot.slane %v1744, 7
        %v2371 = vor.u32 %v2370, %v1747
        %v2372 = vsel %vm2346, %v2369, %v2371
        %v2373 = vrot.slane %v2370, 4
        %v2374 = vrot.slane %v1754, 7
        %v2375 = vor.u32 %v2374, %v1757
        %v2376 = vsel %vm2346, %v2373, %v2375
        %v2377 = vrot.slane %v2374, 4
        %v2378 = vrot.slane %v1764, 7
        %v2379 = vor.u32 %v2378, %v1767
        %v2380 = vsel %vm2346, %v2377, %v2379
        %v2381 = vrot.slane %v2378, 4
        %v2382 = vrot.slane %v1774, 7
        %v2383 = vor.u32 %v2382, %v1777
        %v2384 = vsel %vm2346, %v2381, %v2383
        %v2385 = vrot.slane %v2382, 4
        %v2386 = vrot.slane %v1784, 7
        %v2387 = vor.u32 %v2386, %v1787
        %v2388 = vsel %vm2346, %v2385, %v2387
        %v2389 = vrot.slane %v2386, 4
        %v2390 = vrot.slane %v1794, 7
        %v2391 = vor.u32 %v2390, %v1797
        %v2392 = vsel %vm2346, %v2389, %v2391
        %v2393 = vrot.slane %v2390, 4
        %v2394 = vrot.slane %v1804, 7
        %v2395 = vor.u32 %v2394, %v1807
        %v2396 = vsel %vm2346, %v2393, %v2395
        %v2397 = vrot.slane %v2394, 4
        %v2398 = vrot.slane %v1814, 7
        %v2399 = vor.u32 %v2398, %v1817
        %v2400 = vsel %vm2346, %v2397, %v2399
        %v2401 = vrot.slane %v2398, 4
        %v2402 = vrot.slane %v1824, 7
        %v2403 = vor.u32 %v2402, %v1827
        %v2404 = vsel %vm2346, %v2401, %v2403
        %v2405 = vrot.slane %v2402, 4
        %v2406 = vrot.slane %v1834, 7
        %v2407 = vor.u32 %v2406, %v1837
        %v2408 = vsel %vm2346, %v2405, %v2407
        %v2409 = vrot.slane %v2406, 4
        %v2410 = vrot.slane %v1844, 7
        %v2411 = vor.u32 %v2410, %v1847
        %v2412 = vsel %vm2346, %v2409, %v2411
        %v2413 = vrot.slane %v2410, 4
        %v2414 = vrot.slane %v1854, 7
        %v2415 = vor.u32 %v2414, %v1857
        %v2416 = vsel %vm2346, %v2413, %v2415
        %v2417 = vrot.slane %v2414, 4
        %v2418 = vrot.slane %v1864, 7
        %v2419 = vor.u32 %v2418, %v1867
        %v2420 = vsel %vm2346, %v2417, %v2419
        %v2421 = vrot.slane %v2418, 4
        %v2422 = vrot.slane %v1874, 7
        %v2423 = vor.u32 %v2422, %v1877
        %v2424 = vsel %vm2346, %v2421, %v2423
        %v2425 = vrot.slane %v2422, 4
        %v2426 = vrot.slane %v1884, 7
        %v2427 = vor.u32 %v2426, %v1887
        %v2428 = vsel %vm2346, %v2425, %v2427
        %v2429 = vrot.slane %v2426, 4
        %v2430 = vrot.slane %v1894, 7
        %v2431 = vor.u32 %v2430, %v1897
        %v2432 = vsel %vm2346, %v2429, %v2431
        %v2433 = vrot.slane %v2430, 4
        %v2434 = vrot.slane %v1904, 7
        %v2435 = vor.u32 %v2434, %v1907
        %v2436 = vsel %vm2346, %v2433, %v2435
        %v2437 = vrot.slane %v2434, 4
        %v2438 = vrot.slane %v1914, 7
        %v2439 = vor.u32 %v2438, %v1917
        %v2440 = vsel %vm2346, %v2437, %v2439
        %v2441 = vrot.slane %v2438, 4
        %v2442 = vrot.slane %v1924, 7
        %v2443 = vor.u32 %v2442, %v1927
        %v2444 = vsel %vm2346, %v2441, %v2443
        %v2445 = vrot.slane %v2442, 4
        %v2446 = vrot.slane %v1934, 7
        %v2447 = vor.u32 %v2446, %v1937
        %v2448 = vsel %vm2346, %v2445, %v2447
        %v2449 = vrot.slane %v2446, 4
        %v2450 = vrot.slane %v1944, 7
        %v2451 = vor.u32 %v2450, %v1947
        %v2452 = vsel %vm2346, %v2449, %v2451
        %v2453 = vrot.slane %v2450, 4
        %v2454 = vrot.slane %v1954, 7
        %v2455 = vor.u32 %v2454, %v1957
        %v2456 = vsel %vm2346, %v2453, %v2455
        %v2457 = vrot.slane %v2454, 4
        %v2458 = vrot.slane %v1964, 7
        %v2459 = vor.u32 %v2458, %v1967
        %v2460 = vsel %vm2346, %v2457, %v2459
        %v2461 = vrot.slane %v2458, 4
        %v2462 = vrot.slane %v1974, 7
        %v2463 = vor.u32 %v2462, %v1977
        %v2464 = vsel %vm2346, %v2461, %v2463
        %v2465 = vrot.slane %v2462, 4
        %v2466 = vrot.slane %v1984, 7
        %v2467 = vor.u32 %v2466, %v1987
        %v2468 = vsel %vm2346, %v2465, %v2467
        %v2469 = vrot.slane %v2466, 4
        %v2470 = vrot.slane %v1994, 7
        %v2471 = vor.u32 %v2470, %v1997
        %v2472 = vsel %vm2346, %v2469, %v2471
        %v2473 = vrot.slane %v2470, 4
        %v2474 = vrot.slane %v2004, 7
        %v2475 = vor.u32 %v2474, %v2007
        %v2476 = vsel %vm2346, %v2473, %v2475
        %v2477 = vrot.slane %v2474, 4
        %v2478 = vrot.slane %v2014, 7
        %v2479 = vor.u32 %v2478, %v2017
        %v2480 = vsel %vm2346, %v2477, %v2479
        %v2481 = vrot.slane %v2478, 4
        %v2482 = vrot.slane %v2024, 7
        %v2483 = vor.u32 %v2482, %v2027
        %v2484 = vsel %vm2346, %v2481, %v2483
        %v2485 = vrot.slane %v2482, 4
        %v2486 = vrot.slane %v2034, 7
        %v2487 = vor.u32 %v2486, %v2037
        %v2488 = vsel %vm2346, %v2485, %v2487
        %v2489 = vrot.slane %v2486, 4
        %v2527 = vld [vmem:[#allocation2 + $0x20] sm:$0xf]
        %v2528 = vsel %vm298, %v2348, %v2527
        %2529 = vst [vmem:[#allocation2 + $0x20] sm:$0xf] %v2528
        %2530 = vst [vmem:[#allocation2 + $0x2c] sm:$0xf] %v2352
        %2531 = vst [vmem:[#allocation2 + $0x38] sm:$0xf] %v2356
        %2532 = vst [vmem:[#allocation2 + $0x44] sm:$0xf] %v2360
        %2533 = vst [vmem:[#allocation2 + $0x50] sm:$0xf] %v2364
        %2534 = vst [vmem:[#allocation2 + $0x5c] sm:$0xf] %v2368
        %2535 = vst [vmem:[#allocation2 + $0x68] sm:$0xf] %v2372
        %2536 = vst [vmem:[#allocation2 + $0x74] sm:$0xf] %v2376
        %2537 = vst [vmem:[#allocation2 + $0x80] sm:$0xf] %v2380
        %2538 = vst [vmem:[#allocation2 + $0x8c] sm:$0xf] %v2384
        %2539 = vst [vmem:[#allocation2 + $0x98] sm:$0xf] %v2388
        %2540 = vst [vmem:[#allocation2 + $0xa4] sm:$0xf] %v2392
        %2541 = vst [vmem:[#allocation2 + $0xb0] sm:$0xf] %v2396
        %2542 = vst [vmem:[#allocation2 + $0xbc] sm:$0xf] %v2400
        %2543 = vst [vmem:[#allocation2 + $0xc8] sm:$0xf] %v2404
        %2544 = vst [vmem:[#allocation2 + $0xd4] sm:$0xf] %v2408
        %2545 = vst [vmem:[#allocation2 + $0xe0] sm:$0xf] %v2412
        %2546 = vst [vmem:[#allocation2 + $0xec] sm:$0xf] %v2416
        %2547 = vst [vmem:[#allocation2 + $0xf8] sm:$0xf] %v2420
        %2548 = vst [vmem:[#allocation2 + $0x104] sm:$0xf] %v2424
        %2549 = vst [vmem:[#allocation2 + $0x110] sm:$0xf] %v2428
        %2550 = vst [vmem:[#allocation2 + $0x11c] sm:$0xf] %v2432
        %2551 = vst [vmem:[#allocation2 + $0x128] sm:$0xf] %v2436
        %2552 = vst [vmem:[#allocation2 + $0x134] sm:$0xf] %v2440
        %2553 = vst [vmem:[#allocation2 + $0x140] sm:$0xf] %v2444
        %2554 = vst [vmem:[#allocation2 + $0x14c] sm:$0xf] %v2448
        %2555 = vst [vmem:[#allocation2 + $0x158] sm:$0xf] %v2452
        %2556 = vst [vmem:[#allocation2 + $0x164] sm:$0xf] %v2456
        %2557 = vst [vmem:[#allocation2 + $0x170] sm:$0xf] %v2460
        %2558 = vst [vmem:[#allocation2 + $0x17c] sm:$0xf] %v2464
        %2559 = vst [vmem:[#allocation2 + $0x188] sm:$0xf] %v2468
        %2560 = vst [vmem:[#allocation2 + $0x194] sm:$0xf] %v2472
        %2561 = vst [vmem:[#allocation2 + $0x1a0] sm:$0xf] %v2476
        %2562 = vst [vmem:[#allocation2 + $0x1ac] sm:$0xf] %v2480
        %2563 = vst [vmem:[#allocation2 + $0x1b8] sm:$0xf] %v2484
        %2564 = vst [vmem:[#allocation2 + $0x1c4] sm:$0xf] %v2488
        %vm2565 = vmand %vm2160, %vm2344
        %v2566 = vld [vmem:[#allocation2 + $0x1d0] sm:$0x1]
        %v2567 = vsel %vm2565, %v2489, %v2566
        %2568 = vst [vmem:[#allocation2 + $0x1d0] sm:$0x1] %v2567
        %v2569 = vld [vmem:[#allocation2] sm:$0xff]
        %v2570 = vld [vmem:[#allocation2 + $0x8] sm:$0xf]
        %v2571 = vld [vmem:[#allocation2 + $0xc] sm:$0xff]
        %v2572 = vld [vmem:[#allocation2 + $0x14] sm:$0xf]
        %v2573 = vld [vmem:[#allocation2 + $0x18] sm:$0xff]
        %v2574 = vld [vmem:[#allocation2 + $0x20] sm:$0xf]
        %v2575 = vld [vmem:[#allocation2 + $0x24] sm:$0xff]
        %v2576 = vld [vmem:[#allocation2 + $0x2c] sm:$0xf]
        %v2577 = vld [vmem:[#allocation2 + $0x30] sm:$0xff]
        %v2578 = vld [vmem:[#allocation2 + $0x38] sm:$0xf]
        %v2579 = vld [vmem:[#allocation2 + $0x3c] sm:$0xff]
        %v2580 = vld [vmem:[#allocation2 + $0x44] sm:$0xf]
        %v2581 = vld [vmem:[#allocation2 + $0x48] sm:$0xff]
        %v2582 = vld [vmem:[#allocation2 + $0x50] sm:$0xf]
        %v2583 = vld [vmem:[#allocation2 + $0x54] sm:$0xff]
        %v2584 = vld [vmem:[#allocation2 + $0x5c] sm:$0xf]
        %v2585 = vld [vmem:[#allocation2 + $0x60] sm:$0xff]
        %v2586 = vld [vmem:[#allocation2 + $0x68] sm:$0xf]
        %v2587 = vld [vmem:[#allocation2 + $0x6c] sm:$0xff]
        %v2588 = vld [vmem:[#allocation2 + $0x74] sm:$0xf]
        %v2589 = vld [vmem:[#allocation2 + $0x78] sm:$0xff]
        %v2590 = vld [vmem:[#allocation2 + $0x80] sm:$0xf]
        %v2591 = vld [vmem:[#allocation2 + $0x84] sm:$0xff]
        %v2592 = vld [vmem:[#allocation2 + $0x8c] sm:$0xf]
        %v2593 = vld [vmem:[#allocation2 + $0x90] sm:$0xff]
        %v2594 = vld [vmem:[#allocation2 + $0x98] sm:$0xf]
        %v2595 = vld [vmem:[#allocation2 + $0x9c] sm:$0xff]
        %v2596 = vld [vmem:[#allocation2 + $0xa4] sm:$0xf]
        %v2597 = vld [vmem:[#allocation2 + $0xa8] sm:$0xff]
        %v2598 = vld [vmem:[#allocation2 + $0xb0] sm:$0xf]
        %v2599 = vld [vmem:[#allocation2 + $0xb4] sm:$0xff]
        %v2600 = vld [vmem:[#allocation2 + $0xbc] sm:$0xf]
        %v2601 = vld [vmem:[#allocation2 + $0xc0] sm:$0xff]
        %v2602 = vld [vmem:[#allocation2 + $0xc8] sm:$0xf]
        %v2603 = vld [vmem:[#allocation2 + $0xcc] sm:$0xff]
        %v2604 = vld [vmem:[#allocation2 + $0xd4] sm:$0xf]
        %v2605 = vld [vmem:[#allocation2 + $0xd8] sm:$0xff]
        %v2606 = vld [vmem:[#allocation2 + $0xe0] sm:$0xf]
        %v2607 = vld [vmem:[#allocation2 + $0xe4] sm:$0xff]
        %v2608 = vld [vmem:[#allocation2 + $0xec] sm:$0xf]
        %v2609 = vld [vmem:[#allocation2 + $0xf0] sm:$0xff]
        %v2610 = vld [vmem:[#allocation2 + $0xf8] sm:$0xf]
        %v2611 = vld [vmem:[#allocation2 + $0xfc] sm:$0xff]
        %v2612 = vld [vmem:[#allocation2 + $0x104] sm:$0xf]
        %v2613 = vld [vmem:[#allocation2 + $0x108] sm:$0xff]
        %v2614 = vld [vmem:[#allocation2 + $0x110] sm:$0xf]
        %v2615 = vld [vmem:[#allocation2 + $0x114] sm:$0xff]
        %v2616 = vld [vmem:[#allocation2 + $0x11c] sm:$0xf]
        %v2617 = vld [vmem:[#allocation2 + $0x120] sm:$0xff]
        %v2618 = vld [vmem:[#allocation2 + $0x128] sm:$0xf]
        %v2619 = vld [vmem:[#allocation2 + $0x12c] sm:$0xff]
        %v2620 = vld [vmem:[#allocation2 + $0x134] sm:$0xf]
        %v2621 = vld [vmem:[#allocation2 + $0x138] sm:$0xff]
        %v2622 = vld [vmem:[#allocation2 + $0x140] sm:$0xf]
        %v2623 = vld [vmem:[#allocation2 + $0x144] sm:$0xff]
        %v2624 = vld [vmem:[#allocation2 + $0x14c] sm:$0xf]
        %v2625 = vld [vmem:[#allocation2 + $0x150] sm:$0xff]
        %v2626 = vld [vmem:[#allocation2 + $0x158] sm:$0xf]
        %v2627 = vld [vmem:[#allocation2 + $0x15c] sm:$0xff]
        %v2628 = vld [vmem:[#allocation2 + $0x164] sm:$0xf]
        %v2629 = vld [vmem:[#allocation2 + $0x168] sm:$0xff]
        %v2630 = vld [vmem:[#allocation2 + $0x170] sm:$0xf]
        %v2631 = vld [vmem:[#allocation2 + $0x174] sm:$0xff]
        %v2632 = vld [vmem:[#allocation2 + $0x17c] sm:$0xf]
        %v2633 = vld [vmem:[#allocation2 + $0x180] sm:$0xff]
        %v2634 = vld [vmem:[#allocation2 + $0x188] sm:$0xf]
        %v2635 = vld [vmem:[#allocation2 + $0x18c] sm:$0xff]
        %v2636 = vld [vmem:[#allocation2 + $0x194] sm:$0xf]
        %v2637 = vld [vmem:[#allocation2 + $0x198] sm:$0xff]
        %v2638 = vld [vmem:[#allocation2 + $0x1a0] sm:$0xf]
        %v2639 = vld [vmem:[#allocation2 + $0x1a4] sm:$0xff]
        %v2640 = vld [vmem:[#allocation2 + $0x1ac] sm:$0xf]
        %v2641 = vld [vmem:[#allocation6] sm:$0xf]
        %v2642 = vld [vmem:[#allocation6 + $0x4] sm:$0xf]
        %v2643 = vld [vmem:[#allocation6 + $0x8] sm:$0xf]
        %v2644 = vld [vmem:[#allocation6 + $0xc] sm:$0xf]
        %v2645 = vld [vmem:[#allocation6 + $0x10] sm:$0xf]
        %v2646 = vld [vmem:[#allocation6 + $0x14] sm:$0xf]
        %v2647 = vld [vmem:[#allocation6 + $0x18] sm:$0xf]
        %v2648 = vld [vmem:[#allocation6 + $0x1c] sm:$0xf]
        %v2649 = vld [vmem:[#allocation6 + $0x20] sm:$0xf]
        %v2650 = vld [vmem:[#allocation6 + $0x24] sm:$0xf]
        %v2651 = vld [vmem:[#allocation6 + $0x28] sm:$0xf]
        %v2652 = vld [vmem:[#allocation6 + $0x2c] sm:$0xf]
        %v2653 = vld [vmem:[#allocation6 + $0x30] sm:$0xf]
        %v2654 = vld [vmem:[#allocation6 + $0x34] sm:$0xf]
        %v2655 = vld [vmem:[#allocation6 + $0x38] sm:$0xf]
        %v2656 = vld [vmem:[#allocation6 + $0x3c] sm:$0xf]
        %v2657 = vld [vmem:[#allocation6 + $0x40] sm:$0xf]
        %v2658 = vld [vmem:[#allocation6 + $0x44] sm:$0xf]
        %v2659 = vld [vmem:[#allocation6 + $0x48] sm:$0xf]
        %v2660 = vld [vmem:[#allocation6 + $0x4c] sm:$0xf]
        %v2661 = vld [vmem:[#allocation6 + $0x50] sm:$0xf]
        %v2662 = vld [vmem:[#allocation6 + $0x54] sm:$0xf]
        %v2663 = vld [vmem:[#allocation6 + $0x58] sm:$0xf]
        %v2664 = vld [vmem:[#allocation6 + $0x5c] sm:$0xf]
        %v2665 = vld [vmem:[#allocation6 + $0x60] sm:$0xf]
        %v2666 = vld [vmem:[#allocation6 + $0x64] sm:$0xf]
        %v2667 = vld [vmem:[#allocation6 + $0x68] sm:$0xf]
        %v2668 = vld [vmem:[#allocation6 + $0x6c] sm:$0xf]
        %v2669 = vld [vmem:[#allocation6 + $0x70] sm:$0xf]
        %v2670 = vld [vmem:[#allocation6 + $0x74] sm:$0xf]
        %v2671 = vld [vmem:[#allocation6 + $0x78] sm:$0xf]
        %v2672 = vld [vmem:[#allocation6 + $0x7c] sm:$0xf]
        %v2673 = vld [vmem:[#allocation6 + $0x80] sm:$0xf]
        %v2674 = vld [vmem:[#allocation6 + $0x84] sm:$0xf]
        %v2675 = vld [vmem:[#allocation6 + $0x88] sm:$0xf]
        %v2676 = vld [vmem:[#allocation6 + $0x8c] sm:$0xf]
        %v2677 = vld [vmem:[#allocation6 + $0x90] sm:$0xf]
        %v2678 = vld [vmem:[#allocation6 + $0x94] sm:$0xf]
        %v2679 = vld [vmem:[#allocation6 + $0x98] sm:$0xf]
        %v2680 = vld [vmem:[#allocation6 + $0x9c] sm:$0xf]
        %v2681 = vld [vmem:[#allocation6 + $0xa0] sm:$0xf]
        %v2682 = vld [vmem:[#allocation6 + $0xa4] sm:$0xf]
        %v2683 = vld [vmem:[#allocation6 + $0xa8] sm:$0xf]
        %v2684 = vld [vmem:[#allocation6 + $0xac] sm:$0xf]
        %v2685 = vld [vmem:[#allocation6 + $0xb0] sm:$0xf]
        %v2686 = vld [vmem:[#allocation6 + $0xb4] sm:$0xf]
        %v2687 = vld [vmem:[#allocation6 + $0xb8] sm:$0xf]
        %v2688 = vld [vmem:[#allocation6 + $0xbc] sm:$0xf]
        %v2689 = vld [vmem:[#allocation2 + $0x18] sm:$0xee]
        %v2690 = vld [vmem:[#allocation2 + $0x20] sm:$0xe]
        %v2691 = vld [vmem:[#allocation2 + $0x1b0] sm:$0xff]
        %v2692 = vld [vmem:[#allocation2 + $0x1b8] sm:$0xf]
        %v2693 = vld [vmem:[#allocation2 + $0x1bc] sm:$0xff]
        %v2694 = vld [vmem:[#allocation2 + $0x1c4] sm:$0xf]
        %v2695 = vld [vmem:[#allocation2 + $0x1c8] sm:$0x11]
        %v2696 = vld [vmem:[#allocation2 + $0x1d0] sm:$0x1]
        %s2697 = scalar_lea.vmem [#allocation6], 192
        %v2698 = vld [vmem:[%s2697] sm:$0xf]
        %v2699 = vld [vmem:[%s2697 + $0x4] sm:$0xf]
        %v2700 = vld [vmem:[%s2697 + $0x8] sm:$0xf]
        %v2701 = vld [vmem:[%s2697 + $0xc] sm:$0xf]
        %v2702 = vld [vmem:[%s2697 + $0x10] sm:$0xf]
        %v2703 = vld [vmem:[%s2697 + $0x14] sm:$0xf]
        %v2704 = vld [vmem:[%s2697 + $0x18] sm:$0xf]
        %v2705 = vld [vmem:[%s2697 + $0x1c] sm:$0xf]
        %v2706 = vld [vmem:[%s2697 + $0x20] sm:$0xf]
        %v2707 = vld [vmem:[%s2697 + $0x24] sm:$0xf]
        %v2708 = vld [vmem:[%s2697 + $0x28] sm:$0xf]
        %v2709 = vld [vmem:[%s2697 + $0x2c] sm:$0xf]
        %v2710 = vld [vmem:[%s2697 + $0x30] sm:$0xf]
        %v2711 = vld [vmem:[%s2697 + $0x34] sm:$0xf]
        %v2712 = vld [vmem:[%s2697 + $0x38] sm:$0xf]
        %v2713 = vld [vmem:[%s2697 + $0x3c] sm:$0xf]
        %v2714 = vld [vmem:[%s2697 + $0x40] sm:$0xf]
        %v2715 = vld [vmem:[%s2697 + $0x44] sm:$0xf]
        %v2716 = vld [vmem:[%s2697 + $0x48] sm:$0xf]
        %v2717 = vld [vmem:[%s2697 + $0x4c] sm:$0xf]
        %v2718 = vld [vmem:[%s2697 + $0x50] sm:$0xf]
        %v2719 = vld [vmem:[%s2697 + $0x54] sm:$0xf]
        %v2720 = vld [vmem:[%s2697 + $0x58] sm:$0xf]
        %v2721 = vld [vmem:[%s2697 + $0x5c] sm:$0xf]
        %v2722 = vld [vmem:[%s2697 + $0x60] sm:$0xf]
        %v2723 = vld [vmem:[%s2697 + $0x64] sm:$0xf]
        %v2724 = vld [vmem:[%s2697 + $0x68] sm:$0xf]
        %v2725 = vld [vmem:[%s2697 + $0x6c] sm:$0xf]
        %v2726 = vld [vmem:[%s2697 + $0x70] sm:$0xf]
        %v2727 = vld [vmem:[%s2697 + $0x74] sm:$0xf]
        %v2728 = vld [vmem:[%s2697 + $0x78] sm:$0xf]
        %v2729 = vld [vmem:[%s2697 + $0x7c] sm:$0xf]
        %v2730 = vld [vmem:[%s2697 + $0x80] sm:$0xf]
        %v2731 = vld [vmem:[%s2697 + $0x84] sm:$0xf]
        %v2732 = vld [vmem:[%s2697 + $0x88] sm:$0xf]
        %v2733 = vld [vmem:[%s2697 + $0x8c] sm:$0xf]
        %v2734 = vld [vmem:[%s2697 + $0x90] sm:$0xf]
        %v2735 = vld [vmem:[%s2697 + $0x94] sm:$0xf]
        %v2736 = vld [vmem:[%s2697 + $0x98] sm:$0xf]
        %v2737 = vld [vmem:[%s2697 + $0x9c] sm:$0xf]
        %v2738 = vld [vmem:[%s2697 + $0xa0] sm:$0xf]
        %v2739 = vld [vmem:[%s2697 + $0xa4] sm:$0xf]
        %v2740 = vld [vmem:[%s2697 + $0xa8] sm:$0xf]
        %v2741 = vld [vmem:[%s2697 + $0xac] sm:$0xf]
        %v2742 = vld [vmem:[%s2697 + $0xb0] sm:$0xf]
        %v2743 = vld [vmem:[%s2697 + $0xb4] sm:$0xf]
        %v2744 = vld [vmem:[%s2697 + $0xb8] sm:$0xf]
        %v2745 = vld [vmem:[%s2697 + $0xbc] sm:$0xf]
        %v2820 = vunpack.c.l.b16 %v2689
        %v2821 = vunpack.c.h.b16 %v2689
        %v2822 = vunpack.c.l.b16 %v2690
        %v2823 = vunpack.c.l.b16 %v2575
        %v2824 = vunpack.c.h.b16 %v2575
        %v2825 = vunpack.c.l.b16 %v2576
        %v2826 = vunpack.c.l.b16 %v2577
        %v2827 = vunpack.c.h.b16 %v2577
        %v2828 = vunpack.c.l.b16 %v2578
        %v2829 = vunpack.c.l.b16 %v2579
        %v2830 = vunpack.c.h.b16 %v2579
        %v2831 = vunpack.c.l.b16 %v2580
        %v2832 = vunpack.c.l.b16 %v2581
        %v2833 = vunpack.c.h.b16 %v2581
        %v2834 = vunpack.c.l.b16 %v2582
        %v2835 = vunpack.c.l.b16 %v2583
        %v2836 = vunpack.c.h.b16 %v2583
        %v2837 = vunpack.c.l.b16 %v2584
        %v2838 = vunpack.c.l.b16 %v2585
        %v2839 = vunpack.c.h.b16 %v2585
        %v2840 = vunpack.c.l.b16 %v2586
        %v2841 = vunpack.c.l.b16 %v2587
        %v2842 = vunpack.c.h.b16 %v2587
        %v2843 = vunpack.c.l.b16 %v2588
        %v2844 = vunpack.c.l.b16 %v2589
        %v2845 = vunpack.c.h.b16 %v2589
        %v2846 = vunpack.c.l.b16 %v2590
        %v2847 = vunpack.c.l.b16 %v2591
        %v2848 = vunpack.c.h.b16 %v2591
        %v2849 = vunpack.c.l.b16 %v2592
        %v2850 = vunpack.c.l.b16 %v2593
        %v2851 = vunpack.c.h.b16 %v2593
        %v2852 = vunpack.c.l.b16 %v2594
        %v2853 = vunpack.c.l.b16 %v2595
        %v2854 = vunpack.c.h.b16 %v2595
        %v2855 = vunpack.c.l.b16 %v2596
        %v2856 = vunpack.c.l.b16 %v2597
        %v2857 = vunpack.c.h.b16 %v2597
        %v2858 = vunpack.c.l.b16 %v2598
        %v2859 = vunpack.c.l.b16 %v2599
        %v2860 = vunpack.c.h.b16 %v2599
        %v2861 = vunpack.c.l.b16 %v2600
        %v2862 = vunpack.c.l.b16 %v2601
        %v2863 = vunpack.c.h.b16 %v2601
        %v2864 = vunpack.c.l.b16 %v2602
        %v2865 = vunpack.c.l.b16 %v2603
        %v2866 = vunpack.c.h.b16 %v2603
        %v2867 = vunpack.c.l.b16 %v2604
        %v2868 = vunpack.c.l.b16 %v2605
        %v2869 = vunpack.c.h.b16 %v2605
        %v2870 = vunpack.c.l.b16 %v2606
        %v2871 = vunpack.c.l.b16 %v2607
        %v2872 = vunpack.c.h.b16 %v2607
        %v2873 = vunpack.c.l.b16 %v2608
        %v2874 = vunpack.c.l.b16 %v2609
        %v2875 = vunpack.c.h.b16 %v2609
        %v2876 = vunpack.c.l.b16 %v2610
        %v2877 = vunpack.c.l.b16 %v2611
        %v2878 = vunpack.c.h.b16 %v2611
        %v2879 = vunpack.c.l.b16 %v2612
        %v2880 = vunpack.c.l.b16 %v2613
        %v2881 = vunpack.c.h.b16 %v2613
        %v2882 = vunpack.c.l.b16 %v2614
        %v2883 = vunpack.c.l.b16 %v2615
        %v2884 = vunpack.c.h.b16 %v2615
        %v2885 = vunpack.c.l.b16 %v2616
        %v2886 = vunpack.c.l.b16 %v2617
        %v2887 = vunpack.c.h.b16 %v2617
        %v2888 = vunpack.c.l.b16 %v2618
        %v2889 = vunpack.c.l.b16 %v2619
        %v2890 = vunpack.c.h.b16 %v2619
        %v2891 = vunpack.c.l.b16 %v2620
        %v2892 = vunpack.c.l.b16 %v2621
        %v2893 = vunpack.c.h.b16 %v2621
        %v2894 = vunpack.c.l.b16 %v2622
        %v2895 = vunpack.c.l.b16 %v2623
        %v2896 = vunpack.c.h.b16 %v2623
        %v2897 = vunpack.c.l.b16 %v2624
        %v2898 = vunpack.c.l.b16 %v2625
        %v2899 = vunpack.c.h.b16 %v2625
        %v2900 = vunpack.c.l.b16 %v2626
        %v2901 = vunpack.c.l.b16 %v2627
        %v2902 = vunpack.c.h.b16 %v2627
        %v2903 = vunpack.c.l.b16 %v2628
        %v2904 = vunpack.c.l.b16 %v2629
        %v2905 = vunpack.c.h.b16 %v2629
        %v2906 = vunpack.c.l.b16 %v2630
        %v2907 = vunpack.c.l.b16 %v2631
        %v2908 = vunpack.c.h.b16 %v2631
        %v2909 = vunpack.c.l.b16 %v2632
        %v2910 = vunpack.c.l.b16 %v2633
        %v2911 = vunpack.c.h.b16 %v2633
        %v2912 = vunpack.c.l.b16 %v2634
        %v2913 = vunpack.c.l.b16 %v2635
        %v2914 = vunpack.c.h.b16 %v2635
        %v2915 = vunpack.c.l.b16 %v2636
        %v2916 = vunpack.c.l.b16 %v2637
        %v2917 = vunpack.c.h.b16 %v2637
        %v2918 = vunpack.c.l.b16 %v2638
        %v2919 = vunpack.c.l.b16 %v2639
        %v2920 = vunpack.c.h.b16 %v2639
        %v2921 = vunpack.c.l.b16 %v2640
        %v2922 = vunpack.c.l.b16 %v2691
        %v2923 = vunpack.c.h.b16 %v2691
        %v2924 = vunpack.c.l.b16 %v2692
        %v2925 = vunpack.c.l.b16 %v2693
        %v2926 = vunpack.c.h.b16 %v2693
        %v2927 = vunpack.c.l.b16 %v2694
        %v2928 = vunpack.c.l.b16 %v2695
        %v2929 = vunpack.c.h.b16 %v2695
        %v2930 = vunpack.c.l.b16 %v2696
        %v2931 = vpack.c.b16 %v2823, %v2820
        %v2932 = vpack.c.b16 %v2824, %v2821
        %v2933 = vpack.c.b16 %v2825, %v2822
        %v2934 = vpack.c.b16 %v2829, %v2826
        %v2935 = vpack.c.b16 %v2830, %v2827
        %v2936 = vpack.c.b16 %v2831, %v2828
        %v2937 = vpack.c.b16 %v2835, %v2832
        %v2938 = vpack.c.b16 %v2836, %v2833
        %v2939 = vpack.c.b16 %v2837, %v2834
        %v2940 = vpack.c.b16 %v2841, %v2838
        %v2941 = vpack.c.b16 %v2842, %v2839
        %v2942 = vpack.c.b16 %v2843, %v2840
        %v2943 = vpack.c.b16 %v2847, %v2844
        %v2944 = vpack.c.b16 %v2848, %v2845
        %v2945 = vpack.c.b16 %v2849, %v2846
        %v2946 = vpack.c.b16 %v2853, %v2850
        %v2947 = vpack.c.b16 %v2854, %v2851
        %v2948 = vpack.c.b16 %v2855, %v2852
        %v2949 = vpack.c.b16 %v2859, %v2856
        %v2950 = vpack.c.b16 %v2860, %v2857
        %v2951 = vpack.c.b16 %v2861, %v2858
        %v2952 = vpack.c.b16 %v2865, %v2862
        %v2953 = vpack.c.b16 %v2866, %v2863
        %v2954 = vpack.c.b16 %v2867, %v2864
        %v2955 = vpack.c.b16 %v2871, %v2868
        %v2956 = vpack.c.b16 %v2872, %v2869
        %v2957 = vpack.c.b16 %v2873, %v2870
        %v2958 = vpack.c.b16 %v2877, %v2874
        %v2959 = vpack.c.b16 %v2878, %v2875
        %v2960 = vpack.c.b16 %v2879, %v2876
        %v2961 = vpack.c.b16 %v2883, %v2880
        %v2962 = vpack.c.b16 %v2884, %v2881
        %v2963 = vpack.c.b16 %v2885, %v2882
        %v2964 = vpack.c.b16 %v2889, %v2886
        %v2965 = vpack.c.b16 %v2890, %v2887
        %v2966 = vpack.c.b16 %v2891, %v2888
        %v2967 = vpack.c.b16 %v2895, %v2892
        %v2968 = vpack.c.b16 %v2896, %v2893
        %v2969 = vpack.c.b16 %v2897, %v2894
        %v2970 = vpack.c.b16 %v2901, %v2898
        %v2971 = vpack.c.b16 %v2902, %v2899
        %v2972 = vpack.c.b16 %v2903, %v2900
        %v2973 = vpack.c.b16 %v2907, %v2904
        %v2974 = vpack.c.b16 %v2908, %v2905
        %v2975 = vpack.c.b16 %v2909, %v2906
        %v2976 = vpack.c.b16 %v2913, %v2910
        %v2977 = vpack.c.b16 %v2914, %v2911
        %v2978 = vpack.c.b16 %v2915, %v2912
        %v2979 = vpack.c.b16 %v2919, %v2916
        %v2980 = vpack.c.b16 %v2920, %v2917
        %v2981 = vpack.c.b16 %v2921, %v2918
        %v2982 = vpack.c.b16 %v2925, %v2922
        %v2983 = vpack.c.b16 %v2926, %v2923
        %v2984 = vpack.c.b16 %v2927, %v2924
        %v2985 = vpack.c.b16 %v2928, %v2928
        %v2986 = vpack.c.b16 %v2929, %v2929
        %v2987 = vpack.c.b16 %v2930, %v2930
        %vm2988 = vcmask 1046528
        %v2989 = vrot.slane %v2931, 1
        %v2990 = vrot.slane %v2934, 1
        %v2991 = vsel %vm2988, %v2989, %v2990
        %v2992 = vrot.slane %v2932, 1
        %v2993 = vrot.slane %v2935, 1
        %v2994 = vsel %vm2988, %v2992, %v2993
        %v2995 = vrot.slane %v2933, 1
        %v2996 = vrot.slane %v2936, 1
        %v2997 = vsel %vm2988, %v2995, %v2996
        %v2998 = vrot.slane %v2937, 1
        %v2999 = vsel %vm2988, %v2990, %v2998
        %v3000 = vrot.slane %v2938, 1
        %v3001 = vsel %vm2988, %v2993, %v3000
        %v3002 = vrot.slane %v2939, 1
        %v3003 = vsel %vm2988, %v2996, %v3002
        %v3004 = vrot.slane %v2940, 1
        %v3005 = vsel %vm2988, %v2998, %v3004
        %v3006 = vrot.slane %v2941, 1
        %v3007 = vsel %vm2988, %v3000, %v3006
        %v3008 = vrot.slane %v2942, 1
        %v3009 = vsel %vm2988, %v3002, %v3008
        %v3010 = vrot.slane %v2943, 1
        %v3011 = vsel %vm2988, %v3004, %v3010
        %v3012 = vrot.slane %v2944, 1
        %v3013 = vsel %vm2988, %v3006, %v3012
        %v3014 = vrot.slane %v2945, 1
        %v3015 = vsel %vm2988, %v3008, %v3014
        %v3016 = vrot.slane %v2946, 1
        %v3017 = vsel %vm2988, %v3010, %v3016
        %v3018 = vrot.slane %v2947, 1
        %v3019 = vsel %vm2988, %v3012, %v3018
        %v3020 = vrot.slane %v2948, 1
        %v3021 = vsel %vm2988, %v3014, %v3020
        %v3022 = vrot.slane %v2949, 1
        %v3023 = vsel %vm2988, %v3016, %v3022
        %v3024 = vrot.slane %v2950, 1
        %v3025 = vsel %vm2988, %v3018, %v3024
        %v3026 = vrot.slane %v2951, 1
        %v3027 = vsel %vm2988, %v3020, %v3026
        %v3028 = vrot.slane %v2952, 1
        %v3029 = vsel %vm2988, %v3022, %v3028
        %v3030 = vrot.slane %v2953, 1
        %v3031 = vsel %vm2988, %v3024, %v3030
        %v3032 = vrot.slane %v2954, 1
        %v3033 = vsel %vm2988, %v3026, %v3032
        %v3034 = vrot.slane %v2955, 1
        %v3035 = vsel %vm2988, %v3028, %v3034
        %v3036 = vrot.slane %v2956, 1
        %v3037 = vsel %vm2988, %v3030, %v3036
        %v3038 = vrot.slane %v2957, 1
        %v3039 = vsel %vm2988, %v3032, %v3038
        %v3040 = vrot.slane %v2958, 1
        %v3041 = vsel %vm2988, %v3034, %v3040
        %v3042 = vrot.slane %v2959, 1
        %v3043 = vsel %vm2988, %v3036, %v3042
        %v3044 = vrot.slane %v2960, 1
        %v3045 = vsel %vm2988, %v3038, %v3044
        %v3046 = vrot.slane %v2961, 1
        %v3047 = vsel %vm2988, %v3040, %v3046
        %v3048 = vrot.slane %v2962, 1
        %v3049 = vsel %vm2988, %v3042, %v3048
        %v3050 = vrot.slane %v2963, 1
        %v3051 = vsel %vm2988, %v3044, %v3050
        %v3052 = vrot.slane %v2964, 1
        %v3053 = vsel %vm2988, %v3046, %v3052
        %v3054 = vrot.slane %v2965, 1
        %v3055 = vsel %vm2988, %v3048, %v3054
        %v3056 = vrot.slane %v2966, 1
        %v3057 = vsel %vm2988, %v3050, %v3056
        %v3058 = vrot.slane %v2967, 1
        %v3059 = vsel %vm2988, %v3052, %v3058
        %v3060 = vrot.slane %v2968, 1
        %v3061 = vsel %vm2988, %v3054, %v3060
        %v3062 = vrot.slane %v2969, 1
        %v3063 = vsel %vm2988, %v3056, %v3062
        %v3064 = vrot.slane %v2970, 1
        %v3065 = vsel %vm2988, %v3058, %v3064
        %v3066 = vrot.slane %v2971, 1
        %v3067 = vsel %vm2988, %v3060, %v3066
        %v3068 = vrot.slane %v2972, 1
        %v3069 = vsel %vm2988, %v3062, %v3068
        %v3070 = vrot.slane %v2973, 1
        %v3071 = vsel %vm2988, %v3064, %v3070
        %v3072 = vrot.slane %v2974, 1
        %v3073 = vsel %vm2988, %v3066, %v3072
        %v3074 = vrot.slane %v2975, 1
        %v3075 = vsel %vm2988, %v3068, %v3074
        %v3076 = vrot.slane %v2976, 1
        %v3077 = vsel %vm2988, %v3070, %v3076
        %v3078 = vrot.slane %v2977, 1
        %v3079 = vsel %vm2988, %v3072, %v3078
        %v3080 = vrot.slane %v2978, 1
        %v3081 = vsel %vm2988, %v3074, %v3080
        %v3082 = vrot.slane %v2979, 1
        %v3083 = vsel %vm2988, %v3076, %v3082
        %v3084 = vrot.slane %v2980, 1
        %v3085 = vsel %vm2988, %v3078, %v3084
        %v3086 = vrot.slane %v2981, 1
        %v3087 = vsel %vm2988, %v3080, %v3086
        %v3088 = vrot.slane %v2982, 1
        %v3089 = vsel %vm2988, %v3082, %v3088
        %v3090 = vrot.slane %v2983, 1
        %v3091 = vsel %vm2988, %v3084, %v3090
        %v3092 = vrot.slane %v2984, 1
        %v3093 = vsel %vm2988, %v3086, %v3092
        %v3094 = vrot.slane %v2985, 1
        %v3095 = vsel %vm2988, %v3088, %v3094
        %v3096 = vrot.slane %v2986, 1
        %v3097 = vsel %vm2988, %v3090, %v3096
        %v3098 = vrot.slane %v2987, 1
        %v3099 = vsel %vm2988, %v3092, %v3098
        %v3202 = vunpack.c.l.b16 %v2698
        %v3203 = vunpack.c.l.b16 %v2699
        %v3204 = vunpack.c.l.b16 %v2700
        %v3205 = vunpack.c.l.b16 %v2701
        %v3206 = vunpack.c.l.b16 %v2702
        %v3207 = vunpack.c.l.b16 %v2703
        %v3208 = vunpack.c.l.b16 %v2704
        %v3209 = vunpack.c.l.b16 %v2705
        %v3210 = vunpack.c.l.b16 %v2706
        %v3211 = vunpack.c.l.b16 %v2707
        %v3212 = vunpack.c.l.b16 %v2708
        %v3213 = vunpack.c.l.b16 %v2709
        %v3214 = vunpack.c.l.b16 %v2710
        %v3215 = vunpack.c.l.b16 %v2711
        %v3216 = vunpack.c.l.b16 %v2712
        %v3217 = vunpack.c.l.b16 %v2713
        %v3218 = vunpack.c.l.b16 %v2714
        %v3219 = vunpack.c.l.b16 %v2715
        %v3220 = vunpack.c.l.b16 %v2716
        %v3221 = vunpack.c.l.b16 %v2717
        %v3222 = vunpack.c.l.b16 %v2718
        %v3223 = vunpack.c.l.b16 %v2719
        %v3224 = vunpack.c.l.b16 %v2720
        %v3225 = vunpack.c.l.b16 %v2721
        %v3226 = vunpack.c.l.b16 %v2722
        %v3227 = vunpack.c.l.b16 %v2723
        %v3228 = vunpack.c.l.b16 %v2724
        %v3229 = vunpack.c.l.b16 %v2725
        %v3230 = vunpack.c.l.b16 %v2726
        %v3231 = vunpack.c.l.b16 %v2727
        %v3232 = vunpack.c.l.b16 %v2728
        %v3233 = vunpack.c.l.b16 %v2729
        %v3234 = vunpack.c.l.b16 %v2730
        %v3235 = vunpack.c.l.b16 %v2731
        %v3236 = vunpack.c.l.b16 %v2732
        %v3237 = vunpack.c.l.b16 %v2733
        %v3238 = vunpack.c.l.b16 %v2734
        %v3239 = vunpack.c.l.b16 %v2735
        %v3240 = vunpack.c.l.b16 %v2736
        %v3241 = vunpack.c.l.b16 %v2737
        %v3242 = vunpack.c.l.b16 %v2738
        %v3243 = vunpack.c.l.b16 %v2739
        %v3244 = vunpack.c.l.b16 %v2740
        %v3245 = vunpack.c.l.b16 %v2741
        %v3246 = vunpack.c.l.b16 %v2742
        %v3247 = vunpack.c.l.b16 %v2743
        %v3248 = vunpack.c.l.b16 %v2744
        %v3249 = vunpack.c.l.b16 %v2745
        %v3250 = vpack.c.b16 %v3203, %v3202
        %v3251 = vpack.c.b16 %v3205, %v3204
        %v3252 = vpack.c.b16 %v3207, %v3206
        %v3253 = vpack.c.b16 %v3209, %v3208
        %v3254 = vpack.c.b16 %v3211, %v3210
        %v3255 = vpack.c.b16 %v3213, %v3212
        %v3256 = vpack.c.b16 %v3215, %v3214
        %v3257 = vpack.c.b16 %v3217, %v3216
        %v3258 = vpack.c.b16 %v3219, %v3218
        %v3259 = vpack.c.b16 %v3221, %v3220
        %v3260 = vpack.c.b16 %v3223, %v3222
        %v3261 = vpack.c.b16 %v3225, %v3224
        %v3262 = vpack.c.b16 %v3227, %v3226
        %v3263 = vpack.c.b16 %v3229, %v3228
        %v3264 = vpack.c.b16 %v3231, %v3230
        %v3265 = vpack.c.b16 %v3233, %v3232
        %v3266 = vpack.c.b16 %v3235, %v3234
        %v3267 = vpack.c.b16 %v3237, %v3236
        %v3268 = vpack.c.b16 %v3239, %v3238
        %v3269 = vpack.c.b16 %v3241, %v3240
        %v3270 = vpack.c.b16 %v3243, %v3242
        %v3271 = vpack.c.b16 %v3245, %v3244
        %v3272 = vpack.c.b16 %v3247, %v3246
        %v3273 = vpack.c.b16 %v3249, %v3248
        %3298 = vmatpush.bf16.msra.mxu0 %v3257
        %3299 = vmatpush.bf16.msra.mxu0 %v3256
        %3300 = vmatpush.bf16.msra.mxu0 %v3255
        %3301 = vmatpush.bf16.msra.mxu0 %v3254
        %3302 = vmatpush.bf16.msra.mxu0 %v3253
        %3303 = vmatpush.bf16.msra.mxu0 %v3252
        %3304 = vmatpush.bf16.msra.mxu0 %v3251
        %3305 = vmatpush.bf16.msra.mxu0 %v3250
        %3306 = vmatmul.bf16.gmra.mxu0 %v2991
        %v3307 = vpop.f32.mrf.mxu0
        %v3308 = vadd.f32 0.0, %v3307
        %v3309 = vpop.f32.mrf.mxu0
        %v3310 = vadd.f32 0.0, %v3309
        %3311 = vmatmul.bf16.gmra.mxu0 %v2999
        %v3312 = vpop.f32.mrf.mxu0
        %v3313 = vadd.f32 0.0, %v3312
        %v3314 = vpop.f32.mrf.mxu0
        %v3315 = vadd.f32 0.0, %v3314
        %3316 = vmatmul.bf16.gmra.mxu0 %v3005
        %v3317 = vpop.f32.mrf.mxu0
        %v3318 = vadd.f32 0.0, %v3317
        %v3319 = vpop.f32.mrf.mxu0
        %v3320 = vadd.f32 0.0, %v3319
        %3321 = vmatmul.bf16.gmra.mxu0 %v3011
        %v3322 = vpop.f32.mrf.mxu0
        %v3323 = vadd.f32 0.0, %v3322
        %v3324 = vpop.f32.mrf.mxu0
        %v3325 = vadd.f32 0.0, %v3324
        %3326 = vmatmul.bf16.gmra.mxu0 %v3017
        %v3327 = vpop.f32.mrf.mxu0
        %v3328 = vadd.f32 0.0, %v3327
        %v3329 = vpop.f32.mrf.mxu0
        %v3330 = vadd.f32 0.0, %v3329
        %3331 = vmatmul.bf16.gmra.mxu0 %v3023
        %v3332 = vpop.f32.mrf.mxu0
        %v3333 = vadd.f32 0.0, %v3332
        %v3334 = vpop.f32.mrf.mxu0
        %v3335 = vadd.f32 0.0, %v3334
        %3336 = vmatmul.bf16.gmra.mxu0 %v3029
        %v3337 = vpop.f32.mrf.mxu0
        %v3338 = vadd.f32 0.0, %v3337
        %v3339 = vpop.f32.mrf.mxu0
        %v3340 = vadd.f32 0.0, %v3339
        %3341 = vmatmul.bf16.gmra.mxu0 %v3035
        %v3342 = vpop.f32.mrf.mxu0
        %v3343 = vadd.f32 0.0, %v3342
        %v3344 = vpop.f32.mrf.mxu0
        %v3345 = vadd.f32 0.0, %v3344
        %3346 = vmatmul.bf16.gmra.mxu0 %v3041
        %v3347 = vpop.f32.mrf.mxu0
        %v3348 = vadd.f32 0.0, %v3347
        %v3349 = vpop.f32.mrf.mxu0
        %v3350 = vadd.f32 0.0, %v3349
        %3351 = vmatmul.bf16.gmra.mxu0 %v3047
        %v3352 = vpop.f32.mrf.mxu0
        %v3353 = vadd.f32 0.0, %v3352
        %v3354 = vpop.f32.mrf.mxu0
        %v3355 = vadd.f32 0.0, %v3354
        %3356 = vmatmul.bf16.gmra.mxu0 %v3053
        %v3357 = vpop.f32.mrf.mxu0
        %v3358 = vadd.f32 0.0, %v3357
        %v3359 = vpop.f32.mrf.mxu0
        %v3360 = vadd.f32 0.0, %v3359
        %3361 = vmatmul.bf16.gmra.mxu0 %v3059
        %v3362 = vpop.f32.mrf.mxu0
        %v3363 = vadd.f32 0.0, %v3362
        %v3364 = vpop.f32.mrf.mxu0
        %v3365 = vadd.f32 0.0, %v3364
        %3366 = vmatmul.bf16.gmra.mxu0 %v3065
        %v3367 = vpop.f32.mrf.mxu0
        %v3368 = vadd.f32 0.0, %v3367
        %v3369 = vpop.f32.mrf.mxu0
        %v3370 = vadd.f32 0.0, %v3369
        %3371 = vmatmul.bf16.gmra.mxu0 %v3071
        %v3372 = vpop.f32.mrf.mxu0
        %v3373 = vadd.f32 0.0, %v3372
        %v3374 = vpop.f32.mrf.mxu0
        %v3375 = vadd.f32 0.0, %v3374
        %3376 = vmatmul.bf16.gmra.mxu0 %v3077
        %v3377 = vpop.f32.mrf.mxu0
        %v3378 = vadd.f32 0.0, %v3377
        %v3379 = vpop.f32.mrf.mxu0
        %v3380 = vadd.f32 0.0, %v3379
        %3381 = vmatmul.bf16.gmra.mxu0 %v3083
        %v3382 = vpop.f32.mrf.mxu0
        %v3383 = vadd.f32 0.0, %v3382
        %v3384 = vpop.f32.mrf.mxu0
        %v3385 = vadd.f32 0.0, %v3384
        %3386 = vmatmul.bf16.gmra.mxu0 %v3089
        %v3387 = vpop.f32.mrf.mxu0
        %v3388 = vadd.f32 0.0, %v3387
        %v3389 = vpop.f32.mrf.mxu0
        %v3390 = vadd.f32 0.0, %v3389
        %3391 = vmatmul.bf16.gmra.mxu0 %v3095
        %v3392 = vpop.f32.mrf.mxu0
        %v3393 = vadd.f32 0.0, %v3392
        %v3394 = vpop.f32.mrf.mxu0
        %v3395 = vadd.f32 0.0, %v3394
        %3396 = vdwg.mxu0
        %3397 = vmatpush.bf16.msra.mxu0 %v3265
        %3398 = vmatpush.bf16.msra.mxu0 %v3264
        %3399 = vmatpush.bf16.msra.mxu0 %v3263
        %3400 = vmatpush.bf16.msra.mxu0 %v3262
        %3401 = vmatpush.bf16.msra.mxu0 %v3261
        %3402 = vmatpush.bf16.msra.mxu0 %v3260
        %3403 = vmatpush.bf16.msra.mxu0 %v3259
        %3404 = vmatpush.bf16.msra.mxu0 %v3258
        %3405 = vmatmul.bf16.gmra.mxu0 %v2994
        %v3406 = vpop.f32.mrf.mxu0
        %v3407 = vadd.f32 %v3308, %v3406
        %v3408 = vpop.f32.mrf.mxu0
        %v3409 = vadd.f32 %v3310, %v3408
        %3410 = vmatmul.bf16.gmra.mxu0 %v3001
        %v3411 = vpop.f32.mrf.mxu0
        %v3412 = vadd.f32 %v3313, %v3411
        %v3413 = vpop.f32.mrf.mxu0
        %v3414 = vadd.f32 %v3315, %v3413
        %3415 = vmatmul.bf16.gmra.mxu0 %v3007
        %v3416 = vpop.f32.mrf.mxu0
        %v3417 = vadd.f32 %v3318, %v3416
        %v3418 = vpop.f32.mrf.mxu0
        %v3419 = vadd.f32 %v3320, %v3418
        %3420 = vmatmul.bf16.gmra.mxu0 %v3013
        %v3421 = vpop.f32.mrf.mxu0
        %v3422 = vadd.f32 %v3323, %v3421
        %v3423 = vpop.f32.mrf.mxu0
        %v3424 = vadd.f32 %v3325, %v3423
        %3425 = vmatmul.bf16.gmra.mxu0 %v3019
        %v3426 = vpop.f32.mrf.mxu0
        %v3427 = vadd.f32 %v3328, %v3426
        %v3428 = vpop.f32.mrf.mxu0
        %v3429 = vadd.f32 %v3330, %v3428
        %3430 = vmatmul.bf16.gmra.mxu0 %v3025
        %v3431 = vpop.f32.mrf.mxu0
        %v3432 = vadd.f32 %v3333, %v3431
        %v3433 = vpop.f32.mrf.mxu0
        %v3434 = vadd.f32 %v3335, %v3433
        %3435 = vmatmul.bf16.gmra.mxu0 %v3031
        %v3436 = vpop.f32.mrf.mxu0
        %v3437 = vadd.f32 %v3338, %v3436
        %v3438 = vpop.f32.mrf.mxu0
        %v3439 = vadd.f32 %v3340, %v3438
        %3440 = vmatmul.bf16.gmra.mxu0 %v3037
        %v3441 = vpop.f32.mrf.mxu0
        %v3442 = vadd.f32 %v3343, %v3441
        %v3443 = vpop.f32.mrf.mxu0
        %v3444 = vadd.f32 %v3345, %v3443
        %3445 = vmatmul.bf16.gmra.mxu0 %v3043
        %v3446 = vpop.f32.mrf.mxu0
        %v3447 = vadd.f32 %v3348, %v3446
        %v3448 = vpop.f32.mrf.mxu0
        %v3449 = vadd.f32 %v3350, %v3448
        %3450 = vmatmul.bf16.gmra.mxu0 %v3049
        %v3451 = vpop.f32.mrf.mxu0
        %v3452 = vadd.f32 %v3353, %v3451
        %v3453 = vpop.f32.mrf.mxu0
        %v3454 = vadd.f32 %v3355, %v3453
        %3455 = vmatmul.bf16.gmra.mxu0 %v3055
        %v3456 = vpop.f32.mrf.mxu0
        %v3457 = vadd.f32 %v3358, %v3456
        %v3458 = vpop.f32.mrf.mxu0
        %v3459 = vadd.f32 %v3360, %v3458
        %3460 = vmatmul.bf16.gmra.mxu0 %v3061
        %v3461 = vpop.f32.mrf.mxu0
        %v3462 = vadd.f32 %v3363, %v3461
        %v3463 = vpop.f32.mrf.mxu0
        %v3464 = vadd.f32 %v3365, %v3463
        %3465 = vmatmul.bf16.gmra.mxu0 %v3067
        %v3466 = vpop.f32.mrf.mxu0
        %v3467 = vadd.f32 %v3368, %v3466
        %v3468 = vpop.f32.mrf.mxu0
        %v3469 = vadd.f32 %v3370, %v3468
        %3470 = vmatmul.bf16.gmra.mxu0 %v3073
        %v3471 = vpop.f32.mrf.mxu0
        %v3472 = vadd.f32 %v3373, %v3471
        %v3473 = vpop.f32.mrf.mxu0
        %v3474 = vadd.f32 %v3375, %v3473
        %3475 = vmatmul.bf16.gmra.mxu0 %v3079
        %v3476 = vpop.f32.mrf.mxu0
        %v3477 = vadd.f32 %v3378, %v3476
        %v3478 = vpop.f32.mrf.mxu0
        %v3479 = vadd.f32 %v3380, %v3478
        %3480 = vmatmul.bf16.gmra.mxu0 %v3085
        %v3481 = vpop.f32.mrf.mxu0
        %v3482 = vadd.f32 %v3383, %v3481
        %v3483 = vpop.f32.mrf.mxu0
        %v3484 = vadd.f32 %v3385, %v3483
        %3485 = vmatmul.bf16.gmra.mxu0 %v3091
        %v3486 = vpop.f32.mrf.mxu0
        %v3487 = vadd.f32 %v3388, %v3486
        %v3488 = vpop.f32.mrf.mxu0
        %v3489 = vadd.f32 %v3390, %v3488
        %3490 = vmatmul.bf16.gmra.mxu0 %v3097
        %v3491 = vpop.f32.mrf.mxu0
        %v3492 = vadd.f32 %v3393, %v3491
        %v3493 = vpop.f32.mrf.mxu0
        %v3494 = vadd.f32 %v3395, %v3493
        %3495 = vdwg.mxu0
        %3496 = vmatpush.bf16.msra.mxu0 %v3273
        %3497 = vmatpush.bf16.msra.mxu0 %v3272
        %3498 = vmatpush.bf16.msra.mxu0 %v3271
        %3499 = vmatpush.bf16.msra.mxu0 %v3270
        %3500 = vmatpush.bf16.msra.mxu0 %v3269
        %3501 = vmatpush.bf16.msra.mxu0 %v3268
        %3502 = vmatpush.bf16.msra.mxu0 %v3267
        %3503 = vmatpush.bf16.msra.mxu0 %v3266
        %3504 = vmatmul.bf16.gmra.mxu0 %v2997
        %v3505 = vpop.f32.mrf.mxu0
        %v3506 = vadd.f32 %v3407, %v3505
        %v3507 = vpop.f32.mrf.mxu0
        %v3508 = vadd.f32 %v3409, %v3507
        %3509 = vmatmul.bf16.gmra.mxu0 %v3003
        %v3510 = vpop.f32.mrf.mxu0
        %v3511 = vadd.f32 %v3412, %v3510
        %v3512 = vpop.f32.mrf.mxu0
        %v3513 = vadd.f32 %v3414, %v3512
        %3514 = vmatmul.bf16.gmra.mxu0 %v3009
        %v3515 = vpop.f32.mrf.mxu0
        %v3516 = vadd.f32 %v3417, %v3515
        %v3517 = vpop.f32.mrf.mxu0
        %v3518 = vadd.f32 %v3419, %v3517
        %3519 = vmatmul.bf16.gmra.mxu0 %v3015
        %v3520 = vpop.f32.mrf.mxu0
        %v3521 = vadd.f32 %v3422, %v3520
        %v3522 = vpop.f32.mrf.mxu0
        %v3523 = vadd.f32 %v3424, %v3522
        %3524 = vmatmul.bf16.gmra.mxu0 %v3021
        %v3525 = vpop.f32.mrf.mxu0
        %v3526 = vadd.f32 %v3427, %v3525
        %v3527 = vpop.f32.mrf.mxu0
        %v3528 = vadd.f32 %v3429, %v3527
        %3529 = vmatmul.bf16.gmra.mxu0 %v3027
        %v3530 = vpop.f32.mrf.mxu0
        %v3531 = vadd.f32 %v3432, %v3530
        %v3532 = vpop.f32.mrf.mxu0
        %v3533 = vadd.f32 %v3434, %v3532
        %3534 = vmatmul.bf16.gmra.mxu0 %v3033
        %v3535 = vpop.f32.mrf.mxu0
        %v3536 = vadd.f32 %v3437, %v3535
        %v3537 = vpop.f32.mrf.mxu0
        %v3538 = vadd.f32 %v3439, %v3537
        %3539 = vmatmul.bf16.gmra.mxu0 %v3039
        %v3540 = vpop.f32.mrf.mxu0
        %v3541 = vadd.f32 %v3442, %v3540
        %v3542 = vpop.f32.mrf.mxu0
        %v3543 = vadd.f32 %v3444, %v3542
        %3544 = vmatmul.bf16.gmra.mxu0 %v3045
        %v3545 = vpop.f32.mrf.mxu0
        %v3546 = vadd.f32 %v3447, %v3545
        %v3547 = vpop.f32.mrf.mxu0
        %v3548 = vadd.f32 %v3449, %v3547
        %3549 = vmatmul.bf16.gmra.mxu0 %v3051
        %v3550 = vpop.f32.mrf.mxu0
        %v3551 = vadd.f32 %v3452, %v3550
        %v3552 = vpop.f32.mrf.mxu0
        %v3553 = vadd.f32 %v3454, %v3552
        %3554 = vmatmul.bf16.gmra.mxu0 %v3057
        %v3555 = vpop.f32.mrf.mxu0
        %v3556 = vadd.f32 %v3457, %v3555
        %v3557 = vpop.f32.mrf.mxu0
        %v3558 = vadd.f32 %v3459, %v3557
        %3559 = vmatmul.bf16.gmra.mxu0 %v3063
        %v3560 = vpop.f32.mrf.mxu0
        %v3561 = vadd.f32 %v3462, %v3560
        %v3562 = vpop.f32.mrf.mxu0
        %v3563 = vadd.f32 %v3464, %v3562
        %3564 = vmatmul.bf16.gmra.mxu0 %v3069
        %v3565 = vpop.f32.mrf.mxu0
        %v3566 = vadd.f32 %v3467, %v3565
        %v3567 = vpop.f32.mrf.mxu0
        %v3568 = vadd.f32 %v3469, %v3567
        %3569 = vmatmul.bf16.gmra.mxu0 %v3075
        %v3570 = vpop.f32.mrf.mxu0
        %v3571 = vadd.f32 %v3472, %v3570
        %v3572 = vpop.f32.mrf.mxu0
        %v3573 = vadd.f32 %v3474, %v3572
        %3574 = vmatmul.bf16.gmra.mxu0 %v3081
        %v3575 = vpop.f32.mrf.mxu0
        %v3576 = vadd.f32 %v3477, %v3575
        %v3577 = vpop.f32.mrf.mxu0
        %v3578 = vadd.f32 %v3479, %v3577
        %3579 = vmatmul.bf16.gmra.mxu0 %v3087
        %v3580 = vpop.f32.mrf.mxu0
        %v3581 = vadd.f32 %v3482, %v3580
        %v3582 = vpop.f32.mrf.mxu0
        %v3583 = vadd.f32 %v3484, %v3582
        %3584 = vmatmul.bf16.gmra.mxu0 %v3093
        %v3585 = vpop.f32.mrf.mxu0
        %v3586 = vadd.f32 %v3487, %v3585
        %v3587 = vpop.f32.mrf.mxu0
        %v3588 = vadd.f32 %v3489, %v3587
        %3589 = vmatmul.bf16.gmra.mxu0 %v3099
        %v3590 = vpop.f32.mrf.mxu0
        %v3591 = vadd.f32 %v3492, %v3590
        %v3592 = vpop.f32.mrf.mxu0
        %v3593 = vadd.f32 %v3494, %v3592
        %3594 = vdwg.mxu0
        %v3601 = vunpack.c.l.b16 %v2569
        %v3602 = vunpack.c.h.b16 %v2569
        %v3603 = vunpack.c.l.b16 %v2570
        %v3604 = vunpack.c.l.b16 %v2571
        %v3605 = vunpack.c.h.b16 %v2571
        %v3606 = vunpack.c.l.b16 %v2572
        %v3607 = vunpack.c.l.b16 %v2573
        %v3608 = vunpack.c.h.b16 %v2573
        %v3609 = vunpack.c.l.b16 %v2574
        %v3610 = vpack.c.b16 %v3604, %v3601
        %v3611 = vpack.c.b16 %v3605, %v3602
        %v3612 = vpack.c.b16 %v3606, %v3603
        %v3613 = vpack.c.b16 %v2823, %v3607
        %v3614 = vpack.c.b16 %v2824, %v3608
        %v3615 = vpack.c.b16 %v2825, %v3609
        %v3718 = vunpack.c.l.b16 %v2641
        %v3719 = vunpack.c.l.b16 %v2642
        %v3720 = vunpack.c.l.b16 %v2643
        %v3721 = vunpack.c.l.b16 %v2644
        %v3722 = vunpack.c.l.b16 %v2645
        %v3723 = vunpack.c.l.b16 %v2646
        %v3724 = vunpack.c.l.b16 %v2647
        %v3725 = vunpack.c.l.b16 %v2648
        %v3726 = vunpack.c.l.b16 %v2649
        %v3727 = vunpack.c.l.b16 %v2650
        %v3728 = vunpack.c.l.b16 %v2651
        %v3729 = vunpack.c.l.b16 %v2652
        %v3730 = vunpack.c.l.b16 %v2653
        %v3731 = vunpack.c.l.b16 %v2654
        %v3732 = vunpack.c.l.b16 %v2655
        %v3733 = vunpack.c.l.b16 %v2656
        %v3734 = vunpack.c.l.b16 %v2657
        %v3735 = vunpack.c.l.b16 %v2658
        %v3736 = vunpack.c.l.b16 %v2659
        %v3737 = vunpack.c.l.b16 %v2660
        %v3738 = vunpack.c.l.b16 %v2661
        %v3739 = vunpack.c.l.b16 %v2662
        %v3740 = vunpack.c.l.b16 %v2663
        %v3741 = vunpack.c.l.b16 %v2664
        %v3742 = vunpack.c.l.b16 %v2665
        %v3743 = vunpack.c.l.b16 %v2666
        %v3744 = vunpack.c.l.b16 %v2667
        %v3745 = vunpack.c.l.b16 %v2668
        %v3746 = vunpack.c.l.b16 %v2669
        %v3747 = vunpack.c.l.b16 %v2670
        %v3748 = vunpack.c.l.b16 %v2671
        %v3749 = vunpack.c.l.b16 %v2672
        %v3750 = vunpack.c.l.b16 %v2673
        %v3751 = vunpack.c.l.b16 %v2674
        %v3752 = vunpack.c.l.b16 %v2675
        %v3753 = vunpack.c.l.b16 %v2676
        %v3754 = vunpack.c.l.b16 %v2677
        %v3755 = vunpack.c.l.b16 %v2678
        %v3756 = vunpack.c.l.b16 %v2679
        %v3757 = vunpack.c.l.b16 %v2680
        %v3758 = vunpack.c.l.b16 %v2681
        %v3759 = vunpack.c.l.b16 %v2682
        %v3760 = vunpack.c.l.b16 %v2683
        %v3761 = vunpack.c.l.b16 %v2684
        %v3762 = vunpack.c.l.b16 %v2685
        %v3763 = vunpack.c.l.b16 %v2686
        %v3764 = vunpack.c.l.b16 %v2687
        %v3765 = vunpack.c.l.b16 %v2688
        %v3766 = vpack.c.b16 %v3719, %v3718
        %v3767 = vpack.c.b16 %v3721, %v3720
        %v3768 = vpack.c.b16 %v3723, %v3722
        %v3769 = vpack.c.b16 %v3725, %v3724
        %v3770 = vpack.c.b16 %v3727, %v3726
        %v3771 = vpack.c.b16 %v3729, %v3728
        %v3772 = vpack.c.b16 %v3731, %v3730
        %v3773 = vpack.c.b16 %v3733, %v3732
        %v3774 = vpack.c.b16 %v3735, %v3734
        %v3775 = vpack.c.b16 %v3737, %v3736
        %v3776 = vpack.c.b16 %v3739, %v3738
        %v3777 = vpack.c.b16 %v3741, %v3740
        %v3778 = vpack.c.b16 %v3743, %v3742
        %v3779 = vpack.c.b16 %v3745, %v3744
        %v3780 = vpack.c.b16 %v3747, %v3746
        %v3781 = vpack.c.b16 %v3749, %v3748
        %v3782 = vpack.c.b16 %v3751, %v3750
        %v3783 = vpack.c.b16 %v3753, %v3752
        %v3784 = vpack.c.b16 %v3755, %v3754
        %v3785 = vpack.c.b16 %v3757, %v3756
        %v3786 = vpack.c.b16 %v3759, %v3758
        %v3787 = vpack.c.b16 %v3761, %v3760
        %v3788 = vpack.c.b16 %v3763, %v3762
        %v3789 = vpack.c.b16 %v3765, %v3764
        %3814 = vmatpush.bf16.msra.mxu0 %v3773
        %3815 = vmatpush.bf16.msra.mxu0 %v3772
        %3816 = vmatpush.bf16.msra.mxu0 %v3771
        %3817 = vmatpush.bf16.msra.mxu0 %v3770
        %3818 = vmatpush.bf16.msra.mxu0 %v3769
        %3819 = vmatpush.bf16.msra.mxu0 %v3768
        %3820 = vmatpush.bf16.msra.mxu0 %v3767
        %3821 = vmatpush.bf16.msra.mxu0 %v3766
        %3822 = vmatmul.bf16.gmra.mxu0 %v3610
        %v3823 = vpop.f32.mrf.mxu0
        %v3824 = vadd.f32 %v3506, %v3823
        %v3825 = vpop.f32.mrf.mxu0
        %v3826 = vadd.f32 %v3508, %v3825
        %3827 = vmatmul.bf16.gmra.mxu0 %v3613
        %v3828 = vpop.f32.mrf.mxu0
        %v3829 = vadd.f32 %v3511, %v3828
        %v3830 = vpop.f32.mrf.mxu0
        %v3831 = vadd.f32 %v3513, %v3830
        %3832 = vmatmul.bf16.gmra.mxu0 %v2934
        %v3833 = vpop.f32.mrf.mxu0
        %v3834 = vadd.f32 %v3516, %v3833
        %v3835 = vpop.f32.mrf.mxu0
        %v3836 = vadd.f32 %v3518, %v3835
        %3837 = vmatmul.bf16.gmra.mxu0 %v2937
        %v3838 = vpop.f32.mrf.mxu0
        %v3839 = vadd.f32 %v3521, %v3838
        %v3840 = vpop.f32.mrf.mxu0
        %v3841 = vadd.f32 %v3523, %v3840
        %3842 = vmatmul.bf16.gmra.mxu0 %v2940
        %v3843 = vpop.f32.mrf.mxu0
        %v3844 = vadd.f32 %v3526, %v3843
        %v3845 = vpop.f32.mrf.mxu0
        %v3846 = vadd.f32 %v3528, %v3845
        %3847 = vmatmul.bf16.gmra.mxu0 %v2943
        %v3848 = vpop.f32.mrf.mxu0
        %v3849 = vadd.f32 %v3531, %v3848
        %v3850 = vpop.f32.mrf.mxu0
        %v3851 = vadd.f32 %v3533, %v3850
        %3852 = vmatmul.bf16.gmra.mxu0 %v2946
        %v3853 = vpop.f32.mrf.mxu0
        %v3854 = vadd.f32 %v3536, %v3853
        %v3855 = vpop.f32.mrf.mxu0
        %v3856 = vadd.f32 %v3538, %v3855
        %3857 = vmatmul.bf16.gmra.mxu0 %v2949
        %v3858 = vpop.f32.mrf.mxu0
        %v3859 = vadd.f32 %v3541, %v3858
        %v3860 = vpop.f32.mrf.mxu0
        %v3861 = vadd.f32 %v3543, %v3860
        %3862 = vmatmul.bf16.gmra.mxu0 %v2952
        %v3863 = vpop.f32.mrf.mxu0
        %v3864 = vadd.f32 %v3546, %v3863
        %v3865 = vpop.f32.mrf.mxu0
        %v3866 = vadd.f32 %v3548, %v3865
        %3867 = vmatmul.bf16.gmra.mxu0 %v2955
        %v3868 = vpop.f32.mrf.mxu0
        %v3869 = vadd.f32 %v3551, %v3868
        %v3870 = vpop.f32.mrf.mxu0
        %v3871 = vadd.f32 %v3553, %v3870
        %3872 = vmatmul.bf16.gmra.mxu0 %v2958
        %v3873 = vpop.f32.mrf.mxu0
        %v3874 = vadd.f32 %v3556, %v3873
        %v3875 = vpop.f32.mrf.mxu0
        %v3876 = vadd.f32 %v3558, %v3875
        %3877 = vmatmul.bf16.gmra.mxu0 %v2961
        %v3878 = vpop.f32.mrf.mxu0
        %v3879 = vadd.f32 %v3561, %v3878
        %v3880 = vpop.f32.mrf.mxu0
        %v3881 = vadd.f32 %v3563, %v3880
        %3882 = vmatmul.bf16.gmra.mxu0 %v2964
        %v3883 = vpop.f32.mrf.mxu0
        %v3884 = vadd.f32 %v3566, %v3883
        %v3885 = vpop.f32.mrf.mxu0
        %v3886 = vadd.f32 %v3568, %v3885
        %3887 = vmatmul.bf16.gmra.mxu0 %v2967
        %v3888 = vpop.f32.mrf.mxu0
        %v3889 = vadd.f32 %v3571, %v3888
        %v3890 = vpop.f32.mrf.mxu0
        %v3891 = vadd.f32 %v3573, %v3890
        %3892 = vmatmul.bf16.gmra.mxu0 %v2970
        %v3893 = vpop.f32.mrf.mxu0
        %v3894 = vadd.f32 %v3576, %v3893
        %v3895 = vpop.f32.mrf.mxu0
        %v3896 = vadd.f32 %v3578, %v3895
        %3897 = vmatmul.bf16.gmra.mxu0 %v2973
        %v3898 = vpop.f32.mrf.mxu0
        %v3899 = vadd.f32 %v3581, %v3898
        %v3900 = vpop.f32.mrf.mxu0
        %v3901 = vadd.f32 %v3583, %v3900
        %3902 = vmatmul.bf16.gmra.mxu0 %v2976
        %v3903 = vpop.f32.mrf.mxu0
        %v3904 = vadd.f32 %v3586, %v3903
        %v3905 = vpop.f32.mrf.mxu0
        %v3906 = vadd.f32 %v3588, %v3905
        %3907 = vmatmul.bf16.gmra.mxu0 %v2979
        %v3908 = vpop.f32.mrf.mxu0
        %v3909 = vadd.f32 %v3591, %v3908
        %v3910 = vpop.f32.mrf.mxu0
        %v3911 = vadd.f32 %v3593, %v3910
        %3912 = vdwg.mxu0
        %3913 = vmatpush.bf16.msra.mxu0 %v3781
        %3914 = vmatpush.bf16.msra.mxu0 %v3780
        %3915 = vmatpush.bf16.msra.mxu0 %v3779
        %3916 = vmatpush.bf16.msra.mxu0 %v3778
        %3917 = vmatpush.bf16.msra.mxu0 %v3777
        %3918 = vmatpush.bf16.msra.mxu0 %v3776
        %3919 = vmatpush.bf16.msra.mxu0 %v3775
        %3920 = vmatpush.bf16.msra.mxu0 %v3774
        %3921 = vmatmul.bf16.gmra.mxu0 %v3611
        %v3922 = vpop.f32.mrf.mxu0
        %v3923 = vadd.f32 %v3824, %v3922
        %v3924 = vpop.f32.mrf.mxu0
        %v3925 = vadd.f32 %v3826, %v3924
        %3926 = vmatmul.bf16.gmra.mxu0 %v3614
        %v3927 = vpop.f32.mrf.mxu0
        %v3928 = vadd.f32 %v3829, %v3927
        %v3929 = vpop.f32.mrf.mxu0
        %v3930 = vadd.f32 %v3831, %v3929
        %3931 = vmatmul.bf16.gmra.mxu0 %v2935
        %v3932 = vpop.f32.mrf.mxu0
        %v3933 = vadd.f32 %v3834, %v3932
        %v3934 = vpop.f32.mrf.mxu0
        %v3935 = vadd.f32 %v3836, %v3934
        %3936 = vmatmul.bf16.gmra.mxu0 %v2938
        %v3937 = vpop.f32.mrf.mxu0
        %v3938 = vadd.f32 %v3839, %v3937
        %v3939 = vpop.f32.mrf.mxu0
        %v3940 = vadd.f32 %v3841, %v3939
        %3941 = vmatmul.bf16.gmra.mxu0 %v2941
        %v3942 = vpop.f32.mrf.mxu0
        %v3943 = vadd.f32 %v3844, %v3942
        %v3944 = vpop.f32.mrf.mxu0
        %v3945 = vadd.f32 %v3846, %v3944
        %3946 = vmatmul.bf16.gmra.mxu0 %v2944
        %v3947 = vpop.f32.mrf.mxu0
        %v3948 = vadd.f32 %v3849, %v3947
        %v3949 = vpop.f32.mrf.mxu0
        %v3950 = vadd.f32 %v3851, %v3949
        %3951 = vmatmul.bf16.gmra.mxu0 %v2947
        %v3952 = vpop.f32.mrf.mxu0
        %v3953 = vadd.f32 %v3854, %v3952
        %v3954 = vpop.f32.mrf.mxu0
        %v3955 = vadd.f32 %v3856, %v3954
        %3956 = vmatmul.bf16.gmra.mxu0 %v2950
        %v3957 = vpop.f32.mrf.mxu0
        %v3958 = vadd.f32 %v3859, %v3957
        %v3959 = vpop.f32.mrf.mxu0
        %v3960 = vadd.f32 %v3861, %v3959
        %3961 = vmatmul.bf16.gmra.mxu0 %v2953
        %v3962 = vpop.f32.mrf.mxu0
        %v3963 = vadd.f32 %v3864, %v3962
        %v3964 = vpop.f32.mrf.mxu0
        %v3965 = vadd.f32 %v3866, %v3964
        %3966 = vmatmul.bf16.gmra.mxu0 %v2956
        %v3967 = vpop.f32.mrf.mxu0
        %v3968 = vadd.f32 %v3869, %v3967
        %v3969 = vpop.f32.mrf.mxu0
        %v3970 = vadd.f32 %v3871, %v3969
        %3971 = vmatmul.bf16.gmra.mxu0 %v2959
        %v3972 = vpop.f32.mrf.mxu0
        %v3973 = vadd.f32 %v3874, %v3972
        %v3974 = vpop.f32.mrf.mxu0
        %v3975 = vadd.f32 %v3876, %v3974
        %3976 = vmatmul.bf16.gmra.mxu0 %v2962
        %v3977 = vpop.f32.mrf.mxu0
        %v3978 = vadd.f32 %v3879, %v3977
        %v3979 = vpop.f32.mrf.mxu0
        %v3980 = vadd.f32 %v3881, %v3979
        %3981 = vmatmul.bf16.gmra.mxu0 %v2965
        %v3982 = vpop.f32.mrf.mxu0
        %v3983 = vadd.f32 %v3884, %v3982
        %v3984 = vpop.f32.mrf.mxu0
        %v3985 = vadd.f32 %v3886, %v3984
        %3986 = vmatmul.bf16.gmra.mxu0 %v2968
        %v3987 = vpop.f32.mrf.mxu0
        %v3988 = vadd.f32 %v3889, %v3987
        %v3989 = vpop.f32.mrf.mxu0
        %v3990 = vadd.f32 %v3891, %v3989
        %3991 = vmatmul.bf16.gmra.mxu0 %v2971
        %v3992 = vpop.f32.mrf.mxu0
        %v3993 = vadd.f32 %v3894, %v3992
        %v3994 = vpop.f32.mrf.mxu0
        %v3995 = vadd.f32 %v3896, %v3994
        %3996 = vmatmul.bf16.gmra.mxu0 %v2974
        %v3997 = vpop.f32.mrf.mxu0
        %v3998 = vadd.f32 %v3899, %v3997
        %v3999 = vpop.f32.mrf.mxu0
        %v4000 = vadd.f32 %v3901, %v3999
        %4001 = vmatmul.bf16.gmra.mxu0 %v2977
        %v4002 = vpop.f32.mrf.mxu0
        %v4003 = vadd.f32 %v3904, %v4002
        %v4004 = vpop.f32.mrf.mxu0
        %v4005 = vadd.f32 %v3906, %v4004
        %4006 = vmatmul.bf16.gmra.mxu0 %v2980
        %v4007 = vpop.f32.mrf.mxu0
        %v4008 = vadd.f32 %v3909, %v4007
        %v4009 = vpop.f32.mrf.mxu0
        %v4010 = vadd.f32 %v3911, %v4009
        %4011 = vdwg.mxu0
        %4012 = vmatpush.bf16.msra.mxu0 %v3789
        %4013 = vmatpush.bf16.msra.mxu0 %v3788
        %4014 = vmatpush.bf16.msra.mxu0 %v3787
        %4015 = vmatpush.bf16.msra.mxu0 %v3786
        %4016 = vmatpush.bf16.msra.mxu0 %v3785
        %4017 = vmatpush.bf16.msra.mxu0 %v3784
        %4018 = vmatpush.bf16.msra.mxu0 %v3783
        %4019 = vmatpush.bf16.msra.mxu0 %v3782
        %4020 = vmatmul.bf16.gmra.mxu0 %v3612
        %v4021 = vpop.f32.mrf.mxu0
        %v4022 = vadd.f32 %v3923, %v4021
        %v4023 = vpop.f32.mrf.mxu0
        %v4024 = vadd.f32 %v3925, %v4023
        %4025 = vmatmul.bf16.gmra.mxu0 %v3615
        %v4026 = vpop.f32.mrf.mxu0
        %v4027 = vadd.f32 %v3928, %v4026
        %v4028 = vpop.f32.mrf.mxu0
        %v4029 = vadd.f32 %v3930, %v4028
        %4030 = vmatmul.bf16.gmra.mxu0 %v2936
        %v4031 = vpop.f32.mrf.mxu0
        %v4032 = vadd.f32 %v3933, %v4031
        %v4033 = vpop.f32.mrf.mxu0
        %v4034 = vadd.f32 %v3935, %v4033
        %4035 = vmatmul.bf16.gmra.mxu0 %v2939
        %v4036 = vpop.f32.mrf.mxu0
        %v4037 = vadd.f32 %v3938, %v4036
        %v4038 = vpop.f32.mrf.mxu0
        %v4039 = vadd.f32 %v3940, %v4038
        %4040 = vmatmul.bf16.gmra.mxu0 %v2942
        %v4041 = vpop.f32.mrf.mxu0
        %v4042 = vadd.f32 %v3943, %v4041
        %v4043 = vpop.f32.mrf.mxu0
        %v4044 = vadd.f32 %v3945, %v4043
        %4045 = vmatmul.bf16.gmra.mxu0 %v2945
        %v4046 = vpop.f32.mrf.mxu0
        %v4047 = vadd.f32 %v3948, %v4046
        %v4048 = vpop.f32.mrf.mxu0
        %v4049 = vadd.f32 %v3950, %v4048
        %4050 = vmatmul.bf16.gmra.mxu0 %v2948
        %v4051 = vpop.f32.mrf.mxu0
        %v4052 = vadd.f32 %v3953, %v4051
        %v4053 = vpop.f32.mrf.mxu0
        %v4054 = vadd.f32 %v3955, %v4053
        %4055 = vmatmul.bf16.gmra.mxu0 %v2951
        %v4056 = vpop.f32.mrf.mxu0
        %v4057 = vadd.f32 %v3958, %v4056
        %v4058 = vpop.f32.mrf.mxu0
        %v4059 = vadd.f32 %v3960, %v4058
        %4060 = vmatmul.bf16.gmra.mxu0 %v2954
        %v4061 = vpop.f32.mrf.mxu0
        %v4062 = vadd.f32 %v3963, %v4061
        %v4063 = vpop.f32.mrf.mxu0
        %v4064 = vadd.f32 %v3965, %v4063
        %4065 = vmatmul.bf16.gmra.mxu0 %v2957
        %v4066 = vpop.f32.mrf.mxu0
        %v4067 = vadd.f32 %v3968, %v4066
        %v4068 = vpop.f32.mrf.mxu0
        %v4069 = vadd.f32 %v3970, %v4068
        %4070 = vmatmul.bf16.gmra.mxu0 %v2960
        %v4071 = vpop.f32.mrf.mxu0
        %v4072 = vadd.f32 %v3973, %v4071
        %v4073 = vpop.f32.mrf.mxu0
        %v4074 = vadd.f32 %v3975, %v4073
        %4075 = vmatmul.bf16.gmra.mxu0 %v2963
        %v4076 = vpop.f32.mrf.mxu0
        %v4077 = vadd.f32 %v3978, %v4076
        %v4078 = vpop.f32.mrf.mxu0
        %v4079 = vadd.f32 %v3980, %v4078
        %4080 = vmatmul.bf16.gmra.mxu0 %v2966
        %v4081 = vpop.f32.mrf.mxu0
        %v4082 = vadd.f32 %v3983, %v4081
        %v4083 = vpop.f32.mrf.mxu0
        %v4084 = vadd.f32 %v3985, %v4083
        %4085 = vmatmul.bf16.gmra.mxu0 %v2969
        %v4086 = vpop.f32.mrf.mxu0
        %v4087 = vadd.f32 %v3988, %v4086
        %v4088 = vpop.f32.mrf.mxu0
        %v4089 = vadd.f32 %v3990, %v4088
        %4090 = vmatmul.bf16.gmra.mxu0 %v2972
        %v4091 = vpop.f32.mrf.mxu0
        %v4092 = vadd.f32 %v3993, %v4091
        %v4093 = vpop.f32.mrf.mxu0
        %v4094 = vadd.f32 %v3995, %v4093
        %4095 = vmatmul.bf16.gmra.mxu0 %v2975
        %v4096 = vpop.f32.mrf.mxu0
        %v4097 = vadd.f32 %v3998, %v4096
        %v4098 = vpop.f32.mrf.mxu0
        %v4099 = vadd.f32 %v4000, %v4098
        %4100 = vmatmul.bf16.gmra.mxu0 %v2978
        %v4101 = vpop.f32.mrf.mxu0
        %v4102 = vadd.f32 %v4003, %v4101
        %v4103 = vpop.f32.mrf.mxu0
        %v4104 = vadd.f32 %v4005, %v4103
        %4105 = vmatmul.bf16.gmra.mxu0 %v2981
        %v4106 = vpop.f32.mrf.mxu0
        %v4107 = vadd.f32 %v4008, %v4106
        %v4108 = vpop.f32.mrf.mxu0
        %v4109 = vadd.f32 %v4010, %v4108
        %4110 = vdwg.mxu0
        %v4111 = vld [vmem:[#allocation2 + $0x30] sm:$0xcc]
        %v4112 = vld [vmem:[#allocation2 + $0x38] sm:$0xc]
        %v4113 = vld [vmem:[#allocation2 + $0x3c] sm:$0xff]
        %v4114 = vld [vmem:[#allocation2 + $0x44] sm:$0xf]
        %v4115 = vld [vmem:[#allocation2 + $0x48] sm:$0xff]
        %v4116 = vld [vmem:[#allocation2 + $0x50] sm:$0xf]
        %v4117 = vld [vmem:[#allocation2 + $0x54] sm:$0xff]
        %v4118 = vld [vmem:[#allocation2 + $0x5c] sm:$0xf]
        %v4119 = vld [vmem:[#allocation2 + $0x60] sm:$0xff]
        %v4120 = vld [vmem:[#allocation2 + $0x68] sm:$0xf]
        %v4121 = vld [vmem:[#allocation2 + $0x6c] sm:$0xff]
        %v4122 = vld [vmem:[#allocation2 + $0x74] sm:$0xf]
        %v4123 = vld [vmem:[#allocation2 + $0x78] sm:$0xff]
        %v4124 = vld [vmem:[#allocation2 + $0x80] sm:$0xf]
        %v4125 = vld [vmem:[#allocation2 + $0x84] sm:$0xff]
        %v4126 = vld [vmem:[#allocation2 + $0x8c] sm:$0xf]
        %v4127 = vld [vmem:[#allocation2 + $0x90] sm:$0xff]
        %v4128 = vld [vmem:[#allocation2 + $0x98] sm:$0xf]
        %v4129 = vld [vmem:[#allocation2 + $0x9c] sm:$0xff]
        %v4130 = vld [vmem:[#allocation2 + $0xa4] sm:$0xf]
        %v4131 = vld [vmem:[#allocation2 + $0xa8] sm:$0xff]
        %v4132 = vld [vmem:[#allocation2 + $0xb0] sm:$0xf]
        %v4133 = vld [vmem:[#allocation2 + $0xb4] sm:$0xff]
        %v4134 = vld [vmem:[#allocation2 + $0xbc] sm:$0xf]
        %v4135 = vld [vmem:[#allocation2 + $0xc0] sm:$0xff]
        %v4136 = vld [vmem:[#allocation2 + $0xc8] sm:$0xf]
        %v4137 = vld [vmem:[#allocation2 + $0xcc] sm:$0xff]
        %v4138 = vld [vmem:[#allocation2 + $0xd4] sm:$0xf]
        %v4139 = vld [vmem:[#allocation2 + $0xd8] sm:$0xff]
        %v4140 = vld [vmem:[#allocation2 + $0xe0] sm:$0xf]
        %v4141 = vld [vmem:[#allocation2 + $0xe4] sm:$0xff]
        %v4142 = vld [vmem:[#allocation2 + $0xec] sm:$0xf]
        %v4143 = vld [vmem:[#allocation2 + $0xf0] sm:$0xff]
        %v4144 = vld [vmem:[#allocation2 + $0xf8] sm:$0xf]
        %v4145 = vld [vmem:[#allocation2 + $0xfc] sm:$0xff]
        %v4146 = vld [vmem:[#allocation2 + $0x104] sm:$0xf]
        %v4147 = vld [vmem:[#allocation2 + $0x108] sm:$0xff]
        %v4148 = vld [vmem:[#allocation2 + $0x110] sm:$0xf]
        %v4149 = vld [vmem:[#allocation2 + $0x114] sm:$0xff]
        %v4150 = vld [vmem:[#allocation2 + $0x11c] sm:$0xf]
        %v4151 = vld [vmem:[#allocation2 + $0x120] sm:$0xff]
        %v4152 = vld [vmem:[#allocation2 + $0x128] sm:$0xf]
        %v4153 = vld [vmem:[#allocation2 + $0x12c] sm:$0xff]
        %v4154 = vld [vmem:[#allocation2 + $0x134] sm:$0xf]
        %v4155 = vld [vmem:[#allocation2 + $0x138] sm:$0xff]
        %v4156 = vld [vmem:[#allocation2 + $0x140] sm:$0xf]
        %v4157 = vld [vmem:[#allocation2 + $0x144] sm:$0xff]
        %v4158 = vld [vmem:[#allocation2 + $0x14c] sm:$0xf]
        %v4159 = vld [vmem:[#allocation2 + $0x150] sm:$0xff]
        %v4160 = vld [vmem:[#allocation2 + $0x158] sm:$0xf]
        %v4161 = vld [vmem:[#allocation2 + $0x15c] sm:$0xff]
        %v4162 = vld [vmem:[#allocation2 + $0x164] sm:$0xf]
        %v4163 = vld [vmem:[#allocation2 + $0x168] sm:$0xff]
        %v4164 = vld [vmem:[#allocation2 + $0x170] sm:$0xf]
        %v4165 = vld [vmem:[#allocation2 + $0x174] sm:$0xff]
        %v4166 = vld [vmem:[#allocation2 + $0x17c] sm:$0xf]
        %v4167 = vld [vmem:[#allocation2 + $0x180] sm:$0xff]
        %v4168 = vld [vmem:[#allocation2 + $0x188] sm:$0xf]
        %v4169 = vld [vmem:[#allocation2 + $0x18c] sm:$0xff]
        %v4170 = vld [vmem:[#allocation2 + $0x194] sm:$0xf]
        %v4171 = vld [vmem:[#allocation2 + $0x198] sm:$0xff]
        %v4172 = vld [vmem:[#allocation2 + $0x1a0] sm:$0xf]
        %v4173 = vld [vmem:[#allocation2 + $0x1a4] sm:$0xff]
        %v4174 = vld [vmem:[#allocation2 + $0x1ac] sm:$0xf]
        %v4175 = vld [vmem:[#allocation2 + $0x1b0] sm:$0xff]
        %v4176 = vld [vmem:[#allocation2 + $0x1b8] sm:$0xf]
        %v4177 = vld [vmem:[#allocation2 + $0x1bc] sm:$0xff]
        %v4178 = vld [vmem:[#allocation2 + $0x1c4] sm:$0xf]
        %v4179 = vld [vmem:[#allocation2 + $0x1c8] sm:$0xff]
        %v4180 = vld [vmem:[#allocation2 + $0x1d0] sm:$0xf]
        %v4181 = vld [vmem:[#allocation2 + $0x1d4] sm:$0xff]
        %v4182 = vld [vmem:[#allocation2 + $0x1dc] sm:$0xf]
        %v4183 = vld [vmem:[#allocation2 + $0x1e0] sm:$0x33]
        %v4184 = vld [vmem:[#allocation2 + $0x1e8] sm:$0x3]
        %s4185 = scalar_lea.vmem [#allocation6], 384
        %v4186 = vld [vmem:[%s4185] sm:$0xf]
        %v4187 = vld [vmem:[%s4185 + $0x4] sm:$0xf]
        %v4188 = vld [vmem:[%s4185 + $0x8] sm:$0xf]
        %v4189 = vld [vmem:[%s4185 + $0xc] sm:$0xf]
        %v4190 = vld [vmem:[%s4185 + $0x10] sm:$0xf]
        %v4191 = vld [vmem:[%s4185 + $0x14] sm:$0xf]
        %v4192 = vld [vmem:[%s4185 + $0x18] sm:$0xf]
        %v4193 = vld [vmem:[%s4185 + $0x1c] sm:$0xf]
        %v4194 = vld [vmem:[%s4185 + $0x20] sm:$0xf]
        %v4195 = vld [vmem:[%s4185 + $0x24] sm:$0xf]
        %v4196 = vld [vmem:[%s4185 + $0x28] sm:$0xf]
        %v4197 = vld [vmem:[%s4185 + $0x2c] sm:$0xf]
        %v4198 = vld [vmem:[%s4185 + $0x30] sm:$0xf]
        %v4199 = vld [vmem:[%s4185 + $0x34] sm:$0xf]
        %v4200 = vld [vmem:[%s4185 + $0x38] sm:$0xf]
        %v4201 = vld [vmem:[%s4185 + $0x3c] sm:$0xf]
        %v4202 = vld [vmem:[%s4185 + $0x40] sm:$0xf]
        %v4203 = vld [vmem:[%s4185 + $0x44] sm:$0xf]
        %v4204 = vld [vmem:[%s4185 + $0x48] sm:$0xf]
        %v4205 = vld [vmem:[%s4185 + $0x4c] sm:$0xf]
        %v4206 = vld [vmem:[%s4185 + $0x50] sm:$0xf]
        %v4207 = vld [vmem:[%s4185 + $0x54] sm:$0xf]
        %v4208 = vld [vmem:[%s4185 + $0x58] sm:$0xf]
        %v4209 = vld [vmem:[%s4185 + $0x5c] sm:$0xf]
        %v4210 = vld [vmem:[%s4185 + $0x60] sm:$0xf]
        %v4211 = vld [vmem:[%s4185 + $0x64] sm:$0xf]
        %v4212 = vld [vmem:[%s4185 + $0x68] sm:$0xf]
        %v4213 = vld [vmem:[%s4185 + $0x6c] sm:$0xf]
        %v4214 = vld [vmem:[%s4185 + $0x70] sm:$0xf]
        %v4215 = vld [vmem:[%s4185 + $0x74] sm:$0xf]
        %v4216 = vld [vmem:[%s4185 + $0x78] sm:$0xf]
        %v4217 = vld [vmem:[%s4185 + $0x7c] sm:$0xf]
        %v4218 = vld [vmem:[%s4185 + $0x80] sm:$0xf]
        %v4219 = vld [vmem:[%s4185 + $0x84] sm:$0xf]
        %v4220 = vld [vmem:[%s4185 + $0x88] sm:$0xf]
        %v4221 = vld [vmem:[%s4185 + $0x8c] sm:$0xf]
        %v4222 = vld [vmem:[%s4185 + $0x90] sm:$0xf]
        %v4223 = vld [vmem:[%s4185 + $0x94] sm:$0xf]
        %v4224 = vld [vmem:[%s4185 + $0x98] sm:$0xf]
        %v4225 = vld [vmem:[%s4185 + $0x9c] sm:$0xf]
        %v4226 = vld [vmem:[%s4185 + $0xa0] sm:$0xf]
        %v4227 = vld [vmem:[%s4185 + $0xa4] sm:$0xf]
        %v4228 = vld [vmem:[%s4185 + $0xa8] sm:$0xf]
        %v4229 = vld [vmem:[%s4185 + $0xac] sm:$0xf]
        %v4230 = vld [vmem:[%s4185 + $0xb0] sm:$0xf]
        %v4231 = vld [vmem:[%s4185 + $0xb4] sm:$0xf]
        %v4232 = vld [vmem:[%s4185 + $0xb8] sm:$0xf]
        %v4233 = vld [vmem:[%s4185 + $0xbc] sm:$0xf]
        %v4308 = vunpack.c.l.b16 %v4111
        %v4309 = vunpack.c.h.b16 %v4111
        %v4310 = vunpack.c.l.b16 %v4112
        %v4311 = vunpack.c.l.b16 %v4113
        %v4312 = vunpack.c.h.b16 %v4113
        %v4313 = vunpack.c.l.b16 %v4114
        %v4314 = vunpack.c.l.b16 %v4115
        %v4315 = vunpack.c.h.b16 %v4115
        %v4316 = vunpack.c.l.b16 %v4116
        %v4317 = vunpack.c.l.b16 %v4117
        %v4318 = vunpack.c.h.b16 %v4117
        %v4319 = vunpack.c.l.b16 %v4118
        %v4320 = vunpack.c.l.b16 %v4119
        %v4321 = vunpack.c.h.b16 %v4119
        %v4322 = vunpack.c.l.b16 %v4120
        %v4323 = vunpack.c.l.b16 %v4121
        %v4324 = vunpack.c.h.b16 %v4121
        %v4325 = vunpack.c.l.b16 %v4122
        %v4326 = vunpack.c.l.b16 %v4123
        %v4327 = vunpack.c.h.b16 %v4123
        %v4328 = vunpack.c.l.b16 %v4124
        %v4329 = vunpack.c.l.b16 %v4125
        %v4330 = vunpack.c.h.b16 %v4125
        %v4331 = vunpack.c.l.b16 %v4126
        %v4332 = vunpack.c.l.b16 %v4127
        %v4333 = vunpack.c.h.b16 %v4127
        %v4334 = vunpack.c.l.b16 %v4128
        %v4335 = vunpack.c.l.b16 %v4129
        %v4336 = vunpack.c.h.b16 %v4129
        %v4337 = vunpack.c.l.b16 %v4130
        %v4338 = vunpack.c.l.b16 %v4131
        %v4339 = vunpack.c.h.b16 %v4131
        %v4340 = vunpack.c.l.b16 %v4132
        %v4341 = vunpack.c.l.b16 %v4133
        %v4342 = vunpack.c.h.b16 %v4133
        %v4343 = vunpack.c.l.b16 %v4134
        %v4344 = vunpack.c.l.b16 %v4135
        %v4345 = vunpack.c.h.b16 %v4135
        %v4346 = vunpack.c.l.b16 %v4136
        %v4347 = vunpack.c.l.b16 %v4137
        %v4348 = vunpack.c.h.b16 %v4137
        %v4349 = vunpack.c.l.b16 %v4138
        %v4350 = vunpack.c.l.b16 %v4139
        %v4351 = vunpack.c.h.b16 %v4139
        %v4352 = vunpack.c.l.b16 %v4140
        %v4353 = vunpack.c.l.b16 %v4141
        %v4354 = vunpack.c.h.b16 %v4141
        %v4355 = vunpack.c.l.b16 %v4142
        %v4356 = vunpack.c.l.b16 %v4143
        %v4357 = vunpack.c.h.b16 %v4143
        %v4358 = vunpack.c.l.b16 %v4144
        %v4359 = vunpack.c.l.b16 %v4145
        %v4360 = vunpack.c.h.b16 %v4145
        %v4361 = vunpack.c.l.b16 %v4146
        %v4362 = vunpack.c.l.b16 %v4147
        %v4363 = vunpack.c.h.b16 %v4147
        %v4364 = vunpack.c.l.b16 %v4148
        %v4365 = vunpack.c.l.b16 %v4149
        %v4366 = vunpack.c.h.b16 %v4149
        %v4367 = vunpack.c.l.b16 %v4150
        %v4368 = vunpack.c.l.b16 %v4151
        %v4369 = vunpack.c.h.b16 %v4151
        %v4370 = vunpack.c.l.b16 %v4152
        %v4371 = vunpack.c.l.b16 %v4153
        %v4372 = vunpack.c.h.b16 %v4153
        %v4373 = vunpack.c.l.b16 %v4154
        %v4374 = vunpack.c.l.b16 %v4155
        %v4375 = vunpack.c.h.b16 %v4155
        %v4376 = vunpack.c.l.b16 %v4156
        %v4377 = vunpack.c.l.b16 %v4157
        %v4378 = vunpack.c.h.b16 %v4157
        %v4379 = vunpack.c.l.b16 %v4158
        %v4380 = vunpack.c.l.b16 %v4159
        %v4381 = vunpack.c.h.b16 %v4159
        %v4382 = vunpack.c.l.b16 %v4160
        %v4383 = vunpack.c.l.b16 %v4161
        %v4384 = vunpack.c.h.b16 %v4161
        %v4385 = vunpack.c.l.b16 %v4162
        %v4386 = vunpack.c.l.b16 %v4163
        %v4387 = vunpack.c.h.b16 %v4163
        %v4388 = vunpack.c.l.b16 %v4164
        %v4389 = vunpack.c.l.b16 %v4165
        %v4390 = vunpack.c.h.b16 %v4165
        %v4391 = vunpack.c.l.b16 %v4166
        %v4392 = vunpack.c.l.b16 %v4167
        %v4393 = vunpack.c.h.b16 %v4167
        %v4394 = vunpack.c.l.b16 %v4168
        %v4395 = vunpack.c.l.b16 %v4169
        %v4396 = vunpack.c.h.b16 %v4169
        %v4397 = vunpack.c.l.b16 %v4170
        %v4398 = vunpack.c.l.b16 %v4171
        %v4399 = vunpack.c.h.b16 %v4171
        %v4400 = vunpack.c.l.b16 %v4172
        %v4401 = vunpack.c.l.b16 %v4173
        %v4402 = vunpack.c.h.b16 %v4173
        %v4403 = vunpack.c.l.b16 %v4174
        %v4404 = vunpack.c.l.b16 %v4175
        %v4405 = vunpack.c.h.b16 %v4175
        %v4406 = vunpack.c.l.b16 %v4176
        %v4407 = vunpack.c.l.b16 %v4177
        %v4408 = vunpack.c.h.b16 %v4177
        %v4409 = vunpack.c.l.b16 %v4178
        %v4410 = vunpack.c.l.b16 %v4179
        %v4411 = vunpack.c.h.b16 %v4179
        %v4412 = vunpack.c.l.b16 %v4180
        %v4413 = vunpack.c.l.b16 %v4181
        %v4414 = vunpack.c.h.b16 %v4181
        %v4415 = vunpack.c.l.b16 %v4182
        %v4416 = vunpack.c.l.b16 %v4183
        %v4417 = vunpack.c.h.b16 %v4183
        %v4418 = vunpack.c.l.b16 %v4184
        %v4419 = vpack.c.b16 %v4311, %v4308
        %v4420 = vpack.c.b16 %v4312, %v4309
        %v4421 = vpack.c.b16 %v4313, %v4310
        %v4422 = vpack.c.b16 %v4317, %v4314
        %v4423 = vpack.c.b16 %v4318, %v4315
        %v4424 = vpack.c.b16 %v4319, %v4316
        %v4425 = vpack.c.b16 %v4323, %v4320
        %v4426 = vpack.c.b16 %v4324, %v4321
        %v4427 = vpack.c.b16 %v4325, %v4322
        %v4428 = vpack.c.b16 %v4329, %v4326
        %v4429 = vpack.c.b16 %v4330, %v4327
        %v4430 = vpack.c.b16 %v4331, %v4328
        %v4431 = vpack.c.b16 %v4335, %v4332
        %v4432 = vpack.c.b16 %v4336, %v4333
        %v4433 = vpack.c.b16 %v4337, %v4334
        %v4434 = vpack.c.b16 %v4341, %v4338
        %v4435 = vpack.c.b16 %v4342, %v4339
        %v4436 = vpack.c.b16 %v4343, %v4340
        %v4437 = vpack.c.b16 %v4347, %v4344
        %v4438 = vpack.c.b16 %v4348, %v4345
        %v4439 = vpack.c.b16 %v4349, %v4346
        %v4440 = vpack.c.b16 %v4353, %v4350
        %v4441 = vpack.c.b16 %v4354, %v4351
        %v4442 = vpack.c.b16 %v4355, %v4352
        %v4443 = vpack.c.b16 %v4359, %v4356
        %v4444 = vpack.c.b16 %v4360, %v4357
        %v4445 = vpack.c.b16 %v4361, %v4358
        %v4446 = vpack.c.b16 %v4365, %v4362
        %v4447 = vpack.c.b16 %v4366, %v4363
        %v4448 = vpack.c.b16 %v4367, %v4364
        %v4449 = vpack.c.b16 %v4371, %v4368
        %v4450 = vpack.c.b16 %v4372, %v4369
        %v4451 = vpack.c.b16 %v4373, %v4370
        %v4452 = vpack.c.b16 %v4377, %v4374
        %v4453 = vpack.c.b16 %v4378, %v4375
        %v4454 = vpack.c.b16 %v4379, %v4376
        %v4455 = vpack.c.b16 %v4383, %v4380
        %v4456 = vpack.c.b16 %v4384, %v4381
        %v4457 = vpack.c.b16 %v4385, %v4382
        %v4458 = vpack.c.b16 %v4389, %v4386
        %v4459 = vpack.c.b16 %v4390, %v4387
        %v4460 = vpack.c.b16 %v4391, %v4388
        %v4461 = vpack.c.b16 %v4395, %v4392
        %v4462 = vpack.c.b16 %v4396, %v4393
        %v4463 = vpack.c.b16 %v4397, %v4394
        %v4464 = vpack.c.b16 %v4401, %v4398
        %v4465 = vpack.c.b16 %v4402, %v4399
        %v4466 = vpack.c.b16 %v4403, %v4400
        %v4467 = vpack.c.b16 %v4407, %v4404
        %v4468 = vpack.c.b16 %v4408, %v4405
        %v4469 = vpack.c.b16 %v4409, %v4406
        %v4470 = vpack.c.b16 %v4413, %v4410
        %v4471 = vpack.c.b16 %v4414, %v4411
        %v4472 = vpack.c.b16 %v4415, %v4412
        %v4473 = vpack.c.b16 %v4416, %v4416
        %v4474 = vpack.c.b16 %v4417, %v4417
        %v4475 = vpack.c.b16 %v4418, %v4418
        %vm4476 = vcmask 1045504
        %v4477 = vrot.slane %v4419, 2
        %v4478 = vrot.slane %v4422, 2
        %v4479 = vsel %vm4476, %v4477, %v4478
        %v4480 = vrot.slane %v4420, 2
        %v4481 = vrot.slane %v4423, 2
        %v4482 = vsel %vm4476, %v4480, %v4481
        %v4483 = vrot.slane %v4421, 2
        %v4484 = vrot.slane %v4424, 2
        %v4485 = vsel %vm4476, %v4483, %v4484
        %v4486 = vrot.slane %v4425, 2
        %v4487 = vsel %vm4476, %v4478, %v4486
        %v4488 = vrot.slane %v4426, 2
        %v4489 = vsel %vm4476, %v4481, %v4488
        %v4490 = vrot.slane %v4427, 2
        %v4491 = vsel %vm4476, %v4484, %v4490
        %v4492 = vrot.slane %v4428, 2
        %v4493 = vsel %vm4476, %v4486, %v4492
        %v4494 = vrot.slane %v4429, 2
        %v4495 = vsel %vm4476, %v4488, %v4494
        %v4496 = vrot.slane %v4430, 2
        %v4497 = vsel %vm4476, %v4490, %v4496
        %v4498 = vrot.slane %v4431, 2
        %v4499 = vsel %vm4476, %v4492, %v4498
        %v4500 = vrot.slane %v4432, 2
        %v4501 = vsel %vm4476, %v4494, %v4500
        %v4502 = vrot.slane %v4433, 2
        %v4503 = vsel %vm4476, %v4496, %v4502
        %v4504 = vrot.slane %v4434, 2
        %v4505 = vsel %vm4476, %v4498, %v4504
        %v4506 = vrot.slane %v4435, 2
        %v4507 = vsel %vm4476, %v4500, %v4506
        %v4508 = vrot.slane %v4436, 2
        %v4509 = vsel %vm4476, %v4502, %v4508
        %v4510 = vrot.slane %v4437, 2
        %v4511 = vsel %vm4476, %v4504, %v4510
        %v4512 = vrot.slane %v4438, 2
        %v4513 = vsel %vm4476, %v4506, %v4512
        %v4514 = vrot.slane %v4439, 2
        %v4515 = vsel %vm4476, %v4508, %v4514
        %v4516 = vrot.slane %v4440, 2
        %v4517 = vsel %vm4476, %v4510, %v4516
        %v4518 = vrot.slane %v4441, 2
        %v4519 = vsel %vm4476, %v4512, %v4518
        %v4520 = vrot.slane %v4442, 2
        %v4521 = vsel %vm4476, %v4514, %v4520
        %v4522 = vrot.slane %v4443, 2
        %v4523 = vsel %vm4476, %v4516, %v4522
        %v4524 = vrot.slane %v4444, 2
        %v4525 = vsel %vm4476, %v4518, %v4524
        %v4526 = vrot.slane %v4445, 2
        %v4527 = vsel %vm4476, %v4520, %v4526
        %v4528 = vrot.slane %v4446, 2
        %v4529 = vsel %vm4476, %v4522, %v4528
        %v4530 = vrot.slane %v4447, 2
        %v4531 = vsel %vm4476, %v4524, %v4530
        %v4532 = vrot.slane %v4448, 2
        %v4533 = vsel %vm4476, %v4526, %v4532
        %v4534 = vrot.slane %v4449, 2
        %v4535 = vsel %vm4476, %v4528, %v4534
        %v4536 = vrot.slane %v4450, 2
        %v4537 = vsel %vm4476, %v4530, %v4536
        %v4538 = vrot.slane %v4451, 2
        %v4539 = vsel %vm4476, %v4532, %v4538
        %v4540 = vrot.slane %v4452, 2
        %v4541 = vsel %vm4476, %v4534, %v4540
        %v4542 = vrot.slane %v4453, 2
        %v4543 = vsel %vm4476, %v4536, %v4542
        %v4544 = vrot.slane %v4454, 2
        %v4545 = vsel %vm4476, %v4538, %v4544
        %v4546 = vrot.slane %v4455, 2
        %v4547 = vsel %vm4476, %v4540, %v4546
        %v4548 = vrot.slane %v4456, 2
        %v4549 = vsel %vm4476, %v4542, %v4548
        %v4550 = vrot.slane %v4457, 2
        %v4551 = vsel %vm4476, %v4544, %v4550
        %v4552 = vrot.slane %v4458, 2
        %v4553 = vsel %vm4476, %v4546, %v4552
        %v4554 = vrot.slane %v4459, 2
        %v4555 = vsel %vm4476, %v4548, %v4554
        %v4556 = vrot.slane %v4460, 2
        %v4557 = vsel %vm4476, %v4550, %v4556
        %v4558 = vrot.slane %v4461, 2
        %v4559 = vsel %vm4476, %v4552, %v4558
        %v4560 = vrot.slane %v4462, 2
        %v4561 = vsel %vm4476, %v4554, %v4560
        %v4562 = vrot.slane %v4463, 2
        %v4563 = vsel %vm4476, %v4556, %v4562
        %v4564 = vrot.slane %v4464, 2
        %v4565 = vsel %vm4476, %v4558, %v4564
        %v4566 = vrot.slane %v4465, 2
        %v4567 = vsel %vm4476, %v4560, %v4566
        %v4568 = vrot.slane %v4466, 2
        %v4569 = vsel %vm4476, %v4562, %v4568
        %v4570 = vrot.slane %v4467, 2
        %v4571 = vsel %vm4476, %v4564, %v4570
        %v4572 = vrot.slane %v4468, 2
        %v4573 = vsel %vm4476, %v4566, %v4572
        %v4574 = vrot.slane %v4469, 2
        %v4575 = vsel %vm4476, %v4568, %v4574
        %v4576 = vrot.slane %v4470, 2
        %v4577 = vsel %vm4476, %v4570, %v4576
        %v4578 = vrot.slane %v4471, 2
        %v4579 = vsel %vm4476, %v4572, %v4578
        %v4580 = vrot.slane %v4472, 2
        %v4581 = vsel %vm4476, %v4574, %v4580
        %v4582 = vrot.slane %v4473, 2
        %v4583 = vsel %vm4476, %v4576, %v4582
        %v4584 = vrot.slane %v4474, 2
        %v4585 = vsel %vm4476, %v4578, %v4584
        %v4586 = vrot.slane %v4475, 2
        %v4587 = vsel %vm4476, %v4580, %v4586
        %v4690 = vunpack.c.l.b16 %v4186
        %v4691 = vunpack.c.l.b16 %v4187
        %v4692 = vunpack.c.l.b16 %v4188
        %v4693 = vunpack.c.l.b16 %v4189
        %v4694 = vunpack.c.l.b16 %v4190
        %v4695 = vunpack.c.l.b16 %v4191
        %v4696 = vunpack.c.l.b16 %v4192
        %v4697 = vunpack.c.l.b16 %v4193
        %v4698 = vunpack.c.l.b16 %v4194
        %v4699 = vunpack.c.l.b16 %v4195
        %v4700 = vunpack.c.l.b16 %v4196
        %v4701 = vunpack.c.l.b16 %v4197
        %v4702 = vunpack.c.l.b16 %v4198
        %v4703 = vunpack.c.l.b16 %v4199
        %v4704 = vunpack.c.l.b16 %v4200
        %v4705 = vunpack.c.l.b16 %v4201
        %v4706 = vunpack.c.l.b16 %v4202
        %v4707 = vunpack.c.l.b16 %v4203
        %v4708 = vunpack.c.l.b16 %v4204
        %v4709 = vunpack.c.l.b16 %v4205
        %v4710 = vunpack.c.l.b16 %v4206
        %v4711 = vunpack.c.l.b16 %v4207
        %v4712 = vunpack.c.l.b16 %v4208
        %v4713 = vunpack.c.l.b16 %v4209
        %v4714 = vunpack.c.l.b16 %v4210
        %v4715 = vunpack.c.l.b16 %v4211
        %v4716 = vunpack.c.l.b16 %v4212
        %v4717 = vunpack.c.l.b16 %v4213
        %v4718 = vunpack.c.l.b16 %v4214
        %v4719 = vunpack.c.l.b16 %v4215
        %v4720 = vunpack.c.l.b16 %v4216
        %v4721 = vunpack.c.l.b16 %v4217
        %v4722 = vunpack.c.l.b16 %v4218
        %v4723 = vunpack.c.l.b16 %v4219
        %v4724 = vunpack.c.l.b16 %v4220
        %v4725 = vunpack.c.l.b16 %v4221
        %v4726 = vunpack.c.l.b16 %v4222
        %v4727 = vunpack.c.l.b16 %v4223
        %v4728 = vunpack.c.l.b16 %v4224
        %v4729 = vunpack.c.l.b16 %v4225
        %v4730 = vunpack.c.l.b16 %v4226
        %v4731 = vunpack.c.l.b16 %v4227
        %v4732 = vunpack.c.l.b16 %v4228
        %v4733 = vunpack.c.l.b16 %v4229
        %v4734 = vunpack.c.l.b16 %v4230
        %v4735 = vunpack.c.l.b16 %v4231
        %v4736 = vunpack.c.l.b16 %v4232
        %v4737 = vunpack.c.l.b16 %v4233
        %v4738 = vpack.c.b16 %v4691, %v4690
        %v4739 = vpack.c.b16 %v4693, %v4692
        %v4740 = vpack.c.b16 %v4695, %v4694
        %v4741 = vpack.c.b16 %v4697, %v4696
        %v4742 = vpack.c.b16 %v4699, %v4698
        %v4743 = vpack.c.b16 %v4701, %v4700
        %v4744 = vpack.c.b16 %v4703, %v4702
        %v4745 = vpack.c.b16 %v4705, %v4704
        %v4746 = vpack.c.b16 %v4707, %v4706
        %v4747 = vpack.c.b16 %v4709, %v4708
        %v4748 = vpack.c.b16 %v4711, %v4710
        %v4749 = vpack.c.b16 %v4713, %v4712
        %v4750 = vpack.c.b16 %v4715, %v4714
        %v4751 = vpack.c.b16 %v4717, %v4716
        %v4752 = vpack.c.b16 %v4719, %v4718
        %v4753 = vpack.c.b16 %v4721, %v4720
        %v4754 = vpack.c.b16 %v4723, %v4722
        %v4755 = vpack.c.b16 %v4725, %v4724
        %v4756 = vpack.c.b16 %v4727, %v4726
        %v4757 = vpack.c.b16 %v4729, %v4728
        %v4758 = vpack.c.b16 %v4731, %v4730
        %v4759 = vpack.c.b16 %v4733, %v4732
        %v4760 = vpack.c.b16 %v4735, %v4734
        %v4761 = vpack.c.b16 %v4737, %v4736
        %4786 = vmatpush.bf16.msra.mxu0 %v4745
        %4787 = vmatpush.bf16.msra.mxu0 %v4744
        %4788 = vmatpush.bf16.msra.mxu0 %v4743
        %4789 = vmatpush.bf16.msra.mxu0 %v4742
        %4790 = vmatpush.bf16.msra.mxu0 %v4741
        %4791 = vmatpush.bf16.msra.mxu0 %v4740
        %4792 = vmatpush.bf16.msra.mxu0 %v4739
        %4793 = vmatpush.bf16.msra.mxu0 %v4738
        %4794 = vmatmul.bf16.gmra.mxu0 %v4479
        %v4795 = vpop.f32.mrf.mxu0
        %v4796 = vadd.f32 0.0, %v4795
        %v4797 = vpop.f32.mrf.mxu0
        %v4798 = vadd.f32 0.0, %v4797
        %4799 = vmatmul.bf16.gmra.mxu0 %v4487
        %v4800 = vpop.f32.mrf.mxu0
        %v4801 = vadd.f32 0.0, %v4800
        %v4802 = vpop.f32.mrf.mxu0
        %v4803 = vadd.f32 0.0, %v4802
        %4804 = vmatmul.bf16.gmra.mxu0 %v4493
        %v4805 = vpop.f32.mrf.mxu0
        %v4806 = vadd.f32 0.0, %v4805
        %v4807 = vpop.f32.mrf.mxu0
        %v4808 = vadd.f32 0.0, %v4807
        %4809 = vmatmul.bf16.gmra.mxu0 %v4499
        %v4810 = vpop.f32.mrf.mxu0
        %v4811 = vadd.f32 0.0, %v4810
        %v4812 = vpop.f32.mrf.mxu0
        %v4813 = vadd.f32 0.0, %v4812
        %4814 = vmatmul.bf16.gmra.mxu0 %v4505
        %v4815 = vpop.f32.mrf.mxu0
        %v4816 = vadd.f32 0.0, %v4815
        %v4817 = vpop.f32.mrf.mxu0
        %v4818 = vadd.f32 0.0, %v4817
        %4819 = vmatmul.bf16.gmra.mxu0 %v4511
        %v4820 = vpop.f32.mrf.mxu0
        %v4821 = vadd.f32 0.0, %v4820
        %v4822 = vpop.f32.mrf.mxu0
        %v4823 = vadd.f32 0.0, %v4822
        %4824 = vmatmul.bf16.gmra.mxu0 %v4517
        %v4825 = vpop.f32.mrf.mxu0
        %v4826 = vadd.f32 0.0, %v4825
        %v4827 = vpop.f32.mrf.mxu0
        %v4828 = vadd.f32 0.0, %v4827
        %4829 = vmatmul.bf16.gmra.mxu0 %v4523
        %v4830 = vpop.f32.mrf.mxu0
        %v4831 = vadd.f32 0.0, %v4830
        %v4832 = vpop.f32.mrf.mxu0
        %v4833 = vadd.f32 0.0, %v4832
        %4834 = vmatmul.bf16.gmra.mxu0 %v4529
        %v4835 = vpop.f32.mrf.mxu0
        %v4836 = vadd.f32 0.0, %v4835
        %v4837 = vpop.f32.mrf.mxu0
        %v4838 = vadd.f32 0.0, %v4837
        %4839 = vmatmul.bf16.gmra.mxu0 %v4535
        %v4840 = vpop.f32.mrf.mxu0
        %v4841 = vadd.f32 0.0, %v4840
        %v4842 = vpop.f32.mrf.mxu0
        %v4843 = vadd.f32 0.0, %v4842
        %4844 = vmatmul.bf16.gmra.mxu0 %v4541
        %v4845 = vpop.f32.mrf.mxu0
        %v4846 = vadd.f32 0.0, %v4845
        %v4847 = vpop.f32.mrf.mxu0
        %v4848 = vadd.f32 0.0, %v4847
        %4849 = vmatmul.bf16.gmra.mxu0 %v4547
        %v4850 = vpop.f32.mrf.mxu0
        %v4851 = vadd.f32 0.0, %v4850
        %v4852 = vpop.f32.mrf.mxu0
        %v4853 = vadd.f32 0.0, %v4852
        %4854 = vmatmul.bf16.gmra.mxu0 %v4553
        %v4855 = vpop.f32.mrf.mxu0
        %v4856 = vadd.f32 0.0, %v4855
        %v4857 = vpop.f32.mrf.mxu0
        %v4858 = vadd.f32 0.0, %v4857
        %4859 = vmatmul.bf16.gmra.mxu0 %v4559
        %v4860 = vpop.f32.mrf.mxu0
        %v4861 = vadd.f32 0.0, %v4860
        %v4862 = vpop.f32.mrf.mxu0
        %v4863 = vadd.f32 0.0, %v4862
        %4864 = vmatmul.bf16.gmra.mxu0 %v4565
        %v4865 = vpop.f32.mrf.mxu0
        %v4866 = vadd.f32 0.0, %v4865
        %v4867 = vpop.f32.mrf.mxu0
        %v4868 = vadd.f32 0.0, %v4867
        %4869 = vmatmul.bf16.gmra.mxu0 %v4571
        %v4870 = vpop.f32.mrf.mxu0
        %v4871 = vadd.f32 0.0, %v4870
        %v4872 = vpop.f32.mrf.mxu0
        %v4873 = vadd.f32 0.0, %v4872
        %4874 = vmatmul.bf16.gmra.mxu0 %v4577
        %v4875 = vpop.f32.mrf.mxu0
        %v4876 = vadd.f32 0.0, %v4875
        %v4877 = vpop.f32.mrf.mxu0
        %v4878 = vadd.f32 0.0, %v4877
        %4879 = vmatmul.bf16.gmra.mxu0 %v4583
        %v4880 = vpop.f32.mrf.mxu0
        %v4881 = vadd.f32 0.0, %v4880
        %v4882 = vpop.f32.mrf.mxu0
        %v4883 = vadd.f32 0.0, %v4882
        %4884 = vdwg.mxu0
        %4885 = vmatpush.bf16.msra.mxu0 %v4753
        %4886 = vmatpush.bf16.msra.mxu0 %v4752
        %4887 = vmatpush.bf16.msra.mxu0 %v4751
        %4888 = vmatpush.bf16.msra.mxu0 %v4750
        %4889 = vmatpush.bf16.msra.mxu0 %v4749
        %4890 = vmatpush.bf16.msra.mxu0 %v4748
        %4891 = vmatpush.bf16.msra.mxu0 %v4747
        %4892 = vmatpush.bf16.msra.mxu0 %v4746
        %4893 = vmatmul.bf16.gmra.mxu0 %v4482
        %v4894 = vpop.f32.mrf.mxu0
        %v4895 = vadd.f32 %v4796, %v4894
        %v4896 = vpop.f32.mrf.mxu0
        %v4897 = vadd.f32 %v4798, %v4896
        %4898 = vmatmul.bf16.gmra.mxu0 %v4489
        %v4899 = vpop.f32.mrf.mxu0
        %v4900 = vadd.f32 %v4801, %v4899
        %v4901 = vpop.f32.mrf.mxu0
        %v4902 = vadd.f32 %v4803, %v4901
        %4903 = vmatmul.bf16.gmra.mxu0 %v4495
        %v4904 = vpop.f32.mrf.mxu0
        %v4905 = vadd.f32 %v4806, %v4904
        %v4906 = vpop.f32.mrf.mxu0
        %v4907 = vadd.f32 %v4808, %v4906
        %4908 = vmatmul.bf16.gmra.mxu0 %v4501
        %v4909 = vpop.f32.mrf.mxu0
        %v4910 = vadd.f32 %v4811, %v4909
        %v4911 = vpop.f32.mrf.mxu0
        %v4912 = vadd.f32 %v4813, %v4911
        %4913 = vmatmul.bf16.gmra.mxu0 %v4507
        %v4914 = vpop.f32.mrf.mxu0
        %v4915 = vadd.f32 %v4816, %v4914
        %v4916 = vpop.f32.mrf.mxu0
        %v4917 = vadd.f32 %v4818, %v4916
        %4918 = vmatmul.bf16.gmra.mxu0 %v4513
        %v4919 = vpop.f32.mrf.mxu0
        %v4920 = vadd.f32 %v4821, %v4919
        %v4921 = vpop.f32.mrf.mxu0
        %v4922 = vadd.f32 %v4823, %v4921
        %4923 = vmatmul.bf16.gmra.mxu0 %v4519
        %v4924 = vpop.f32.mrf.mxu0
        %v4925 = vadd.f32 %v4826, %v4924
        %v4926 = vpop.f32.mrf.mxu0
        %v4927 = vadd.f32 %v4828, %v4926
        %4928 = vmatmul.bf16.gmra.mxu0 %v4525
        %v4929 = vpop.f32.mrf.mxu0
        %v4930 = vadd.f32 %v4831, %v4929
        %v4931 = vpop.f32.mrf.mxu0
        %v4932 = vadd.f32 %v4833, %v4931
        %4933 = vmatmul.bf16.gmra.mxu0 %v4531
        %v4934 = vpop.f32.mrf.mxu0
        %v4935 = vadd.f32 %v4836, %v4934
        %v4936 = vpop.f32.mrf.mxu0
        %v4937 = vadd.f32 %v4838, %v4936
        %4938 = vmatmul.bf16.gmra.mxu0 %v4537
        %v4939 = vpop.f32.mrf.mxu0
        %v4940 = vadd.f32 %v4841, %v4939
        %v4941 = vpop.f32.mrf.mxu0
        %v4942 = vadd.f32 %v4843, %v4941
        %4943 = vmatmul.bf16.gmra.mxu0 %v4543
        %v4944 = vpop.f32.mrf.mxu0
        %v4945 = vadd.f32 %v4846, %v4944
        %v4946 = vpop.f32.mrf.mxu0
        %v4947 = vadd.f32 %v4848, %v4946
        %4948 = vmatmul.bf16.gmra.mxu0 %v4549
        %v4949 = vpop.f32.mrf.mxu0
        %v4950 = vadd.f32 %v4851, %v4949
        %v4951 = vpop.f32.mrf.mxu0
        %v4952 = vadd.f32 %v4853, %v4951
        %4953 = vmatmul.bf16.gmra.mxu0 %v4555
        %v4954 = vpop.f32.mrf.mxu0
        %v4955 = vadd.f32 %v4856, %v4954
        %v4956 = vpop.f32.mrf.mxu0
        %v4957 = vadd.f32 %v4858, %v4956
        %4958 = vmatmul.bf16.gmra.mxu0 %v4561
        %v4959 = vpop.f32.mrf.mxu0
        %v4960 = vadd.f32 %v4861, %v4959
        %v4961 = vpop.f32.mrf.mxu0
        %v4962 = vadd.f32 %v4863, %v4961
        %4963 = vmatmul.bf16.gmra.mxu0 %v4567
        %v4964 = vpop.f32.mrf.mxu0
        %v4965 = vadd.f32 %v4866, %v4964
        %v4966 = vpop.f32.mrf.mxu0
        %v4967 = vadd.f32 %v4868, %v4966
        %4968 = vmatmul.bf16.gmra.mxu0 %v4573
        %v4969 = vpop.f32.mrf.mxu0
        %v4970 = vadd.f32 %v4871, %v4969
        %v4971 = vpop.f32.mrf.mxu0
        %v4972 = vadd.f32 %v4873, %v4971
        %4973 = vmatmul.bf16.gmra.mxu0 %v4579
        %v4974 = vpop.f32.mrf.mxu0
        %v4975 = vadd.f32 %v4876, %v4974
        %v4976 = vpop.f32.mrf.mxu0
        %v4977 = vadd.f32 %v4878, %v4976
        %4978 = vmatmul.bf16.gmra.mxu0 %v4585
        %v4979 = vpop.f32.mrf.mxu0
        %v4980 = vadd.f32 %v4881, %v4979
        %v4981 = vpop.f32.mrf.mxu0
        %v4982 = vadd.f32 %v4883, %v4981
        %4983 = vdwg.mxu0
        %4984 = vmatpush.bf16.msra.mxu0 %v4761
        %4985 = vmatpush.bf16.msra.mxu0 %v4760
        %4986 = vmatpush.bf16.msra.mxu0 %v4759
        %4987 = vmatpush.bf16.msra.mxu0 %v4758
        %4988 = vmatpush.bf16.msra.mxu0 %v4757
        %4989 = vmatpush.bf16.msra.mxu0 %v4756
        %4990 = vmatpush.bf16.msra.mxu0 %v4755
        %4991 = vmatpush.bf16.msra.mxu0 %v4754
        %4992 = vmatmul.bf16.gmra.mxu0 %v4485
        %v4993 = vpop.f32.mrf.mxu0
        %v4994 = vadd.f32 %v4895, %v4993
        %v4995 = vpop.f32.mrf.mxu0
        %v4996 = vadd.f32 %v4897, %v4995
        %4997 = vmatmul.bf16.gmra.mxu0 %v4491
        %v4998 = vpop.f32.mrf.mxu0
        %v4999 = vadd.f32 %v4900, %v4998
        %v5000 = vpop.f32.mrf.mxu0
        %v5001 = vadd.f32 %v4902, %v5000
        %5002 = vmatmul.bf16.gmra.mxu0 %v4497
        %v5003 = vpop.f32.mrf.mxu0
        %v5004 = vadd.f32 %v4905, %v5003
        %v5005 = vpop.f32.mrf.mxu0
        %v5006 = vadd.f32 %v4907, %v5005
        %5007 = vmatmul.bf16.gmra.mxu0 %v4503
        %v5008 = vpop.f32.mrf.mxu0
        %v5009 = vadd.f32 %v4910, %v5008
        %v5010 = vpop.f32.mrf.mxu0
        %v5011 = vadd.f32 %v4912, %v5010
        %5012 = vmatmul.bf16.gmra.mxu0 %v4509
        %v5013 = vpop.f32.mrf.mxu0
        %v5014 = vadd.f32 %v4915, %v5013
        %v5015 = vpop.f32.mrf.mxu0
        %v5016 = vadd.f32 %v4917, %v5015
        %5017 = vmatmul.bf16.gmra.mxu0 %v4515
        %v5018 = vpop.f32.mrf.mxu0
        %v5019 = vadd.f32 %v4920, %v5018
        %v5020 = vpop.f32.mrf.mxu0
        %v5021 = vadd.f32 %v4922, %v5020
        %5022 = vmatmul.bf16.gmra.mxu0 %v4521
        %v5023 = vpop.f32.mrf.mxu0
        %v5024 = vadd.f32 %v4925, %v5023
        %v5025 = vpop.f32.mrf.mxu0
        %v5026 = vadd.f32 %v4927, %v5025
        %5027 = vmatmul.bf16.gmra.mxu0 %v4527
        %v5028 = vpop.f32.mrf.mxu0
        %v5029 = vadd.f32 %v4930, %v5028
        %v5030 = vpop.f32.mrf.mxu0
        %v5031 = vadd.f32 %v4932, %v5030
        %5032 = vmatmul.bf16.gmra.mxu0 %v4533
        %v5033 = vpop.f32.mrf.mxu0
        %v5034 = vadd.f32 %v4935, %v5033
        %v5035 = vpop.f32.mrf.mxu0
        %v5036 = vadd.f32 %v4937, %v5035
        %5037 = vmatmul.bf16.gmra.mxu0 %v4539
        %v5038 = vpop.f32.mrf.mxu0
        %v5039 = vadd.f32 %v4940, %v5038
        %v5040 = vpop.f32.mrf.mxu0
        %v5041 = vadd.f32 %v4942, %v5040
        %5042 = vmatmul.bf16.gmra.mxu0 %v4545
        %v5043 = vpop.f32.mrf.mxu0
        %v5044 = vadd.f32 %v4945, %v5043
        %v5045 = vpop.f32.mrf.mxu0
        %v5046 = vadd.f32 %v4947, %v5045
        %5047 = vmatmul.bf16.gmra.mxu0 %v4551
        %v5048 = vpop.f32.mrf.mxu0
        %v5049 = vadd.f32 %v4950, %v5048
        %v5050 = vpop.f32.mrf.mxu0
        %v5051 = vadd.f32 %v4952, %v5050
        %5052 = vmatmul.bf16.gmra.mxu0 %v4557
        %v5053 = vpop.f32.mrf.mxu0
        %v5054 = vadd.f32 %v4955, %v5053
        %v5055 = vpop.f32.mrf.mxu0
        %v5056 = vadd.f32 %v4957, %v5055
        %5057 = vmatmul.bf16.gmra.mxu0 %v4563
        %v5058 = vpop.f32.mrf.mxu0
        %v5059 = vadd.f32 %v4960, %v5058
        %v5060 = vpop.f32.mrf.mxu0
        %v5061 = vadd.f32 %v4962, %v5060
        %5062 = vmatmul.bf16.gmra.mxu0 %v4569
        %v5063 = vpop.f32.mrf.mxu0
        %v5064 = vadd.f32 %v4965, %v5063
        %v5065 = vpop.f32.mrf.mxu0
        %v5066 = vadd.f32 %v4967, %v5065
        %5067 = vmatmul.bf16.gmra.mxu0 %v4575
        %v5068 = vpop.f32.mrf.mxu0
        %v5069 = vadd.f32 %v4970, %v5068
        %v5070 = vpop.f32.mrf.mxu0
        %v5071 = vadd.f32 %v4972, %v5070
        %5072 = vmatmul.bf16.gmra.mxu0 %v4581
        %v5073 = vpop.f32.mrf.mxu0
        %v5074 = vadd.f32 %v4975, %v5073
        %v5075 = vpop.f32.mrf.mxu0
        %v5076 = vadd.f32 %v4977, %v5075
        %5077 = vmatmul.bf16.gmra.mxu0 %v4587
        %v5078 = vpop.f32.mrf.mxu0
        %v5079 = vadd.f32 %v4980, %v5078
        %v5080 = vpop.f32.mrf.mxu0
        %v5081 = vadd.f32 %v4982, %v5080
        %5082 = vdwg.mxu0
        %v5083 = vadd.f32 %v4022, %v4994
        %v5084 = vadd.f32 %v4024, %v4996
        %v5085 = vadd.f32 %v4027, %v4999
        %v5086 = vadd.f32 %v4029, %v5001
        %v5087 = vadd.f32 %v4032, %v5004
        %v5088 = vadd.f32 %v4034, %v5006
        %v5089 = vadd.f32 %v4037, %v5009
        %v5090 = vadd.f32 %v4039, %v5011
        %v5091 = vadd.f32 %v4042, %v5014
        %v5092 = vadd.f32 %v4044, %v5016
        %v5093 = vadd.f32 %v4047, %v5019
        %v5094 = vadd.f32 %v4049, %v5021
        %v5095 = vadd.f32 %v4052, %v5024
        %v5096 = vadd.f32 %v4054, %v5026
        %v5097 = vadd.f32 %v4057, %v5029
        %v5098 = vadd.f32 %v4059, %v5031
        %v5099 = vadd.f32 %v4062, %v5034
        %v5100 = vadd.f32 %v4064, %v5036
        %v5101 = vadd.f32 %v4067, %v5039
        %v5102 = vadd.f32 %v4069, %v5041
        %v5103 = vadd.f32 %v4072, %v5044
        %v5104 = vadd.f32 %v4074, %v5046
        %v5105 = vadd.f32 %v4077, %v5049
        %v5106 = vadd.f32 %v4079, %v5051
        %v5107 = vadd.f32 %v4082, %v5054
        %v5108 = vadd.f32 %v4084, %v5056
        %v5109 = vadd.f32 %v4087, %v5059
        %v5110 = vadd.f32 %v4089, %v5061
        %v5111 = vadd.f32 %v4092, %v5064
        %v5112 = vadd.f32 %v4094, %v5066
        %v5113 = vadd.f32 %v4097, %v5069
        %v5114 = vadd.f32 %v4099, %v5071
        %v5115 = vadd.f32 %v4102, %v5074
        %v5116 = vadd.f32 %v4104, %v5076
        %v5117 = vadd.f32 %v4107, %v5079
        %v5118 = vadd.f32 %v4109, %v5081
        %v5119 = vld [vmem:[%s2] sm:$0x1]
        %v5121 = vperm.slane %v5119, 0
        %v5123 = vadd.f32 %v5083, %v5121
        %v5124 = vadd.f32 %v5084, %v5121
        %v5125 = vadd.f32 %v5085, %v5121
        %v5126 = vadd.f32 %v5086, %v5121
        %v5127 = vadd.f32 %v5087, %v5121
        %v5128 = vadd.f32 %v5088, %v5121
        %v5129 = vadd.f32 %v5089, %v5121
        %v5130 = vadd.f32 %v5090, %v5121
        %v5131 = vadd.f32 %v5091, %v5121
        %v5132 = vadd.f32 %v5092, %v5121
        %v5133 = vadd.f32 %v5093, %v5121
        %v5134 = vadd.f32 %v5094, %v5121
        %v5135 = vadd.f32 %v5095, %v5121
        %v5136 = vadd.f32 %v5096, %v5121
        %v5137 = vadd.f32 %v5097, %v5121
        %v5138 = vadd.f32 %v5098, %v5121
        %v5139 = vadd.f32 %v5099, %v5121
        %v5140 = vadd.f32 %v5100, %v5121
        %v5141 = vadd.f32 %v5101, %v5121
        %v5142 = vadd.f32 %v5102, %v5121
        %v5143 = vadd.f32 %v5103, %v5121
        %v5144 = vadd.f32 %v5104, %v5121
        %v5145 = vadd.f32 %v5105, %v5121
        %v5146 = vadd.f32 %v5106, %v5121
        %v5147 = vadd.f32 %v5107, %v5121
        %v5148 = vadd.f32 %v5108, %v5121
        %v5149 = vadd.f32 %v5109, %v5121
        %v5150 = vadd.f32 %v5110, %v5121
        %v5151 = vadd.f32 %v5111, %v5121
        %v5152 = vadd.f32 %v5112, %v5121
        %v5153 = vadd.f32 %v5113, %v5121
        %v5154 = vadd.f32 %v5114, %v5121
        %v5155 = vadd.f32 %v5115, %v5121
        %v5156 = vadd.f32 %v5116, %v5121
        %v5157 = vadd.f32 %v5117, %v5121
        %v5158 = vadd.f32 %v5118, %v5121
        %v5159 = vmax.f32 %v5123, 0.0
        %v5160 = vmax.f32 %v5124, 0.0
        %v5161 = vmax.f32 %v5125, 0.0
        %v5162 = vmax.f32 %v5126, 0.0
        %v5163 = vmax.f32 %v5127, 0.0
        %v5164 = vmax.f32 %v5128, 0.0
        %v5165 = vmax.f32 %v5129, 0.0
        %v5166 = vmax.f32 %v5130, 0.0
        %v5167 = vmax.f32 %v5131, 0.0
        %v5168 = vmax.f32 %v5132, 0.0
        %v5169 = vmax.f32 %v5133, 0.0
        %v5170 = vmax.f32 %v5134, 0.0
        %v5171 = vmax.f32 %v5135, 0.0
        %v5172 = vmax.f32 %v5136, 0.0
        %v5173 = vmax.f32 %v5137, 0.0
        %v5174 = vmax.f32 %v5138, 0.0
        %v5175 = vmax.f32 %v5139, 0.0
        %v5176 = vmax.f32 %v5140, 0.0
        %v5177 = vmax.f32 %v5141, 0.0
        %v5178 = vmax.f32 %v5142, 0.0
        %v5179 = vmax.f32 %v5143, 0.0
        %v5180 = vmax.f32 %v5144, 0.0
        %v5181 = vmax.f32 %v5145, 0.0
        %v5182 = vmax.f32 %v5146, 0.0
        %v5183 = vmax.f32 %v5147, 0.0
        %v5184 = vmax.f32 %v5148, 0.0
        %v5185 = vmax.f32 %v5149, 0.0
        %v5186 = vmax.f32 %v5150, 0.0
        %v5187 = vmax.f32 %v5151, 0.0
        %v5188 = vmax.f32 %v5152, 0.0
        %v5189 = vmax.f32 %v5153, 0.0
        %v5190 = vmax.f32 %v5154, 0.0
        %v5191 = vmax.f32 %v5155, 0.0
        %v5192 = vmax.f32 %v5156, 0.0
        %v5193 = vmax.f32 %v5157, 0.0
        %v5194 = vmax.f32 %v5158, 0.0
        %v5195 = vsel %vm1574, 1, 0
        %v5196 = vsel %vm1575, 1, 0
        %v5197 = vsel %vm1576, 1, 0
        %v5198 = vsel %vm1577, 1, 0
        %v5199 = vsel %vm1578, 1, 0
        %v5200 = vsel %vm1579, 1, 0
        %v5201 = vsel %vm1580, 1, 0
        %v5202 = vsel %vm1581, 1, 0
        %v5203 = vsel %vm1582, 1, 0
        %v5204 = vsel %vm1583, 1, 0
        %v5205 = vsel %vm1584, 1, 0
        %v5206 = vsel %vm1585, 1, 0
        %v5207 = vsel %vm1586, 1, 0
        %v5208 = vsel %vm1587, 1, 0
        %v5209 = vsel %vm1588, 1, 0
        %v5210 = vsel %vm1589, 1, 0
        %v5211 = vsel %vm1590, 1, 0
        %v5212 = vsel %vm1591, 1, 0
        %v5213 = vsel %vm1592, 1, 0
        %v5214 = vsel %vm1593, 1, 0
        %v5215 = vsel %vm1594, 1, 0
        %v5216 = vsel %vm1595, 1, 0
        %v5217 = vsel %vm1596, 1, 0
        %v5218 = vsel %vm1597, 1, 0
        %v5219 = vsel %vm1598, 1, 0
        %v5220 = vsel %vm1599, 1, 0
        %v5221 = vsel %vm1600, 1, 0
        %v5222 = vsel %vm1601, 1, 0
        %v5223 = vsel %vm1602, 1, 0
        %v5224 = vsel %vm1603, 1, 0
        %v5225 = vsel %vm1604, 1, 0
        %v5226 = vsel %vm1605, 1, 0
        %v5227 = vsel %vm1606, 1, 0
        %v5228 = vsel %vm1607, 1, 0
        %v5229 = vsel %vm1608, 1, 0
        %v5230 = vsel %vm1609, 1, 0
        %vm5231 = vcmp.eq.s32.totalorder %v5195, 1
        %vm5232 = vcmp.eq.s32.totalorder %v5196, 1
        %vm5233 = vcmp.eq.s32.totalorder %v5197, 1
        %vm5234 = vcmp.eq.s32.totalorder %v5198, 1
        %vm5235 = vcmp.eq.s32.totalorder %v5199, 1
        %vm5236 = vcmp.eq.s32.totalorder %v5200, 1
        %vm5237 = vcmp.eq.s32.totalorder %v5201, 1
        %vm5238 = vcmp.eq.s32.totalorder %v5202, 1
        %vm5239 = vcmp.eq.s32.totalorder %v5203, 1
        %vm5240 = vcmp.eq.s32.totalorder %v5204, 1
        %vm5241 = vcmp.eq.s32.totalorder %v5205, 1
        %vm5242 = vcmp.eq.s32.totalorder %v5206, 1
        %vm5243 = vcmp.eq.s32.totalorder %v5207, 1
        %vm5244 = vcmp.eq.s32.totalorder %v5208, 1
        %vm5245 = vcmp.eq.s32.totalorder %v5209, 1
        %vm5246 = vcmp.eq.s32.totalorder %v5210, 1
        %vm5247 = vcmp.eq.s32.totalorder %v5211, 1
        %vm5248 = vcmp.eq.s32.totalorder %v5212, 1
        %vm5249 = vcmp.eq.s32.totalorder %v5213, 1
        %vm5250 = vcmp.eq.s32.totalorder %v5214, 1
        %vm5251 = vcmp.eq.s32.totalorder %v5215, 1
        %vm5252 = vcmp.eq.s32.totalorder %v5216, 1
        %vm5253 = vcmp.eq.s32.totalorder %v5217, 1
        %vm5254 = vcmp.eq.s32.totalorder %v5218, 1
        %vm5255 = vcmp.eq.s32.totalorder %v5219, 1
        %vm5256 = vcmp.eq.s32.totalorder %v5220, 1
        %vm5257 = vcmp.eq.s32.totalorder %v5221, 1
        %vm5258 = vcmp.eq.s32.totalorder %v5222, 1
        %vm5259 = vcmp.eq.s32.totalorder %v5223, 1
        %vm5260 = vcmp.eq.s32.totalorder %v5224, 1
        %vm5261 = vcmp.eq.s32.totalorder %v5225, 1
        %vm5262 = vcmp.eq.s32.totalorder %v5226, 1
        %vm5263 = vcmp.eq.s32.totalorder %v5227, 1
        %vm5264 = vcmp.eq.s32.totalorder %v5228, 1
        %vm5265 = vcmp.eq.s32.totalorder %v5229, 1
        %vm5266 = vcmp.eq.s32.totalorder %v5230, 1
        %v5267 = vsel %vm5231, %v5159, 0.0
        %v5268 = vsel %vm5232, %v5160, 0.0
        %v5269 = vsel %vm5233, %v5161, 0.0
        %v5270 = vsel %vm5234, %v5162, 0.0
        %v5271 = vsel %vm5235, %v5163, 0.0
        %v5272 = vsel %vm5236, %v5164, 0.0
        %v5273 = vsel %vm5237, %v5165, 0.0
        %v5274 = vsel %vm5238, %v5166, 0.0
        %v5275 = vsel %vm5239, %v5167, 0.0
        %v5276 = vsel %vm5240, %v5168, 0.0
        %v5277 = vsel %vm5241, %v5169, 0.0
        %v5278 = vsel %vm5242, %v5170, 0.0
        %v5279 = vsel %vm5243, %v5171, 0.0
        %v5280 = vsel %vm5244, %v5172, 0.0
        %v5281 = vsel %vm5245, %v5173, 0.0
        %v5282 = vsel %vm5246, %v5174, 0.0
        %v5283 = vsel %vm5247, %v5175, 0.0
        %v5284 = vsel %vm5248, %v5176, 0.0
        %v5285 = vsel %vm5249, %v5177, 0.0
        %v5286 = vsel %vm5250, %v5178, 0.0
        %v5287 = vsel %vm5251, %v5179, 0.0
        %v5288 = vsel %vm5252, %v5180, 0.0
        %v5289 = vsel %vm5253, %v5181, 0.0
        %v5290 = vsel %vm5254, %v5182, 0.0
        %v5291 = vsel %vm5255, %v5183, 0.0
        %v5292 = vsel %vm5256, %v5184, 0.0
        %v5293 = vsel %vm5257, %v5185, 0.0
        %v5294 = vsel %vm5258, %v5186, 0.0
        %v5295 = vsel %vm5259, %v5187, 0.0
        %v5296 = vsel %vm5260, %v5188, 0.0
        %v5297 = vsel %vm5261, %v5189, 0.0
        %v5298 = vsel %vm5262, %v5190, 0.0
        %v5299 = vsel %vm5263, %v5191, 0.0
        %v5300 = vsel %vm5264, %v5192, 0.0
        %v5301 = vsel %vm5265, %v5193, 0.0
        %v5302 = vsel %vm5266, %v5194, 0.0
        %v5303 = vpack.c.bf16 %v5267, %v5267
        %v5304 = vpack.c.bf16 %v5268, %v5268
        %v5305 = vpack.c.bf16 %v5269, %v5269
        %v5306 = vpack.c.bf16 %v5270, %v5270
        %v5307 = vpack.c.bf16 %v5271, %v5271
        %v5308 = vpack.c.bf16 %v5272, %v5272
        %v5309 = vpack.c.bf16 %v5273, %v5273
        %v5310 = vpack.c.bf16 %v5274, %v5274
        %v5311 = vpack.c.bf16 %v5275, %v5275
        %v5312 = vpack.c.bf16 %v5276, %v5276
        %v5313 = vpack.c.bf16 %v5277, %v5277
        %v5314 = vpack.c.bf16 %v5278, %v5278
        %v5315 = vpack.c.bf16 %v5279, %v5279
        %v5316 = vpack.c.bf16 %v5280, %v5280
        %v5317 = vpack.c.bf16 %v5281, %v5281
        %v5318 = vpack.c.bf16 %v5282, %v5282
        %v5319 = vpack.c.bf16 %v5283, %v5283
        %v5320 = vpack.c.bf16 %v5284, %v5284
        %v5321 = vpack.c.bf16 %v5285, %v5285
        %v5322 = vpack.c.bf16 %v5286, %v5286
        %v5323 = vpack.c.bf16 %v5287, %v5287
        %v5324 = vpack.c.bf16 %v5288, %v5288
        %v5325 = vpack.c.bf16 %v5289, %v5289
        %v5326 = vpack.c.bf16 %v5290, %v5290
        %v5327 = vpack.c.bf16 %v5291, %v5291
        %v5328 = vpack.c.bf16 %v5292, %v5292
        %v5329 = vpack.c.bf16 %v5293, %v5293
        %v5330 = vpack.c.bf16 %v5294, %v5294
        %v5331 = vpack.c.bf16 %v5295, %v5295
        %v5332 = vpack.c.bf16 %v5296, %v5296
        %v5333 = vpack.c.bf16 %v5297, %v5297
        %v5334 = vpack.c.bf16 %v5298, %v5298
        %v5335 = vpack.c.bf16 %v5299, %v5299
        %v5336 = vpack.c.bf16 %v5300, %v5300
        %v5337 = vpack.c.bf16 %v5301, %v5301
        %v5338 = vpack.c.bf16 %v5302, %v5302
        %v5340 = vshrl.u32 %v5303, 16
        %v5342 = vrot.slane %v5340, 6
        %v5343 = vshll.u32 %v5303, 16
        %v5345 = vrot.slane %v5343, 7
        %v5346 = vor.u32 %v5342, %v5345
        %v5347 = vrot.slane %v5346, 4
        %v5349 = vshrl.u32 %v5304, 16
        %v5351 = vrot.slane %v5349, 6
        %v5352 = vshll.u32 %v5304, 16
        %v5354 = vrot.slane %v5352, 7
        %v5355 = vor.u32 %v5351, %v5354
        %v5356 = vsel %vm1683, %v5347, %v5355
        %v5357 = vrot.slane %v5355, 4
        %v5359 = vshrl.u32 %v5305, 16
        %v5361 = vrot.slane %v5359, 6
        %v5362 = vshll.u32 %v5305, 16
        %v5364 = vrot.slane %v5362, 7
        %v5365 = vor.u32 %v5361, %v5364
        %v5366 = vsel %vm1683, %v5357, %v5365
        %v5367 = vrot.slane %v5365, 4
        %v5369 = vshrl.u32 %v5306, 16
        %v5371 = vrot.slane %v5369, 6
        %v5372 = vshll.u32 %v5306, 16
        %v5374 = vrot.slane %v5372, 7
        %v5375 = vor.u32 %v5371, %v5374
        %v5376 = vsel %vm1683, %v5367, %v5375
        %v5377 = vrot.slane %v5375, 4
        %v5379 = vshrl.u32 %v5307, 16
        %v5381 = vrot.slane %v5379, 6
        %v5382 = vshll.u32 %v5307, 16
        %v5384 = vrot.slane %v5382, 7
        %v5385 = vor.u32 %v5381, %v5384
        %v5386 = vsel %vm1683, %v5377, %v5385
        %v5387 = vrot.slane %v5385, 4
        %v5389 = vshrl.u32 %v5308, 16
        %v5391 = vrot.slane %v5389, 6
        %v5392 = vshll.u32 %v5308, 16
        %v5394 = vrot.slane %v5392, 7
        %v5395 = vor.u32 %v5391, %v5394
        %v5396 = vsel %vm1683, %v5387, %v5395
        %v5397 = vrot.slane %v5395, 4
        %v5399 = vshrl.u32 %v5309, 16
        %v5401 = vrot.slane %v5399, 6
        %v5402 = vshll.u32 %v5309, 16
        %v5404 = vrot.slane %v5402, 7
        %v5405 = vor.u32 %v5401, %v5404
        %v5406 = vsel %vm1683, %v5397, %v5405
        %v5407 = vrot.slane %v5405, 4
        %v5409 = vshrl.u32 %v5310, 16
        %v5411 = vrot.slane %v5409, 6
        %v5412 = vshll.u32 %v5310, 16
        %v5414 = vrot.slane %v5412, 7
        %v5415 = vor.u32 %v5411, %v5414
        %v5416 = vsel %vm1683, %v5407, %v5415
        %v5417 = vrot.slane %v5415, 4
        %v5419 = vshrl.u32 %v5311, 16
        %v5421 = vrot.slane %v5419, 6
        %v5422 = vshll.u32 %v5311, 16
        %v5424 = vrot.slane %v5422, 7
        %v5425 = vor.u32 %v5421, %v5424
        %v5426 = vsel %vm1683, %v5417, %v5425
        %v5427 = vrot.slane %v5425, 4
        %v5429 = vshrl.u32 %v5312, 16
        %v5431 = vrot.slane %v5429, 6
        %v5432 = vshll.u32 %v5312, 16
        %v5434 = vrot.slane %v5432, 7
        %v5435 = vor.u32 %v5431, %v5434
        %v5436 = vsel %vm1683, %v5427, %v5435
        %v5437 = vrot.slane %v5435, 4
        %v5439 = vshrl.u32 %v5313, 16
        %v5441 = vrot.slane %v5439, 6
        %v5442 = vshll.u32 %v5313, 16
        %v5444 = vrot.slane %v5442, 7
        %v5445 = vor.u32 %v5441, %v5444
        %v5446 = vsel %vm1683, %v5437, %v5445
        %v5447 = vrot.slane %v5445, 4
        %v5449 = vshrl.u32 %v5314, 16
        %v5451 = vrot.slane %v5449, 6
        %v5452 = vshll.u32 %v5314, 16
        %v5454 = vrot.slane %v5452, 7
        %v5455 = vor.u32 %v5451, %v5454
        %v5456 = vsel %vm1683, %v5447, %v5455
        %v5457 = vrot.slane %v5455, 4
        %v5459 = vshrl.u32 %v5315, 16
        %v5461 = vrot.slane %v5459, 6
        %v5462 = vshll.u32 %v5315, 16
        %v5464 = vrot.slane %v5462, 7
        %v5465 = vor.u32 %v5461, %v5464
        %v5466 = vsel %vm1683, %v5457, %v5465
        %v5467 = vrot.slane %v5465, 4
        %v5469 = vshrl.u32 %v5316, 16
        %v5471 = vrot.slane %v5469, 6
        %v5472 = vshll.u32 %v5316, 16
        %v5474 = vrot.slane %v5472, 7
        %v5475 = vor.u32 %v5471, %v5474
        %v5476 = vsel %vm1683, %v5467, %v5475
        %v5477 = vrot.slane %v5475, 4
        %v5479 = vshrl.u32 %v5317, 16
        %v5481 = vrot.slane %v5479, 6
        %v5482 = vshll.u32 %v5317, 16
        %v5484 = vrot.slane %v5482, 7
        %v5485 = vor.u32 %v5481, %v5484
        %v5486 = vsel %vm1683, %v5477, %v5485
        %v5487 = vrot.slane %v5485, 4
        %v5489 = vshrl.u32 %v5318, 16
        %v5491 = vrot.slane %v5489, 6
        %v5492 = vshll.u32 %v5318, 16
        %v5494 = vrot.slane %v5492, 7
        %v5495 = vor.u32 %v5491, %v5494
        %v5496 = vsel %vm1683, %v5487, %v5495
        %v5497 = vrot.slane %v5495, 4
        %v5499 = vshrl.u32 %v5319, 16
        %v5501 = vrot.slane %v5499, 6
        %v5502 = vshll.u32 %v5319, 16
        %v5504 = vrot.slane %v5502, 7
        %v5505 = vor.u32 %v5501, %v5504
        %v5506 = vsel %vm1683, %v5497, %v5505
        %v5507 = vrot.slane %v5505, 4
        %v5509 = vshrl.u32 %v5320, 16
        %v5511 = vrot.slane %v5509, 6
        %v5512 = vshll.u32 %v5320, 16
        %v5514 = vrot.slane %v5512, 7
        %v5515 = vor.u32 %v5511, %v5514
        %v5516 = vsel %vm1683, %v5507, %v5515
        %v5517 = vrot.slane %v5515, 4
        %v5519 = vshrl.u32 %v5321, 16
        %v5521 = vrot.slane %v5519, 6
        %v5522 = vshll.u32 %v5321, 16
        %v5524 = vrot.slane %v5522, 7
        %v5525 = vor.u32 %v5521, %v5524
        %v5526 = vsel %vm1683, %v5517, %v5525
        %v5527 = vrot.slane %v5525, 4
        %v5529 = vshrl.u32 %v5322, 16
        %v5531 = vrot.slane %v5529, 6
        %v5532 = vshll.u32 %v5322, 16
        %v5534 = vrot.slane %v5532, 7
        %v5535 = vor.u32 %v5531, %v5534
        %v5536 = vsel %vm1683, %v5527, %v5535
        %v5537 = vrot.slane %v5535, 4
        %v5539 = vshrl.u32 %v5323, 16
        %v5541 = vrot.slane %v5539, 6
        %v5542 = vshll.u32 %v5323, 16
        %v5544 = vrot.slane %v5542, 7
        %v5545 = vor.u32 %v5541, %v5544
        %v5546 = vsel %vm1683, %v5537, %v5545
        %v5547 = vrot.slane %v5545, 4
        %v5549 = vshrl.u32 %v5324, 16
        %v5551 = vrot.slane %v5549, 6
        %v5552 = vshll.u32 %v5324, 16
        %v5554 = vrot.slane %v5552, 7
        %v5555 = vor.u32 %v5551, %v5554
        %v5556 = vsel %vm1683, %v5547, %v5555
        %v5557 = vrot.slane %v5555, 4
        %v5559 = vshrl.u32 %v5325, 16
        %v5561 = vrot.slane %v5559, 6
        %v5562 = vshll.u32 %v5325, 16
        %v5564 = vrot.slane %v5562, 7
        %v5565 = vor.u32 %v5561, %v5564
        %v5566 = vsel %vm1683, %v5557, %v5565
        %v5567 = vrot.slane %v5565, 4
        %v5569 = vshrl.u32 %v5326, 16
        %v5571 = vrot.slane %v5569, 6
        %v5572 = vshll.u32 %v5326, 16
        %v5574 = vrot.slane %v5572, 7
        %v5575 = vor.u32 %v5571, %v5574
        %v5576 = vsel %vm1683, %v5567, %v5575
        %v5577 = vrot.slane %v5575, 4
        %v5579 = vshrl.u32 %v5327, 16
        %v5581 = vrot.slane %v5579, 6
        %v5582 = vshll.u32 %v5327, 16
        %v5584 = vrot.slane %v5582, 7
        %v5585 = vor.u32 %v5581, %v5584
        %v5586 = vsel %vm1683, %v5577, %v5585
        %v5587 = vrot.slane %v5585, 4
        %v5589 = vshrl.u32 %v5328, 16
        %v5591 = vrot.slane %v5589, 6
        %v5592 = vshll.u32 %v5328, 16
        %v5594 = vrot.slane %v5592, 7
        %v5595 = vor.u32 %v5591, %v5594
        %v5596 = vsel %vm1683, %v5587, %v5595
        %v5597 = vrot.slane %v5595, 4
        %v5599 = vshrl.u32 %v5329, 16
        %v5601 = vrot.slane %v5599, 6
        %v5602 = vshll.u32 %v5329, 16
        %v5604 = vrot.slane %v5602, 7
        %v5605 = vor.u32 %v5601, %v5604
        %v5606 = vsel %vm1683, %v5597, %v5605
        %v5607 = vrot.slane %v5605, 4
        %v5609 = vshrl.u32 %v5330, 16
        %v5611 = vrot.slane %v5609, 6
        %v5612 = vshll.u32 %v5330, 16
        %v5614 = vrot.slane %v5612, 7
        %v5615 = vor.u32 %v5611, %v5614
        %v5616 = vsel %vm1683, %v5607, %v5615
        %v5617 = vrot.slane %v5615, 4
        %v5619 = vshrl.u32 %v5331, 16
        %v5621 = vrot.slane %v5619, 6
        %v5622 = vshll.u32 %v5331, 16
        %v5624 = vrot.slane %v5622, 7
        %v5625 = vor.u32 %v5621, %v5624
        %v5626 = vsel %vm1683, %v5617, %v5625
        %v5627 = vrot.slane %v5625, 4
        %v5629 = vshrl.u32 %v5332, 16
        %v5631 = vrot.slane %v5629, 6
        %v5632 = vshll.u32 %v5332, 16
        %v5634 = vrot.slane %v5632, 7
        %v5635 = vor.u32 %v5631, %v5634
        %v5636 = vsel %vm1683, %v5627, %v5635
        %v5637 = vrot.slane %v5635, 4
        %v5639 = vshrl.u32 %v5333, 16
        %v5641 = vrot.slane %v5639, 6
        %v5642 = vshll.u32 %v5333, 16
        %v5644 = vrot.slane %v5642, 7
        %v5645 = vor.u32 %v5641, %v5644
        %v5646 = vsel %vm1683, %v5637, %v5645
        %v5647 = vrot.slane %v5645, 4
        %v5649 = vshrl.u32 %v5334, 16
        %v5651 = vrot.slane %v5649, 6
        %v5652 = vshll.u32 %v5334, 16
        %v5654 = vrot.slane %v5652, 7
        %v5655 = vor.u32 %v5651, %v5654
        %v5656 = vsel %vm1683, %v5647, %v5655
        %v5657 = vrot.slane %v5655, 4
        %v5659 = vshrl.u32 %v5335, 16
        %v5661 = vrot.slane %v5659, 6
        %v5662 = vshll.u32 %v5335, 16
        %v5664 = vrot.slane %v5662, 7
        %v5665 = vor.u32 %v5661, %v5664
        %v5666 = vsel %vm1683, %v5657, %v5665
        %v5667 = vrot.slane %v5665, 4
        %v5669 = vshrl.u32 %v5336, 16
        %v5671 = vrot.slane %v5669, 6
        %v5672 = vshll.u32 %v5336, 16
        %v5674 = vrot.slane %v5672, 7
        %v5675 = vor.u32 %v5671, %v5674
        %v5676 = vsel %vm1683, %v5667, %v5675
        %v5677 = vrot.slane %v5675, 4
        %v5679 = vshrl.u32 %v5337, 16
        %v5681 = vrot.slane %v5679, 6
        %v5682 = vshll.u32 %v5337, 16
        %v5684 = vrot.slane %v5682, 7
        %v5685 = vor.u32 %v5681, %v5684
        %v5686 = vsel %vm1683, %v5677, %v5685
        %v5687 = vrot.slane %v5685, 4
        %v5689 = vshrl.u32 %v5338, 16
        %v5691 = vrot.slane %v5689, 6
        %v5692 = vshll.u32 %v5338, 16
        %v5694 = vrot.slane %v5692, 7
        %v5695 = vor.u32 %v5691, %v5694
        %v5696 = vsel %vm1683, %v5687, %v5695
        %v5697 = vrot.slane %v5695, 4
        %v5735 = vld [vmem:[#allocation2 + $0x18] sm:$0xe]
        %v5736 = vsel %vm2082, %v5346, %v5735
        %5737 = vst [vmem:[#allocation2 + $0x18] sm:$0xe] %v5736
        %5738 = vst [vmem:[#allocation2 + $0x24] sm:$0xf] %v5356
        %5739 = vst [vmem:[#allocation2 + $0x30] sm:$0xf] %v5366
        %5740 = vst [vmem:[#allocation2 + $0x3c] sm:$0xf] %v5376
        %5741 = vst [vmem:[#allocation2 + $0x48] sm:$0xf] %v5386
        %5742 = vst [vmem:[#allocation2 + $0x54] sm:$0xf] %v5396
        %5743 = vst [vmem:[#allocation2 + $0x60] sm:$0xf] %v5406
        %5744 = vst [vmem:[#allocation2 + $0x6c] sm:$0xf] %v5416
        %5745 = vst [vmem:[#allocation2 + $0x78] sm:$0xf] %v5426
        %5746 = vst [vmem:[#allocation2 + $0x84] sm:$0xf] %v5436
        %5747 = vst [vmem:[#allocation2 + $0x90] sm:$0xf] %v5446
        %5748 = vst [vmem:[#allocation2 + $0x9c] sm:$0xf] %v5456
        %5749 = vst [vmem:[#allocation2 + $0xa8] sm:$0xf] %v5466
        %5750 = vst [vmem:[#allocation2 + $0xb4] sm:$0xf] %v5476
        %5751 = vst [vmem:[#allocation2 + $0xc0] sm:$0xf] %v5486
        %5752 = vst [vmem:[#allocation2 + $0xcc] sm:$0xf] %v5496
        %5753 = vst [vmem:[#allocation2 + $0xd8] sm:$0xf] %v5506
        %5754 = vst [vmem:[#allocation2 + $0xe4] sm:$0xf] %v5516
        %5755 = vst [vmem:[#allocation2 + $0xf0] sm:$0xf] %v5526
        %5756 = vst [vmem:[#allocation2 + $0xfc] sm:$0xf] %v5536
        %5757 = vst [vmem:[#allocation2 + $0x108] sm:$0xf] %v5546
        %5758 = vst [vmem:[#allocation2 + $0x114] sm:$0xf] %v5556
        %5759 = vst [vmem:[#allocation2 + $0x120] sm:$0xf] %v5566
        %5760 = vst [vmem:[#allocation2 + $0x12c] sm:$0xf] %v5576
        %5761 = vst [vmem:[#allocation2 + $0x138] sm:$0xf] %v5586
        %5762 = vst [vmem:[#allocation2 + $0x144] sm:$0xf] %v5596
        %5763 = vst [vmem:[#allocation2 + $0x150] sm:$0xf] %v5606
        %5764 = vst [vmem:[#allocation2 + $0x15c] sm:$0xf] %v5616
        %5765 = vst [vmem:[#allocation2 + $0x168] sm:$0xf] %v5626
        %5766 = vst [vmem:[#allocation2 + $0x174] sm:$0xf] %v5636
        %5767 = vst [vmem:[#allocation2 + $0x180] sm:$0xf] %v5646
        %5768 = vst [vmem:[#allocation2 + $0x18c] sm:$0xf] %v5656
        %5769 = vst [vmem:[#allocation2 + $0x198] sm:$0xf] %v5666
        %5770 = vst [vmem:[#allocation2 + $0x1a4] sm:$0xf] %v5676
        %5771 = vst [vmem:[#allocation2 + $0x1b0] sm:$0xf] %v5686
        %5772 = vst [vmem:[#allocation2 + $0x1bc] sm:$0xf] %v5696
        %v5773 = vld [vmem:[#allocation2 + $0x1c8] sm:$0x3]
        %v5774 = vsel %vm285, %v5697, %v5773
        %5775 = vst [vmem:[#allocation2 + $0x1c8] sm:$0x3] %v5774
        %v5812 = vrot.slane %v5303, 7
        %v5813 = vrot.slane %v5812, 4
        %v5814 = vrot.slane %v5304, 7
        %v5815 = vsel %vm2162, %v5813, %v5814
        %v5816 = vrot.slane %v5814, 4
        %v5817 = vrot.slane %v5305, 7
        %v5818 = vsel %vm2162, %v5816, %v5817
        %v5819 = vrot.slane %v5817, 4
        %v5820 = vrot.slane %v5306, 7
        %v5821 = vsel %vm2162, %v5819, %v5820
        %v5822 = vrot.slane %v5820, 4
        %v5823 = vrot.slane %v5307, 7
        %v5824 = vsel %vm2162, %v5822, %v5823
        %v5825 = vrot.slane %v5823, 4
        %v5826 = vrot.slane %v5308, 7
        %v5827 = vsel %vm2162, %v5825, %v5826
        %v5828 = vrot.slane %v5826, 4
        %v5829 = vrot.slane %v5309, 7
        %v5830 = vsel %vm2162, %v5828, %v5829
        %v5831 = vrot.slane %v5829, 4
        %v5832 = vrot.slane %v5310, 7
        %v5833 = vsel %vm2162, %v5831, %v5832
        %v5834 = vrot.slane %v5832, 4
        %v5835 = vrot.slane %v5311, 7
        %v5836 = vsel %vm2162, %v5834, %v5835
        %v5837 = vrot.slane %v5835, 4
        %v5838 = vrot.slane %v5312, 7
        %v5839 = vsel %vm2162, %v5837, %v5838
        %v5840 = vrot.slane %v5838, 4
        %v5841 = vrot.slane %v5313, 7
        %v5842 = vsel %vm2162, %v5840, %v5841
        %v5843 = vrot.slane %v5841, 4
        %v5844 = vrot.slane %v5314, 7
        %v5845 = vsel %vm2162, %v5843, %v5844
        %v5846 = vrot.slane %v5844, 4
        %v5847 = vrot.slane %v5315, 7
        %v5848 = vsel %vm2162, %v5846, %v5847
        %v5849 = vrot.slane %v5847, 4
        %v5850 = vrot.slane %v5316, 7
        %v5851 = vsel %vm2162, %v5849, %v5850
        %v5852 = vrot.slane %v5850, 4
        %v5853 = vrot.slane %v5317, 7
        %v5854 = vsel %vm2162, %v5852, %v5853
        %v5855 = vrot.slane %v5853, 4
        %v5856 = vrot.slane %v5318, 7
        %v5857 = vsel %vm2162, %v5855, %v5856
        %v5858 = vrot.slane %v5856, 4
        %v5859 = vrot.slane %v5319, 7
        %v5860 = vsel %vm2162, %v5858, %v5859
        %v5861 = vrot.slane %v5859, 4
        %v5862 = vrot.slane %v5320, 7
        %v5863 = vsel %vm2162, %v5861, %v5862
        %v5864 = vrot.slane %v5862, 4
        %v5865 = vrot.slane %v5321, 7
        %v5866 = vsel %vm2162, %v5864, %v5865
        %v5867 = vrot.slane %v5865, 4
        %v5868 = vrot.slane %v5322, 7
        %v5869 = vsel %vm2162, %v5867, %v5868
        %v5870 = vrot.slane %v5868, 4
        %v5871 = vrot.slane %v5323, 7
        %v5872 = vsel %vm2162, %v5870, %v5871
        %v5873 = vrot.slane %v5871, 4
        %v5874 = vrot.slane %v5324, 7
        %v5875 = vsel %vm2162, %v5873, %v5874
        %v5876 = vrot.slane %v5874, 4
        %v5877 = vrot.slane %v5325, 7
        %v5878 = vsel %vm2162, %v5876, %v5877
        %v5879 = vrot.slane %v5877, 4
        %v5880 = vrot.slane %v5326, 7
        %v5881 = vsel %vm2162, %v5879, %v5880
        %v5882 = vrot.slane %v5880, 4
        %v5883 = vrot.slane %v5327, 7
        %v5884 = vsel %vm2162, %v5882, %v5883
        %v5885 = vrot.slane %v5883, 4
        %v5886 = vrot.slane %v5328, 7
        %v5887 = vsel %vm2162, %v5885, %v5886
        %v5888 = vrot.slane %v5886, 4
        %v5889 = vrot.slane %v5329, 7
        %v5890 = vsel %vm2162, %v5888, %v5889
        %v5891 = vrot.slane %v5889, 4
        %v5892 = vrot.slane %v5330, 7
        %v5893 = vsel %vm2162, %v5891, %v5892
        %v5894 = vrot.slane %v5892, 4
        %v5895 = vrot.slane %v5331, 7
        %v5896 = vsel %vm2162, %v5894, %v5895
        %v5897 = vrot.slane %v5895, 4
        %v5898 = vrot.slane %v5332, 7
        %v5899 = vsel %vm2162, %v5897, %v5898
        %v5900 = vrot.slane %v5898, 4
        %v5901 = vrot.slane %v5333, 7
        %v5902 = vsel %vm2162, %v5900, %v5901
        %v5903 = vrot.slane %v5901, 4
        %v5904 = vrot.slane %v5334, 7
        %v5905 = vsel %vm2162, %v5903, %v5904
        %v5906 = vrot.slane %v5904, 4
        %v5907 = vrot.slane %v5335, 7
        %v5908 = vsel %vm2162, %v5906, %v5907
        %v5909 = vrot.slane %v5907, 4
        %v5910 = vrot.slane %v5336, 7
        %v5911 = vsel %vm2162, %v5909, %v5910
        %v5912 = vrot.slane %v5910, 4
        %v5913 = vrot.slane %v5337, 7
        %v5914 = vsel %vm2162, %v5912, %v5913
        %v5915 = vrot.slane %v5913, 4
        %v5916 = vrot.slane %v5338, 7
        %v5917 = vsel %vm2162, %v5915, %v5916
        %v5918 = vrot.slane %v5916, 4
        %5956 = vst [vmem:[#allocation2 + $0x1c] sm:$0xe] %v5812
        %5957 = vst [vmem:[#allocation2 + $0x28] sm:$0xf] %v5815
        %5958 = vst [vmem:[#allocation2 + $0x34] sm:$0xf] %v5818
        %5959 = vst [vmem:[#allocation2 + $0x40] sm:$0xf] %v5821
        %5960 = vst [vmem:[#allocation2 + $0x4c] sm:$0xf] %v5824
        %5961 = vst [vmem:[#allocation2 + $0x58] sm:$0xf] %v5827
        %5962 = vst [vmem:[#allocation2 + $0x64] sm:$0xf] %v5830
        %5963 = vst [vmem:[#allocation2 + $0x70] sm:$0xf] %v5833
        %5964 = vst [vmem:[#allocation2 + $0x7c] sm:$0xf] %v5836
        %5965 = vst [vmem:[#allocation2 + $0x88] sm:$0xf] %v5839
        %5966 = vst [vmem:[#allocation2 + $0x94] sm:$0xf] %v5842
        %5967 = vst [vmem:[#allocation2 + $0xa0] sm:$0xf] %v5845
        %5968 = vst [vmem:[#allocation2 + $0xac] sm:$0xf] %v5848
        %5969 = vst [vmem:[#allocation2 + $0xb8] sm:$0xf] %v5851
        %5970 = vst [vmem:[#allocation2 + $0xc4] sm:$0xf] %v5854
        %5971 = vst [vmem:[#allocation2 + $0xd0] sm:$0xf] %v5857
        %5972 = vst [vmem:[#allocation2 + $0xdc] sm:$0xf] %v5860
        %5973 = vst [vmem:[#allocation2 + $0xe8] sm:$0xf] %v5863
        %5974 = vst [vmem:[#allocation2 + $0xf4] sm:$0xf] %v5866
        %5975 = vst [vmem:[#allocation2 + $0x100] sm:$0xf] %v5869
        %5976 = vst [vmem:[#allocation2 + $0x10c] sm:$0xf] %v5872
        %5977 = vst [vmem:[#allocation2 + $0x118] sm:$0xf] %v5875
        %5978 = vst [vmem:[#allocation2 + $0x124] sm:$0xf] %v5878
        %5979 = vst [vmem:[#allocation2 + $0x130] sm:$0xf] %v5881
        %5980 = vst [vmem:[#allocation2 + $0x13c] sm:$0xf] %v5884
        %5981 = vst [vmem:[#allocation2 + $0x148] sm:$0xf] %v5887
        %5982 = vst [vmem:[#allocation2 + $0x154] sm:$0xf] %v5890
        %5983 = vst [vmem:[#allocation2 + $0x160] sm:$0xf] %v5893
        %5984 = vst [vmem:[#allocation2 + $0x16c] sm:$0xf] %v5896
        %5985 = vst [vmem:[#allocation2 + $0x178] sm:$0xf] %v5899
        %5986 = vst [vmem:[#allocation2 + $0x184] sm:$0xf] %v5902
        %5987 = vst [vmem:[#allocation2 + $0x190] sm:$0xf] %v5905
        %5988 = vst [vmem:[#allocation2 + $0x19c] sm:$0xf] %v5908
        %5989 = vst [vmem:[#allocation2 + $0x1a8] sm:$0xf] %v5911
        %5990 = vst [vmem:[#allocation2 + $0x1b4] sm:$0xf] %v5914
        %5991 = vst [vmem:[#allocation2 + $0x1c0] sm:$0xf] %v5917
        %5992 = vst [vmem:[#allocation2 + $0x1cc] sm:$0x1] %v5918
        %v5993 = vrot.slane %v5340, 7
        %v5994 = vor.u32 %v5993, %v5343
        %v5995 = vrot.slane %v5993, 4
        %v5996 = vrot.slane %v5349, 7
        %v5997 = vor.u32 %v5996, %v5352
        %v5998 = vsel %vm2346, %v5995, %v5997
        %v5999 = vrot.slane %v5996, 4
        %v6000 = vrot.slane %v5359, 7
        %v6001 = vor.u32 %v6000, %v5362
        %v6002 = vsel %vm2346, %v5999, %v6001
        %v6003 = vrot.slane %v6000, 4
        %v6004 = vrot.slane %v5369, 7
        %v6005 = vor.u32 %v6004, %v5372
        %v6006 = vsel %vm2346, %v6003, %v6005
        %v6007 = vrot.slane %v6004, 4
        %v6008 = vrot.slane %v5379, 7
        %v6009 = vor.u32 %v6008, %v5382
        %v6010 = vsel %vm2346, %v6007, %v6009
        %v6011 = vrot.slane %v6008, 4
        %v6012 = vrot.slane %v5389, 7
        %v6013 = vor.u32 %v6012, %v5392
        %v6014 = vsel %vm2346, %v6011, %v6013
        %v6015 = vrot.slane %v6012, 4
        %v6016 = vrot.slane %v5399, 7
        %v6017 = vor.u32 %v6016, %v5402
        %v6018 = vsel %vm2346, %v6015, %v6017
        %v6019 = vrot.slane %v6016, 4
        %v6020 = vrot.slane %v5409, 7
        %v6021 = vor.u32 %v6020, %v5412
        %v6022 = vsel %vm2346, %v6019, %v6021
        %v6023 = vrot.slane %v6020, 4
        %v6024 = vrot.slane %v5419, 7
        %v6025 = vor.u32 %v6024, %v5422
        %v6026 = vsel %vm2346, %v6023, %v6025
        %v6027 = vrot.slane %v6024, 4
        %v6028 = vrot.slane %v5429, 7
        %v6029 = vor.u32 %v6028, %v5432
        %v6030 = vsel %vm2346, %v6027, %v6029
        %v6031 = vrot.slane %v6028, 4
        %v6032 = vrot.slane %v5439, 7
        %v6033 = vor.u32 %v6032, %v5442
        %v6034 = vsel %vm2346, %v6031, %v6033
        %v6035 = vrot.slane %v6032, 4
        %v6036 = vrot.slane %v5449, 7
        %v6037 = vor.u32 %v6036, %v5452
        %v6038 = vsel %vm2346, %v6035, %v6037
        %v6039 = vrot.slane %v6036, 4
        %v6040 = vrot.slane %v5459, 7
        %v6041 = vor.u32 %v6040, %v5462
        %v6042 = vsel %vm2346, %v6039, %v6041
        %v6043 = vrot.slane %v6040, 4
        %v6044 = vrot.slane %v5469, 7
        %v6045 = vor.u32 %v6044, %v5472
        %v6046 = vsel %vm2346, %v6043, %v6045
        %v6047 = vrot.slane %v6044, 4
        %v6048 = vrot.slane %v5479, 7
        %v6049 = vor.u32 %v6048, %v5482
        %v6050 = vsel %vm2346, %v6047, %v6049
        %v6051 = vrot.slane %v6048, 4
        %v6052 = vrot.slane %v5489, 7
        %v6053 = vor.u32 %v6052, %v5492
        %v6054 = vsel %vm2346, %v6051, %v6053
        %v6055 = vrot.slane %v6052, 4
        %v6056 = vrot.slane %v5499, 7
        %v6057 = vor.u32 %v6056, %v5502
        %v6058 = vsel %vm2346, %v6055, %v6057
        %v6059 = vrot.slane %v6056, 4
        %v6060 = vrot.slane %v5509, 7
        %v6061 = vor.u32 %v6060, %v5512
        %v6062 = vsel %vm2346, %v6059, %v6061
        %v6063 = vrot.slane %v6060, 4
        %v6064 = vrot.slane %v5519, 7
        %v6065 = vor.u32 %v6064, %v5522
        %v6066 = vsel %vm2346, %v6063, %v6065
        %v6067 = vrot.slane %v6064, 4
        %v6068 = vrot.slane %v5529, 7
        %v6069 = vor.u32 %v6068, %v5532
        %v6070 = vsel %vm2346, %v6067, %v6069
        %v6071 = vrot.slane %v6068, 4
        %v6072 = vrot.slane %v5539, 7
        %v6073 = vor.u32 %v6072, %v5542
        %v6074 = vsel %vm2346, %v6071, %v6073
        %v6075 = vrot.slane %v6072, 4
        %v6076 = vrot.slane %v5549, 7
        %v6077 = vor.u32 %v6076, %v5552
        %v6078 = vsel %vm2346, %v6075, %v6077
        %v6079 = vrot.slane %v6076, 4
        %v6080 = vrot.slane %v5559, 7
        %v6081 = vor.u32 %v6080, %v5562
        %v6082 = vsel %vm2346, %v6079, %v6081
        %v6083 = vrot.slane %v6080, 4
        %v6084 = vrot.slane %v5569, 7
        %v6085 = vor.u32 %v6084, %v5572
        %v6086 = vsel %vm2346, %v6083, %v6085
        %v6087 = vrot.slane %v6084, 4
        %v6088 = vrot.slane %v5579, 7
        %v6089 = vor.u32 %v6088, %v5582
        %v6090 = vsel %vm2346, %v6087, %v6089
        %v6091 = vrot.slane %v6088, 4
        %v6092 = vrot.slane %v5589, 7
        %v6093 = vor.u32 %v6092, %v5592
        %v6094 = vsel %vm2346, %v6091, %v6093
        %v6095 = vrot.slane %v6092, 4
        %v6096 = vrot.slane %v5599, 7
        %v6097 = vor.u32 %v6096, %v5602
        %v6098 = vsel %vm2346, %v6095, %v6097
        %v6099 = vrot.slane %v6096, 4
        %v6100 = vrot.slane %v5609, 7
        %v6101 = vor.u32 %v6100, %v5612
        %v6102 = vsel %vm2346, %v6099, %v6101
        %v6103 = vrot.slane %v6100, 4
        %v6104 = vrot.slane %v5619, 7
        %v6105 = vor.u32 %v6104, %v5622
        %v6106 = vsel %vm2346, %v6103, %v6105
        %v6107 = vrot.slane %v6104, 4
        %v6108 = vrot.slane %v5629, 7
        %v6109 = vor.u32 %v6108, %v5632
        %v6110 = vsel %vm2346, %v6107, %v6109
        %v6111 = vrot.slane %v6108, 4
        %v6112 = vrot.slane %v5639, 7
        %v6113 = vor.u32 %v6112, %v5642
        %v6114 = vsel %vm2346, %v6111, %v6113
        %v6115 = vrot.slane %v6112, 4
        %v6116 = vrot.slane %v5649, 7
        %v6117 = vor.u32 %v6116, %v5652
        %v6118 = vsel %vm2346, %v6115, %v6117
        %v6119 = vrot.slane %v6116, 4
        %v6120 = vrot.slane %v5659, 7
        %v6121 = vor.u32 %v6120, %v5662
        %v6122 = vsel %vm2346, %v6119, %v6121
        %v6123 = vrot.slane %v6120, 4
        %v6124 = vrot.slane %v5669, 7
        %v6125 = vor.u32 %v6124, %v5672
        %v6126 = vsel %vm2346, %v6123, %v6125
        %v6127 = vrot.slane %v6124, 4
        %v6128 = vrot.slane %v5679, 7
        %v6129 = vor.u32 %v6128, %v5682
        %v6130 = vsel %vm2346, %v6127, %v6129
        %v6131 = vrot.slane %v6128, 4
        %v6132 = vrot.slane %v5689, 7
        %v6133 = vor.u32 %v6132, %v5692
        %v6134 = vsel %vm2346, %v6131, %v6133
        %v6135 = vrot.slane %v6132, 4
        %v6173 = vld [vmem:[#allocation2 + $0x20] sm:$0xf]
        %v6174 = vsel %vm298, %v5994, %v6173
        %6175 = vst [vmem:[#allocation2 + $0x20] sm:$0xf] %v6174
        %6176 = vst [vmem:[#allocation2 + $0x2c] sm:$0xf] %v5998
        %6177 = vst [vmem:[#allocation2 + $0x38] sm:$0xf] %v6002
        %6178 = vst [vmem:[#allocation2 + $0x44] sm:$0xf] %v6006
        %6179 = vst [vmem:[#allocation2 + $0x50] sm:$0xf] %v6010
        %6180 = vst [vmem:[#allocation2 + $0x5c] sm:$0xf] %v6014
        %6181 = vst [vmem:[#allocation2 + $0x68] sm:$0xf] %v6018
        %6182 = vst [vmem:[#allocation2 + $0x74] sm:$0xf] %v6022
        %6183 = vst [vmem:[#allocation2 + $0x80] sm:$0xf] %v6026
        %6184 = vst [vmem:[#allocation2 + $0x8c] sm:$0xf] %v6030
        %6185 = vst [vmem:[#allocation2 + $0x98] sm:$0xf] %v6034
        %6186 = vst [vmem:[#allocation2 + $0xa4] sm:$0xf] %v6038
        %6187 = vst [vmem:[#allocation2 + $0xb0] sm:$0xf] %v6042
        %6188 = vst [vmem:[#allocation2 + $0xbc] sm:$0xf] %v6046
        %6189 = vst [vmem:[#allocation2 + $0xc8] sm:$0xf] %v6050
        %6190 = vst [vmem:[#allocation2 + $0xd4] sm:$0xf] %v6054
        %6191 = vst [vmem:[#allocation2 + $0xe0] sm:$0xf] %v6058
        %6192 = vst [vmem:[#allocation2 + $0xec] sm:$0xf] %v6062
        %6193 = vst [vmem:[#allocation2 + $0xf8] sm:$0xf] %v6066
        %6194 = vst [vmem:[#allocation2 + $0x104] sm:$0xf] %v6070
        %6195 = vst [vmem:[#allocation2 + $0x110] sm:$0xf] %v6074
        %6196 = vst [vmem:[#allocation2 + $0x11c] sm:$0xf] %v6078
        %6197 = vst [vmem:[#allocation2 + $0x128] sm:$0xf] %v6082
        %6198 = vst [vmem:[#allocation2 + $0x134] sm:$0xf] %v6086
        %6199 = vst [vmem:[#allocation2 + $0x140] sm:$0xf] %v6090
        %6200 = vst [vmem:[#allocation2 + $0x14c] sm:$0xf] %v6094
        %6201 = vst [vmem:[#allocation2 + $0x158] sm:$0xf] %v6098
        %6202 = vst [vmem:[#allocation2 + $0x164] sm:$0xf] %v6102
        %6203 = vst [vmem:[#allocation2 + $0x170] sm:$0xf] %v6106
        %6204 = vst [vmem:[#allocation2 + $0x17c] sm:$0xf] %v6110
        %6205 = vst [vmem:[#allocation2 + $0x188] sm:$0xf] %v6114
        %6206 = vst [vmem:[#allocation2 + $0x194] sm:$0xf] %v6118
        %6207 = vst [vmem:[#allocation2 + $0x1a0] sm:$0xf] %v6122
        %6208 = vst [vmem:[#allocation2 + $0x1ac] sm:$0xf] %v6126
        %6209 = vst [vmem:[#allocation2 + $0x1b8] sm:$0xf] %v6130
        %6210 = vst [vmem:[#allocation2 + $0x1c4] sm:$0xf] %v6134
        %v6211 = vld [vmem:[#allocation2 + $0x1d0] sm:$0x1]
        %v6212 = vsel %vm2565, %v6135, %v6211
        %6213 = vst [vmem:[#allocation2 + $0x1d0] sm:$0x1] %v6212
        %v6214 = vld [vmem:[#allocation2] sm:$0xff]
        %v6215 = vld [vmem:[#allocation2 + $0x8] sm:$0xf]
        %v6216 = vld [vmem:[#allocation2 + $0xc] sm:$0xff]
        %v6217 = vld [vmem:[#allocation2 + $0x14] sm:$0xf]
        %v6218 = vld [vmem:[#allocation2 + $0x18] sm:$0xff]
        %v6219 = vld [vmem:[#allocation2 + $0x20] sm:$0xf]
        %v6220 = vld [vmem:[#allocation2 + $0x24] sm:$0xff]
        %v6221 = vld [vmem:[#allocation2 + $0x2c] sm:$0xf]
        %v6222 = vld [vmem:[#allocation2 + $0x30] sm:$0xff]
        %v6223 = vld [vmem:[#allocation2 + $0x38] sm:$0xf]
        %v6224 = vld [vmem:[#allocation2 + $0x3c] sm:$0xff]
        %v6225 = vld [vmem:[#allocation2 + $0x44] sm:$0xf]
        %v6226 = vld [vmem:[#allocation2 + $0x48] sm:$0xff]
        %v6227 = vld [vmem:[#allocation2 + $0x50] sm:$0xf]
        %v6228 = vld [vmem:[#allocation2 + $0x54] sm:$0xff]
        %v6229 = vld [vmem:[#allocation2 + $0x5c] sm:$0xf]
        %v6230 = vld [vmem:[#allocation2 + $0x60] sm:$0xff]
        %v6231 = vld [vmem:[#allocation2 + $0x68] sm:$0xf]
        %v6232 = vld [vmem:[#allocation2 + $0x6c] sm:$0xff]
        %v6233 = vld [vmem:[#allocation2 + $0x74] sm:$0xf]
        %v6234 = vld [vmem:[#allocation2 + $0x78] sm:$0xff]
        %v6235 = vld [vmem:[#allocation2 + $0x80] sm:$0xf]
        %v6236 = vld [vmem:[#allocation2 + $0x84] sm:$0xff]
        %v6237 = vld [vmem:[#allocation2 + $0x8c] sm:$0xf]
        %v6238 = vld [vmem:[#allocation2 + $0x90] sm:$0xff]
        %v6239 = vld [vmem:[#allocation2 + $0x98] sm:$0xf]
        %v6240 = vld [vmem:[#allocation2 + $0x9c] sm:$0xff]
        %v6241 = vld [vmem:[#allocation2 + $0xa4] sm:$0xf]
        %v6242 = vld [vmem:[#allocation2 + $0xa8] sm:$0xff]
        %v6243 = vld [vmem:[#allocation2 + $0xb0] sm:$0xf]
        %v6244 = vld [vmem:[#allocation2 + $0xb4] sm:$0xff]
        %v6245 = vld [vmem:[#allocation2 + $0xbc] sm:$0xf]
        %v6246 = vld [vmem:[#allocation2 + $0xc0] sm:$0xff]
        %v6247 = vld [vmem:[#allocation2 + $0xc8] sm:$0xf]
        %v6248 = vld [vmem:[#allocation2 + $0xcc] sm:$0xff]
        %v6249 = vld [vmem:[#allocation2 + $0xd4] sm:$0xf]
        %v6250 = vld [vmem:[#allocation2 + $0xd8] sm:$0xff]
        %v6251 = vld [vmem:[#allocation2 + $0xe0] sm:$0xf]
        %v6252 = vld [vmem:[#allocation2 + $0xe4] sm:$0xff]
        %v6253 = vld [vmem:[#allocation2 + $0xec] sm:$0xf]
        %v6254 = vld [vmem:[#allocation2 + $0xf0] sm:$0xff]
        %v6255 = vld [vmem:[#allocation2 + $0xf8] sm:$0xf]
        %v6256 = vld [vmem:[#allocation2 + $0xfc] sm:$0xff]
        %v6257 = vld [vmem:[#allocation2 + $0x104] sm:$0xf]
        %v6258 = vld [vmem:[#allocation2 + $0x108] sm:$0xff]
        %v6259 = vld [vmem:[#allocation2 + $0x110] sm:$0xf]
        %v6260 = vld [vmem:[#allocation2 + $0x114] sm:$0xff]
        %v6261 = vld [vmem:[#allocation2 + $0x11c] sm:$0xf]
        %v6262 = vld [vmem:[#allocation2 + $0x120] sm:$0xff]
        %v6263 = vld [vmem:[#allocation2 + $0x128] sm:$0xf]
        %v6264 = vld [vmem:[#allocation2 + $0x12c] sm:$0xff]
        %v6265 = vld [vmem:[#allocation2 + $0x134] sm:$0xf]
        %v6266 = vld [vmem:[#allocation2 + $0x138] sm:$0xff]
        %v6267 = vld [vmem:[#allocation2 + $0x140] sm:$0xf]
        %v6268 = vld [vmem:[#allocation2 + $0x144] sm:$0xff]
        %v6269 = vld [vmem:[#allocation2 + $0x14c] sm:$0xf]
        %v6270 = vld [vmem:[#allocation2 + $0x150] sm:$0xff]
        %v6271 = vld [vmem:[#allocation2 + $0x158] sm:$0xf]
        %v6272 = vld [vmem:[#allocation2 + $0x15c] sm:$0xff]
        %v6273 = vld [vmem:[#allocation2 + $0x164] sm:$0xf]
        %v6274 = vld [vmem:[#allocation2 + $0x168] sm:$0xff]
        %v6275 = vld [vmem:[#allocation2 + $0x170] sm:$0xf]
        %v6276 = vld [vmem:[#allocation2 + $0x174] sm:$0xff]
        %v6277 = vld [vmem:[#allocation2 + $0x17c] sm:$0xf]
        %v6278 = vld [vmem:[#allocation2 + $0x180] sm:$0xff]
        %v6279 = vld [vmem:[#allocation2 + $0x188] sm:$0xf]
        %v6280 = vld [vmem:[#allocation2 + $0x18c] sm:$0xff]
        %v6281 = vld [vmem:[#allocation2 + $0x194] sm:$0xf]
        %v6282 = vld [vmem:[#allocation2 + $0x198] sm:$0xff]
        %v6283 = vld [vmem:[#allocation2 + $0x1a0] sm:$0xf]
        %v6284 = vld [vmem:[#allocation2 + $0x1a4] sm:$0xff]
        %v6285 = vld [vmem:[#allocation2 + $0x1ac] sm:$0xf]
        %v6286 = vld [vmem:[#allocation8] sm:$0xf]
        %v6287 = vld [vmem:[#allocation8 + $0x4] sm:$0xf]
        %v6288 = vld [vmem:[#allocation8 + $0x8] sm:$0xf]
        %v6289 = vld [vmem:[#allocation8 + $0xc] sm:$0xf]
        %v6290 = vld [vmem:[#allocation8 + $0x10] sm:$0xf]
        %v6291 = vld [vmem:[#allocation8 + $0x14] sm:$0xf]
        %v6292 = vld [vmem:[#allocation8 + $0x18] sm:$0xf]
        %v6293 = vld [vmem:[#allocation8 + $0x1c] sm:$0xf]
        %v6294 = vld [vmem:[#allocation8 + $0x20] sm:$0xf]
        %v6295 = vld [vmem:[#allocation8 + $0x24] sm:$0xf]
        %v6296 = vld [vmem:[#allocation8 + $0x28] sm:$0xf]
        %v6297 = vld [vmem:[#allocation8 + $0x2c] sm:$0xf]
        %v6298 = vld [vmem:[#allocation8 + $0x30] sm:$0xf]
        %v6299 = vld [vmem:[#allocation8 + $0x34] sm:$0xf]
        %v6300 = vld [vmem:[#allocation8 + $0x38] sm:$0xf]
        %v6301 = vld [vmem:[#allocation8 + $0x3c] sm:$0xf]
        %v6302 = vld [vmem:[#allocation8 + $0x40] sm:$0xf]
        %v6303 = vld [vmem:[#allocation8 + $0x44] sm:$0xf]
        %v6304 = vld [vmem:[#allocation8 + $0x48] sm:$0xf]
        %v6305 = vld [vmem:[#allocation8 + $0x4c] sm:$0xf]
        %v6306 = vld [vmem:[#allocation8 + $0x50] sm:$0xf]
        %v6307 = vld [vmem:[#allocation8 + $0x54] sm:$0xf]
        %v6308 = vld [vmem:[#allocation8 + $0x58] sm:$0xf]
        %v6309 = vld [vmem:[#allocation8 + $0x5c] sm:$0xf]
        %v6310 = vld [vmem:[#allocation8 + $0x60] sm:$0xf]
        %v6311 = vld [vmem:[#allocation8 + $0x64] sm:$0xf]
        %v6312 = vld [vmem:[#allocation8 + $0x68] sm:$0xf]
        %v6313 = vld [vmem:[#allocation8 + $0x6c] sm:$0xf]
        %v6314 = vld [vmem:[#allocation8 + $0x70] sm:$0xf]
        %v6315 = vld [vmem:[#allocation8 + $0x74] sm:$0xf]
        %v6316 = vld [vmem:[#allocation8 + $0x78] sm:$0xf]
        %v6317 = vld [vmem:[#allocation8 + $0x7c] sm:$0xf]
        %v6318 = vld [vmem:[#allocation8 + $0x80] sm:$0xf]
        %v6319 = vld [vmem:[#allocation8 + $0x84] sm:$0xf]
        %v6320 = vld [vmem:[#allocation8 + $0x88] sm:$0xf]
        %v6321 = vld [vmem:[#allocation8 + $0x8c] sm:$0xf]
        %v6322 = vld [vmem:[#allocation8 + $0x90] sm:$0xf]
        %v6323 = vld [vmem:[#allocation8 + $0x94] sm:$0xf]
        %v6324 = vld [vmem:[#allocation8 + $0x98] sm:$0xf]
        %v6325 = vld [vmem:[#allocation8 + $0x9c] sm:$0xf]
        %v6326 = vld [vmem:[#allocation8 + $0xa0] sm:$0xf]
        %v6327 = vld [vmem:[#allocation8 + $0xa4] sm:$0xf]
        %v6328 = vld [vmem:[#allocation8 + $0xa8] sm:$0xf]
        %v6329 = vld [vmem:[#allocation8 + $0xac] sm:$0xf]
        %v6330 = vld [vmem:[#allocation8 + $0xb0] sm:$0xf]
        %v6331 = vld [vmem:[#allocation8 + $0xb4] sm:$0xf]
        %v6332 = vld [vmem:[#allocation8 + $0xb8] sm:$0xf]
        %v6333 = vld [vmem:[#allocation8 + $0xbc] sm:$0xf]
        %v6334 = vld [vmem:[#allocation2 + $0x18] sm:$0xee]
        %v6335 = vld [vmem:[#allocation2 + $0x20] sm:$0xe]
        %v6336 = vld [vmem:[#allocation2 + $0x1b0] sm:$0xff]
        %v6337 = vld [vmem:[#allocation2 + $0x1b8] sm:$0xf]
        %v6338 = vld [vmem:[#allocation2 + $0x1bc] sm:$0xff]
        %v6339 = vld [vmem:[#allocation2 + $0x1c4] sm:$0xf]
        %v6340 = vld [vmem:[#allocation2 + $0x1c8] sm:$0x11]
        %v6341 = vld [vmem:[#allocation2 + $0x1d0] sm:$0x1]
        %s6342 = scalar_lea.vmem [#allocation8], 192
        %v6343 = vld [vmem:[%s6342] sm:$0xf]
        %v6344 = vld [vmem:[%s6342 + $0x4] sm:$0xf]
        %v6345 = vld [vmem:[%s6342 + $0x8] sm:$0xf]
        %v6346 = vld [vmem:[%s6342 + $0xc] sm:$0xf]
        %v6347 = vld [vmem:[%s6342 + $0x10] sm:$0xf]
        %v6348 = vld [vmem:[%s6342 + $0x14] sm:$0xf]
        %v6349 = vld [vmem:[%s6342 + $0x18] sm:$0xf]
        %v6350 = vld [vmem:[%s6342 + $0x1c] sm:$0xf]
        %v6351 = vld [vmem:[%s6342 + $0x20] sm:$0xf]
        %v6352 = vld [vmem:[%s6342 + $0x24] sm:$0xf]
        %v6353 = vld [vmem:[%s6342 + $0x28] sm:$0xf]
        %v6354 = vld [vmem:[%s6342 + $0x2c] sm:$0xf]
        %v6355 = vld [vmem:[%s6342 + $0x30] sm:$0xf]
        %v6356 = vld [vmem:[%s6342 + $0x34] sm:$0xf]
        %v6357 = vld [vmem:[%s6342 + $0x38] sm:$0xf]
        %v6358 = vld [vmem:[%s6342 + $0x3c] sm:$0xf]
        %v6359 = vld [vmem:[%s6342 + $0x40] sm:$0xf]
        %v6360 = vld [vmem:[%s6342 + $0x44] sm:$0xf]
        %v6361 = vld [vmem:[%s6342 + $0x48] sm:$0xf]
        %v6362 = vld [vmem:[%s6342 + $0x4c] sm:$0xf]
        %v6363 = vld [vmem:[%s6342 + $0x50] sm:$0xf]
        %v6364 = vld [vmem:[%s6342 + $0x54] sm:$0xf]
        %v6365 = vld [vmem:[%s6342 + $0x58] sm:$0xf]
        %v6366 = vld [vmem:[%s6342 + $0x5c] sm:$0xf]
        %v6367 = vld [vmem:[%s6342 + $0x60] sm:$0xf]
        %v6368 = vld [vmem:[%s6342 + $0x64] sm:$0xf]
        %v6369 = vld [vmem:[%s6342 + $0x68] sm:$0xf]
        %v6370 = vld [vmem:[%s6342 + $0x6c] sm:$0xf]
        %v6371 = vld [vmem:[%s6342 + $0x70] sm:$0xf]
        %v6372 = vld [vmem:[%s6342 + $0x74] sm:$0xf]
        %v6373 = vld [vmem:[%s6342 + $0x78] sm:$0xf]
        %v6374 = vld [vmem:[%s6342 + $0x7c] sm:$0xf]
        %v6375 = vld [vmem:[%s6342 + $0x80] sm:$0xf]
        %v6376 = vld [vmem:[%s6342 + $0x84] sm:$0xf]
        %v6377 = vld [vmem:[%s6342 + $0x88] sm:$0xf]
        %v6378 = vld [vmem:[%s6342 + $0x8c] sm:$0xf]
        %v6379 = vld [vmem:[%s6342 + $0x90] sm:$0xf]
        %v6380 = vld [vmem:[%s6342 + $0x94] sm:$0xf]
        %v6381 = vld [vmem:[%s6342 + $0x98] sm:$0xf]
        %v6382 = vld [vmem:[%s6342 + $0x9c] sm:$0xf]
        %v6383 = vld [vmem:[%s6342 + $0xa0] sm:$0xf]
        %v6384 = vld [vmem:[%s6342 + $0xa4] sm:$0xf]
        %v6385 = vld [vmem:[%s6342 + $0xa8] sm:$0xf]
        %v6386 = vld [vmem:[%s6342 + $0xac] sm:$0xf]
        %v6387 = vld [vmem:[%s6342 + $0xb0] sm:$0xf]
        %v6388 = vld [vmem:[%s6342 + $0xb4] sm:$0xf]
        %v6389 = vld [vmem:[%s6342 + $0xb8] sm:$0xf]
        %v6390 = vld [vmem:[%s6342 + $0xbc] sm:$0xf]
        %v6465 = vunpack.c.l.b16 %v6334
        %v6466 = vunpack.c.h.b16 %v6334
        %v6467 = vunpack.c.l.b16 %v6335
        %v6468 = vunpack.c.l.b16 %v6220
        %v6469 = vunpack.c.h.b16 %v6220
        %v6470 = vunpack.c.l.b16 %v6221
        %v6471 = vunpack.c.l.b16 %v6222
        %v6472 = vunpack.c.h.b16 %v6222
        %v6473 = vunpack.c.l.b16 %v6223
        %v6474 = vunpack.c.l.b16 %v6224
        %v6475 = vunpack.c.h.b16 %v6224
        %v6476 = vunpack.c.l.b16 %v6225
        %v6477 = vunpack.c.l.b16 %v6226
        %v6478 = vunpack.c.h.b16 %v6226
        %v6479 = vunpack.c.l.b16 %v6227
        %v6480 = vunpack.c.l.b16 %v6228
        %v6481 = vunpack.c.h.b16 %v6228
        %v6482 = vunpack.c.l.b16 %v6229
        %v6483 = vunpack.c.l.b16 %v6230
        %v6484 = vunpack.c.h.b16 %v6230
        %v6485 = vunpack.c.l.b16 %v6231
        %v6486 = vunpack.c.l.b16 %v6232
        %v6487 = vunpack.c.h.b16 %v6232
        %v6488 = vunpack.c.l.b16 %v6233
        %v6489 = vunpack.c.l.b16 %v6234
        %v6490 = vunpack.c.h.b16 %v6234
        %v6491 = vunpack.c.l.b16 %v6235
        %v6492 = vunpack.c.l.b16 %v6236
        %v6493 = vunpack.c.h.b16 %v6236
        %v6494 = vunpack.c.l.b16 %v6237
        %v6495 = vunpack.c.l.b16 %v6238
        %v6496 = vunpack.c.h.b16 %v6238
        %v6497 = vunpack.c.l.b16 %v6239
        %v6498 = vunpack.c.l.b16 %v6240
        %v6499 = vunpack.c.h.b16 %v6240
        %v6500 = vunpack.c.l.b16 %v6241
        %v6501 = vunpack.c.l.b16 %v6242
        %v6502 = vunpack.c.h.b16 %v6242
        %v6503 = vunpack.c.l.b16 %v6243
        %v6504 = vunpack.c.l.b16 %v6244
        %v6505 = vunpack.c.h.b16 %v6244
        %v6506 = vunpack.c.l.b16 %v6245
        %v6507 = vunpack.c.l.b16 %v6246
        %v6508 = vunpack.c.h.b16 %v6246
        %v6509 = vunpack.c.l.b16 %v6247
        %v6510 = vunpack.c.l.b16 %v6248
        %v6511 = vunpack.c.h.b16 %v6248
        %v6512 = vunpack.c.l.b16 %v6249
        %v6513 = vunpack.c.l.b16 %v6250
        %v6514 = vunpack.c.h.b16 %v6250
        %v6515 = vunpack.c.l.b16 %v6251
        %v6516 = vunpack.c.l.b16 %v6252
        %v6517 = vunpack.c.h.b16 %v6252
        %v6518 = vunpack.c.l.b16 %v6253
        %v6519 = vunpack.c.l.b16 %v6254
        %v6520 = vunpack.c.h.b16 %v6254
        %v6521 = vunpack.c.l.b16 %v6255
        %v6522 = vunpack.c.l.b16 %v6256
        %v6523 = vunpack.c.h.b16 %v6256
        %v6524 = vunpack.c.l.b16 %v6257
        %v6525 = vunpack.c.l.b16 %v6258
        %v6526 = vunpack.c.h.b16 %v6258
        %v6527 = vunpack.c.l.b16 %v6259
        %v6528 = vunpack.c.l.b16 %v6260
        %v6529 = vunpack.c.h.b16 %v6260
        %v6530 = vunpack.c.l.b16 %v6261
        %v6531 = vunpack.c.l.b16 %v6262
        %v6532 = vunpack.c.h.b16 %v6262
        %v6533 = vunpack.c.l.b16 %v6263
        %v6534 = vunpack.c.l.b16 %v6264
        %v6535 = vunpack.c.h.b16 %v6264
        %v6536 = vunpack.c.l.b16 %v6265
        %v6537 = vunpack.c.l.b16 %v6266
        %v6538 = vunpack.c.h.b16 %v6266
        %v6539 = vunpack.c.l.b16 %v6267
        %v6540 = vunpack.c.l.b16 %v6268
        %v6541 = vunpack.c.h.b16 %v6268
        %v6542 = vunpack.c.l.b16 %v6269
        %v6543 = vunpack.c.l.b16 %v6270
        %v6544 = vunpack.c.h.b16 %v6270
        %v6545 = vunpack.c.l.b16 %v6271
        %v6546 = vunpack.c.l.b16 %v6272
        %v6547 = vunpack.c.h.b16 %v6272
        %v6548 = vunpack.c.l.b16 %v6273
        %v6549 = vunpack.c.l.b16 %v6274
        %v6550 = vunpack.c.h.b16 %v6274
        %v6551 = vunpack.c.l.b16 %v6275
        %v6552 = vunpack.c.l.b16 %v6276
        %v6553 = vunpack.c.h.b16 %v6276
        %v6554 = vunpack.c.l.b16 %v6277
        %v6555 = vunpack.c.l.b16 %v6278
        %v6556 = vunpack.c.h.b16 %v6278
        %v6557 = vunpack.c.l.b16 %v6279
        %v6558 = vunpack.c.l.b16 %v6280
        %v6559 = vunpack.c.h.b16 %v6280
        %v6560 = vunpack.c.l.b16 %v6281
        %v6561 = vunpack.c.l.b16 %v6282
        %v6562 = vunpack.c.h.b16 %v6282
        %v6563 = vunpack.c.l.b16 %v6283
        %v6564 = vunpack.c.l.b16 %v6284
        %v6565 = vunpack.c.h.b16 %v6284
        %v6566 = vunpack.c.l.b16 %v6285
        %v6567 = vunpack.c.l.b16 %v6336
        %v6568 = vunpack.c.h.b16 %v6336
        %v6569 = vunpack.c.l.b16 %v6337
        %v6570 = vunpack.c.l.b16 %v6338
        %v6571 = vunpack.c.h.b16 %v6338
        %v6572 = vunpack.c.l.b16 %v6339
        %v6573 = vunpack.c.l.b16 %v6340
        %v6574 = vunpack.c.h.b16 %v6340
        %v6575 = vunpack.c.l.b16 %v6341
        %v6576 = vpack.c.b16 %v6468, %v6465
        %v6577 = vpack.c.b16 %v6469, %v6466
        %v6578 = vpack.c.b16 %v6470, %v6467
        %v6579 = vpack.c.b16 %v6474, %v6471
        %v6580 = vpack.c.b16 %v6475, %v6472
        %v6581 = vpack.c.b16 %v6476, %v6473
        %v6582 = vpack.c.b16 %v6480, %v6477
        %v6583 = vpack.c.b16 %v6481, %v6478
        %v6584 = vpack.c.b16 %v6482, %v6479
        %v6585 = vpack.c.b16 %v6486, %v6483
        %v6586 = vpack.c.b16 %v6487, %v6484
        %v6587 = vpack.c.b16 %v6488, %v6485
        %v6588 = vpack.c.b16 %v6492, %v6489
        %v6589 = vpack.c.b16 %v6493, %v6490
        %v6590 = vpack.c.b16 %v6494, %v6491
        %v6591 = vpack.c.b16 %v6498, %v6495
        %v6592 = vpack.c.b16 %v6499, %v6496
        %v6593 = vpack.c.b16 %v6500, %v6497
        %v6594 = vpack.c.b16 %v6504, %v6501
        %v6595 = vpack.c.b16 %v6505, %v6502
        %v6596 = vpack.c.b16 %v6506, %v6503
        %v6597 = vpack.c.b16 %v6510, %v6507
        %v6598 = vpack.c.b16 %v6511, %v6508
        %v6599 = vpack.c.b16 %v6512, %v6509
        %v6600 = vpack.c.b16 %v6516, %v6513
        %v6601 = vpack.c.b16 %v6517, %v6514
        %v6602 = vpack.c.b16 %v6518, %v6515
        %v6603 = vpack.c.b16 %v6522, %v6519
        %v6604 = vpack.c.b16 %v6523, %v6520
        %v6605 = vpack.c.b16 %v6524, %v6521
        %v6606 = vpack.c.b16 %v6528, %v6525
        %v6607 = vpack.c.b16 %v6529, %v6526
        %v6608 = vpack.c.b16 %v6530, %v6527
        %v6609 = vpack.c.b16 %v6534, %v6531
        %v6610 = vpack.c.b16 %v6535, %v6532
        %v6611 = vpack.c.b16 %v6536, %v6533
        %v6612 = vpack.c.b16 %v6540, %v6537
        %v6613 = vpack.c.b16 %v6541, %v6538
        %v6614 = vpack.c.b16 %v6542, %v6539
        %v6615 = vpack.c.b16 %v6546, %v6543
        %v6616 = vpack.c.b16 %v6547, %v6544
        %v6617 = vpack.c.b16 %v6548, %v6545
        %v6618 = vpack.c.b16 %v6552, %v6549
        %v6619 = vpack.c.b16 %v6553, %v6550
        %v6620 = vpack.c.b16 %v6554, %v6551
        %v6621 = vpack.c.b16 %v6558, %v6555
        %v6622 = vpack.c.b16 %v6559, %v6556
        %v6623 = vpack.c.b16 %v6560, %v6557
        %v6624 = vpack.c.b16 %v6564, %v6561
        %v6625 = vpack.c.b16 %v6565, %v6562
        %v6626 = vpack.c.b16 %v6566, %v6563
        %v6627 = vpack.c.b16 %v6570, %v6567
        %v6628 = vpack.c.b16 %v6571, %v6568
        %v6629 = vpack.c.b16 %v6572, %v6569
        %v6630 = vpack.c.b16 %v6573, %v6573
        %v6631 = vpack.c.b16 %v6574, %v6574
        %v6632 = vpack.c.b16 %v6575, %v6575
        %v6633 = vrot.slane %v6576, 1
        %v6634 = vrot.slane %v6579, 1
        %v6635 = vsel %vm2988, %v6633, %v6634
        %v6636 = vrot.slane %v6577, 1
        %v6637 = vrot.slane %v6580, 1
        %v6638 = vsel %vm2988, %v6636, %v6637
        %v6639 = vrot.slane %v6578, 1
        %v6640 = vrot.slane %v6581, 1
        %v6641 = vsel %vm2988, %v6639, %v6640
        %v6642 = vrot.slane %v6582, 1
        %v6643 = vsel %vm2988, %v6634, %v6642
        %v6644 = vrot.slane %v6583, 1
        %v6645 = vsel %vm2988, %v6637, %v6644
        %v6646 = vrot.slane %v6584, 1
        %v6647 = vsel %vm2988, %v6640, %v6646
        %v6648 = vrot.slane %v6585, 1
        %v6649 = vsel %vm2988, %v6642, %v6648
        %v6650 = vrot.slane %v6586, 1
        %v6651 = vsel %vm2988, %v6644, %v6650
        %v6652 = vrot.slane %v6587, 1
        %v6653 = vsel %vm2988, %v6646, %v6652
        %v6654 = vrot.slane %v6588, 1
        %v6655 = vsel %vm2988, %v6648, %v6654
        %v6656 = vrot.slane %v6589, 1
        %v6657 = vsel %vm2988, %v6650, %v6656
        %v6658 = vrot.slane %v6590, 1
        %v6659 = vsel %vm2988, %v6652, %v6658
        %v6660 = vrot.slane %v6591, 1
        %v6661 = vsel %vm2988, %v6654, %v6660
        %v6662 = vrot.slane %v6592, 1
        %v6663 = vsel %vm2988, %v6656, %v6662
        %v6664 = vrot.slane %v6593, 1
        %v6665 = vsel %vm2988, %v6658, %v6664
        %v6666 = vrot.slane %v6594, 1
        %v6667 = vsel %vm2988, %v6660, %v6666
        %v6668 = vrot.slane %v6595, 1
        %v6669 = vsel %vm2988, %v6662, %v6668
        %v6670 = vrot.slane %v6596, 1
        %v6671 = vsel %vm2988, %v6664, %v6670
        %v6672 = vrot.slane %v6597, 1
        %v6673 = vsel %vm2988, %v6666, %v6672
        %v6674 = vrot.slane %v6598, 1
        %v6675 = vsel %vm2988, %v6668, %v6674
        %v6676 = vrot.slane %v6599, 1
        %v6677 = vsel %vm2988, %v6670, %v6676
        %v6678 = vrot.slane %v6600, 1
        %v6679 = vsel %vm2988, %v6672, %v6678
        %v6680 = vrot.slane %v6601, 1
        %v6681 = vsel %vm2988, %v6674, %v6680
        %v6682 = vrot.slane %v6602, 1
        %v6683 = vsel %vm2988, %v6676, %v6682
        %v6684 = vrot.slane %v6603, 1
        %v6685 = vsel %vm2988, %v6678, %v6684
        %v6686 = vrot.slane %v6604, 1
        %v6687 = vsel %vm2988, %v6680, %v6686
        %v6688 = vrot.slane %v6605, 1
        %v6689 = vsel %vm2988, %v6682, %v6688
        %v6690 = vrot.slane %v6606, 1
        %v6691 = vsel %vm2988, %v6684, %v6690
        %v6692 = vrot.slane %v6607, 1
        %v6693 = vsel %vm2988, %v6686, %v6692
        %v6694 = vrot.slane %v6608, 1
        %v6695 = vsel %vm2988, %v6688, %v6694
        %v6696 = vrot.slane %v6609, 1
        %v6697 = vsel %vm2988, %v6690, %v6696
        %v6698 = vrot.slane %v6610, 1
        %v6699 = vsel %vm2988, %v6692, %v6698
        %v6700 = vrot.slane %v6611, 1
        %v6701 = vsel %vm2988, %v6694, %v6700
        %v6702 = vrot.slane %v6612, 1
        %v6703 = vsel %vm2988, %v6696, %v6702
        %v6704 = vrot.slane %v6613, 1
        %v6705 = vsel %vm2988, %v6698, %v6704
        %v6706 = vrot.slane %v6614, 1
        %v6707 = vsel %vm2988, %v6700, %v6706
        %v6708 = vrot.slane %v6615, 1
        %v6709 = vsel %vm2988, %v6702, %v6708
        %v6710 = vrot.slane %v6616, 1
        %v6711 = vsel %vm2988, %v6704, %v6710
        %v6712 = vrot.slane %v6617, 1
        %v6713 = vsel %vm2988, %v6706, %v6712
        %v6714 = vrot.slane %v6618, 1
        %v6715 = vsel %vm2988, %v6708, %v6714
        %v6716 = vrot.slane %v6619, 1
        %v6717 = vsel %vm2988, %v6710, %v6716
        %v6718 = vrot.slane %v6620, 1
        %v6719 = vsel %vm2988, %v6712, %v6718
        %v6720 = vrot.slane %v6621, 1
        %v6721 = vsel %vm2988, %v6714, %v6720
        %v6722 = vrot.slane %v6622, 1
        %v6723 = vsel %vm2988, %v6716, %v6722
        %v6724 = vrot.slane %v6623, 1
        %v6725 = vsel %vm2988, %v6718, %v6724
        %v6726 = vrot.slane %v6624, 1
        %v6727 = vsel %vm2988, %v6720, %v6726
        %v6728 = vrot.slane %v6625, 1
        %v6729 = vsel %vm2988, %v6722, %v6728
        %v6730 = vrot.slane %v6626, 1
        %v6731 = vsel %vm2988, %v6724, %v6730
        %v6732 = vrot.slane %v6627, 1
        %v6733 = vsel %vm2988, %v6726, %v6732
        %v6734 = vrot.slane %v6628, 1
        %v6735 = vsel %vm2988, %v6728, %v6734
        %v6736 = vrot.slane %v6629, 1
        %v6737 = vsel %vm2988, %v6730, %v6736
        %v6738 = vrot.slane %v6630, 1
        %v6739 = vsel %vm2988, %v6732, %v6738
        %v6740 = vrot.slane %v6631, 1
        %v6741 = vsel %vm2988, %v6734, %v6740
        %v6742 = vrot.slane %v6632, 1
        %v6743 = vsel %vm2988, %v6736, %v6742
        %v6846 = vunpack.c.l.b16 %v6343
        %v6847 = vunpack.c.l.b16 %v6344
        %v6848 = vunpack.c.l.b16 %v6345
        %v6849 = vunpack.c.l.b16 %v6346
        %v6850 = vunpack.c.l.b16 %v6347
        %v6851 = vunpack.c.l.b16 %v6348
        %v6852 = vunpack.c.l.b16 %v6349
        %v6853 = vunpack.c.l.b16 %v6350
        %v6854 = vunpack.c.l.b16 %v6351
        %v6855 = vunpack.c.l.b16 %v6352
        %v6856 = vunpack.c.l.b16 %v6353
        %v6857 = vunpack.c.l.b16 %v6354
        %v6858 = vunpack.c.l.b16 %v6355
        %v6859 = vunpack.c.l.b16 %v6356
        %v6860 = vunpack.c.l.b16 %v6357
        %v6861 = vunpack.c.l.b16 %v6358
        %v6862 = vunpack.c.l.b16 %v6359
        %v6863 = vunpack.c.l.b16 %v6360
        %v6864 = vunpack.c.l.b16 %v6361
        %v6865 = vunpack.c.l.b16 %v6362
        %v6866 = vunpack.c.l.b16 %v6363
        %v6867 = vunpack.c.l.b16 %v6364
        %v6868 = vunpack.c.l.b16 %v6365
        %v6869 = vunpack.c.l.b16 %v6366
        %v6870 = vunpack.c.l.b16 %v6367
        %v6871 = vunpack.c.l.b16 %v6368
        %v6872 = vunpack.c.l.b16 %v6369
        %v6873 = vunpack.c.l.b16 %v6370
        %v6874 = vunpack.c.l.b16 %v6371
        %v6875 = vunpack.c.l.b16 %v6372
        %v6876 = vunpack.c.l.b16 %v6373
        %v6877 = vunpack.c.l.b16 %v6374
        %v6878 = vunpack.c.l.b16 %v6375
        %v6879 = vunpack.c.l.b16 %v6376
        %v6880 = vunpack.c.l.b16 %v6377
        %v6881 = vunpack.c.l.b16 %v6378
        %v6882 = vunpack.c.l.b16 %v6379
        %v6883 = vunpack.c.l.b16 %v6380
        %v6884 = vunpack.c.l.b16 %v6381
        %v6885 = vunpack.c.l.b16 %v6382
        %v6886 = vunpack.c.l.b16 %v6383
        %v6887 = vunpack.c.l.b16 %v6384
        %v6888 = vunpack.c.l.b16 %v6385
        %v6889 = vunpack.c.l.b16 %v6386
        %v6890 = vunpack.c.l.b16 %v6387
        %v6891 = vunpack.c.l.b16 %v6388
        %v6892 = vunpack.c.l.b16 %v6389
        %v6893 = vunpack.c.l.b16 %v6390
        %v6894 = vpack.c.b16 %v6847, %v6846
        %v6895 = vpack.c.b16 %v6849, %v6848
        %v6896 = vpack.c.b16 %v6851, %v6850
        %v6897 = vpack.c.b16 %v6853, %v6852
        %v6898 = vpack.c.b16 %v6855, %v6854
        %v6899 = vpack.c.b16 %v6857, %v6856
        %v6900 = vpack.c.b16 %v6859, %v6858
        %v6901 = vpack.c.b16 %v6861, %v6860
        %v6902 = vpack.c.b16 %v6863, %v6862
        %v6903 = vpack.c.b16 %v6865, %v6864
        %v6904 = vpack.c.b16 %v6867, %v6866
        %v6905 = vpack.c.b16 %v6869, %v6868
        %v6906 = vpack.c.b16 %v6871, %v6870
        %v6907 = vpack.c.b16 %v6873, %v6872
        %v6908 = vpack.c.b16 %v6875, %v6874
        %v6909 = vpack.c.b16 %v6877, %v6876
        %v6910 = vpack.c.b16 %v6879, %v6878
        %v6911 = vpack.c.b16 %v6881, %v6880
        %v6912 = vpack.c.b16 %v6883, %v6882
        %v6913 = vpack.c.b16 %v6885, %v6884
        %v6914 = vpack.c.b16 %v6887, %v6886
        %v6915 = vpack.c.b16 %v6889, %v6888
        %v6916 = vpack.c.b16 %v6891, %v6890
        %v6917 = vpack.c.b16 %v6893, %v6892
        %6942 = vmatpush.bf16.msra.mxu0 %v6901
        %6943 = vmatpush.bf16.msra.mxu0 %v6900
        %6944 = vmatpush.bf16.msra.mxu0 %v6899
        %6945 = vmatpush.bf16.msra.mxu0 %v6898
        %6946 = vmatpush.bf16.msra.mxu0 %v6897
        %6947 = vmatpush.bf16.msra.mxu0 %v6896
        %6948 = vmatpush.bf16.msra.mxu0 %v6895
        %6949 = vmatpush.bf16.msra.mxu0 %v6894
        %6950 = vmatmul.bf16.gmra.mxu0 %v6635
        %v6951 = vpop.f32.mrf.mxu0
        %v6952 = vadd.f32 0.0, %v6951
        %v6953 = vpop.f32.mrf.mxu0
        %v6954 = vadd.f32 0.0, %v6953
        %6955 = vmatmul.bf16.gmra.mxu0 %v6643
        %v6956 = vpop.f32.mrf.mxu0
        %v6957 = vadd.f32 0.0, %v6956
        %v6958 = vpop.f32.mrf.mxu0
        %v6959 = vadd.f32 0.0, %v6958
        %6960 = vmatmul.bf16.gmra.mxu0 %v6649
        %v6961 = vpop.f32.mrf.mxu0
        %v6962 = vadd.f32 0.0, %v6961
        %v6963 = vpop.f32.mrf.mxu0
        %v6964 = vadd.f32 0.0, %v6963
        %6965 = vmatmul.bf16.gmra.mxu0 %v6655
        %v6966 = vpop.f32.mrf.mxu0
        %v6967 = vadd.f32 0.0, %v6966
        %v6968 = vpop.f32.mrf.mxu0
        %v6969 = vadd.f32 0.0, %v6968
        %6970 = vmatmul.bf16.gmra.mxu0 %v6661
        %v6971 = vpop.f32.mrf.mxu0
        %v6972 = vadd.f32 0.0, %v6971
        %v6973 = vpop.f32.mrf.mxu0
        %v6974 = vadd.f32 0.0, %v6973
        %6975 = vmatmul.bf16.gmra.mxu0 %v6667
        %v6976 = vpop.f32.mrf.mxu0
        %v6977 = vadd.f32 0.0, %v6976
        %v6978 = vpop.f32.mrf.mxu0
        %v6979 = vadd.f32 0.0, %v6978
        %6980 = vmatmul.bf16.gmra.mxu0 %v6673
        %v6981 = vpop.f32.mrf.mxu0
        %v6982 = vadd.f32 0.0, %v6981
        %v6983 = vpop.f32.mrf.mxu0
        %v6984 = vadd.f32 0.0, %v6983
        %6985 = vmatmul.bf16.gmra.mxu0 %v6679
        %v6986 = vpop.f32.mrf.mxu0
        %v6987 = vadd.f32 0.0, %v6986
        %v6988 = vpop.f32.mrf.mxu0
        %v6989 = vadd.f32 0.0, %v6988
        %6990 = vmatmul.bf16.gmra.mxu0 %v6685
        %v6991 = vpop.f32.mrf.mxu0
        %v6992 = vadd.f32 0.0, %v6991
        %v6993 = vpop.f32.mrf.mxu0
        %v6994 = vadd.f32 0.0, %v6993
        %6995 = vmatmul.bf16.gmra.mxu0 %v6691
        %v6996 = vpop.f32.mrf.mxu0
        %v6997 = vadd.f32 0.0, %v6996
        %v6998 = vpop.f32.mrf.mxu0
        %v6999 = vadd.f32 0.0, %v6998
        %7000 = vmatmul.bf16.gmra.mxu0 %v6697
        %v7001 = vpop.f32.mrf.mxu0
        %v7002 = vadd.f32 0.0, %v7001
        %v7003 = vpop.f32.mrf.mxu0
        %v7004 = vadd.f32 0.0, %v7003
        %7005 = vmatmul.bf16.gmra.mxu0 %v6703
        %v7006 = vpop.f32.mrf.mxu0
        %v7007 = vadd.f32 0.0, %v7006
        %v7008 = vpop.f32.mrf.mxu0
        %v7009 = vadd.f32 0.0, %v7008
        %7010 = vmatmul.bf16.gmra.mxu0 %v6709
        %v7011 = vpop.f32.mrf.mxu0
        %v7012 = vadd.f32 0.0, %v7011
        %v7013 = vpop.f32.mrf.mxu0
        %v7014 = vadd.f32 0.0, %v7013
        %7015 = vmatmul.bf16.gmra.mxu0 %v6715
        %v7016 = vpop.f32.mrf.mxu0
        %v7017 = vadd.f32 0.0, %v7016
        %v7018 = vpop.f32.mrf.mxu0
        %v7019 = vadd.f32 0.0, %v7018
        %7020 = vmatmul.bf16.gmra.mxu0 %v6721
        %v7021 = vpop.f32.mrf.mxu0
        %v7022 = vadd.f32 0.0, %v7021
        %v7023 = vpop.f32.mrf.mxu0
        %v7024 = vadd.f32 0.0, %v7023
        %7025 = vmatmul.bf16.gmra.mxu0 %v6727
        %v7026 = vpop.f32.mrf.mxu0
        %v7027 = vadd.f32 0.0, %v7026
        %v7028 = vpop.f32.mrf.mxu0
        %v7029 = vadd.f32 0.0, %v7028
        %7030 = vmatmul.bf16.gmra.mxu0 %v6733
        %v7031 = vpop.f32.mrf.mxu0
        %v7032 = vadd.f32 0.0, %v7031
        %v7033 = vpop.f32.mrf.mxu0
        %v7034 = vadd.f32 0.0, %v7033
        %7035 = vmatmul.bf16.gmra.mxu0 %v6739
        %v7036 = vpop.f32.mrf.mxu0
        %v7037 = vadd.f32 0.0, %v7036
        %v7038 = vpop.f32.mrf.mxu0
        %v7039 = vadd.f32 0.0, %v7038
        %7040 = vdwg.mxu0
        %7041 = vmatpush.bf16.msra.mxu0 %v6909
        %7042 = vmatpush.bf16.msra.mxu0 %v6908
        %7043 = vmatpush.bf16.msra.mxu0 %v6907
        %7044 = vmatpush.bf16.msra.mxu0 %v6906
        %7045 = vmatpush.bf16.msra.mxu0 %v6905
        %7046 = vmatpush.bf16.msra.mxu0 %v6904
        %7047 = vmatpush.bf16.msra.mxu0 %v6903
        %7048 = vmatpush.bf16.msra.mxu0 %v6902
        %7049 = vmatmul.bf16.gmra.mxu0 %v6638
        %v7050 = vpop.f32.mrf.mxu0
        %v7051 = vadd.f32 %v6952, %v7050
        %v7052 = vpop.f32.mrf.mxu0
        %v7053 = vadd.f32 %v6954, %v7052
        %7054 = vmatmul.bf16.gmra.mxu0 %v6645
        %v7055 = vpop.f32.mrf.mxu0
        %v7056 = vadd.f32 %v6957, %v7055
        %v7057 = vpop.f32.mrf.mxu0
        %v7058 = vadd.f32 %v6959, %v7057
        %7059 = vmatmul.bf16.gmra.mxu0 %v6651
        %v7060 = vpop.f32.mrf.mxu0
        %v7061 = vadd.f32 %v6962, %v7060
        %v7062 = vpop.f32.mrf.mxu0
        %v7063 = vadd.f32 %v6964, %v7062
        %7064 = vmatmul.bf16.gmra.mxu0 %v6657
        %v7065 = vpop.f32.mrf.mxu0
        %v7066 = vadd.f32 %v6967, %v7065
        %v7067 = vpop.f32.mrf.mxu0
        %v7068 = vadd.f32 %v6969, %v7067
        %7069 = vmatmul.bf16.gmra.mxu0 %v6663
        %v7070 = vpop.f32.mrf.mxu0
        %v7071 = vadd.f32 %v6972, %v7070
        %v7072 = vpop.f32.mrf.mxu0
        %v7073 = vadd.f32 %v6974, %v7072
        %7074 = vmatmul.bf16.gmra.mxu0 %v6669
        %v7075 = vpop.f32.mrf.mxu0
        %v7076 = vadd.f32 %v6977, %v7075
        %v7077 = vpop.f32.mrf.mxu0
        %v7078 = vadd.f32 %v6979, %v7077
        %7079 = vmatmul.bf16.gmra.mxu0 %v6675
        %v7080 = vpop.f32.mrf.mxu0
        %v7081 = vadd.f32 %v6982, %v7080
        %v7082 = vpop.f32.mrf.mxu0
        %v7083 = vadd.f32 %v6984, %v7082
        %7084 = vmatmul.bf16.gmra.mxu0 %v6681
        %v7085 = vpop.f32.mrf.mxu0
        %v7086 = vadd.f32 %v6987, %v7085
        %v7087 = vpop.f32.mrf.mxu0
        %v7088 = vadd.f32 %v6989, %v7087
        %7089 = vmatmul.bf16.gmra.mxu0 %v6687
        %v7090 = vpop.f32.mrf.mxu0
        %v7091 = vadd.f32 %v6992, %v7090
        %v7092 = vpop.f32.mrf.mxu0
        %v7093 = vadd.f32 %v6994, %v7092
        %7094 = vmatmul.bf16.gmra.mxu0 %v6693
        %v7095 = vpop.f32.mrf.mxu0
        %v7096 = vadd.f32 %v6997, %v7095
        %v7097 = vpop.f32.mrf.mxu0
        %v7098 = vadd.f32 %v6999, %v7097
        %7099 = vmatmul.bf16.gmra.mxu0 %v6699
        %v7100 = vpop.f32.mrf.mxu0
        %v7101 = vadd.f32 %v7002, %v7100
        %v7102 = vpop.f32.mrf.mxu0
        %v7103 = vadd.f32 %v7004, %v7102
        %7104 = vmatmul.bf16.gmra.mxu0 %v6705
        %v7105 = vpop.f32.mrf.mxu0
        %v7106 = vadd.f32 %v7007, %v7105
        %v7107 = vpop.f32.mrf.mxu0
        %v7108 = vadd.f32 %v7009, %v7107
        %7109 = vmatmul.bf16.gmra.mxu0 %v6711
        %v7110 = vpop.f32.mrf.mxu0
        %v7111 = vadd.f32 %v7012, %v7110
        %v7112 = vpop.f32.mrf.mxu0
        %v7113 = vadd.f32 %v7014, %v7112
        %7114 = vmatmul.bf16.gmra.mxu0 %v6717
        %v7115 = vpop.f32.mrf.mxu0
        %v7116 = vadd.f32 %v7017, %v7115
        %v7117 = vpop.f32.mrf.mxu0
        %v7118 = vadd.f32 %v7019, %v7117
        %7119 = vmatmul.bf16.gmra.mxu0 %v6723
        %v7120 = vpop.f32.mrf.mxu0
        %v7121 = vadd.f32 %v7022, %v7120
        %v7122 = vpop.f32.mrf.mxu0
        %v7123 = vadd.f32 %v7024, %v7122
        %7124 = vmatmul.bf16.gmra.mxu0 %v6729
        %v7125 = vpop.f32.mrf.mxu0
        %v7126 = vadd.f32 %v7027, %v7125
        %v7127 = vpop.f32.mrf.mxu0
        %v7128 = vadd.f32 %v7029, %v7127
        %7129 = vmatmul.bf16.gmra.mxu0 %v6735
        %v7130 = vpop.f32.mrf.mxu0
        %v7131 = vadd.f32 %v7032, %v7130
        %v7132 = vpop.f32.mrf.mxu0
        %v7133 = vadd.f32 %v7034, %v7132
        %7134 = vmatmul.bf16.gmra.mxu0 %v6741
        %v7135 = vpop.f32.mrf.mxu0
        %v7136 = vadd.f32 %v7037, %v7135
        %v7137 = vpop.f32.mrf.mxu0
        %v7138 = vadd.f32 %v7039, %v7137
        %7139 = vdwg.mxu0
        %7140 = vmatpush.bf16.msra.mxu0 %v6917
        %7141 = vmatpush.bf16.msra.mxu0 %v6916
        %7142 = vmatpush.bf16.msra.mxu0 %v6915
        %7143 = vmatpush.bf16.msra.mxu0 %v6914
        %7144 = vmatpush.bf16.msra.mxu0 %v6913
        %7145 = vmatpush.bf16.msra.mxu0 %v6912
        %7146 = vmatpush.bf16.msra.mxu0 %v6911
        %7147 = vmatpush.bf16.msra.mxu0 %v6910
        %7148 = vmatmul.bf16.gmra.mxu0 %v6641
        %v7149 = vpop.f32.mrf.mxu0
        %v7150 = vadd.f32 %v7051, %v7149
        %v7151 = vpop.f32.mrf.mxu0
        %v7152 = vadd.f32 %v7053, %v7151
        %7153 = vmatmul.bf16.gmra.mxu0 %v6647
        %v7154 = vpop.f32.mrf.mxu0
        %v7155 = vadd.f32 %v7056, %v7154
        %v7156 = vpop.f32.mrf.mxu0
        %v7157 = vadd.f32 %v7058, %v7156
        %7158 = vmatmul.bf16.gmra.mxu0 %v6653
        %v7159 = vpop.f32.mrf.mxu0
        %v7160 = vadd.f32 %v7061, %v7159
        %v7161 = vpop.f32.mrf.mxu0
        %v7162 = vadd.f32 %v7063, %v7161
        %7163 = vmatmul.bf16.gmra.mxu0 %v6659
        %v7164 = vpop.f32.mrf.mxu0
        %v7165 = vadd.f32 %v7066, %v7164
        %v7166 = vpop.f32.mrf.mxu0
        %v7167 = vadd.f32 %v7068, %v7166
        %7168 = vmatmul.bf16.gmra.mxu0 %v6665
        %v7169 = vpop.f32.mrf.mxu0
        %v7170 = vadd.f32 %v7071, %v7169
        %v7171 = vpop.f32.mrf.mxu0
        %v7172 = vadd.f32 %v7073, %v7171
        %7173 = vmatmul.bf16.gmra.mxu0 %v6671
        %v7174 = vpop.f32.mrf.mxu0
        %v7175 = vadd.f32 %v7076, %v7174
        %v7176 = vpop.f32.mrf.mxu0
        %v7177 = vadd.f32 %v7078, %v7176
        %7178 = vmatmul.bf16.gmra.mxu0 %v6677
        %v7179 = vpop.f32.mrf.mxu0
        %v7180 = vadd.f32 %v7081, %v7179
        %v7181 = vpop.f32.mrf.mxu0
        %v7182 = vadd.f32 %v7083, %v7181
        %7183 = vmatmul.bf16.gmra.mxu0 %v6683
        %v7184 = vpop.f32.mrf.mxu0
        %v7185 = vadd.f32 %v7086, %v7184
        %v7186 = vpop.f32.mrf.mxu0
        %v7187 = vadd.f32 %v7088, %v7186
        %7188 = vmatmul.bf16.gmra.mxu0 %v6689
        %v7189 = vpop.f32.mrf.mxu0
        %v7190 = vadd.f32 %v7091, %v7189
        %v7191 = vpop.f32.mrf.mxu0
        %v7192 = vadd.f32 %v7093, %v7191
        %7193 = vmatmul.bf16.gmra.mxu0 %v6695
        %v7194 = vpop.f32.mrf.mxu0
        %v7195 = vadd.f32 %v7096, %v7194
        %v7196 = vpop.f32.mrf.mxu0
        %v7197 = vadd.f32 %v7098, %v7196
        %7198 = vmatmul.bf16.gmra.mxu0 %v6701
        %v7199 = vpop.f32.mrf.mxu0
        %v7200 = vadd.f32 %v7101, %v7199
        %v7201 = vpop.f32.mrf.mxu0
        %v7202 = vadd.f32 %v7103, %v7201
        %7203 = vmatmul.bf16.gmra.mxu0 %v6707
        %v7204 = vpop.f32.mrf.mxu0
        %v7205 = vadd.f32 %v7106, %v7204
        %v7206 = vpop.f32.mrf.mxu0
        %v7207 = vadd.f32 %v7108, %v7206
        %7208 = vmatmul.bf16.gmra.mxu0 %v6713
        %v7209 = vpop.f32.mrf.mxu0
        %v7210 = vadd.f32 %v7111, %v7209
        %v7211 = vpop.f32.mrf.mxu0
        %v7212 = vadd.f32 %v7113, %v7211
        %7213 = vmatmul.bf16.gmra.mxu0 %v6719
        %v7214 = vpop.f32.mrf.mxu0
        %v7215 = vadd.f32 %v7116, %v7214
        %v7216 = vpop.f32.mrf.mxu0
        %v7217 = vadd.f32 %v7118, %v7216
        %7218 = vmatmul.bf16.gmra.mxu0 %v6725
        %v7219 = vpop.f32.mrf.mxu0
        %v7220 = vadd.f32 %v7121, %v7219
        %v7221 = vpop.f32.mrf.mxu0
        %v7222 = vadd.f32 %v7123, %v7221
        %7223 = vmatmul.bf16.gmra.mxu0 %v6731
        %v7224 = vpop.f32.mrf.mxu0
        %v7225 = vadd.f32 %v7126, %v7224
        %v7226 = vpop.f32.mrf.mxu0
        %v7227 = vadd.f32 %v7128, %v7226
        %7228 = vmatmul.bf16.gmra.mxu0 %v6737
        %v7229 = vpop.f32.mrf.mxu0
        %v7230 = vadd.f32 %v7131, %v7229
        %v7231 = vpop.f32.mrf.mxu0
        %v7232 = vadd.f32 %v7133, %v7231
        %7233 = vmatmul.bf16.gmra.mxu0 %v6743
        %v7234 = vpop.f32.mrf.mxu0
        %v7235 = vadd.f32 %v7136, %v7234
        %v7236 = vpop.f32.mrf.mxu0
        %v7237 = vadd.f32 %v7138, %v7236
        %7238 = vdwg.mxu0
        %v7245 = vunpack.c.l.b16 %v6214
        %v7246 = vunpack.c.h.b16 %v6214
        %v7247 = vunpack.c.l.b16 %v6215
        %v7248 = vunpack.c.l.b16 %v6216
        %v7249 = vunpack.c.h.b16 %v6216
        %v7250 = vunpack.c.l.b16 %v6217
        %v7251 = vunpack.c.l.b16 %v6218
        %v7252 = vunpack.c.h.b16 %v6218
        %v7253 = vunpack.c.l.b16 %v6219
        %v7254 = vpack.c.b16 %v7248, %v7245
        %v7255 = vpack.c.b16 %v7249, %v7246
        %v7256 = vpack.c.b16 %v7250, %v7247
        %v7257 = vpack.c.b16 %v6468, %v7251
        %v7258 = vpack.c.b16 %v6469, %v7252
        %v7259 = vpack.c.b16 %v6470, %v7253
        %v7362 = vunpack.c.l.b16 %v6286
        %v7363 = vunpack.c.l.b16 %v6287
        %v7364 = vunpack.c.l.b16 %v6288
        %v7365 = vunpack.c.l.b16 %v6289
        %v7366 = vunpack.c.l.b16 %v6290
        %v7367 = vunpack.c.l.b16 %v6291
        %v7368 = vunpack.c.l.b16 %v6292
        %v7369 = vunpack.c.l.b16 %v6293
        %v7370 = vunpack.c.l.b16 %v6294
        %v7371 = vunpack.c.l.b16 %v6295
        %v7372 = vunpack.c.l.b16 %v6296
        %v7373 = vunpack.c.l.b16 %v6297
        %v7374 = vunpack.c.l.b16 %v6298
        %v7375 = vunpack.c.l.b16 %v6299
        %v7376 = vunpack.c.l.b16 %v6300
        %v7377 = vunpack.c.l.b16 %v6301
        %v7378 = vunpack.c.l.b16 %v6302
        %v7379 = vunpack.c.l.b16 %v6303
        %v7380 = vunpack.c.l.b16 %v6304
        %v7381 = vunpack.c.l.b16 %v6305
        %v7382 = vunpack.c.l.b16 %v6306
        %v7383 = vunpack.c.l.b16 %v6307
        %v7384 = vunpack.c.l.b16 %v6308
        %v7385 = vunpack.c.l.b16 %v6309
        %v7386 = vunpack.c.l.b16 %v6310
        %v7387 = vunpack.c.l.b16 %v6311
        %v7388 = vunpack.c.l.b16 %v6312
        %v7389 = vunpack.c.l.b16 %v6313
        %v7390 = vunpack.c.l.b16 %v6314
        %v7391 = vunpack.c.l.b16 %v6315
        %v7392 = vunpack.c.l.b16 %v6316
        %v7393 = vunpack.c.l.b16 %v6317
        %v7394 = vunpack.c.l.b16 %v6318
        %v7395 = vunpack.c.l.b16 %v6319
        %v7396 = vunpack.c.l.b16 %v6320
        %v7397 = vunpack.c.l.b16 %v6321
        %v7398 = vunpack.c.l.b16 %v6322
        %v7399 = vunpack.c.l.b16 %v6323
        %v7400 = vunpack.c.l.b16 %v6324
        %v7401 = vunpack.c.l.b16 %v6325
        %v7402 = vunpack.c.l.b16 %v6326
        %v7403 = vunpack.c.l.b16 %v6327
        %v7404 = vunpack.c.l.b16 %v6328
        %v7405 = vunpack.c.l.b16 %v6329
        %v7406 = vunpack.c.l.b16 %v6330
        %v7407 = vunpack.c.l.b16 %v6331
        %v7408 = vunpack.c.l.b16 %v6332
        %v7409 = vunpack.c.l.b16 %v6333
        %v7410 = vpack.c.b16 %v7363, %v7362
        %v7411 = vpack.c.b16 %v7365, %v7364
        %v7412 = vpack.c.b16 %v7367, %v7366
        %v7413 = vpack.c.b16 %v7369, %v7368
        %v7414 = vpack.c.b16 %v7371, %v7370
        %v7415 = vpack.c.b16 %v7373, %v7372
        %v7416 = vpack.c.b16 %v7375, %v7374
        %v7417 = vpack.c.b16 %v7377, %v7376
        %v7418 = vpack.c.b16 %v7379, %v7378
        %v7419 = vpack.c.b16 %v7381, %v7380
        %v7420 = vpack.c.b16 %v7383, %v7382
        %v7421 = vpack.c.b16 %v7385, %v7384
        %v7422 = vpack.c.b16 %v7387, %v7386
        %v7423 = vpack.c.b16 %v7389, %v7388
        %v7424 = vpack.c.b16 %v7391, %v7390
        %v7425 = vpack.c.b16 %v7393, %v7392
        %v7426 = vpack.c.b16 %v7395, %v7394
        %v7427 = vpack.c.b16 %v7397, %v7396
        %v7428 = vpack.c.b16 %v7399, %v7398
        %v7429 = vpack.c.b16 %v7401, %v7400
        %v7430 = vpack.c.b16 %v7403, %v7402
        %v7431 = vpack.c.b16 %v7405, %v7404
        %v7432 = vpack.c.b16 %v7407, %v7406
        %v7433 = vpack.c.b16 %v7409, %v7408
        %7458 = vmatpush.bf16.msra.mxu0 %v7417
        %7459 = vmatpush.bf16.msra.mxu0 %v7416
        %7460 = vmatpush.bf16.msra.mxu0 %v7415
        %7461 = vmatpush.bf16.msra.mxu0 %v7414
        %7462 = vmatpush.bf16.msra.mxu0 %v7413
        %7463 = vmatpush.bf16.msra.mxu0 %v7412
        %7464 = vmatpush.bf16.msra.mxu0 %v7411
        %7465 = vmatpush.bf16.msra.mxu0 %v7410
        %7466 = vmatmul.bf16.gmra.mxu0 %v7254
        %v7467 = vpop.f32.mrf.mxu0
        %v7468 = vadd.f32 %v7150, %v7467
        %v7469 = vpop.f32.mrf.mxu0
        %v7470 = vadd.f32 %v7152, %v7469
        %7471 = vmatmul.bf16.gmra.mxu0 %v7257
        %v7472 = vpop.f32.mrf.mxu0
        %v7473 = vadd.f32 %v7155, %v7472
        %v7474 = vpop.f32.mrf.mxu0
        %v7475 = vadd.f32 %v7157, %v7474
        %7476 = vmatmul.bf16.gmra.mxu0 %v6579
        %v7477 = vpop.f32.mrf.mxu0
        %v7478 = vadd.f32 %v7160, %v7477
        %v7479 = vpop.f32.mrf.mxu0
        %v7480 = vadd.f32 %v7162, %v7479
        %7481 = vmatmul.bf16.gmra.mxu0 %v6582
        %v7482 = vpop.f32.mrf.mxu0
        %v7483 = vadd.f32 %v7165, %v7482
        %v7484 = vpop.f32.mrf.mxu0
        %v7485 = vadd.f32 %v7167, %v7484
        %7486 = vmatmul.bf16.gmra.mxu0 %v6585
        %v7487 = vpop.f32.mrf.mxu0
        %v7488 = vadd.f32 %v7170, %v7487
        %v7489 = vpop.f32.mrf.mxu0
        %v7490 = vadd.f32 %v7172, %v7489
        %7491 = vmatmul.bf16.gmra.mxu0 %v6588
        %v7492 = vpop.f32.mrf.mxu0
        %v7493 = vadd.f32 %v7175, %v7492
        %v7494 = vpop.f32.mrf.mxu0
        %v7495 = vadd.f32 %v7177, %v7494
        %7496 = vmatmul.bf16.gmra.mxu0 %v6591
        %v7497 = vpop.f32.mrf.mxu0
        %v7498 = vadd.f32 %v7180, %v7497
        %v7499 = vpop.f32.mrf.mxu0
        %v7500 = vadd.f32 %v7182, %v7499
        %7501 = vmatmul.bf16.gmra.mxu0 %v6594
        %v7502 = vpop.f32.mrf.mxu0
        %v7503 = vadd.f32 %v7185, %v7502
        %v7504 = vpop.f32.mrf.mxu0
        %v7505 = vadd.f32 %v7187, %v7504
        %7506 = vmatmul.bf16.gmra.mxu0 %v6597
        %v7507 = vpop.f32.mrf.mxu0
        %v7508 = vadd.f32 %v7190, %v7507
        %v7509 = vpop.f32.mrf.mxu0
        %v7510 = vadd.f32 %v7192, %v7509
        %7511 = vmatmul.bf16.gmra.mxu0 %v6600
        %v7512 = vpop.f32.mrf.mxu0
        %v7513 = vadd.f32 %v7195, %v7512
        %v7514 = vpop.f32.mrf.mxu0
        %v7515 = vadd.f32 %v7197, %v7514
        %7516 = vmatmul.bf16.gmra.mxu0 %v6603
        %v7517 = vpop.f32.mrf.mxu0
        %v7518 = vadd.f32 %v7200, %v7517
        %v7519 = vpop.f32.mrf.mxu0
        %v7520 = vadd.f32 %v7202, %v7519
        %7521 = vmatmul.bf16.gmra.mxu0 %v6606
        %v7522 = vpop.f32.mrf.mxu0
        %v7523 = vadd.f32 %v7205, %v7522
        %v7524 = vpop.f32.mrf.mxu0
        %v7525 = vadd.f32 %v7207, %v7524
        %7526 = vmatmul.bf16.gmra.mxu0 %v6609
        %v7527 = vpop.f32.mrf.mxu0
        %v7528 = vadd.f32 %v7210, %v7527
        %v7529 = vpop.f32.mrf.mxu0
        %v7530 = vadd.f32 %v7212, %v7529
        %7531 = vmatmul.bf16.gmra.mxu0 %v6612
        %v7532 = vpop.f32.mrf.mxu0
        %v7533 = vadd.f32 %v7215, %v7532
        %v7534 = vpop.f32.mrf.mxu0
        %v7535 = vadd.f32 %v7217, %v7534
        %7536 = vmatmul.bf16.gmra.mxu0 %v6615
        %v7537 = vpop.f32.mrf.mxu0
        %v7538 = vadd.f32 %v7220, %v7537
        %v7539 = vpop.f32.mrf.mxu0
        %v7540 = vadd.f32 %v7222, %v7539
        %7541 = vmatmul.bf16.gmra.mxu0 %v6618
        %v7542 = vpop.f32.mrf.mxu0
        %v7543 = vadd.f32 %v7225, %v7542
        %v7544 = vpop.f32.mrf.mxu0
        %v7545 = vadd.f32 %v7227, %v7544
        %7546 = vmatmul.bf16.gmra.mxu0 %v6621
        %v7547 = vpop.f32.mrf.mxu0
        %v7548 = vadd.f32 %v7230, %v7547
        %v7549 = vpop.f32.mrf.mxu0
        %v7550 = vadd.f32 %v7232, %v7549
        %7551 = vmatmul.bf16.gmra.mxu0 %v6624
        %v7552 = vpop.f32.mrf.mxu0
        %v7553 = vadd.f32 %v7235, %v7552
        %v7554 = vpop.f32.mrf.mxu0
        %v7555 = vadd.f32 %v7237, %v7554
        %7556 = vdwg.mxu0
        %7557 = vmatpush.bf16.msra.mxu0 %v7425
        %7558 = vmatpush.bf16.msra.mxu0 %v7424
        %7559 = vmatpush.bf16.msra.mxu0 %v7423
        %7560 = vmatpush.bf16.msra.mxu0 %v7422
        %7561 = vmatpush.bf16.msra.mxu0 %v7421
        %7562 = vmatpush.bf16.msra.mxu0 %v7420
        %7563 = vmatpush.bf16.msra.mxu0 %v7419
        %7564 = vmatpush.bf16.msra.mxu0 %v7418
        %7565 = vmatmul.bf16.gmra.mxu0 %v7255
        %v7566 = vpop.f32.mrf.mxu0
        %v7567 = vadd.f32 %v7468, %v7566
        %v7568 = vpop.f32.mrf.mxu0
        %v7569 = vadd.f32 %v7470, %v7568
        %7570 = vmatmul.bf16.gmra.mxu0 %v7258
        %v7571 = vpop.f32.mrf.mxu0
        %v7572 = vadd.f32 %v7473, %v7571
        %v7573 = vpop.f32.mrf.mxu0
        %v7574 = vadd.f32 %v7475, %v7573
        %7575 = vmatmul.bf16.gmra.mxu0 %v6580
        %v7576 = vpop.f32.mrf.mxu0
        %v7577 = vadd.f32 %v7478, %v7576
        %v7578 = vpop.f32.mrf.mxu0
        %v7579 = vadd.f32 %v7480, %v7578
        %7580 = vmatmul.bf16.gmra.mxu0 %v6583
        %v7581 = vpop.f32.mrf.mxu0
        %v7582 = vadd.f32 %v7483, %v7581
        %v7583 = vpop.f32.mrf.mxu0
        %v7584 = vadd.f32 %v7485, %v7583
        %7585 = vmatmul.bf16.gmra.mxu0 %v6586
        %v7586 = vpop.f32.mrf.mxu0
        %v7587 = vadd.f32 %v7488, %v7586
        %v7588 = vpop.f32.mrf.mxu0
        %v7589 = vadd.f32 %v7490, %v7588
        %7590 = vmatmul.bf16.gmra.mxu0 %v6589
        %v7591 = vpop.f32.mrf.mxu0
        %v7592 = vadd.f32 %v7493, %v7591
        %v7593 = vpop.f32.mrf.mxu0
        %v7594 = vadd.f32 %v7495, %v7593
        %7595 = vmatmul.bf16.gmra.mxu0 %v6592
        %v7596 = vpop.f32.mrf.mxu0
        %v7597 = vadd.f32 %v7498, %v7596
        %v7598 = vpop.f32.mrf.mxu0
        %v7599 = vadd.f32 %v7500, %v7598
        %7600 = vmatmul.bf16.gmra.mxu0 %v6595
        %v7601 = vpop.f32.mrf.mxu0
        %v7602 = vadd.f32 %v7503, %v7601
        %v7603 = vpop.f32.mrf.mxu0
        %v7604 = vadd.f32 %v7505, %v7603
        %7605 = vmatmul.bf16.gmra.mxu0 %v6598
        %v7606 = vpop.f32.mrf.mxu0
        %v7607 = vadd.f32 %v7508, %v7606
        %v7608 = vpop.f32.mrf.mxu0
        %v7609 = vadd.f32 %v7510, %v7608
        %7610 = vmatmul.bf16.gmra.mxu0 %v6601
        %v7611 = vpop.f32.mrf.mxu0
        %v7612 = vadd.f32 %v7513, %v7611
        %v7613 = vpop.f32.mrf.mxu0
        %v7614 = vadd.f32 %v7515, %v7613
        %7615 = vmatmul.bf16.gmra.mxu0 %v6604
        %v7616 = vpop.f32.mrf.mxu0
        %v7617 = vadd.f32 %v7518, %v7616
        %v7618 = vpop.f32.mrf.mxu0
        %v7619 = vadd.f32 %v7520, %v7618
        %7620 = vmatmul.bf16.gmra.mxu0 %v6607
        %v7621 = vpop.f32.mrf.mxu0
        %v7622 = vadd.f32 %v7523, %v7621
        %v7623 = vpop.f32.mrf.mxu0
        %v7624 = vadd.f32 %v7525, %v7623
        %7625 = vmatmul.bf16.gmra.mxu0 %v6610
        %v7626 = vpop.f32.mrf.mxu0
        %v7627 = vadd.f32 %v7528, %v7626
        %v7628 = vpop.f32.mrf.mxu0
        %v7629 = vadd.f32 %v7530, %v7628
        %7630 = vmatmul.bf16.gmra.mxu0 %v6613
        %v7631 = vpop.f32.mrf.mxu0
        %v7632 = vadd.f32 %v7533, %v7631
        %v7633 = vpop.f32.mrf.mxu0
        %v7634 = vadd.f32 %v7535, %v7633
        %7635 = vmatmul.bf16.gmra.mxu0 %v6616
        %v7636 = vpop.f32.mrf.mxu0
        %v7637 = vadd.f32 %v7538, %v7636
        %v7638 = vpop.f32.mrf.mxu0
        %v7639 = vadd.f32 %v7540, %v7638
        %7640 = vmatmul.bf16.gmra.mxu0 %v6619
        %v7641 = vpop.f32.mrf.mxu0
        %v7642 = vadd.f32 %v7543, %v7641
        %v7643 = vpop.f32.mrf.mxu0
        %v7644 = vadd.f32 %v7545, %v7643
        %7645 = vmatmul.bf16.gmra.mxu0 %v6622
        %v7646 = vpop.f32.mrf.mxu0
        %v7647 = vadd.f32 %v7548, %v7646
        %v7648 = vpop.f32.mrf.mxu0
        %v7649 = vadd.f32 %v7550, %v7648
        %7650 = vmatmul.bf16.gmra.mxu0 %v6625
        %v7651 = vpop.f32.mrf.mxu0
        %v7652 = vadd.f32 %v7553, %v7651
        %v7653 = vpop.f32.mrf.mxu0
        %v7654 = vadd.f32 %v7555, %v7653
        %7655 = vdwg.mxu0
        %7656 = vmatpush.bf16.msra.mxu0 %v7433
        %7657 = vmatpush.bf16.msra.mxu0 %v7432
        %7658 = vmatpush.bf16.msra.mxu0 %v7431
        %7659 = vmatpush.bf16.msra.mxu0 %v7430
        %7660 = vmatpush.bf16.msra.mxu0 %v7429
        %7661 = vmatpush.bf16.msra.mxu0 %v7428
        %7662 = vmatpush.bf16.msra.mxu0 %v7427
        %7663 = vmatpush.bf16.msra.mxu0 %v7426
        %7664 = vmatmul.bf16.gmra.mxu0 %v7256
        %v7665 = vpop.f32.mrf.mxu0
        %v7666 = vadd.f32 %v7567, %v7665
        %v7667 = vpop.f32.mrf.mxu0
        %v7668 = vadd.f32 %v7569, %v7667
        %7669 = vmatmul.bf16.gmra.mxu0 %v7259
        %v7670 = vpop.f32.mrf.mxu0
        %v7671 = vadd.f32 %v7572, %v7670
        %v7672 = vpop.f32.mrf.mxu0
        %v7673 = vadd.f32 %v7574, %v7672
        %7674 = vmatmul.bf16.gmra.mxu0 %v6581
        %v7675 = vpop.f32.mrf.mxu0
        %v7676 = vadd.f32 %v7577, %v7675
        %v7677 = vpop.f32.mrf.mxu0
        %v7678 = vadd.f32 %v7579, %v7677
        %7679 = vmatmul.bf16.gmra.mxu0 %v6584
        %v7680 = vpop.f32.mrf.mxu0
        %v7681 = vadd.f32 %v7582, %v7680
        %v7682 = vpop.f32.mrf.mxu0
        %v7683 = vadd.f32 %v7584, %v7682
        %7684 = vmatmul.bf16.gmra.mxu0 %v6587
        %v7685 = vpop.f32.mrf.mxu0
        %v7686 = vadd.f32 %v7587, %v7685
        %v7687 = vpop.f32.mrf.mxu0
        %v7688 = vadd.f32 %v7589, %v7687
        %7689 = vmatmul.bf16.gmra.mxu0 %v6590
        %v7690 = vpop.f32.mrf.mxu0
        %v7691 = vadd.f32 %v7592, %v7690
        %v7692 = vpop.f32.mrf.mxu0
        %v7693 = vadd.f32 %v7594, %v7692
        %7694 = vmatmul.bf16.gmra.mxu0 %v6593
        %v7695 = vpop.f32.mrf.mxu0
        %v7696 = vadd.f32 %v7597, %v7695
        %v7697 = vpop.f32.mrf.mxu0
        %v7698 = vadd.f32 %v7599, %v7697
        %7699 = vmatmul.bf16.gmra.mxu0 %v6596
        %v7700 = vpop.f32.mrf.mxu0
        %v7701 = vadd.f32 %v7602, %v7700
        %v7702 = vpop.f32.mrf.mxu0
        %v7703 = vadd.f32 %v7604, %v7702
        %7704 = vmatmul.bf16.gmra.mxu0 %v6599
        %v7705 = vpop.f32.mrf.mxu0
        %v7706 = vadd.f32 %v7607, %v7705
        %v7707 = vpop.f32.mrf.mxu0
        %v7708 = vadd.f32 %v7609, %v7707
        %7709 = vmatmul.bf16.gmra.mxu0 %v6602
        %v7710 = vpop.f32.mrf.mxu0
        %v7711 = vadd.f32 %v7612, %v7710
        %v7712 = vpop.f32.mrf.mxu0
        %v7713 = vadd.f32 %v7614, %v7712
        %7714 = vmatmul.bf16.gmra.mxu0 %v6605
        %v7715 = vpop.f32.mrf.mxu0
        %v7716 = vadd.f32 %v7617, %v7715
        %v7717 = vpop.f32.mrf.mxu0
        %v7718 = vadd.f32 %v7619, %v7717
        %7719 = vmatmul.bf16.gmra.mxu0 %v6608
        %v7720 = vpop.f32.mrf.mxu0
        %v7721 = vadd.f32 %v7622, %v7720
        %v7722 = vpop.f32.mrf.mxu0
        %v7723 = vadd.f32 %v7624, %v7722
        %7724 = vmatmul.bf16.gmra.mxu0 %v6611
        %v7725 = vpop.f32.mrf.mxu0
        %v7726 = vadd.f32 %v7627, %v7725
        %v7727 = vpop.f32.mrf.mxu0
        %v7728 = vadd.f32 %v7629, %v7727
        %7729 = vmatmul.bf16.gmra.mxu0 %v6614
        %v7730 = vpop.f32.mrf.mxu0
        %v7731 = vadd.f32 %v7632, %v7730
        %v7732 = vpop.f32.mrf.mxu0
        %v7733 = vadd.f32 %v7634, %v7732
        %7734 = vmatmul.bf16.gmra.mxu0 %v6617
        %v7735 = vpop.f32.mrf.mxu0
        %v7736 = vadd.f32 %v7637, %v7735
        %v7737 = vpop.f32.mrf.mxu0
        %v7738 = vadd.f32 %v7639, %v7737
        %7739 = vmatmul.bf16.gmra.mxu0 %v6620
        %v7740 = vpop.f32.mrf.mxu0
        %v7741 = vadd.f32 %v7642, %v7740
        %v7742 = vpop.f32.mrf.mxu0
        %v7743 = vadd.f32 %v7644, %v7742
        %7744 = vmatmul.bf16.gmra.mxu0 %v6623
        %v7745 = vpop.f32.mrf.mxu0
        %v7746 = vadd.f32 %v7647, %v7745
        %v7747 = vpop.f32.mrf.mxu0
        %v7748 = vadd.f32 %v7649, %v7747
        %7749 = vmatmul.bf16.gmra.mxu0 %v6626
        %v7750 = vpop.f32.mrf.mxu0
        %v7751 = vadd.f32 %v7652, %v7750
        %v7752 = vpop.f32.mrf.mxu0
        %v7753 = vadd.f32 %v7654, %v7752
        %7754 = vdwg.mxu0
        %v7755 = vld [vmem:[#allocation2 + $0x30] sm:$0xcc]
        %v7756 = vld [vmem:[#allocation2 + $0x38] sm:$0xc]
        %v7757 = vld [vmem:[#allocation2 + $0x3c] sm:$0xff]
        %v7758 = vld [vmem:[#allocation2 + $0x44] sm:$0xf]
        %v7759 = vld [vmem:[#allocation2 + $0x48] sm:$0xff]
        %v7760 = vld [vmem:[#allocation2 + $0x50] sm:$0xf]
        %v7761 = vld [vmem:[#allocation2 + $0x54] sm:$0xff]
        %v7762 = vld [vmem:[#allocation2 + $0x5c] sm:$0xf]
        %v7763 = vld [vmem:[#allocation2 + $0x60] sm:$0xff]
        %v7764 = vld [vmem:[#allocation2 + $0x68] sm:$0xf]
        %v7765 = vld [vmem:[#allocation2 + $0x6c] sm:$0xff]
        %v7766 = vld [vmem:[#allocation2 + $0x74] sm:$0xf]
        %v7767 = vld [vmem:[#allocation2 + $0x78] sm:$0xff]
        %v7768 = vld [vmem:[#allocation2 + $0x80] sm:$0xf]
        %v7769 = vld [vmem:[#allocation2 + $0x84] sm:$0xff]
        %v7770 = vld [vmem:[#allocation2 + $0x8c] sm:$0xf]
        %v7771 = vld [vmem:[#allocation2 + $0x90] sm:$0xff]
        %v7772 = vld [vmem:[#allocation2 + $0x98] sm:$0xf]
        %v7773 = vld [vmem:[#allocation2 + $0x9c] sm:$0xff]
        %v7774 = vld [vmem:[#allocation2 + $0xa4] sm:$0xf]
        %v7775 = vld [vmem:[#allocation2 + $0xa8] sm:$0xff]
        %v7776 = vld [vmem:[#allocation2 + $0xb0] sm:$0xf]
        %v7777 = vld [vmem:[#allocation2 + $0xb4] sm:$0xff]
        %v7778 = vld [vmem:[#allocation2 + $0xbc] sm:$0xf]
        %v7779 = vld [vmem:[#allocation2 + $0xc0] sm:$0xff]
        %v7780 = vld [vmem:[#allocation2 + $0xc8] sm:$0xf]
        %v7781 = vld [vmem:[#allocation2 + $0xcc] sm:$0xff]
        %v7782 = vld [vmem:[#allocation2 + $0xd4] sm:$0xf]
        %v7783 = vld [vmem:[#allocation2 + $0xd8] sm:$0xff]
        %v7784 = vld [vmem:[#allocation2 + $0xe0] sm:$0xf]
        %v7785 = vld [vmem:[#allocation2 + $0xe4] sm:$0xff]
        %v7786 = vld [vmem:[#allocation2 + $0xec] sm:$0xf]
        %v7787 = vld [vmem:[#allocation2 + $0xf0] sm:$0xff]
        %v7788 = vld [vmem:[#allocation2 + $0xf8] sm:$0xf]
        %v7789 = vld [vmem:[#allocation2 + $0xfc] sm:$0xff]
        %v7790 = vld [vmem:[#allocation2 + $0x104] sm:$0xf]
        %v7791 = vld [vmem:[#allocation2 + $0x108] sm:$0xff]
        %v7792 = vld [vmem:[#allocation2 + $0x110] sm:$0xf]
        %v7793 = vld [vmem:[#allocation2 + $0x114] sm:$0xff]
        %v7794 = vld [vmem:[#allocation2 + $0x11c] sm:$0xf]
        %v7795 = vld [vmem:[#allocation2 + $0x120] sm:$0xff]
        %v7796 = vld [vmem:[#allocation2 + $0x128] sm:$0xf]
        %v7797 = vld [vmem:[#allocation2 + $0x12c] sm:$0xff]
        %v7798 = vld [vmem:[#allocation2 + $0x134] sm:$0xf]
        %v7799 = vld [vmem:[#allocation2 + $0x138] sm:$0xff]
        %v7800 = vld [vmem:[#allocation2 + $0x140] sm:$0xf]
        %v7801 = vld [vmem:[#allocation2 + $0x144] sm:$0xff]
        %v7802 = vld [vmem:[#allocation2 + $0x14c] sm:$0xf]
        %v7803 = vld [vmem:[#allocation2 + $0x150] sm:$0xff]
        %v7804 = vld [vmem:[#allocation2 + $0x158] sm:$0xf]
        %v7805 = vld [vmem:[#allocation2 + $0x15c] sm:$0xff]
        %v7806 = vld [vmem:[#allocation2 + $0x164] sm:$0xf]
        %v7807 = vld [vmem:[#allocation2 + $0x168] sm:$0xff]
        %v7808 = vld [vmem:[#allocation2 + $0x170] sm:$0xf]
        %v7809 = vld [vmem:[#allocation2 + $0x174] sm:$0xff]
        %v7810 = vld [vmem:[#allocation2 + $0x17c] sm:$0xf]
        %v7811 = vld [vmem:[#allocation2 + $0x180] sm:$0xff]
        %v7812 = vld [vmem:[#allocation2 + $0x188] sm:$0xf]
        %v7813 = vld [vmem:[#allocation2 + $0x18c] sm:$0xff]
        %v7814 = vld [vmem:[#allocation2 + $0x194] sm:$0xf]
        %v7815 = vld [vmem:[#allocation2 + $0x198] sm:$0xff]
        %v7816 = vld [vmem:[#allocation2 + $0x1a0] sm:$0xf]
        %v7817 = vld [vmem:[#allocation2 + $0x1a4] sm:$0xff]
        %v7818 = vld [vmem:[#allocation2 + $0x1ac] sm:$0xf]
        %v7819 = vld [vmem:[#allocation2 + $0x1b0] sm:$0xff]
        %v7820 = vld [vmem:[#allocation2 + $0x1b8] sm:$0xf]
        %v7821 = vld [vmem:[#allocation2 + $0x1bc] sm:$0xff]
        %v7822 = vld [vmem:[#allocation2 + $0x1c4] sm:$0xf]
        %v7823 = vld [vmem:[#allocation2 + $0x1c8] sm:$0xff]
        %v7824 = vld [vmem:[#allocation2 + $0x1d0] sm:$0xf]
        %v7825 = vld [vmem:[#allocation2 + $0x1d4] sm:$0xff]
        %v7826 = vld [vmem:[#allocation2 + $0x1dc] sm:$0xf]
        %v7827 = vld [vmem:[#allocation2 + $0x1e0] sm:$0x33]
        %v7828 = vld [vmem:[#allocation2 + $0x1e8] sm:$0x3]
        %s7829 = scalar_lea.vmem [#allocation8], 384
        %v7830 = vld [vmem:[%s7829] sm:$0xf]
        %v7831 = vld [vmem:[%s7829 + $0x4] sm:$0xf]
        %v7832 = vld [vmem:[%s7829 + $0x8] sm:$0xf]
        %v7833 = vld [vmem:[%s7829 + $0xc] sm:$0xf]
        %v7834 = vld [vmem:[%s7829 + $0x10] sm:$0xf]
        %v7835 = vld [vmem:[%s7829 + $0x14] sm:$0xf]
        %v7836 = vld [vmem:[%s7829 + $0x18] sm:$0xf]
        %v7837 = vld [vmem:[%s7829 + $0x1c] sm:$0xf]
        %v7838 = vld [vmem:[%s7829 + $0x20] sm:$0xf]
        %v7839 = vld [vmem:[%s7829 + $0x24] sm:$0xf]
        %v7840 = vld [vmem:[%s7829 + $0x28] sm:$0xf]
        %v7841 = vld [vmem:[%s7829 + $0x2c] sm:$0xf]
        %v7842 = vld [vmem:[%s7829 + $0x30] sm:$0xf]
        %v7843 = vld [vmem:[%s7829 + $0x34] sm:$0xf]
        %v7844 = vld [vmem:[%s7829 + $0x38] sm:$0xf]
        %v7845 = vld [vmem:[%s7829 + $0x3c] sm:$0xf]
        %v7846 = vld [vmem:[%s7829 + $0x40] sm:$0xf]
        %v7847 = vld [vmem:[%s7829 + $0x44] sm:$0xf]
        %v7848 = vld [vmem:[%s7829 + $0x48] sm:$0xf]
        %v7849 = vld [vmem:[%s7829 + $0x4c] sm:$0xf]
        %v7850 = vld [vmem:[%s7829 + $0x50] sm:$0xf]
        %v7851 = vld [vmem:[%s7829 + $0x54] sm:$0xf]
        %v7852 = vld [vmem:[%s7829 + $0x58] sm:$0xf]
        %v7853 = vld [vmem:[%s7829 + $0x5c] sm:$0xf]
        %v7854 = vld [vmem:[%s7829 + $0x60] sm:$0xf]
        %v7855 = vld [vmem:[%s7829 + $0x64] sm:$0xf]
        %v7856 = vld [vmem:[%s7829 + $0x68] sm:$0xf]
        %v7857 = vld [vmem:[%s7829 + $0x6c] sm:$0xf]
        %v7858 = vld [vmem:[%s7829 + $0x70] sm:$0xf]
        %v7859 = vld [vmem:[%s7829 + $0x74] sm:$0xf]
        %v7860 = vld [vmem:[%s7829 + $0x78] sm:$0xf]
        %v7861 = vld [vmem:[%s7829 + $0x7c] sm:$0xf]
        %v7862 = vld [vmem:[%s7829 + $0x80] sm:$0xf]
        %v7863 = vld [vmem:[%s7829 + $0x84] sm:$0xf]
        %v7864 = vld [vmem:[%s7829 + $0x88] sm:$0xf]
        %v7865 = vld [vmem:[%s7829 + $0x8c] sm:$0xf]
        %v7866 = vld [vmem:[%s7829 + $0x90] sm:$0xf]
        %v7867 = vld [vmem:[%s7829 + $0x94] sm:$0xf]
        %v7868 = vld [vmem:[%s7829 + $0x98] sm:$0xf]
        %v7869 = vld [vmem:[%s7829 + $0x9c] sm:$0xf]
        %v7870 = vld [vmem:[%s7829 + $0xa0] sm:$0xf]
        %v7871 = vld [vmem:[%s7829 + $0xa4] sm:$0xf]
        %v7872 = vld [vmem:[%s7829 + $0xa8] sm:$0xf]
        %v7873 = vld [vmem:[%s7829 + $0xac] sm:$0xf]
        %v7874 = vld [vmem:[%s7829 + $0xb0] sm:$0xf]
        %v7875 = vld [vmem:[%s7829 + $0xb4] sm:$0xf]
        %v7876 = vld [vmem:[%s7829 + $0xb8] sm:$0xf]
        %v7877 = vld [vmem:[%s7829 + $0xbc] sm:$0xf]
        %v7952 = vunpack.c.l.b16 %v7755
        %v7953 = vunpack.c.h.b16 %v7755
        %v7954 = vunpack.c.l.b16 %v7756
        %v7955 = vunpack.c.l.b16 %v7757
        %v7956 = vunpack.c.h.b16 %v7757
        %v7957 = vunpack.c.l.b16 %v7758
        %v7958 = vunpack.c.l.b16 %v7759
        %v7959 = vunpack.c.h.b16 %v7759
        %v7960 = vunpack.c.l.b16 %v7760
        %v7961 = vunpack.c.l.b16 %v7761
        %v7962 = vunpack.c.h.b16 %v7761
        %v7963 = vunpack.c.l.b16 %v7762
        %v7964 = vunpack.c.l.b16 %v7763
        %v7965 = vunpack.c.h.b16 %v7763
        %v7966 = vunpack.c.l.b16 %v7764
        %v7967 = vunpack.c.l.b16 %v7765
        %v7968 = vunpack.c.h.b16 %v7765
        %v7969 = vunpack.c.l.b16 %v7766
        %v7970 = vunpack.c.l.b16 %v7767
        %v7971 = vunpack.c.h.b16 %v7767
        %v7972 = vunpack.c.l.b16 %v7768
        %v7973 = vunpack.c.l.b16 %v7769
        %v7974 = vunpack.c.h.b16 %v7769
        %v7975 = vunpack.c.l.b16 %v7770
        %v7976 = vunpack.c.l.b16 %v7771
        %v7977 = vunpack.c.h.b16 %v7771
        %v7978 = vunpack.c.l.b16 %v7772
        %v7979 = vunpack.c.l.b16 %v7773
        %v7980 = vunpack.c.h.b16 %v7773
        %v7981 = vunpack.c.l.b16 %v7774
        %v7982 = vunpack.c.l.b16 %v7775
        %v7983 = vunpack.c.h.b16 %v7775
        %v7984 = vunpack.c.l.b16 %v7776
        %v7985 = vunpack.c.l.b16 %v7777
        %v7986 = vunpack.c.h.b16 %v7777
        %v7987 = vunpack.c.l.b16 %v7778
        %v7988 = vunpack.c.l.b16 %v7779
        %v7989 = vunpack.c.h.b16 %v7779
        %v7990 = vunpack.c.l.b16 %v7780
        %v7991 = vunpack.c.l.b16 %v7781
        %v7992 = vunpack.c.h.b16 %v7781
        %v7993 = vunpack.c.l.b16 %v7782
        %v7994 = vunpack.c.l.b16 %v7783
        %v7995 = vunpack.c.h.b16 %v7783
        %v7996 = vunpack.c.l.b16 %v7784
        %v7997 = vunpack.c.l.b16 %v7785
        %v7998 = vunpack.c.h.b16 %v7785
        %v7999 = vunpack.c.l.b16 %v7786
        %v8000 = vunpack.c.l.b16 %v7787
        %v8001 = vunpack.c.h.b16 %v7787
        %v8002 = vunpack.c.l.b16 %v7788
        %v8003 = vunpack.c.l.b16 %v7789
        %v8004 = vunpack.c.h.b16 %v7789
        %v8005 = vunpack.c.l.b16 %v7790
        %v8006 = vunpack.c.l.b16 %v7791
        %v8007 = vunpack.c.h.b16 %v7791
        %v8008 = vunpack.c.l.b16 %v7792
        %v8009 = vunpack.c.l.b16 %v7793
        %v8010 = vunpack.c.h.b16 %v7793
        %v8011 = vunpack.c.l.b16 %v7794
        %v8012 = vunpack.c.l.b16 %v7795
        %v8013 = vunpack.c.h.b16 %v7795
        %v8014 = vunpack.c.l.b16 %v7796
        %v8015 = vunpack.c.l.b16 %v7797
        %v8016 = vunpack.c.h.b16 %v7797
        %v8017 = vunpack.c.l.b16 %v7798
        %v8018 = vunpack.c.l.b16 %v7799
        %v8019 = vunpack.c.h.b16 %v7799
        %v8020 = vunpack.c.l.b16 %v7800
        %v8021 = vunpack.c.l.b16 %v7801
        %v8022 = vunpack.c.h.b16 %v7801
        %v8023 = vunpack.c.l.b16 %v7802
        %v8024 = vunpack.c.l.b16 %v7803
        %v8025 = vunpack.c.h.b16 %v7803
        %v8026 = vunpack.c.l.b16 %v7804
        %v8027 = vunpack.c.l.b16 %v7805
        %v8028 = vunpack.c.h.b16 %v7805
        %v8029 = vunpack.c.l.b16 %v7806
        %v8030 = vunpack.c.l.b16 %v7807
        %v8031 = vunpack.c.h.b16 %v7807
        %v8032 = vunpack.c.l.b16 %v7808
        %v8033 = vunpack.c.l.b16 %v7809
        %v8034 = vunpack.c.h.b16 %v7809
        %v8035 = vunpack.c.l.b16 %v7810
        %v8036 = vunpack.c.l.b16 %v7811
        %v8037 = vunpack.c.h.b16 %v7811
        %v8038 = vunpack.c.l.b16 %v7812
        %v8039 = vunpack.c.l.b16 %v7813
        %v8040 = vunpack.c.h.b16 %v7813
        %v8041 = vunpack.c.l.b16 %v7814
        %v8042 = vunpack.c.l.b16 %v7815
        %v8043 = vunpack.c.h.b16 %v7815
        %v8044 = vunpack.c.l.b16 %v7816
        %v8045 = vunpack.c.l.b16 %v7817
        %v8046 = vunpack.c.h.b16 %v7817
        %v8047 = vunpack.c.l.b16 %v7818
        %v8048 = vunpack.c.l.b16 %v7819
        %v8049 = vunpack.c.h.b16 %v7819
        %v8050 = vunpack.c.l.b16 %v7820
        %v8051 = vunpack.c.l.b16 %v7821
        %v8052 = vunpack.c.h.b16 %v7821
        %v8053 = vunpack.c.l.b16 %v7822
        %v8054 = vunpack.c.l.b16 %v7823
        %v8055 = vunpack.c.h.b16 %v7823
        %v8056 = vunpack.c.l.b16 %v7824
        %v8057 = vunpack.c.l.b16 %v7825
        %v8058 = vunpack.c.h.b16 %v7825
        %v8059 = vunpack.c.l.b16 %v7826
        %v8060 = vunpack.c.l.b16 %v7827
        %v8061 = vunpack.c.h.b16 %v7827
        %v8062 = vunpack.c.l.b16 %v7828
        %v8063 = vpack.c.b16 %v7955, %v7952
        %v8064 = vpack.c.b16 %v7956, %v7953
        %v8065 = vpack.c.b16 %v7957, %v7954
        %v8066 = vpack.c.b16 %v7961, %v7958
        %v8067 = vpack.c.b16 %v7962, %v7959
        %v8068 = vpack.c.b16 %v7963, %v7960
        %v8069 = vpack.c.b16 %v7967, %v7964
        %v8070 = vpack.c.b16 %v7968, %v7965
        %v8071 = vpack.c.b16 %v7969, %v7966
        %v8072 = vpack.c.b16 %v7973, %v7970
        %v8073 = vpack.c.b16 %v7974, %v7971
        %v8074 = vpack.c.b16 %v7975, %v7972
        %v8075 = vpack.c.b16 %v7979, %v7976
        %v8076 = vpack.c.b16 %v7980, %v7977
        %v8077 = vpack.c.b16 %v7981, %v7978
        %v8078 = vpack.c.b16 %v7985, %v7982
        %v8079 = vpack.c.b16 %v7986, %v7983
        %v8080 = vpack.c.b16 %v7987, %v7984
        %v8081 = vpack.c.b16 %v7991, %v7988
        %v8082 = vpack.c.b16 %v7992, %v7989
        %v8083 = vpack.c.b16 %v7993, %v7990
        %v8084 = vpack.c.b16 %v7997, %v7994
        %v8085 = vpack.c.b16 %v7998, %v7995
        %v8086 = vpack.c.b16 %v7999, %v7996
        %v8087 = vpack.c.b16 %v8003, %v8000
        %v8088 = vpack.c.b16 %v8004, %v8001
        %v8089 = vpack.c.b16 %v8005, %v8002
        %v8090 = vpack.c.b16 %v8009, %v8006
        %v8091 = vpack.c.b16 %v8010, %v8007
        %v8092 = vpack.c.b16 %v8011, %v8008
        %v8093 = vpack.c.b16 %v8015, %v8012
        %v8094 = vpack.c.b16 %v8016, %v8013
        %v8095 = vpack.c.b16 %v8017, %v8014
        %v8096 = vpack.c.b16 %v8021, %v8018
        %v8097 = vpack.c.b16 %v8022, %v8019
        %v8098 = vpack.c.b16 %v8023, %v8020
        %v8099 = vpack.c.b16 %v8027, %v8024
        %v8100 = vpack.c.b16 %v8028, %v8025
        %v8101 = vpack.c.b16 %v8029, %v8026
        %v8102 = vpack.c.b16 %v8033, %v8030
        %v8103 = vpack.c.b16 %v8034, %v8031
        %v8104 = vpack.c.b16 %v8035, %v8032
        %v8105 = vpack.c.b16 %v8039, %v8036
        %v8106 = vpack.c.b16 %v8040, %v8037
        %v8107 = vpack.c.b16 %v8041, %v8038
        %v8108 = vpack.c.b16 %v8045, %v8042
        %v8109 = vpack.c.b16 %v8046, %v8043
        %v8110 = vpack.c.b16 %v8047, %v8044
        %v8111 = vpack.c.b16 %v8051, %v8048
        %v8112 = vpack.c.b16 %v8052, %v8049
        %v8113 = vpack.c.b16 %v8053, %v8050
        %v8114 = vpack.c.b16 %v8057, %v8054
        %v8115 = vpack.c.b16 %v8058, %v8055
        %v8116 = vpack.c.b16 %v8059, %v8056
        %v8117 = vpack.c.b16 %v8060, %v8060
        %v8118 = vpack.c.b16 %v8061, %v8061
        %v8119 = vpack.c.b16 %v8062, %v8062
        %v8120 = vrot.slane %v8063, 2
        %v8121 = vrot.slane %v8066, 2
        %v8122 = vsel %vm4476, %v8120, %v8121
        %v8123 = vrot.slane %v8064, 2
        %v8124 = vrot.slane %v8067, 2
        %v8125 = vsel %vm4476, %v8123, %v8124
        %v8126 = vrot.slane %v8065, 2
        %v8127 = vrot.slane %v8068, 2
        %v8128 = vsel %vm4476, %v8126, %v8127
        %v8129 = vrot.slane %v8069, 2
        %v8130 = vsel %vm4476, %v8121, %v8129
        %v8131 = vrot.slane %v8070, 2
        %v8132 = vsel %vm4476, %v8124, %v8131
        %v8133 = vrot.slane %v8071, 2
        %v8134 = vsel %vm4476, %v8127, %v8133
        %v8135 = vrot.slane %v8072, 2
        %v8136 = vsel %vm4476, %v8129, %v8135
        %v8137 = vrot.slane %v8073, 2
        %v8138 = vsel %vm4476, %v8131, %v8137
        %v8139 = vrot.slane %v8074, 2
        %v8140 = vsel %vm4476, %v8133, %v8139
        %v8141 = vrot.slane %v8075, 2
        %v8142 = vsel %vm4476, %v8135, %v8141
        %v8143 = vrot.slane %v8076, 2
        %v8144 = vsel %vm4476, %v8137, %v8143
        %v8145 = vrot.slane %v8077, 2
        %v8146 = vsel %vm4476, %v8139, %v8145
        %v8147 = vrot.slane %v8078, 2
        %v8148 = vsel %vm4476, %v8141, %v8147
        %v8149 = vrot.slane %v8079, 2
        %v8150 = vsel %vm4476, %v8143, %v8149
        %v8151 = vrot.slane %v8080, 2
        %v8152 = vsel %vm4476, %v8145, %v8151
        %v8153 = vrot.slane %v8081, 2
        %v8154 = vsel %vm4476, %v8147, %v8153
        %v8155 = vrot.slane %v8082, 2
        %v8156 = vsel %vm4476, %v8149, %v8155
        %v8157 = vrot.slane %v8083, 2
        %v8158 = vsel %vm4476, %v8151, %v8157
        %v8159 = vrot.slane %v8084, 2
        %v8160 = vsel %vm4476, %v8153, %v8159
        %v8161 = vrot.slane %v8085, 2
        %v8162 = vsel %vm4476, %v8155, %v8161
        %v8163 = vrot.slane %v8086, 2
        %v8164 = vsel %vm4476, %v8157, %v8163
        %v8165 = vrot.slane %v8087, 2
        %v8166 = vsel %vm4476, %v8159, %v8165
        %v8167 = vrot.slane %v8088, 2
        %v8168 = vsel %vm4476, %v8161, %v8167
        %v8169 = vrot.slane %v8089, 2
        %v8170 = vsel %vm4476, %v8163, %v8169
        %v8171 = vrot.slane %v8090, 2
        %v8172 = vsel %vm4476, %v8165, %v8171
        %v8173 = vrot.slane %v8091, 2
        %v8174 = vsel %vm4476, %v8167, %v8173
        %v8175 = vrot.slane %v8092, 2
        %v8176 = vsel %vm4476, %v8169, %v8175
        %v8177 = vrot.slane %v8093, 2
        %v8178 = vsel %vm4476, %v8171, %v8177
        %v8179 = vrot.slane %v8094, 2
        %v8180 = vsel %vm4476, %v8173, %v8179
        %v8181 = vrot.slane %v8095, 2
        %v8182 = vsel %vm4476, %v8175, %v8181
        %v8183 = vrot.slane %v8096, 2
        %v8184 = vsel %vm4476, %v8177, %v8183
        %v8185 = vrot.slane %v8097, 2
        %v8186 = vsel %vm4476, %v8179, %v8185
        %v8187 = vrot.slane %v8098, 2
        %v8188 = vsel %vm4476, %v8181, %v8187
        %v8189 = vrot.slane %v8099, 2
        %v8190 = vsel %vm4476, %v8183, %v8189
        %v8191 = vrot.slane %v8100, 2
        %v8192 = vsel %vm4476, %v8185, %v8191
        %v8193 = vrot.slane %v8101, 2
        %v8194 = vsel %vm4476, %v8187, %v8193
        %v8195 = vrot.slane %v8102, 2
        %v8196 = vsel %vm4476, %v8189, %v8195
        %v8197 = vrot.slane %v8103, 2
        %v8198 = vsel %vm4476, %v8191, %v8197
        %v8199 = vrot.slane %v8104, 2
        %v8200 = vsel %vm4476, %v8193, %v8199
        %v8201 = vrot.slane %v8105, 2
        %v8202 = vsel %vm4476, %v8195, %v8201
        %v8203 = vrot.slane %v8106, 2
        %v8204 = vsel %vm4476, %v8197, %v8203
        %v8205 = vrot.slane %v8107, 2
        %v8206 = vsel %vm4476, %v8199, %v8205
        %v8207 = vrot.slane %v8108, 2
        %v8208 = vsel %vm4476, %v8201, %v8207
        %v8209 = vrot.slane %v8109, 2
        %v8210 = vsel %vm4476, %v8203, %v8209
        %v8211 = vrot.slane %v8110, 2
        %v8212 = vsel %vm4476, %v8205, %v8211
        %v8213 = vrot.slane %v8111, 2
        %v8214 = vsel %vm4476, %v8207, %v8213
        %v8215 = vrot.slane %v8112, 2
        %v8216 = vsel %vm4476, %v8209, %v8215
        %v8217 = vrot.slane %v8113, 2
        %v8218 = vsel %vm4476, %v8211, %v8217
        %v8219 = vrot.slane %v8114, 2
        %v8220 = vsel %vm4476, %v8213, %v8219
        %v8221 = vrot.slane %v8115, 2
        %v8222 = vsel %vm4476, %v8215, %v8221
        %v8223 = vrot.slane %v8116, 2
        %v8224 = vsel %vm4476, %v8217, %v8223
        %v8225 = vrot.slane %v8117, 2
        %v8226 = vsel %vm4476, %v8219, %v8225
        %v8227 = vrot.slane %v8118, 2
        %v8228 = vsel %vm4476, %v8221, %v8227
        %v8229 = vrot.slane %v8119, 2
        %v8230 = vsel %vm4476, %v8223, %v8229
        %v8333 = vunpack.c.l.b16 %v7830
        %v8334 = vunpack.c.l.b16 %v7831
        %v8335 = vunpack.c.l.b16 %v7832
        %v8336 = vunpack.c.l.b16 %v7833
        %v8337 = vunpack.c.l.b16 %v7834
        %v8338 = vunpack.c.l.b16 %v7835
        %v8339 = vunpack.c.l.b16 %v7836
        %v8340 = vunpack.c.l.b16 %v7837
        %v8341 = vunpack.c.l.b16 %v7838
        %v8342 = vunpack.c.l.b16 %v7839
        %v8343 = vunpack.c.l.b16 %v7840
        %v8344 = vunpack.c.l.b16 %v7841
        %v8345 = vunpack.c.l.b16 %v7842
        %v8346 = vunpack.c.l.b16 %v7843
        %v8347 = vunpack.c.l.b16 %v7844
        %v8348 = vunpack.c.l.b16 %v7845
        %v8349 = vunpack.c.l.b16 %v7846
        %v8350 = vunpack.c.l.b16 %v7847
        %v8351 = vunpack.c.l.b16 %v7848
        %v8352 = vunpack.c.l.b16 %v7849
        %v8353 = vunpack.c.l.b16 %v7850
        %v8354 = vunpack.c.l.b16 %v7851
        %v8355 = vunpack.c.l.b16 %v7852
        %v8356 = vunpack.c.l.b16 %v7853
        %v8357 = vunpack.c.l.b16 %v7854
        %v8358 = vunpack.c.l.b16 %v7855
        %v8359 = vunpack.c.l.b16 %v7856
        %v8360 = vunpack.c.l.b16 %v7857
        %v8361 = vunpack.c.l.b16 %v7858
        %v8362 = vunpack.c.l.b16 %v7859
        %v8363 = vunpack.c.l.b16 %v7860
        %v8364 = vunpack.c.l.b16 %v7861
        %v8365 = vunpack.c.l.b16 %v7862
        %v8366 = vunpack.c.l.b16 %v7863
        %v8367 = vunpack.c.l.b16 %v7864
        %v8368 = vunpack.c.l.b16 %v7865
        %v8369 = vunpack.c.l.b16 %v7866
        %v8370 = vunpack.c.l.b16 %v7867
        %v8371 = vunpack.c.l.b16 %v7868
        %v8372 = vunpack.c.l.b16 %v7869
        %v8373 = vunpack.c.l.b16 %v7870
        %v8374 = vunpack.c.l.b16 %v7871
        %v8375 = vunpack.c.l.b16 %v7872
        %v8376 = vunpack.c.l.b16 %v7873
        %v8377 = vunpack.c.l.b16 %v7874
        %v8378 = vunpack.c.l.b16 %v7875
        %v8379 = vunpack.c.l.b16 %v7876
        %v8380 = vunpack.c.l.b16 %v7877
        %v8381 = vpack.c.b16 %v8334, %v8333
        %v8382 = vpack.c.b16 %v8336, %v8335
        %v8383 = vpack.c.b16 %v8338, %v8337
        %v8384 = vpack.c.b16 %v8340, %v8339
        %v8385 = vpack.c.b16 %v8342, %v8341
        %v8386 = vpack.c.b16 %v8344, %v8343
        %v8387 = vpack.c.b16 %v8346, %v8345
        %v8388 = vpack.c.b16 %v8348, %v8347
        %v8389 = vpack.c.b16 %v8350, %v8349
        %v8390 = vpack.c.b16 %v8352, %v8351
        %v8391 = vpack.c.b16 %v8354, %v8353
        %v8392 = vpack.c.b16 %v8356, %v8355
        %v8393 = vpack.c.b16 %v8358, %v8357
        %v8394 = vpack.c.b16 %v8360, %v8359
        %v8395 = vpack.c.b16 %v8362, %v8361
        %v8396 = vpack.c.b16 %v8364, %v8363
        %v8397 = vpack.c.b16 %v8366, %v8365
        %v8398 = vpack.c.b16 %v8368, %v8367
        %v8399 = vpack.c.b16 %v8370, %v8369
        %v8400 = vpack.c.b16 %v8372, %v8371
        %v8401 = vpack.c.b16 %v8374, %v8373
        %v8402 = vpack.c.b16 %v8376, %v8375
        %v8403 = vpack.c.b16 %v8378, %v8377
        %v8404 = vpack.c.b16 %v8380, %v8379
        %8429 = vmatpush.bf16.msra.mxu0 %v8388
        %8430 = vmatpush.bf16.msra.mxu0 %v8387
        %8431 = vmatpush.bf16.msra.mxu0 %v8386
        %8432 = vmatpush.bf16.msra.mxu0 %v8385
        %8433 = vmatpush.bf16.msra.mxu0 %v8384
        %8434 = vmatpush.bf16.msra.mxu0 %v8383
        %8435 = vmatpush.bf16.msra.mxu0 %v8382
        %8436 = vmatpush.bf16.msra.mxu0 %v8381
        %8437 = vmatmul.bf16.gmra.mxu0 %v8122
        %v8438 = vpop.f32.mrf.mxu0
        %v8439 = vadd.f32 0.0, %v8438
        %v8440 = vpop.f32.mrf.mxu0
        %v8441 = vadd.f32 0.0, %v8440
        %8442 = vmatmul.bf16.gmra.mxu0 %v8130
        %v8443 = vpop.f32.mrf.mxu0
        %v8444 = vadd.f32 0.0, %v8443
        %v8445 = vpop.f32.mrf.mxu0
        %v8446 = vadd.f32 0.0, %v8445
        %8447 = vmatmul.bf16.gmra.mxu0 %v8136
        %v8448 = vpop.f32.mrf.mxu0
        %v8449 = vadd.f32 0.0, %v8448
        %v8450 = vpop.f32.mrf.mxu0
        %v8451 = vadd.f32 0.0, %v8450
        %8452 = vmatmul.bf16.gmra.mxu0 %v8142
        %v8453 = vpop.f32.mrf.mxu0
        %v8454 = vadd.f32 0.0, %v8453
        %v8455 = vpop.f32.mrf.mxu0
        %v8456 = vadd.f32 0.0, %v8455
        %8457 = vmatmul.bf16.gmra.mxu0 %v8148
        %v8458 = vpop.f32.mrf.mxu0
        %v8459 = vadd.f32 0.0, %v8458
        %v8460 = vpop.f32.mrf.mxu0
        %v8461 = vadd.f32 0.0, %v8460
        %8462 = vmatmul.bf16.gmra.mxu0 %v8154
        %v8463 = vpop.f32.mrf.mxu0
        %v8464 = vadd.f32 0.0, %v8463
        %v8465 = vpop.f32.mrf.mxu0
        %v8466 = vadd.f32 0.0, %v8465
        %8467 = vmatmul.bf16.gmra.mxu0 %v8160
        %v8468 = vpop.f32.mrf.mxu0
        %v8469 = vadd.f32 0.0, %v8468
        %v8470 = vpop.f32.mrf.mxu0
        %v8471 = vadd.f32 0.0, %v8470
        %8472 = vmatmul.bf16.gmra.mxu0 %v8166
        %v8473 = vpop.f32.mrf.mxu0
        %v8474 = vadd.f32 0.0, %v8473
        %v8475 = vpop.f32.mrf.mxu0
        %v8476 = vadd.f32 0.0, %v8475
        %8477 = vmatmul.bf16.gmra.mxu0 %v8172
        %v8478 = vpop.f32.mrf.mxu0
        %v8479 = vadd.f32 0.0, %v8478
        %v8480 = vpop.f32.mrf.mxu0
        %v8481 = vadd.f32 0.0, %v8480
        %8482 = vmatmul.bf16.gmra.mxu0 %v8178
        %v8483 = vpop.f32.mrf.mxu0
        %v8484 = vadd.f32 0.0, %v8483
        %v8485 = vpop.f32.mrf.mxu0
        %v8486 = vadd.f32 0.0, %v8485
        %8487 = vmatmul.bf16.gmra.mxu0 %v8184
        %v8488 = vpop.f32.mrf.mxu0
        %v8489 = vadd.f32 0.0, %v8488
        %v8490 = vpop.f32.mrf.mxu0
        %v8491 = vadd.f32 0.0, %v8490
        %8492 = vmatmul.bf16.gmra.mxu0 %v8190
        %v8493 = vpop.f32.mrf.mxu0
        %v8494 = vadd.f32 0.0, %v8493
        %v8495 = vpop.f32.mrf.mxu0
        %v8496 = vadd.f32 0.0, %v8495
        %8497 = vmatmul.bf16.gmra.mxu0 %v8196
        %v8498 = vpop.f32.mrf.mxu0
        %v8499 = vadd.f32 0.0, %v8498
        %v8500 = vpop.f32.mrf.mxu0
        %v8501 = vadd.f32 0.0, %v8500
        %8502 = vmatmul.bf16.gmra.mxu0 %v8202
        %v8503 = vpop.f32.mrf.mxu0
        %v8504 = vadd.f32 0.0, %v8503
        %v8505 = vpop.f32.mrf.mxu0
        %v8506 = vadd.f32 0.0, %v8505
        %8507 = vmatmul.bf16.gmra.mxu0 %v8208
        %v8508 = vpop.f32.mrf.mxu0
        %v8509 = vadd.f32 0.0, %v8508
        %v8510 = vpop.f32.mrf.mxu0
        %v8511 = vadd.f32 0.0, %v8510
        %8512 = vmatmul.bf16.gmra.mxu0 %v8214
        %v8513 = vpop.f32.mrf.mxu0
        %v8514 = vadd.f32 0.0, %v8513
        %v8515 = vpop.f32.mrf.mxu0
        %v8516 = vadd.f32 0.0, %v8515
        %8517 = vmatmul.bf16.gmra.mxu0 %v8220
        %v8518 = vpop.f32.mrf.mxu0
        %v8519 = vadd.f32 0.0, %v8518
        %v8520 = vpop.f32.mrf.mxu0
        %v8521 = vadd.f32 0.0, %v8520
        %8522 = vmatmul.bf16.gmra.mxu0 %v8226
        %v8523 = vpop.f32.mrf.mxu0
        %v8524 = vadd.f32 0.0, %v8523
        %v8525 = vpop.f32.mrf.mxu0
        %v8526 = vadd.f32 0.0, %v8525
        %8527 = vdwg.mxu0
        %8528 = vmatpush.bf16.msra.mxu0 %v8396
        %8529 = vmatpush.bf16.msra.mxu0 %v8395
        %8530 = vmatpush.bf16.msra.mxu0 %v8394
        %8531 = vmatpush.bf16.msra.mxu0 %v8393
        %8532 = vmatpush.bf16.msra.mxu0 %v8392
        %8533 = vmatpush.bf16.msra.mxu0 %v8391
        %8534 = vmatpush.bf16.msra.mxu0 %v8390
        %8535 = vmatpush.bf16.msra.mxu0 %v8389
        %8536 = vmatmul.bf16.gmra.mxu0 %v8125
        %v8537 = vpop.f32.mrf.mxu0
        %v8538 = vadd.f32 %v8439, %v8537
        %v8539 = vpop.f32.mrf.mxu0
        %v8540 = vadd.f32 %v8441, %v8539
        %8541 = vmatmul.bf16.gmra.mxu0 %v8132
        %v8542 = vpop.f32.mrf.mxu0
        %v8543 = vadd.f32 %v8444, %v8542
        %v8544 = vpop.f32.mrf.mxu0
        %v8545 = vadd.f32 %v8446, %v8544
        %8546 = vmatmul.bf16.gmra.mxu0 %v8138
        %v8547 = vpop.f32.mrf.mxu0
        %v8548 = vadd.f32 %v8449, %v8547
        %v8549 = vpop.f32.mrf.mxu0
        %v8550 = vadd.f32 %v8451, %v8549
        %8551 = vmatmul.bf16.gmra.mxu0 %v8144
        %v8552 = vpop.f32.mrf.mxu0
        %v8553 = vadd.f32 %v8454, %v8552
        %v8554 = vpop.f32.mrf.mxu0
        %v8555 = vadd.f32 %v8456, %v8554
        %8556 = vmatmul.bf16.gmra.mxu0 %v8150
        %v8557 = vpop.f32.mrf.mxu0
        %v8558 = vadd.f32 %v8459, %v8557
        %v8559 = vpop.f32.mrf.mxu0
        %v8560 = vadd.f32 %v8461, %v8559
        %8561 = vmatmul.bf16.gmra.mxu0 %v8156
        %v8562 = vpop.f32.mrf.mxu0
        %v8563 = vadd.f32 %v8464, %v8562
        %v8564 = vpop.f32.mrf.mxu0
        %v8565 = vadd.f32 %v8466, %v8564
        %8566 = vmatmul.bf16.gmra.mxu0 %v8162
        %v8567 = vpop.f32.mrf.mxu0
        %v8568 = vadd.f32 %v8469, %v8567
        %v8569 = vpop.f32.mrf.mxu0
        %v8570 = vadd.f32 %v8471, %v8569
        %8571 = vmatmul.bf16.gmra.mxu0 %v8168
        %v8572 = vpop.f32.mrf.mxu0
        %v8573 = vadd.f32 %v8474, %v8572
        %v8574 = vpop.f32.mrf.mxu0
        %v8575 = vadd.f32 %v8476, %v8574
        %8576 = vmatmul.bf16.gmra.mxu0 %v8174
        %v8577 = vpop.f32.mrf.mxu0
        %v8578 = vadd.f32 %v8479, %v8577
        %v8579 = vpop.f32.mrf.mxu0
        %v8580 = vadd.f32 %v8481, %v8579
        %8581 = vmatmul.bf16.gmra.mxu0 %v8180
        %v8582 = vpop.f32.mrf.mxu0
        %v8583 = vadd.f32 %v8484, %v8582
        %v8584 = vpop.f32.mrf.mxu0
        %v8585 = vadd.f32 %v8486, %v8584
        %8586 = vmatmul.bf16.gmra.mxu0 %v8186
        %v8587 = vpop.f32.mrf.mxu0
        %v8588 = vadd.f32 %v8489, %v8587
        %v8589 = vpop.f32.mrf.mxu0
        %v8590 = vadd.f32 %v8491, %v8589
        %8591 = vmatmul.bf16.gmra.mxu0 %v8192
        %v8592 = vpop.f32.mrf.mxu0
        %v8593 = vadd.f32 %v8494, %v8592
        %v8594 = vpop.f32.mrf.mxu0
        %v8595 = vadd.f32 %v8496, %v8594
        %8596 = vmatmul.bf16.gmra.mxu0 %v8198
        %v8597 = vpop.f32.mrf.mxu0
        %v8598 = vadd.f32 %v8499, %v8597
        %v8599 = vpop.f32.mrf.mxu0
        %v8600 = vadd.f32 %v8501, %v8599
        %8601 = vmatmul.bf16.gmra.mxu0 %v8204
        %v8602 = vpop.f32.mrf.mxu0
        %v8603 = vadd.f32 %v8504, %v8602
        %v8604 = vpop.f32.mrf.mxu0
        %v8605 = vadd.f32 %v8506, %v8604
        %8606 = vmatmul.bf16.gmra.mxu0 %v8210
        %v8607 = vpop.f32.mrf.mxu0
        %v8608 = vadd.f32 %v8509, %v8607
        %v8609 = vpop.f32.mrf.mxu0
        %v8610 = vadd.f32 %v8511, %v8609
        %8611 = vmatmul.bf16.gmra.mxu0 %v8216
        %v8612 = vpop.f32.mrf.mxu0
        %v8613 = vadd.f32 %v8514, %v8612
        %v8614 = vpop.f32.mrf.mxu0
        %v8615 = vadd.f32 %v8516, %v8614
        %8616 = vmatmul.bf16.gmra.mxu0 %v8222
        %v8617 = vpop.f32.mrf.mxu0
        %v8618 = vadd.f32 %v8519, %v8617
        %v8619 = vpop.f32.mrf.mxu0
        %v8620 = vadd.f32 %v8521, %v8619
        %8621 = vmatmul.bf16.gmra.mxu0 %v8228
        %v8622 = vpop.f32.mrf.mxu0
        %v8623 = vadd.f32 %v8524, %v8622
        %v8624 = vpop.f32.mrf.mxu0
        %v8625 = vadd.f32 %v8526, %v8624
        %8626 = vdwg.mxu0
        %8627 = vmatpush.bf16.msra.mxu0 %v8404
        %8628 = vmatpush.bf16.msra.mxu0 %v8403
        %8629 = vmatpush.bf16.msra.mxu0 %v8402
        %8630 = vmatpush.bf16.msra.mxu0 %v8401
        %8631 = vmatpush.bf16.msra.mxu0 %v8400
        %8632 = vmatpush.bf16.msra.mxu0 %v8399
        %8633 = vmatpush.bf16.msra.mxu0 %v8398
        %8634 = vmatpush.bf16.msra.mxu0 %v8397
        %8635 = vmatmul.bf16.gmra.mxu0 %v8128
        %v8636 = vpop.f32.mrf.mxu0
        %v8637 = vadd.f32 %v8538, %v8636
        %v8638 = vpop.f32.mrf.mxu0
        %v8639 = vadd.f32 %v8540, %v8638
        %8640 = vmatmul.bf16.gmra.mxu0 %v8134
        %v8641 = vpop.f32.mrf.mxu0
        %v8642 = vadd.f32 %v8543, %v8641
        %v8643 = vpop.f32.mrf.mxu0
        %v8644 = vadd.f32 %v8545, %v8643
        %8645 = vmatmul.bf16.gmra.mxu0 %v8140
        %v8646 = vpop.f32.mrf.mxu0
        %v8647 = vadd.f32 %v8548, %v8646
        %v8648 = vpop.f32.mrf.mxu0
        %v8649 = vadd.f32 %v8550, %v8648
        %8650 = vmatmul.bf16.gmra.mxu0 %v8146
        %v8651 = vpop.f32.mrf.mxu0
        %v8652 = vadd.f32 %v8553, %v8651
        %v8653 = vpop.f32.mrf.mxu0
        %v8654 = vadd.f32 %v8555, %v8653
        %8655 = vmatmul.bf16.gmra.mxu0 %v8152
        %v8656 = vpop.f32.mrf.mxu0
        %v8657 = vadd.f32 %v8558, %v8656
        %v8658 = vpop.f32.mrf.mxu0
        %v8659 = vadd.f32 %v8560, %v8658
        %8660 = vmatmul.bf16.gmra.mxu0 %v8158
        %v8661 = vpop.f32.mrf.mxu0
        %v8662 = vadd.f32 %v8563, %v8661
        %v8663 = vpop.f32.mrf.mxu0
        %v8664 = vadd.f32 %v8565, %v8663
        %8665 = vmatmul.bf16.gmra.mxu0 %v8164
        %v8666 = vpop.f32.mrf.mxu0
        %v8667 = vadd.f32 %v8568, %v8666
        %v8668 = vpop.f32.mrf.mxu0
        %v8669 = vadd.f32 %v8570, %v8668
        %8670 = vmatmul.bf16.gmra.mxu0 %v8170
        %v8671 = vpop.f32.mrf.mxu0
        %v8672 = vadd.f32 %v8573, %v8671
        %v8673 = vpop.f32.mrf.mxu0
        %v8674 = vadd.f32 %v8575, %v8673
        %8675 = vmatmul.bf16.gmra.mxu0 %v8176
        %v8676 = vpop.f32.mrf.mxu0
        %v8677 = vadd.f32 %v8578, %v8676
        %v8678 = vpop.f32.mrf.mxu0
        %v8679 = vadd.f32 %v8580, %v8678
        %8680 = vmatmul.bf16.gmra.mxu0 %v8182
        %v8681 = vpop.f32.mrf.mxu0
        %v8682 = vadd.f32 %v8583, %v8681
        %v8683 = vpop.f32.mrf.mxu0
        %v8684 = vadd.f32 %v8585, %v8683
        %8685 = vmatmul.bf16.gmra.mxu0 %v8188
        %v8686 = vpop.f32.mrf.mxu0
        %v8687 = vadd.f32 %v8588, %v8686
        %v8688 = vpop.f32.mrf.mxu0
        %v8689 = vadd.f32 %v8590, %v8688
        %8690 = vmatmul.bf16.gmra.mxu0 %v8194
        %v8691 = vpop.f32.mrf.mxu0
        %v8692 = vadd.f32 %v8593, %v8691
        %v8693 = vpop.f32.mrf.mxu0
        %v8694 = vadd.f32 %v8595, %v8693
        %8695 = vmatmul.bf16.gmra.mxu0 %v8200
        %v8696 = vpop.f32.mrf.mxu0
        %v8697 = vadd.f32 %v8598, %v8696
        %v8698 = vpop.f32.mrf.mxu0
        %v8699 = vadd.f32 %v8600, %v8698
        %8700 = vmatmul.bf16.gmra.mxu0 %v8206
        %v8701 = vpop.f32.mrf.mxu0
        %v8702 = vadd.f32 %v8603, %v8701
        %v8703 = vpop.f32.mrf.mxu0
        %v8704 = vadd.f32 %v8605, %v8703
        %8705 = vmatmul.bf16.gmra.mxu0 %v8212
        %v8706 = vpop.f32.mrf.mxu0
        %v8707 = vadd.f32 %v8608, %v8706
        %v8708 = vpop.f32.mrf.mxu0
        %v8709 = vadd.f32 %v8610, %v8708
        %8710 = vmatmul.bf16.gmra.mxu0 %v8218
        %v8711 = vpop.f32.mrf.mxu0
        %v8712 = vadd.f32 %v8613, %v8711
        %v8713 = vpop.f32.mrf.mxu0
        %v8714 = vadd.f32 %v8615, %v8713
        %8715 = vmatmul.bf16.gmra.mxu0 %v8224
        %v8716 = vpop.f32.mrf.mxu0
        %v8717 = vadd.f32 %v8618, %v8716
        %v8718 = vpop.f32.mrf.mxu0
        %v8719 = vadd.f32 %v8620, %v8718
        %8720 = vmatmul.bf16.gmra.mxu0 %v8230
        %v8721 = vpop.f32.mrf.mxu0
        %v8722 = vadd.f32 %v8623, %v8721
        %v8723 = vpop.f32.mrf.mxu0
        %v8724 = vadd.f32 %v8625, %v8723
        %8725 = vdwg.mxu0
        %v8726 = vadd.f32 %v7666, %v8637
        %v8727 = vadd.f32 %v7668, %v8639
        %v8728 = vadd.f32 %v7671, %v8642
        %v8729 = vadd.f32 %v7673, %v8644
        %v8730 = vadd.f32 %v7676, %v8647
        %v8731 = vadd.f32 %v7678, %v8649
        %v8732 = vadd.f32 %v7681, %v8652
        %v8733 = vadd.f32 %v7683, %v8654
        %v8734 = vadd.f32 %v7686, %v8657
        %v8735 = vadd.f32 %v7688, %v8659
        %v8736 = vadd.f32 %v7691, %v8662
        %v8737 = vadd.f32 %v7693, %v8664
        %v8738 = vadd.f32 %v7696, %v8667
        %v8739 = vadd.f32 %v7698, %v8669
        %v8740 = vadd.f32 %v7701, %v8672
        %v8741 = vadd.f32 %v7703, %v8674
        %v8742 = vadd.f32 %v7706, %v8677
        %v8743 = vadd.f32 %v7708, %v8679
        %v8744 = vadd.f32 %v7711, %v8682
        %v8745 = vadd.f32 %v7713, %v8684
        %v8746 = vadd.f32 %v7716, %v8687
        %v8747 = vadd.f32 %v7718, %v8689
        %v8748 = vadd.f32 %v7721, %v8692
        %v8749 = vadd.f32 %v7723, %v8694
        %v8750 = vadd.f32 %v7726, %v8697
        %v8751 = vadd.f32 %v7728, %v8699
        %v8752 = vadd.f32 %v7731, %v8702
        %v8753 = vadd.f32 %v7733, %v8704
        %v8754 = vadd.f32 %v7736, %v8707
        %v8755 = vadd.f32 %v7738, %v8709
        %v8756 = vadd.f32 %v7741, %v8712
        %v8757 = vadd.f32 %v7743, %v8714
        %v8758 = vadd.f32 %v7746, %v8717
        %v8759 = vadd.f32 %v7748, %v8719
        %v8760 = vadd.f32 %v7751, %v8722
        %v8761 = vadd.f32 %v7753, %v8724
        %v8762 = vld [vmem:[%s4] sm:$0x1]
        %v8764 = vperm.slane %v8762, 0
        %v8766 = vadd.f32 %v8726, %v8764
        %v8767 = vadd.f32 %v8727, %v8764
        %v8768 = vadd.f32 %v8728, %v8764
        %v8769 = vadd.f32 %v8729, %v8764
        %v8770 = vadd.f32 %v8730, %v8764
        %v8771 = vadd.f32 %v8731, %v8764
        %v8772 = vadd.f32 %v8732, %v8764
        %v8773 = vadd.f32 %v8733, %v8764
        %v8774 = vadd.f32 %v8734, %v8764
        %v8775 = vadd.f32 %v8735, %v8764
        %v8776 = vadd.f32 %v8736, %v8764
        %v8777 = vadd.f32 %v8737, %v8764
        %v8778 = vadd.f32 %v8738, %v8764
        %v8779 = vadd.f32 %v8739, %v8764
        %v8780 = vadd.f32 %v8740, %v8764
        %v8781 = vadd.f32 %v8741, %v8764
        %v8782 = vadd.f32 %v8742, %v8764
        %v8783 = vadd.f32 %v8743, %v8764
        %v8784 = vadd.f32 %v8744, %v8764
        %v8785 = vadd.f32 %v8745, %v8764
        %v8786 = vadd.f32 %v8746, %v8764
        %v8787 = vadd.f32 %v8747, %v8764
        %v8788 = vadd.f32 %v8748, %v8764
        %v8789 = vadd.f32 %v8749, %v8764
        %v8790 = vadd.f32 %v8750, %v8764
        %v8791 = vadd.f32 %v8751, %v8764
        %v8792 = vadd.f32 %v8752, %v8764
        %v8793 = vadd.f32 %v8753, %v8764
        %v8794 = vadd.f32 %v8754, %v8764
        %v8795 = vadd.f32 %v8755, %v8764
        %v8796 = vadd.f32 %v8756, %v8764
        %v8797 = vadd.f32 %v8757, %v8764
        %v8798 = vadd.f32 %v8758, %v8764
        %v8799 = vadd.f32 %v8759, %v8764
        %v8800 = vadd.f32 %v8760, %v8764
        %v8801 = vadd.f32 %v8761, %v8764
        %v8802 = vld [vmem:[%s240] sm:$0xff]
        %v8803 = vld [vmem:[%s240 + $0x8] sm:$0xff]
        %v8804 = vld [vmem:[%s240 + $0x10] sm:$0xff]
        %v8805 = vld [vmem:[%s240 + $0x18] sm:$0xff]
        %v8806 = vld [vmem:[%s240 + $0x20] sm:$0xff]
        %v8807 = vld [vmem:[%s240 + $0x28] sm:$0xff]
        %v8808 = vld [vmem:[%s240 + $0x30] sm:$0xff]
        %v8809 = vld [vmem:[%s240 + $0x38] sm:$0xff]
        %v8810 = vld [vmem:[%s240 + $0x40] sm:$0xff]
        %v8811 = vld [vmem:[%s240 + $0x48] sm:$0xff]
        %v8812 = vld [vmem:[%s240 + $0x50] sm:$0xff]
        %v8813 = vld [vmem:[%s240 + $0x58] sm:$0xff]
        %v8814 = vld [vmem:[%s240 + $0x60] sm:$0xff]
        %v8815 = vld [vmem:[%s240 + $0x68] sm:$0xff]
        %v8816 = vld [vmem:[%s240 + $0x70] sm:$0xff]
        %v8817 = vld [vmem:[%s240 + $0x78] sm:$0xff]
        %v8818 = vld [vmem:[%s240 + $0x80] sm:$0xff]
        %v8819 = vld [vmem:[%s240 + $0x88] sm:$0xff]
        %v8820 = vld [vmem:[%s240 + $0x90] sm:$0xff]
        %v8821 = vld [vmem:[%s240 + $0x98] sm:$0xff]
        %v8822 = vld [vmem:[%s240 + $0xa0] sm:$0xff]
        %v8823 = vld [vmem:[%s240 + $0xa8] sm:$0xff]
        %v8824 = vld [vmem:[%s240 + $0xb0] sm:$0xff]
        %v8825 = vld [vmem:[%s240 + $0xb8] sm:$0xff]
        %v8826 = vld [vmem:[%s240 + $0xc0] sm:$0xff]
        %v8827 = vld [vmem:[%s240 + $0xc8] sm:$0xff]
        %v8828 = vld [vmem:[%s240 + $0xd0] sm:$0xff]
        %v8829 = vld [vmem:[%s240 + $0xd8] sm:$0xff]
        %v8830 = vld [vmem:[%s240 + $0xe0] sm:$0xff]
        %v8831 = vld [vmem:[%s240 + $0xe8] sm:$0xff]
        %v8832 = vld [vmem:[%s240 + $0xf0] sm:$0xff]
        %v8833 = vld [vmem:[%s240 + $0xf8] sm:$0xff]
        %v8834 = vld [vmem:[%s240 + $0x100] sm:$0xff]
        %v8835 = vld [vmem:[%s240 + $0x108] sm:$0xff]
        %v8836 = vld [vmem:[%s240 + $0x110] sm:$0xff]
        %v8837 = vld [vmem:[%s240 + $0x118] sm:$0xff]
        %v8838 = vadd.f32 %v8766, %v8802
        %v8839 = vadd.f32 %v8767, %v8803
        %v8840 = vadd.f32 %v8768, %v8804
        %v8841 = vadd.f32 %v8769, %v8805
        %v8842 = vadd.f32 %v8770, %v8806
        %v8843 = vadd.f32 %v8771, %v8807
        %v8844 = vadd.f32 %v8772, %v8808
        %v8845 = vadd.f32 %v8773, %v8809
        %v8846 = vadd.f32 %v8774, %v8810
        %v8847 = vadd.f32 %v8775, %v8811
        %v8848 = vadd.f32 %v8776, %v8812
        %v8849 = vadd.f32 %v8777, %v8813
        %v8850 = vadd.f32 %v8778, %v8814
        %v8851 = vadd.f32 %v8779, %v8815
        %v8852 = vadd.f32 %v8780, %v8816
        %v8853 = vadd.f32 %v8781, %v8817
        %v8854 = vadd.f32 %v8782, %v8818
        %v8855 = vadd.f32 %v8783, %v8819
        %v8856 = vadd.f32 %v8784, %v8820
        %v8857 = vadd.f32 %v8785, %v8821
        %v8858 = vadd.f32 %v8786, %v8822
        %v8859 = vadd.f32 %v8787, %v8823
        %v8860 = vadd.f32 %v8788, %v8824
        %v8861 = vadd.f32 %v8789, %v8825
        %v8862 = vadd.f32 %v8790, %v8826
        %v8863 = vadd.f32 %v8791, %v8827
        %v8864 = vadd.f32 %v8792, %v8828
        %v8865 = vadd.f32 %v8793, %v8829
        %v8866 = vadd.f32 %v8794, %v8830
        %v8867 = vadd.f32 %v8795, %v8831
        %v8868 = vadd.f32 %v8796, %v8832
        %v8869 = vadd.f32 %v8797, %v8833
        %v8870 = vadd.f32 %v8798, %v8834
        %v8871 = vadd.f32 %v8799, %v8835
        %v8872 = vadd.f32 %v8800, %v8836
        %v8873 = vadd.f32 %v8801, %v8837
        %v8874 = vmax.f32 %v8838, 0.0
        %v8875 = vmax.f32 %v8839, 0.0
        %v8876 = vmax.f32 %v8840, 0.0
        %v8877 = vmax.f32 %v8841, 0.0
        %v8878 = vmax.f32 %v8842, 0.0
        %v8879 = vmax.f32 %v8843, 0.0
        %v8880 = vmax.f32 %v8844, 0.0
        %v8881 = vmax.f32 %v8845, 0.0
        %v8882 = vmax.f32 %v8846, 0.0
        %v8883 = vmax.f32 %v8847, 0.0
        %v8884 = vmax.f32 %v8848, 0.0
        %v8885 = vmax.f32 %v8849, 0.0
        %v8886 = vmax.f32 %v8850, 0.0
        %v8887 = vmax.f32 %v8851, 0.0
        %v8888 = vmax.f32 %v8852, 0.0
        %v8889 = vmax.f32 %v8853, 0.0
        %v8890 = vmax.f32 %v8854, 0.0
        %v8891 = vmax.f32 %v8855, 0.0
        %v8892 = vmax.f32 %v8856, 0.0
        %v8893 = vmax.f32 %v8857, 0.0
        %v8894 = vmax.f32 %v8858, 0.0
        %v8895 = vmax.f32 %v8859, 0.0
        %v8896 = vmax.f32 %v8860, 0.0
        %v8897 = vmax.f32 %v8861, 0.0
        %v8898 = vmax.f32 %v8862, 0.0
        %v8899 = vmax.f32 %v8863, 0.0
        %v8900 = vmax.f32 %v8864, 0.0
        %v8901 = vmax.f32 %v8865, 0.0
        %v8902 = vmax.f32 %v8866, 0.0
        %v8903 = vmax.f32 %v8867, 0.0
        %v8904 = vmax.f32 %v8868, 0.0
        %v8905 = vmax.f32 %v8869, 0.0
        %v8906 = vmax.f32 %v8870, 0.0
        %v8907 = vmax.f32 %v8871, 0.0
        %v8908 = vmax.f32 %v8872, 0.0
        %v8909 = vmax.f32 %v8873, 0.0
        %8910 = vst [vmem:[%s277] sm:$0xff] %v8874
        %8911 = vst [vmem:[%s277 + $0x8] sm:$0xff] %v8875
        %8912 = vst [vmem:[%s277 + $0x10] sm:$0xff] %v8876
        %8913 = vst [vmem:[%s277 + $0x18] sm:$0xff] %v8877
        %8914 = vst [vmem:[%s277 + $0x20] sm:$0xff] %v8878
        %8915 = vst [vmem:[%s277 + $0x28] sm:$0xff] %v8879
        %8916 = vst [vmem:[%s277 + $0x30] sm:$0xff] %v8880
        %8917 = vst [vmem:[%s277 + $0x38] sm:$0xff] %v8881
        %8918 = vst [vmem:[%s277 + $0x40] sm:$0xff] %v8882
        %8919 = vst [vmem:[%s277 + $0x48] sm:$0xff] %v8883
        %8920 = vst [vmem:[%s277 + $0x50] sm:$0xff] %v8884
        %8921 = vst [vmem:[%s277 + $0x58] sm:$0xff] %v8885
        %8922 = vst [vmem:[%s277 + $0x60] sm:$0xff] %v8886
        %8923 = vst [vmem:[%s277 + $0x68] sm:$0xff] %v8887
        %8924 = vst [vmem:[%s277 + $0x70] sm:$0xff] %v8888
        %8925 = vst [vmem:[%s277 + $0x78] sm:$0xff] %v8889
        %8926 = vst [vmem:[%s277 + $0x80] sm:$0xff] %v8890
        %8927 = vst [vmem:[%s277 + $0x88] sm:$0xff] %v8891
        %8928 = vst [vmem:[%s277 + $0x90] sm:$0xff] %v8892
        %8929 = vst [vmem:[%s277 + $0x98] sm:$0xff] %v8893
        %8930 = vst [vmem:[%s277 + $0xa0] sm:$0xff] %v8894
        %8931 = vst [vmem:[%s277 + $0xa8] sm:$0xff] %v8895
        %8932 = vst [vmem:[%s277 + $0xb0] sm:$0xff] %v8896
        %8933 = vst [vmem:[%s277 + $0xb8] sm:$0xff] %v8897
        %8934 = vst [vmem:[%s277 + $0xc0] sm:$0xff] %v8898
        %8935 = vst [vmem:[%s277 + $0xc8] sm:$0xff] %v8899
        %8936 = vst [vmem:[%s277 + $0xd0] sm:$0xff] %v8900
        %8937 = vst [vmem:[%s277 + $0xd8] sm:$0xff] %v8901
        %8938 = vst [vmem:[%s277 + $0xe0] sm:$0xff] %v8902
        %8939 = vst [vmem:[%s277 + $0xe8] sm:$0xff] %v8903
        %8940 = vst [vmem:[%s277 + $0xf0] sm:$0xff] %v8904
        %8941 = vst [vmem:[%s277 + $0xf8] sm:$0xff] %v8905
        %8942 = vst [vmem:[%s277 + $0x100] sm:$0xff] %v8906
        %8943 = vst [vmem:[%s277 + $0x108] sm:$0xff] %v8907
        %8944 = vst [vmem:[%s277 + $0x110] sm:$0xff] %v8908
        %8945 = vst [vmem:[%s277 + $0x118] sm:$0xff] %v8909
        %s8946 = sand.u32 %s141, 1
        %s8947 = scalar_lea.sflag [#allocation5], %s8946
        %s8948 = sand.u32 %s141, 1
        %s8949 = smul.addr %s8948, 288
        %s8950 = scalar_lea.vmem [#allocation9], %s8949
        // Predicated region
        $region53: #{tpu_custom_call.1} parent=39 // pred_check
          %p8951 = pneg %p151
        $region54: #{tpu_custom_call.1} parent=39 // pred_check_branch
          %8953 = sbr.rel (%p8951) target = $region56
        $region55: #{tpu_custom_call.1} parent=39 // pred_region
          %8955 = vsyncadd %s8947, 0
          %s8956 = smul.addr %s23, 36
          %s8957 = smul.addr %s8956, 8
          %s8958 = scalar_lea.hbm %s5, %s8957
          %s8959 = sshll.u32 %s8950, 4
          %s8960 = int_to_ptr.vmem [resolvable:$true] %s8959
          %s8961 = sshll.u32 %s8958, 4
          %s8962 = int_to_ptr.hbm [resolvable:$true] %s8961
          %8967 = dma.vmem_to_hbm [thread:$0]  %s8960, 4608, %s8962, %s8947, 128, 128, 8
        $region56: #{tpu_custom_call.1} parent=39 // pred_fallthru
          _
      $region40: #{tpu_custom_call.1} parent=5 // pred_fallthru
        _
      %p8968 = scmp.le.s32.totalorder 2, %s18
      // Predicated region
      $region57: #{tpu_custom_call.1} parent=5 // pred_check
        %p8969 = pneg %p8968
      $region58: #{tpu_custom_call.1} parent=5 // pred_check_branch
        %8971 = sbr.rel (%p8969) target = $region60
      $region59: #{tpu_custom_call.1} parent=5 // pred_region
        %s8972 = ssub.s32 %s18, 2
        // Predicated region
        $region61: #{tpu_custom_call.1} parent=59 // pred_check
          %p8973 = pneg %p157
        $region62: #{tpu_custom_call.1} parent=59 // pred_check_branch
          %8975 = sbr.rel (%p8973) target = $region64
        $region63: #{tpu_custom_call.1} parent=59 // pred_region
          %s8976 = sand.u32 %s142, 1
          %s8977 = scalar_lea.sflag [#allocation5], %s8976
          %s8978 = sand.u32 %s142, 1
          %s8979 = smul.addr %s8978, 288
          %s8980 = scalar_lea.vmem [#allocation9], %s8979
          %8982 = dma.done %s8977, 4608
        $region64: #{tpu_custom_call.1} parent=59 // pred_fallthru
          _
      $region60: #{tpu_custom_call.1} parent=5 // pred_fallthru
        _
    $region6: #{tpu_custom_call.1} parent=1 // loop_footer
      %s22 = sadd.s32 1, %s18
    $region7: #{tpu_custom_call.1} parent=1 // loop_footer_branch
      %17 = sbr.rel target = $region3
    $region8: #{tpu_custom_call.1} parent=1 // loop_exit
      _
    %8983 = vsyncpa [#allocation4], 1
    %s8984 = scalar_lea.sflag [#allocation4], 1
    %8985 = vsyncpa %s8984, 1
    %8986 = vsyncpa [#allocation7], 1
    %8987 = vsyncpa [#allocation5], 1
    %s8988 = scalar_lea.sflag [#allocation5], 1
    %8989 = vsyncpa %s8988, 1

</llo_original>
